<compile_context>
chip_gen: v6e
topology: v6e:2x2x1
jax: 0.10.0
libtpu: 0.0.40
codegen_flags: <defaults>
</compile_context>

<pallas_src>
import jax
import jax.numpy as jnp
from jax import lax
from jax.experimental import pallas as pl
from jax.experimental.pallas import tpu as pltpu

# Halo geometry of the shared feature bank (max conv padding is 3 for conv4).
_TOP = 8     # >= 3, rounded to a sublane multiple so interior stores start aligned
_BOT = 3
_LEFT = 3
_RIGHT = 3


def _round_up(v, m):
    return (v + m - 1) // m * m


def _make_aod_kernel(H, W):
    f32 = jnp.float32
    H_TOT = H + _TOP + _BOT
    W_TOT = W + _LEFT + _RIGHT
    relu = lambda v: jnp.maximum(v, 0.0)

    def kernel(x_ref,
               w1_ref, b1_ref, w2_ref, b2_ref, w3_ref, b3_ref,
               w4_ref, b4_ref, w5_ref, b5_ref,
               out_ref, bank_ref):
        # ---- zero ONLY the halo rows / lanes (interior is overwritten per image).
        # Must run every grid step: with dimension_semantics=("parallel",) each
        # TensorCore has its own scratch, so do NOT guard with program_id == 0.
        bank_ref[:, 0:_TOP, :] = jnp.zeros((12, _TOP, W_TOT), f32)
        bank_ref[:, _TOP + H:H_TOT, :] = jnp.zeros((12, _BOT, W_TOT), f32)
        bank_ref[:, _TOP:_TOP + H, 0:_LEFT] = jnp.zeros((12, H, _LEFT), f32)
        bank_ref[:, _TOP:_TOP + H, _LEFT + W:W_TOT] = jnp.zeros((12, H, _RIGHT), f32)

        def stash(ch_base, planes):
            for co, pln in enumerate(planes):
                bank_ref[ch_base + co, _TOP:_TOP + H, _LEFT:_LEFT + W] = pln

        def conv(ch_start, cin, k, p, w_ref, b_ref):
            """k x k conv over `cin` contiguous bank channels -> 3 outputs.

            fori_loop over input channels keeps the trace small; only the k*k
            taps are unrolled.  The three (H, W) accumulators are loop-carried
            values (register-resident for small tiles), not VMEM RMW per tap.
            Weights are flat (cout, cin, k, k) row-major scalars in SMEM.
            """
            r0 = _TOP - p
            c0 = _LEFT - p
            kk = k * k

            def body(ci, accs):
                a0, a1, a2 = accs
                plane = bank_ref[ch_start + ci]            # (H_TOT, W_TOT), one load / channel
                wbase = ci * kk
                for kh in range(k):
                    band = plane[r0 + kh:r0 + kh + H, :]   # sublane shift only
                    for kw in range(k):
                        patch = band[:, c0 + kw:c0 + kw + W]
                        t = wbase + kh * k + kw
                        a0 = a0 + w_ref[t] * patch
                        a1 = a1 + w_ref[cin * kk + t] * patch
                        a2 = a2 + w_ref[2 * cin * kk + t] * patch
                return a0, a1, a2

            init = tuple(jnp.full((H, W), b_ref[co], f32) for co in range(3))
            a0, a1, a2 = lax.fori_loop(0, cin, body, init)
            return [relu(a0), relu(a1), relu(a2)]

        # Input planes are loaded once and reused by conv1 and the epilogue.
        x_planes = [x_ref[0, ci] for ci in range(3)]

        # ---- conv1: 1x1, 3 -> 3 (reads the input block directly) ----
        x1 = []
        for co in range(3):
            acc = jnp.full((H, W), b1_ref[co], f32)
            for ci in range(3):
                acc = acc + w1_ref[co * 3 + ci] * x_planes[ci]
            x1.append(relu(acc))
        stash(0, x1)                                   # bank ch 0-2  = x1

        # ---- conv2: 3x3 pad 1, in = x1 (bank 0-2) ----
        x2 = conv(0, 3, 3, 1, w2_ref, b2_ref)
        stash(3, x2)                                   # bank ch 3-5  = x2

        # ---- conv3: 5x5 pad 2, in = cat(x1,x2) (bank 0-5) ----
        x3 = conv(0, 6, 5, 2, w3_ref, b3_ref)
        stash(6, x3)                                   # bank ch 6-8  = x3

        # ---- conv4: 7x7 pad 3, in = cat(x2,x3) (bank 3-8) ----
        x4 = conv(3, 6, 7, 3, w4_ref, b4_ref)
        stash(9, x4)                                   # bank ch 9-11 = x4

        # ---- conv5: 3x3 pad 1, in = cat(x1,x2,x3,x4) (bank 0-11) ----
        kmaps = conv(0, 12, 3, 1, w5_ref, b5_ref)

        # ---- output = relu(k*x - k + 1) = relu(k*(x-1) + 1) ----
        for co in range(3):
            out_ref[0, co] = relu(kmaps[co] * (x_planes[co] - 1.0) + 1.0)

    return kernel


def aodnet_pallas(x, params):
    N, C, H, W = x.shape
    assert C == 3, "AODnet expects 3 input channels"
    f32 = jnp.float32

    H_TOT = H + _TOP + _BOT
    W_TOT = W + _LEFT + _RIGHT

    img_spec = pl.BlockSpec((1, 3, H, W), lambda n: (n, 0, 0, 0))
    smem_spec = pl.BlockSpec(memory_space=pltpu.MemorySpace.SMEM)

    flat_params = []
    for i in range(1, 6):
        flat_params.append(params[f"w{i}"].reshape(-1).astype(f32))
        flat_params.append(params[f"b{i}"].astype(f32))

    # Generation-aware scoped-VMEM budget: feature bank + double-buffered
    # in/out blocks + headroom, clamped below this chip's physical capacity.
    bank_bytes = 12 * _round_up(H_TOT, 8) * _round_up(W_TOT, 128) * 4
    io_bytes = 2 * 2 * 3 * _round_up(H, 8) * _round_up(W, 128) * 4
    need = bank_bytes + io_bytes + (8 << 20)
    try:
        cap = int(pltpu.get_tpu_info().vmem_capacity_bytes)
    except Exception:
        cap = 64 << 20          # conservative fallback (v7x-sized)
    vmem_limit = int(min(max(need, 32 << 20), cap - (16 << 20)))

    kernel = _make_aod_kernel(H, W)

    return pl.pallas_call(
        kernel,
        out_shape=jax.ShapeDtypeStruct((N, 3, H, W), f32),
        grid=(N,),
        in_specs=[img_spec] + [smem_spec] * 10,
        out_specs=pl.BlockSpec((1, 3, H, W), lambda n: (n, 0, 0, 0)),
        scratch_shapes=[pltpu.VMEM((12, H_TOT, W_TOT), f32)],
        compiler_params=pltpu.CompilerParams(
            dimension_semantics=("parallel",),
            vmem_limit_bytes=vmem_limit),
    )(x, *flat_params)


# ---------------- pure-JAX reference (for self-check only) -------------------
def aodnet_ref(x, p):
    def conv(xx, w, b, pad):
        y = jax.lax.conv_general_dilated(
            xx, w, (1, 1), [(pad, pad), (pad, pad)],
            dimension_numbers=("NCHW", "OIHW", "NCHW"),
            precision=jax.lax.Precision.HIGHEST)
        return y + b[None, :, None, None]

    relu = jax.nn.relu
    x1 = relu(conv(x, p["w1"], p["b1"], 0))
    x2 = relu(conv(x1, p["w2"], p["b2"], 1))
    cat1 = jnp.concatenate([x1, x2], axis=1)
    x3 = relu(conv(cat1, p["w3"], p["b3"], 2))
    cat2 = jnp.concatenate([x2, x3], axis=1)
    x4 = relu(conv(cat2, p["w4"], p["b4"], 3))
    cat3 = jnp.concatenate([x1, x2, x3, x4], axis=1)
    k = relu(conv(cat3, p["w5"], p["b5"], 1))
    return relu(k * x - k + 1.0)


def make_params():
    # Deterministic synthetic init (PyTorch-default-like uniform bounds).
    base = jax.random.PRNGKey(0)
    specs = {1: (3, 3, 1), 2: (3, 3, 3), 3: (3, 6, 5), 4: (3, 6, 7), 5: (3, 12, 3)}
    params = {}
    for i, (co, ci, k) in specs.items():
        kw, kb = jax.random.split(jax.random.fold_in(base, i))
        bound = 1.0 / (ci * k * k) ** 0.5
        params[f"w{i}"] = jax.random.uniform(kw, (co, ci, k, k), jnp.float32,
                                             -bound, bound)
        params[f"b{i}"] = jax.random.uniform(kb, (co,), jnp.float32,
                                             -bound, bound)
    return params


if __name__ == "__main__":
    params = make_params()
    x = jax.random.uniform(jax.random.PRNGKey(0), (2, 3, 16, 16), jnp.float32)

    out = jax.block_until_ready(aodnet_pallas(x, params))

    ref = aodnet_ref(x, params)
    err = float(jnp.max(jnp.abs(out - ref)))
    if not (out.shape == x.shape and err < 1e-3):
        raise RuntimeError(f"mismatch: shape={out.shape} max_abs_err={err}")
    print("KERNEL_OK")
</pallas_src>

<mosaic_0001>
module attributes {stable_mosaic.version = 11 : i64} {
  func.func @kernel(%arg0: i32, %arg1: memref<1x3x16x16xf32, #tpu.memory_space<vmem>>, %arg2: memref<9xf32, #tpu.memory_space<smem>>, %arg3: memref<3xf32, #tpu.memory_space<smem>>, %arg4: memref<81xf32, #tpu.memory_space<smem>>, %arg5: memref<3xf32, #tpu.memory_space<smem>>, %arg6: memref<450xf32, #tpu.memory_space<smem>>, %arg7: memref<3xf32, #tpu.memory_space<smem>>, %arg8: memref<882xf32, #tpu.memory_space<smem>>, %arg9: memref<3xf32, #tpu.memory_space<smem>>, %arg10: memref<324xf32, #tpu.memory_space<smem>>, %arg11: memref<3xf32, #tpu.memory_space<smem>>, %arg12: memref<1x3x16x16xf32, #tpu.memory_space<vmem>>, %arg13: memref<12x27x22xf32, #tpu.memory_space<vmem>>) attributes {dimension_semantics = [#tpu.dimension_semantics<parallel>], iteration_bounds = array<i64: 2>, scalar_prefetch = 0 : i64, scratch_operands = 1 : i64, tpu.core_type = #tpu.core_type<tc>, window_params = [{transform_indices = @transform_0, window_bounds = array<i64: 1, 3, 16, 16>}, {transform_indices = @transform_1, window_bounds = array<i64: 9>}, {transform_indices = @transform_2, window_bounds = array<i64: 3>}, {transform_indices = @transform_3, window_bounds = array<i64: 81>}, {transform_indices = @transform_4, window_bounds = array<i64: 3>}, {transform_indices = @transform_5, window_bounds = array<i64: 450>}, {transform_indices = @transform_6, window_bounds = array<i64: 3>}, {transform_indices = @transform_7, window_bounds = array<i64: 882>}, {transform_indices = @transform_8, window_bounds = array<i64: 3>}, {transform_indices = @transform_9, window_bounds = array<i64: 324>}, {transform_indices = @transform_10, window_bounds = array<i64: 3>}, {transform_indices = @transform_11, window_bounds = array<i64: 1, 3, 16, 16>}]} {
    %cst = arith.constant 0.000000e+00 : f32
    %0 = vector.broadcast %cst : f32 to vector<12x8x22xf32>
    %c0 = arith.constant 0 : index
    %c0_0 = arith.constant 0 : index
    %c0_1 = arith.constant 0 : index
    %1 = vector.load %arg13[%c0, %c0_0, %c0_1] : memref<12x27x22xf32, #tpu.memory_space<vmem>>, vector<12x8x22xf32>
    tpu.vector_store %arg13[%c0, %c0_0, %c0_1], %0 {strides = array<i32>} : memref<12x27x22xf32, #tpu.memory_space<vmem>>, vector<12x8x22xf32>,
    %cst_2 = arith.constant 0.000000e+00 : f32
    %2 = vector.broadcast %cst_2 : f32 to vector<12x3x22xf32>
    %c0_3 = arith.constant 0 : index
    %c24 = arith.constant 24 : index
    %c0_4 = arith.constant 0 : index
    %3 = vector.load %arg13[%c0_3, %c24, %c0_4] : memref<12x27x22xf32, #tpu.memory_space<vmem>>, vector<12x3x22xf32>
    tpu.vector_store %arg13[%c0_3, %c24, %c0_4], %2 {strides = array<i32>} : memref<12x27x22xf32, #tpu.memory_space<vmem>>, vector<12x3x22xf32>,
    %cst_5 = arith.constant 0.000000e+00 : f32
    %4 = vector.broadcast %cst_5 : f32 to vector<12x16x3xf32>
    %c0_6 = arith.constant 0 : index
    %c8 = arith.constant 8 : index
    %c0_7 = arith.constant 0 : index
    %5 = vector.load %arg13[%c0_6, %c8, %c0_7] : memref<12x27x22xf32, #tpu.memory_space<vmem>>, vector<12x16x3xf32>
    tpu.vector_store %arg13[%c0_6, %c8, %c0_7], %4 {strides = array<i32>} : memref<12x27x22xf32, #tpu.memory_space<vmem>>, vector<12x16x3xf32>,
    %cst_8 = arith.constant 0.000000e+00 : f32
    %6 = vector.broadcast %cst_8 : f32 to vector<12x16x3xf32>
    %c0_9 = arith.constant 0 : index
    %c8_10 = arith.constant 8 : index
    %c19 = arith.constant 19 : index
    %7 = vector.load %arg13[%c0_9, %c8_10, %c19] : memref<12x27x22xf32, #tpu.memory_space<vmem>>, vector<12x16x3xf32>
    tpu.vector_store %arg13[%c0_9, %c8_10, %c19], %6 {strides = array<i32>} : memref<12x27x22xf32, #tpu.memory_space<vmem>>, vector<12x16x3xf32>,
    %c0_11 = arith.constant 0 : index
    %c0_12 = arith.constant 0 : index
    %c0_13 = arith.constant 0 : index
    %c0_14 = arith.constant 0 : index
    %8 = vector.load %arg1[%c0_11, %c0_12, %c0_13, %c0_14] : memref<1x3x16x16xf32, #tpu.memory_space<vmem>>, vector<1x1x16x16xf32>
    %9 = vector.shape_cast %8 : vector<1x1x16x16xf32> to vector<16x16xf32>
    %c0_15 = arith.constant 0 : index
    %c1 = arith.constant 1 : index
    %c0_16 = arith.constant 0 : index
    %c0_17 = arith.constant 0 : index
    %10 = vector.load %arg1[%c0_15, %c1, %c0_16, %c0_17] : memref<1x3x16x16xf32, #tpu.memory_space<vmem>>, vector<1x1x16x16xf32>
    %11 = vector.shape_cast %10 : vector<1x1x16x16xf32> to vector<16x16xf32>
    %c0_18 = arith.constant 0 : index
    %c2 = arith.constant 2 : index
    %c0_19 = arith.constant 0 : index
    %c0_20 = arith.constant 0 : index
    %12 = vector.load %arg1[%c0_18, %c2, %c0_19, %c0_20] : memref<1x3x16x16xf32, #tpu.memory_space<vmem>>, vector<1x1x16x16xf32>
    %13 = vector.shape_cast %12 : vector<1x1x16x16xf32> to vector<16x16xf32>
    %c0_21 = arith.constant 0 : index
    %14 = memref.load %arg3[%c0_21] : memref<3xf32, #tpu.memory_space<smem>>
    %15 = vector.broadcast %14 : f32 to vector<16x16xf32>
    %c0_22 = arith.constant 0 : index
    %16 = memref.load %arg2[%c0_22] : memref<9xf32, #tpu.memory_space<smem>>
    %17 = vector.broadcast %16 : f32 to vector<16x16xf32>
    %18 = arith.mulf %17, %9 : vector<16x16xf32>
    %19 = arith.addf %15, %18 : vector<16x16xf32>
    %c1_23 = arith.constant 1 : index
    %20 = memref.load %arg2[%c1_23] : memref<9xf32, #tpu.memory_space<smem>>
    %21 = vector.broadcast %20 : f32 to vector<16x16xf32>
    %22 = arith.mulf %21, %11 : vector<16x16xf32>
    %23 = arith.addf %19, %22 : vector<16x16xf32>
    %c2_24 = arith.constant 2 : index
    %24 = memref.load %arg2[%c2_24] : memref<9xf32, #tpu.memory_space<smem>>
    %25 = vector.broadcast %24 : f32 to vector<16x16xf32>
    %26 = arith.mulf %25, %13 : vector<16x16xf32>
    %27 = arith.addf %23, %26 : vector<16x16xf32>
    %cst_25 = arith.constant 0.000000e+00 : f32
    %28 = vector.broadcast %cst_25 : f32 to vector<16x16xf32>
    %29 = arith.maximumf %27, %28 : vector<16x16xf32>
    %c1_26 = arith.constant 1 : index
    %30 = memref.load %arg3[%c1_26] : memref<3xf32, #tpu.memory_space<smem>>
    %31 = vector.broadcast %30 : f32 to vector<16x16xf32>
    %c3 = arith.constant 3 : index
    %32 = memref.load %arg2[%c3] : memref<9xf32, #tpu.memory_space<smem>>
    %33 = vector.broadcast %32 : f32 to vector<16x16xf32>
    %34 = arith.mulf %33, %9 : vector<16x16xf32>
    %35 = arith.addf %31, %34 : vector<16x16xf32>
    %c4 = arith.constant 4 : index
    %36 = memref.load %arg2[%c4] : memref<9xf32, #tpu.memory_space<smem>>
    %37 = vector.broadcast %36 : f32 to vector<16x16xf32>
    %38 = arith.mulf %37, %11 : vector<16x16xf32>
    %39 = arith.addf %35, %38 : vector<16x16xf32>
    %c5 = arith.constant 5 : index
    %40 = memref.load %arg2[%c5] : memref<9xf32, #tpu.memory_space<smem>>
    %41 = vector.broadcast %40 : f32 to vector<16x16xf32>
    %42 = arith.mulf %41, %13 : vector<16x16xf32>
    %43 = arith.addf %39, %42 : vector<16x16xf32>
    %cst_27 = arith.constant 0.000000e+00 : f32
    %44 = vector.broadcast %cst_27 : f32 to vector<16x16xf32>
    %45 = arith.maximumf %43, %44 : vector<16x16xf32>
    %c2_28 = arith.constant 2 : index
    %46 = memref.load %arg3[%c2_28] : memref<3xf32, #tpu.memory_space<smem>>
    %47 = vector.broadcast %46 : f32 to vector<16x16xf32>
    %c6 = arith.constant 6 : index
    %48 = memref.load %arg2[%c6] : memref<9xf32, #tpu.memory_space<smem>>
    %49 = vector.broadcast %48 : f32 to vector<16x16xf32>
    %50 = arith.mulf %49, %9 : vector<16x16xf32>
    %51 = arith.addf %47, %50 : vector<16x16xf32>
    %c7 = arith.constant 7 : index
    %52 = memref.load %arg2[%c7] : memref<9xf32, #tpu.memory_space<smem>>
    %53 = vector.broadcast %52 : f32 to vector<16x16xf32>
    %54 = arith.mulf %53, %11 : vector<16x16xf32>
    %55 = arith.addf %51, %54 : vector<16x16xf32>
    %c8_29 = arith.constant 8 : index
    %56 = memref.load %arg2[%c8_29] : memref<9xf32, #tpu.memory_space<smem>>
    %57 = vector.broadcast %56 : f32 to vector<16x16xf32>
    %58 = arith.mulf %57, %13 : vector<16x16xf32>
    %59 = arith.addf %55, %58 : vector<16x16xf32>
    %cst_30 = arith.constant 0.000000e+00 : f32
    %60 = vector.broadcast %cst_30 : f32 to vector<16x16xf32>
    %61 = arith.maximumf %59, %60 : vector<16x16xf32>
    %c0_31 = arith.constant 0 : index
    %c8_32 = arith.constant 8 : index
    %c3_33 = arith.constant 3 : index
    %62 = vector.load %arg13[%c0_31, %c8_32, %c3_33] : memref<12x27x22xf32, #tpu.memory_space<vmem>>, vector<1x16x16xf32>
    %63 = vector.shape_cast %62 : vector<1x16x16xf32> to vector<16x16xf32>
    %64 = vector.shape_cast %29 : vector<16x16xf32> to vector<1x16x16xf32>
    tpu.vector_store %arg13[%c0_31, %c8_32, %c3_33], %64 {strides = array<i32>} : memref<12x27x22xf32, #tpu.memory_space<vmem>>, vector<1x16x16xf32>,
    %c1_34 = arith.constant 1 : index
    %c8_35 = arith.constant 8 : index
    %c3_36 = arith.constant 3 : index
    %65 = vector.load %arg13[%c1_34, %c8_35, %c3_36] : memref<12x27x22xf32, #tpu.memory_space<vmem>>, vector<1x16x16xf32>
    %66 = vector.shape_cast %65 : vector<1x16x16xf32> to vector<16x16xf32>
    %67 = vector.shape_cast %45 : vector<16x16xf32> to vector<1x16x16xf32>
    tpu.vector_store %arg13[%c1_34, %c8_35, %c3_36], %67 {strides = array<i32>} : memref<12x27x22xf32, #tpu.memory_space<vmem>>, vector<1x16x16xf32>,
    %c2_37 = arith.constant 2 : index
    %c8_38 = arith.constant 8 : index
    %c3_39 = arith.constant 3 : index
    %68 = vector.load %arg13[%c2_37, %c8_38, %c3_39] : memref<12x27x22xf32, #tpu.memory_space<vmem>>, vector<1x16x16xf32>
    %69 = vector.shape_cast %68 : vector<1x16x16xf32> to vector<16x16xf32>
    %70 = vector.shape_cast %61 : vector<16x16xf32> to vector<1x16x16xf32>
    tpu.vector_store %arg13[%c2_37, %c8_38, %c3_39], %70 {strides = array<i32>} : memref<12x27x22xf32, #tpu.memory_space<vmem>>, vector<1x16x16xf32>,
    %c0_40 = arith.constant 0 : index
    %71 = memref.load %arg5[%c0_40] : memref<3xf32, #tpu.memory_space<smem>>
    %72 = vector.broadcast %71 : f32 to vector<16x16xf32>
    %c1_41 = arith.constant 1 : index
    %73 = memref.load %arg5[%c1_41] : memref<3xf32, #tpu.memory_space<smem>>
    %74 = vector.broadcast %73 : f32 to vector<16x16xf32>
    %c2_42 = arith.constant 2 : index
    %75 = memref.load %arg5[%c2_42] : memref<3xf32, #tpu.memory_space<smem>>
    %76 = vector.broadcast %75 : f32 to vector<16x16xf32>
    %c0_i32 = arith.constant 0 : i32
    %c3_i32 = arith.constant 3 : i32
    %77 = arith.addi %c0_i32, %c3_i32 : i32
    %c1_i32 = arith.constant 1 : i32
    %78:3 = scf.for %arg14 = %c0_i32 to %77 step %c1_i32 iter_args(%arg15 = %72, %arg16 = %74, %arg17 = %76) -> (vector<16x16xf32>, vector<16x16xf32>, vector<16x16xf32>)  : i32 {
      %c0_i32_120 = arith.constant 0 : i32
      %184 = arith.addi %c0_i32_120, %arg14 : i32
      %185 = arith.index_cast %184 : i32 to index
      %c0_121 = arith.constant 0 : index
      %c0_122 = arith.constant 0 : index
      %186 = vector.load %arg13[%185, %c0_121, %c0_122] : memref<12x27x22xf32, #tpu.memory_space<vmem>>, vector<1x27x22xf32>
      %187 = vector.shape_cast %186 : vector<1x27x22xf32> to vector<27x22xf32>
      %c9_i32 = arith.constant 9 : i32
      %188 = arith.muli %arg14, %c9_i32 : i32
      %189 = vector.extract_strided_slice %187 {offsets = [7, 0], sizes = [16, 22], strides = [1, 1]} : vector<27x22xf32> to vector<16x22xf32>
      %190 = vector.extract_strided_slice %189 {offsets = [0, 2], sizes = [16, 16], strides = [1, 1]} : vector<16x22xf32> to vector<16x16xf32>
      %c0_i32_123 = arith.constant 0 : i32
      %191 = arith.addi %188, %c0_i32_123 : i32
      %c0_i32_124 = arith.constant 0 : i32
      %192 = arith.addi %191, %c0_i32_124 : i32
      %193 = arith.index_cast %192 : i32 to index
      %194 = memref.load %arg4[%193] : memref<81xf32, #tpu.memory_space<smem>>
      %195 = vector.broadcast %194 : f32 to vector<16x16xf32>
      %196 = arith.mulf %195, %190 : vector<16x16xf32>
      %197 = arith.addf %arg15, %196 : vector<16x16xf32>
      %c27_i32 = arith.constant 27 : i32
      %198 = arith.addi %c27_i32, %192 : i32
      %199 = arith.index_cast %198 : i32 to index
      %200 = memref.load %arg4[%199] : memref<81xf32, #tpu.memory_space<smem>>
      %201 = vector.broadcast %200 : f32 to vector<16x16xf32>
      %202 = arith.mulf %201, %190 : vector<16x16xf32>
      %203 = arith.addf %arg16, %202 : vector<16x16xf32>
      %c54_i32 = arith.constant 54 : i32
      %204 = arith.addi %c54_i32, %192 : i32
      %205 = arith.index_cast %204 : i32 to index
      %206 = memref.load %arg4[%205] : memref<81xf32, #tpu.memory_space<smem>>
      %207 = vector.broadcast %206 : f32 to vector<16x16xf32>
      %208 = arith.mulf %207, %190 : vector<16x16xf32>
      %209 = arith.addf %arg17, %208 : vector<16x16xf32>
      %210 = vector.extract_strided_slice %189 {offsets = [0, 3], sizes = [16, 16], strides = [1, 1]} : vector<16x22xf32> to vector<16x16xf32>
      %c0_i32_125 = arith.constant 0 : i32
      %211 = arith.addi %188, %c0_i32_125 : i32
      %c1_i32_126 = arith.constant 1 : i32
      %212 = arith.addi %211, %c1_i32_126 : i32
      %213 = arith.index_cast %212 : i32 to index
      %214 = memref.load %arg4[%213] : memref<81xf32, #tpu.memory_space<smem>>
      %215 = vector.broadcast %214 : f32 to vector<16x16xf32>
      %216 = arith.mulf %215, %210 : vector<16x16xf32>
      %217 = arith.addf %197, %216 : vector<16x16xf32>
      %c27_i32_127 = arith.constant 27 : i32
      %218 = arith.addi %c27_i32_127, %212 : i32
      %219 = arith.index_cast %218 : i32 to index
      %220 = memref.load %arg4[%219] : memref<81xf32, #tpu.memory_space<smem>>
      %221 = vector.broadcast %220 : f32 to vector<16x16xf32>
      %222 = arith.mulf %221, %210 : vector<16x16xf32>
      %223 = arith.addf %203, %222 : vector<16x16xf32>
      %c54_i32_128 = arith.constant 54 : i32
      %224 = arith.addi %c54_i32_128, %212 : i32
      %225 = arith.index_cast %224 : i32 to index
      %226 = memref.load %arg4[%225] : memref<81xf32, #tpu.memory_space<smem>>
      %227 = vector.broadcast %226 : f32 to vector<16x16xf32>
      %228 = arith.mulf %227, %210 : vector<16x16xf32>
      %229 = arith.addf %209, %228 : vector<16x16xf32>
      %230 = vector.extract_strided_slice %189 {offsets = [0, 4], sizes = [16, 16], strides = [1, 1]} : vector<16x22xf32> to vector<16x16xf32>
      %c0_i32_129 = arith.constant 0 : i32
      %231 = arith.addi %188, %c0_i32_129 : i32
      %c2_i32 = arith.constant 2 : i32
      %232 = arith.addi %231, %c2_i32 : i32
      %233 = arith.index_cast %232 : i32 to index
      %234 = memref.load %arg4[%233] : memref<81xf32, #tpu.memory_space<smem>>
      %235 = vector.broadcast %234 : f32 to vector<16x16xf32>
      %236 = arith.mulf %235, %230 : vector<16x16xf32>
      %237 = arith.addf %217, %236 : vector<16x16xf32>
      %c27_i32_130 = arith.constant 27 : i32
      %238 = arith.addi %c27_i32_130, %232 : i32
      %239 = arith.index_cast %238 : i32 to index
      %240 = memref.load %arg4[%239] : memref<81xf32, #tpu.memory_space<smem>>
      %241 = vector.broadcast %240 : f32 to vector<16x16xf32>
      %242 = arith.mulf %241, %230 : vector<16x16xf32>
      %243 = arith.addf %223, %242 : vector<16x16xf32>
      %c54_i32_131 = arith.constant 54 : i32
      %244 = arith.addi %c54_i32_131, %232 : i32
      %245 = arith.index_cast %244 : i32 to index
      %246 = memref.load %arg4[%245] : memref<81xf32, #tpu.memory_space<smem>>
      %247 = vector.broadcast %246 : f32 to vector<16x16xf32>
      %248 = arith.mulf %247, %230 : vector<16x16xf32>
      %249 = arith.addf %229, %248 : vector<16x16xf32>
      %250 = vector.extract_strided_slice %187 {offsets = [8, 0], sizes = [16, 22], strides = [1, 1]} : vector<27x22xf32> to vector<16x22xf32>
      %251 = vector.extract_strided_slice %250 {offsets = [0, 2], sizes = [16, 16], strides = [1, 1]} : vector<16x22xf32> to vector<16x16xf32>
      %c3_i32_132 = arith.constant 3 : i32
      %252 = arith.addi %188, %c3_i32_132 : i32
      %c0_i32_133 = arith.constant 0 : i32
      %253 = arith.addi %252, %c0_i32_133 : i32
      %254 = arith.index_cast %253 : i32 to index
      %255 = memref.load %arg4[%254] : memref<81xf32, #tpu.memory_space<smem>>
      %256 = vector.broadcast %255 : f32 to vector<16x16xf32>
      %257 = arith.mulf %256, %251 : vector<16x16xf32>
      %258 = arith.addf %237, %257 : vector<16x16xf32>
      %c27_i32_134 = arith.constant 27 : i32
      %259 = arith.addi %c27_i32_134, %253 : i32
      %260 = arith.index_cast %259 : i32 to index
      %261 = memref.load %arg4[%260] : memref<81xf32, #tpu.memory_space<smem>>
      %262 = vector.broadcast %261 : f32 to vector<16x16xf32>
      %263 = arith.mulf %262, %251 : vector<16x16xf32>
      %264 = arith.addf %243, %263 : vector<16x16xf32>
      %c54_i32_135 = arith.constant 54 : i32
      %265 = arith.addi %c54_i32_135, %253 : i32
      %266 = arith.index_cast %265 : i32 to index
      %267 = memref.load %arg4[%266] : memref<81xf32, #tpu.memory_space<smem>>
      %268 = vector.broadcast %267 : f32 to vector<16x16xf32>
      %269 = arith.mulf %268, %251 : vector<16x16xf32>
      %270 = arith.addf %249, %269 : vector<16x16xf32>
      %271 = vector.extract_strided_slice %250 {offsets = [0, 3], sizes = [16, 16], strides = [1, 1]} : vector<16x22xf32> to vector<16x16xf32>
      %c3_i32_136 = arith.constant 3 : i32
      %272 = arith.addi %188, %c3_i32_136 : i32
      %c1_i32_137 = arith.constant 1 : i32
      %273 = arith.addi %272, %c1_i32_137 : i32
      %274 = arith.index_cast %273 : i32 to index
      %275 = memref.load %arg4[%274] : memref<81xf32, #tpu.memory_space<smem>>
      %276 = vector.broadcast %275 : f32 to vector<16x16xf32>
      %277 = arith.mulf %276, %271 : vector<16x16xf32>
      %278 = arith.addf %258, %277 : vector<16x16xf32>
      %c27_i32_138 = arith.constant 27 : i32
      %279 = arith.addi %c27_i32_138, %273 : i32
      %280 = arith.index_cast %279 : i32 to index
      %281 = memref.load %arg4[%280] : memref<81xf32, #tpu.memory_space<smem>>
      %282 = vector.broadcast %281 : f32 to vector<16x16xf32>
      %283 = arith.mulf %282, %271 : vector<16x16xf32>
      %284 = arith.addf %264, %283 : vector<16x16xf32>
      %c54_i32_139 = arith.constant 54 : i32
      %285 = arith.addi %c54_i32_139, %273 : i32
      %286 = arith.index_cast %285 : i32 to index
      %287 = memref.load %arg4[%286] : memref<81xf32, #tpu.memory_space<smem>>
      %288 = vector.broadcast %287 : f32 to vector<16x16xf32>
      %289 = arith.mulf %288, %271 : vector<16x16xf32>
      %290 = arith.addf %270, %289 : vector<16x16xf32>
      %291 = vector.extract_strided_slice %250 {offsets = [0, 4], sizes = [16, 16], strides = [1, 1]} : vector<16x22xf32> to vector<16x16xf32>
      %c3_i32_140 = arith.constant 3 : i32
      %292 = arith.addi %188, %c3_i32_140 : i32
      %c2_i32_141 = arith.constant 2 : i32
      %293 = arith.addi %292, %c2_i32_141 : i32
      %294 = arith.index_cast %293 : i32 to index
      %295 = memref.load %arg4[%294] : memref<81xf32, #tpu.memory_space<smem>>
      %296 = vector.broadcast %295 : f32 to vector<16x16xf32>
      %297 = arith.mulf %296, %291 : vector<16x16xf32>
      %298 = arith.addf %278, %297 : vector<16x16xf32>
      %c27_i32_142 = arith.constant 27 : i32
      %299 = arith.addi %c27_i32_142, %293 : i32
      %300 = arith.index_cast %299 : i32 to index
      %301 = memref.load %arg4[%300] : memref<81xf32, #tpu.memory_space<smem>>
      %302 = vector.broadcast %301 : f32 to vector<16x16xf32>
      %303 = arith.mulf %302, %291 : vector<16x16xf32>
      %304 = arith.addf %284, %303 : vector<16x16xf32>
      %c54_i32_143 = arith.constant 54 : i32
      %305 = arith.addi %c54_i32_143, %293 : i32
      %306 = arith.index_cast %305 : i32 to index
      %307 = memref.load %arg4[%306] : memref<81xf32, #tpu.memory_space<smem>>
      %308 = vector.broadcast %307 : f32 to vector<16x16xf32>
      %309 = arith.mulf %308, %291 : vector<16x16xf32>
      %310 = arith.addf %290, %309 : vector<16x16xf32>
      %311 = vector.extract_strided_slice %187 {offsets = [9, 0], sizes = [16, 22], strides = [1, 1]} : vector<27x22xf32> to vector<16x22xf32>
      %312 = vector.extract_strided_slice %311 {offsets = [0, 2], sizes = [16, 16], strides = [1, 1]} : vector<16x22xf32> to vector<16x16xf32>
      %c6_i32_144 = arith.constant 6 : i32
      %313 = arith.addi %188, %c6_i32_144 : i32
      %c0_i32_145 = arith.constant 0 : i32
      %314 = arith.addi %313, %c0_i32_145 : i32
      %315 = arith.index_cast %314 : i32 to index
      %316 = memref.load %arg4[%315] : memref<81xf32, #tpu.memory_space<smem>>
      %317 = vector.broadcast %316 : f32 to vector<16x16xf32>
      %318 = arith.mulf %317, %312 : vector<16x16xf32>
      %319 = arith.addf %298, %318 : vector<16x16xf32>
      %c27_i32_146 = arith.constant 27 : i32
      %320 = arith.addi %c27_i32_146, %314 : i32
      %321 = arith.index_cast %320 : i32 to index
      %322 = memref.load %arg4[%321] : memref<81xf32, #tpu.memory_space<smem>>
      %323 = vector.broadcast %322 : f32 to vector<16x16xf32>
      %324 = arith.mulf %323, %312 : vector<16x16xf32>
      %325 = arith.addf %304, %324 : vector<16x16xf32>
      %c54_i32_147 = arith.constant 54 : i32
      %326 = arith.addi %c54_i32_147, %314 : i32
      %327 = arith.index_cast %326 : i32 to index
      %328 = memref.load %arg4[%327] : memref<81xf32, #tpu.memory_space<smem>>
      %329 = vector.broadcast %328 : f32 to vector<16x16xf32>
      %330 = arith.mulf %329, %312 : vector<16x16xf32>
      %331 = arith.addf %310, %330 : vector<16x16xf32>
      %332 = vector.extract_strided_slice %311 {offsets = [0, 3], sizes = [16, 16], strides = [1, 1]} : vector<16x22xf32> to vector<16x16xf32>
      %c6_i32_148 = arith.constant 6 : i32
      %333 = arith.addi %188, %c6_i32_148 : i32
      %c1_i32_149 = arith.constant 1 : i32
      %334 = arith.addi %333, %c1_i32_149 : i32
      %335 = arith.index_cast %334 : i32 to index
      %336 = memref.load %arg4[%335] : memref<81xf32, #tpu.memory_space<smem>>
      %337 = vector.broadcast %336 : f32 to vector<16x16xf32>
      %338 = arith.mulf %337, %332 : vector<16x16xf32>
      %339 = arith.addf %319, %338 : vector<16x16xf32>
      %c27_i32_150 = arith.constant 27 : i32
      %340 = arith.addi %c27_i32_150, %334 : i32
      %341 = arith.index_cast %340 : i32 to index
      %342 = memref.load %arg4[%341] : memref<81xf32, #tpu.memory_space<smem>>
      %343 = vector.broadcast %342 : f32 to vector<16x16xf32>
      %344 = arith.mulf %343, %332 : vector<16x16xf32>
      %345 = arith.addf %325, %344 : vector<16x16xf32>
      %c54_i32_151 = arith.constant 54 : i32
      %346 = arith.addi %c54_i32_151, %334 : i32
      %347 = arith.index_cast %346 : i32 to index
      %348 = memref.load %arg4[%347] : memref<81xf32, #tpu.memory_space<smem>>
      %349 = vector.broadcast %348 : f32 to vector<16x16xf32>
      %350 = arith.mulf %349, %332 : vector<16x16xf32>
      %351 = arith.addf %331, %350 : vector<16x16xf32>
      %352 = vector.extract_strided_slice %311 {offsets = [0, 4], sizes = [16, 16], strides = [1, 1]} : vector<16x22xf32> to vector<16x16xf32>
      %c6_i32_152 = arith.constant 6 : i32
      %353 = arith.addi %188, %c6_i32_152 : i32
      %c2_i32_153 = arith.constant 2 : i32
      %354 = arith.addi %353, %c2_i32_153 : i32
      %355 = arith.index_cast %354 : i32 to index
      %356 = memref.load %arg4[%355] : memref<81xf32, #tpu.memory_space<smem>>
      %357 = vector.broadcast %356 : f32 to vector<16x16xf32>
      %358 = arith.mulf %357, %352 : vector<16x16xf32>
      %359 = arith.addf %339, %358 : vector<16x16xf32>
      %c27_i32_154 = arith.constant 27 : i32
      %360 = arith.addi %c27_i32_154, %354 : i32
      %361 = arith.index_cast %360 : i32 to index
      %362 = memref.load %arg4[%361] : memref<81xf32, #tpu.memory_space<smem>>
      %363 = vector.broadcast %362 : f32 to vector<16x16xf32>
      %364 = arith.mulf %363, %352 : vector<16x16xf32>
      %365 = arith.addf %345, %364 : vector<16x16xf32>
      %c54_i32_155 = arith.constant 54 : i32
      %366 = arith.addi %c54_i32_155, %354 : i32
      %367 = arith.index_cast %366 : i32 to index
      %368 = memref.load %arg4[%367] : memref<81xf32, #tpu.memory_space<smem>>
      %369 = vector.broadcast %368 : f32 to vector<16x16xf32>
      %370 = arith.mulf %369, %352 : vector<16x16xf32>
      %371 = arith.addf %351, %370 : vector<16x16xf32>
      scf.yield %359, %365, %371 : vector<16x16xf32>, vector<16x16xf32>, vector<16x16xf32>
    }
    %c3_i32_43 = arith.constant 3 : i32
    %cst_44 = arith.constant 0.000000e+00 : f32
    %79 = vector.broadcast %cst_44 : f32 to vector<16x16xf32>
    %80 = arith.maximumf %78#0, %79 : vector<16x16xf32>
    %cst_45 = arith.constant 0.000000e+00 : f32
    %81 = vector.broadcast %cst_45 : f32 to vector<16x16xf32>
    %82 = arith.maximumf %78#1, %81 : vector<16x16xf32>
    %cst_46 = arith.constant 0.000000e+00 : f32
    %83 = vector.broadcast %cst_46 : f32 to vector<16x16xf32>
    %84 = arith.maximumf %78#2, %83 : vector<16x16xf32>
    %c3_47 = arith.constant 3 : index
    %c8_48 = arith.constant 8 : index
    %c3_49 = arith.constant 3 : index
    %85 = vector.load %arg13[%c3_47, %c8_48, %c3_49] : memref<12x27x22xf32, #tpu.memory_space<vmem>>, vector<1x16x16xf32>
    %86 = vector.shape_cast %85 : vector<1x16x16xf32> to vector<16x16xf32>
    %87 = vector.shape_cast %80 : vector<16x16xf32> to vector<1x16x16xf32>
    tpu.vector_store %arg13[%c3_47, %c8_48, %c3_49], %87 {strides = array<i32>} : memref<12x27x22xf32, #tpu.memory_space<vmem>>, vector<1x16x16xf32>,
    %c4_50 = arith.constant 4 : index
    %c8_51 = arith.constant 8 : index
    %c3_52 = arith.constant 3 : index
    %88 = vector.load %arg13[%c4_50, %c8_51, %c3_52] : memref<12x27x22xf32, #tpu.memory_space<vmem>>, vector<1x16x16xf32>
    %89 = vector.shape_cast %88 : vector<1x16x16xf32> to vector<16x16xf32>
    %90 = vector.shape_cast %82 : vector<16x16xf32> to vector<1x16x16xf32>
    tpu.vector_store %arg13[%c4_50, %c8_51, %c3_52], %90 {strides = array<i32>} : memref<12x27x22xf32, #tpu.memory_space<vmem>>, vector<1x16x16xf32>,
    %c5_53 = arith.constant 5 : index
    %c8_54 = arith.constant 8 : index
    %c3_55 = arith.constant 3 : index
    %91 = vector.load %arg13[%c5_53, %c8_54, %c3_55] : memref<12x27x22xf32, #tpu.memory_space<vmem>>, vector<1x16x16xf32>
    %92 = vector.shape_cast %91 : vector<1x16x16xf32> to vector<16x16xf32>
    %93 = vector.shape_cast %84 : vector<16x16xf32> to vector<1x16x16xf32>
    tpu.vector_store %arg13[%c5_53, %c8_54, %c3_55], %93 {strides = array<i32>} : memref<12x27x22xf32, #tpu.memory_space<vmem>>, vector<1x16x16xf32>,
    %c0_56 = arith.constant 0 : index
    %94 = memref.load %arg7[%c0_56] : memref<3xf32, #tpu.memory_space<smem>>
    %95 = vector.broadcast %94 : f32 to vector<16x16xf32>
    %c1_57 = arith.constant 1 : index
    %96 = memref.load %arg7[%c1_57] : memref<3xf32, #tpu.memory_space<smem>>
    %97 = vector.broadcast %96 : f32 to vector<16x16xf32>
    %c2_58 = arith.constant 2 : index
    %98 = memref.load %arg7[%c2_58] : memref<3xf32, #tpu.memory_space<smem>>
    %99 = vector.broadcast %98 : f32 to vector<16x16xf32>
    %c0_i32_59 = arith.constant 0 : i32
    %c6_i32 = arith.constant 6 : i32
    %100 = arith.addi %c0_i32_59, %c6_i32 : i32
    %c1_i32_60 = arith.constant 1 : i32
    %101:3 = scf.for %arg14 = %c0_i32_59 to %100 step %c1_i32_60 iter_args(%arg15 = %95, %arg16 = %97, %arg17 = %99) -> (vector<16x16xf32>, vector<16x16xf32>, vector<16x16xf32>)  : i32 {
      %c0_i32_120 = arith.constant 0 : i32
      %184 = arith.addi %c0_i32_120, %arg14 : i32
      %185 = arith.index_cast %184 : i32 to index
      %c0_121 = arith.constant 0 : index
      %c0_122 = arith.constant 0 : index
      %186 = vector.load %arg13[%185, %c0_121, %c0_122] : memref<12x27x22xf32, #tpu.memory_space<vmem>>, vector<1x27x22xf32>
      %187 = vector.shape_cast %186 : vector<1x27x22xf32> to vector<27x22xf32>
      %c25_i32 = arith.constant 25 : i32
      %188 = arith.muli %arg14, %c25_i32 : i32
      %189 = vector.extract_strided_slice %187 {offsets = [6, 0], sizes = [16, 22], strides = [1, 1]} : vector<27x22xf32> to vector<16x22xf32>
      %190 = vector.extract_strided_slice %189 {offsets = [0, 1], sizes = [16, 16], strides = [1, 1]} : vector<16x22xf32> to vector<16x16xf32>
      %c0_i32_123 = arith.constant 0 : i32
      %191 = arith.addi %188, %c0_i32_123 : i32
      %c0_i32_124 = arith.constant 0 : i32
      %192 = arith.addi %191, %c0_i32_124 : i32
      %193 = arith.index_cast %192 : i32 to index
      %194 = memref.load %arg6[%193] : memref<450xf32, #tpu.memory_space<smem>>
      %195 = vector.broadcast %194 : f32 to vector<16x16xf32>
      %196 = arith.mulf %195, %190 : vector<16x16xf32>
      %197 = arith.addf %arg15, %196 : vector<16x16xf32>
      %c150_i32 = arith.constant 150 : i32
      %198 = arith.addi %c150_i32, %192 : i32
      %199 = arith.index_cast %198 : i32 to index
      %200 = memref.load %arg6[%199] : memref<450xf32, #tpu.memory_space<smem>>
      %201 = vector.broadcast %200 : f32 to vector<16x16xf32>
      %202 = arith.mulf %201, %190 : vector<16x16xf32>
      %203 = arith.addf %arg16, %202 : vector<16x16xf32>
      %c300_i32 = arith.constant 300 : i32
      %204 = arith.addi %c300_i32, %192 : i32
      %205 = arith.index_cast %204 : i32 to index
      %206 = memref.load %arg6[%205] : memref<450xf32, #tpu.memory_space<smem>>
      %207 = vector.broadcast %206 : f32 to vector<16x16xf32>
      %208 = arith.mulf %207, %190 : vector<16x16xf32>
      %209 = arith.addf %arg17, %208 : vector<16x16xf32>
      %210 = vector.extract_strided_slice %189 {offsets = [0, 2], sizes = [16, 16], strides = [1, 1]} : vector<16x22xf32> to vector<16x16xf32>
      %c0_i32_125 = arith.constant 0 : i32
      %211 = arith.addi %188, %c0_i32_125 : i32
      %c1_i32_126 = arith.constant 1 : i32
      %212 = arith.addi %211, %c1_i32_126 : i32
      %213 = arith.index_cast %212 : i32 to index
      %214 = memref.load %arg6[%213] : memref<450xf32, #tpu.memory_space<smem>>
      %215 = vector.broadcast %214 : f32 to vector<16x16xf32>
      %216 = arith.mulf %215, %210 : vector<16x16xf32>
      %217 = arith.addf %197, %216 : vector<16x16xf32>
      %c150_i32_127 = arith.constant 150 : i32
      %218 = arith.addi %c150_i32_127, %212 : i32
      %219 = arith.index_cast %218 : i32 to index
      %220 = memref.load %arg6[%219] : memref<450xf32, #tpu.memory_space<smem>>
      %221 = vector.broadcast %220 : f32 to vector<16x16xf32>
      %222 = arith.mulf %221, %210 : vector<16x16xf32>
      %223 = arith.addf %203, %222 : vector<16x16xf32>
      %c300_i32_128 = arith.constant 300 : i32
      %224 = arith.addi %c300_i32_128, %212 : i32
      %225 = arith.index_cast %224 : i32 to index
      %226 = memref.load %arg6[%225] : memref<450xf32, #tpu.memory_space<smem>>
      %227 = vector.broadcast %226 : f32 to vector<16x16xf32>
      %228 = arith.mulf %227, %210 : vector<16x16xf32>
      %229 = arith.addf %209, %228 : vector<16x16xf32>
      %230 = vector.extract_strided_slice %189 {offsets = [0, 3], sizes = [16, 16], strides = [1, 1]} : vector<16x22xf32> to vector<16x16xf32>
      %c0_i32_129 = arith.constant 0 : i32
      %231 = arith.addi %188, %c0_i32_129 : i32
      %c2_i32 = arith.constant 2 : i32
      %232 = arith.addi %231, %c2_i32 : i32
      %233 = arith.index_cast %232 : i32 to index
      %234 = memref.load %arg6[%233] : memref<450xf32, #tpu.memory_space<smem>>
      %235 = vector.broadcast %234 : f32 to vector<16x16xf32>
      %236 = arith.mulf %235, %230 : vector<16x16xf32>
      %237 = arith.addf %217, %236 : vector<16x16xf32>
      %c150_i32_130 = arith.constant 150 : i32
      %238 = arith.addi %c150_i32_130, %232 : i32
      %239 = arith.index_cast %238 : i32 to index
      %240 = memref.load %arg6[%239] : memref<450xf32, #tpu.memory_space<smem>>
      %241 = vector.broadcast %240 : f32 to vector<16x16xf32>
      %242 = arith.mulf %241, %230 : vector<16x16xf32>
      %243 = arith.addf %223, %242 : vector<16x16xf32>
      %c300_i32_131 = arith.constant 300 : i32
      %244 = arith.addi %c300_i32_131, %232 : i32
      %245 = arith.index_cast %244 : i32 to index
      %246 = memref.load %arg6[%245] : memref<450xf32, #tpu.memory_space<smem>>
      %247 = vector.broadcast %246 : f32 to vector<16x16xf32>
      %248 = arith.mulf %247, %230 : vector<16x16xf32>
      %249 = arith.addf %229, %248 : vector<16x16xf32>
      %250 = vector.extract_strided_slice %189 {offsets = [0, 4], sizes = [16, 16], strides = [1, 1]} : vector<16x22xf32> to vector<16x16xf32>
      %c0_i32_132 = arith.constant 0 : i32
      %251 = arith.addi %188, %c0_i32_132 : i32
      %c3_i32_133 = arith.constant 3 : i32
      %252 = arith.addi %251, %c3_i32_133 : i32
      %253 = arith.index_cast %252 : i32 to index
      %254 = memref.load %arg6[%253] : memref<450xf32, #tpu.memory_space<smem>>
      %255 = vector.broadcast %254 : f32 to vector<16x16xf32>
      %256 = arith.mulf %255, %250 : vector<16x16xf32>
      %257 = arith.addf %237, %256 : vector<16x16xf32>
      %c150_i32_134 = arith.constant 150 : i32
      %258 = arith.addi %c150_i32_134, %252 : i32
      %259 = arith.index_cast %258 : i32 to index
      %260 = memref.load %arg6[%259] : memref<450xf32, #tpu.memory_space<smem>>
      %261 = vector.broadcast %260 : f32 to vector<16x16xf32>
      %262 = arith.mulf %261, %250 : vector<16x16xf32>
      %263 = arith.addf %243, %262 : vector<16x16xf32>
      %c300_i32_135 = arith.constant 300 : i32
      %264 = arith.addi %c300_i32_135, %252 : i32
      %265 = arith.index_cast %264 : i32 to index
      %266 = memref.load %arg6[%265] : memref<450xf32, #tpu.memory_space<smem>>
      %267 = vector.broadcast %266 : f32 to vector<16x16xf32>
      %268 = arith.mulf %267, %250 : vector<16x16xf32>
      %269 = arith.addf %249, %268 : vector<16x16xf32>
      %270 = vector.extract_strided_slice %189 {offsets = [0, 5], sizes = [16, 16], strides = [1, 1]} : vector<16x22xf32> to vector<16x16xf32>
      %c0_i32_136 = arith.constant 0 : i32
      %271 = arith.addi %188, %c0_i32_136 : i32
      %c4_i32 = arith.constant 4 : i32
      %272 = arith.addi %271, %c4_i32 : i32
      %273 = arith.index_cast %272 : i32 to index
      %274 = memref.load %arg6[%273] : memref<450xf32, #tpu.memory_space<smem>>
      %275 = vector.broadcast %274 : f32 to vector<16x16xf32>
      %276 = arith.mulf %275, %270 : vector<16x16xf32>
      %277 = arith.addf %257, %276 : vector<16x16xf32>
      %c150_i32_137 = arith.constant 150 : i32
      %278 = arith.addi %c150_i32_137, %272 : i32
      %279 = arith.index_cast %278 : i32 to index
      %280 = memref.load %arg6[%279] : memref<450xf32, #tpu.memory_space<smem>>
      %281 = vector.broadcast %280 : f32 to vector<16x16xf32>
      %282 = arith.mulf %281, %270 : vector<16x16xf32>
      %283 = arith.addf %263, %282 : vector<16x16xf32>
      %c300_i32_138 = arith.constant 300 : i32
      %284 = arith.addi %c300_i32_138, %272 : i32
      %285 = arith.index_cast %284 : i32 to index
      %286 = memref.load %arg6[%285] : memref<450xf32, #tpu.memory_space<smem>>
      %287 = vector.broadcast %286 : f32 to vector<16x16xf32>
      %288 = arith.mulf %287, %270 : vector<16x16xf32>
      %289 = arith.addf %269, %288 : vector<16x16xf32>
      %290 = vector.extract_strided_slice %187 {offsets = [7, 0], sizes = [16, 22], strides = [1, 1]} : vector<27x22xf32> to vector<16x22xf32>
      %291 = vector.extract_strided_slice %290 {offsets = [0, 1], sizes = [16, 16], strides = [1, 1]} : vector<16x22xf32> to vector<16x16xf32>
      %c5_i32 = arith.constant 5 : i32
      %292 = arith.addi %188, %c5_i32 : i32
      %c0_i32_139 = arith.constant 0 : i32
      %293 = arith.addi %292, %c0_i32_139 : i32
      %294 = arith.index_cast %293 : i32 to index
      %295 = memref.load %arg6[%294] : memref<450xf32, #tpu.memory_space<smem>>
      %296 = vector.broadcast %295 : f32 to vector<16x16xf32>
      %297 = arith.mulf %296, %291 : vector<16x16xf32>
      %298 = arith.addf %277, %297 : vector<16x16xf32>
      %c150_i32_140 = arith.constant 150 : i32
      %299 = arith.addi %c150_i32_140, %293 : i32
      %300 = arith.index_cast %299 : i32 to index
      %301 = memref.load %arg6[%300] : memref<450xf32, #tpu.memory_space<smem>>
      %302 = vector.broadcast %301 : f32 to vector<16x16xf32>
      %303 = arith.mulf %302, %291 : vector<16x16xf32>
      %304 = arith.addf %283, %303 : vector<16x16xf32>
      %c300_i32_141 = arith.constant 300 : i32
      %305 = arith.addi %c300_i32_141, %293 : i32
      %306 = arith.index_cast %305 : i32 to index
      %307 = memref.load %arg6[%306] : memref<450xf32, #tpu.memory_space<smem>>
      %308 = vector.broadcast %307 : f32 to vector<16x16xf32>
      %309 = arith.mulf %308, %291 : vector<16x16xf32>
      %310 = arith.addf %289, %309 : vector<16x16xf32>
      %311 = vector.extract_strided_slice %290 {offsets = [0, 2], sizes = [16, 16], strides = [1, 1]} : vector<16x22xf32> to vector<16x16xf32>
      %c5_i32_142 = arith.constant 5 : i32
      %312 = arith.addi %188, %c5_i32_142 : i32
      %c1_i32_143 = arith.constant 1 : i32
      %313 = arith.addi %312, %c1_i32_143 : i32
      %314 = arith.index_cast %313 : i32 to index
      %315 = memref.load %arg6[%314] : memref<450xf32, #tpu.memory_space<smem>>
      %316 = vector.broadcast %315 : f32 to vector<16x16xf32>
      %317 = arith.mulf %316, %311 : vector<16x16xf32>
      %318 = arith.addf %298, %317 : vector<16x16xf32>
      %c150_i32_144 = arith.constant 150 : i32
      %319 = arith.addi %c150_i32_144, %313 : i32
      %320 = arith.index_cast %319 : i32 to index
      %321 = memref.load %arg6[%320] : memref<450xf32, #tpu.memory_space<smem>>
      %322 = vector.broadcast %321 : f32 to vector<16x16xf32>
      %323 = arith.mulf %322, %311 : vector<16x16xf32>
      %324 = arith.addf %304, %323 : vector<16x16xf32>
      %c300_i32_145 = arith.constant 300 : i32
      %325 = arith.addi %c300_i32_145, %313 : i32
      %326 = arith.index_cast %325 : i32 to index
      %327 = memref.load %arg6[%326] : memref<450xf32, #tpu.memory_space<smem>>
      %328 = vector.broadcast %327 : f32 to vector<16x16xf32>
      %329 = arith.mulf %328, %311 : vector<16x16xf32>
      %330 = arith.addf %310, %329 : vector<16x16xf32>
      %331 = vector.extract_strided_slice %290 {offsets = [0, 3], sizes = [16, 16], strides = [1, 1]} : vector<16x22xf32> to vector<16x16xf32>
      %c5_i32_146 = arith.constant 5 : i32
      %332 = arith.addi %188, %c5_i32_146 : i32
      %c2_i32_147 = arith.constant 2 : i32
      %333 = arith.addi %332, %c2_i32_147 : i32
      %334 = arith.index_cast %333 : i32 to index
      %335 = memref.load %arg6[%334] : memref<450xf32, #tpu.memory_space<smem>>
      %336 = vector.broadcast %335 : f32 to vector<16x16xf32>
      %337 = arith.mulf %336, %331 : vector<16x16xf32>
      %338 = arith.addf %318, %337 : vector<16x16xf32>
      %c150_i32_148 = arith.constant 150 : i32
      %339 = arith.addi %c150_i32_148, %333 : i32
      %340 = arith.index_cast %339 : i32 to index
      %341 = memref.load %arg6[%340] : memref<450xf32, #tpu.memory_space<smem>>
      %342 = vector.broadcast %341 : f32 to vector<16x16xf32>
      %343 = arith.mulf %342, %331 : vector<16x16xf32>
      %344 = arith.addf %324, %343 : vector<16x16xf32>
      %c300_i32_149 = arith.constant 300 : i32
      %345 = arith.addi %c300_i32_149, %333 : i32
      %346 = arith.index_cast %345 : i32 to index
      %347 = memref.load %arg6[%346] : memref<450xf32, #tpu.memory_space<smem>>
      %348 = vector.broadcast %347 : f32 to vector<16x16xf32>
      %349 = arith.mulf %348, %331 : vector<16x16xf32>
      %350 = arith.addf %330, %349 : vector<16x16xf32>
      %351 = vector.extract_strided_slice %290 {offsets = [0, 4], sizes = [16, 16], strides = [1, 1]} : vector<16x22xf32> to vector<16x16xf32>
      %c5_i32_150 = arith.constant 5 : i32
      %352 = arith.addi %188, %c5_i32_150 : i32
      %c3_i32_151 = arith.constant 3 : i32
      %353 = arith.addi %352, %c3_i32_151 : i32
      %354 = arith.index_cast %353 : i32 to index
      %355 = memref.load %arg6[%354] : memref<450xf32, #tpu.memory_space<smem>>
      %356 = vector.broadcast %355 : f32 to vector<16x16xf32>
      %357 = arith.mulf %356, %351 : vector<16x16xf32>
      %358 = arith.addf %338, %357 : vector<16x16xf32>
      %c150_i32_152 = arith.constant 150 : i32
      %359 = arith.addi %c150_i32_152, %353 : i32
      %360 = arith.index_cast %359 : i32 to index
      %361 = memref.load %arg6[%360] : memref<450xf32, #tpu.memory_space<smem>>
      %362 = vector.broadcast %361 : f32 to vector<16x16xf32>
      %363 = arith.mulf %362, %351 : vector<16x16xf32>
      %364 = arith.addf %344, %363 : vector<16x16xf32>
      %c300_i32_153 = arith.constant 300 : i32
      %365 = arith.addi %c300_i32_153, %353 : i32
      %366 = arith.index_cast %365 : i32 to index
      %367 = memref.load %arg6[%366] : memref<450xf32, #tpu.memory_space<smem>>
      %368 = vector.broadcast %367 : f32 to vector<16x16xf32>
      %369 = arith.mulf %368, %351 : vector<16x16xf32>
      %370 = arith.addf %350, %369 : vector<16x16xf32>
      %371 = vector.extract_strided_slice %290 {offsets = [0, 5], sizes = [16, 16], strides = [1, 1]} : vector<16x22xf32> to vector<16x16xf32>
      %c5_i32_154 = arith.constant 5 : i32
      %372 = arith.addi %188, %c5_i32_154 : i32
      %c4_i32_155 = arith.constant 4 : i32
      %373 = arith.addi %372, %c4_i32_155 : i32
      %374 = arith.index_cast %373 : i32 to index
      %375 = memref.load %arg6[%374] : memref<450xf32, #tpu.memory_space<smem>>
      %376 = vector.broadcast %375 : f32 to vector<16x16xf32>
      %377 = arith.mulf %376, %371 : vector<16x16xf32>
      %378 = arith.addf %358, %377 : vector<16x16xf32>
      %c150_i32_156 = arith.constant 150 : i32
      %379 = arith.addi %c150_i32_156, %373 : i32
      %380 = arith.index_cast %379 : i32 to index
      %381 = memref.load %arg6[%380] : memref<450xf32, #tpu.memory_space<smem>>
      %382 = vector.broadcast %381 : f32 to vector<16x16xf32>
      %383 = arith.mulf %382, %371 : vector<16x16xf32>
      %384 = arith.addf %364, %383 : vector<16x16xf32>
      %c300_i32_157 = arith.constant 300 : i32
      %385 = arith.addi %c300_i32_157, %373 : i32
      %386 = arith.index_cast %385 : i32 to index
      %387 = memref.load %arg6[%386] : memref<450xf32, #tpu.memory_space<smem>>
      %388 = vector.broadcast %387 : f32 to vector<16x16xf32>
      %389 = arith.mulf %388, %371 : vector<16x16xf32>
      %390 = arith.addf %370, %389 : vector<16x16xf32>
      %391 = vector.extract_strided_slice %187 {offsets = [8, 0], sizes = [16, 22], strides = [1, 1]} : vector<27x22xf32> to vector<16x22xf32>
      %392 = vector.extract_strided_slice %391 {offsets = [0, 1], sizes = [16, 16], strides = [1, 1]} : vector<16x22xf32> to vector<16x16xf32>
      %c10_i32 = arith.constant 10 : i32
      %393 = arith.addi %188, %c10_i32 : i32
      %c0_i32_158 = arith.constant 0 : i32
      %394 = arith.addi %393, %c0_i32_158 : i32
      %395 = arith.index_cast %394 : i32 to index
      %396 = memref.load %arg6[%395] : memref<450xf32, #tpu.memory_space<smem>>
      %397 = vector.broadcast %396 : f32 to vector<16x16xf32>
      %398 = arith.mulf %397, %392 : vector<16x16xf32>
      %399 = arith.addf %378, %398 : vector<16x16xf32>
      %c150_i32_159 = arith.constant 150 : i32
      %400 = arith.addi %c150_i32_159, %394 : i32
      %401 = arith.index_cast %400 : i32 to index
      %402 = memref.load %arg6[%401] : memref<450xf32, #tpu.memory_space<smem>>
      %403 = vector.broadcast %402 : f32 to vector<16x16xf32>
      %404 = arith.mulf %403, %392 : vector<16x16xf32>
      %405 = arith.addf %384, %404 : vector<16x16xf32>
      %c300_i32_160 = arith.constant 300 : i32
      %406 = arith.addi %c300_i32_160, %394 : i32
      %407 = arith.index_cast %406 : i32 to index
      %408 = memref.load %arg6[%407] : memref<450xf32, #tpu.memory_space<smem>>
      %409 = vector.broadcast %408 : f32 to vector<16x16xf32>
      %410 = arith.mulf %409, %392 : vector<16x16xf32>
      %411 = arith.addf %390, %410 : vector<16x16xf32>
      %412 = vector.extract_strided_slice %391 {offsets = [0, 2], sizes = [16, 16], strides = [1, 1]} : vector<16x22xf32> to vector<16x16xf32>
      %c10_i32_161 = arith.constant 10 : i32
      %413 = arith.addi %188, %c10_i32_161 : i32
      %c1_i32_162 = arith.constant 1 : i32
      %414 = arith.addi %413, %c1_i32_162 : i32
      %415 = arith.index_cast %414 : i32 to index
      %416 = memref.load %arg6[%415] : memref<450xf32, #tpu.memory_space<smem>>
      %417 = vector.broadcast %416 : f32 to vector<16x16xf32>
      %418 = arith.mulf %417, %412 : vector<16x16xf32>
      %419 = arith.addf %399, %418 : vector<16x16xf32>
      %c150_i32_163 = arith.constant 150 : i32
      %420 = arith.addi %c150_i32_163, %414 : i32
      %421 = arith.index_cast %420 : i32 to index
      %422 = memref.load %arg6[%421] : memref<450xf32, #tpu.memory_space<smem>>
      %423 = vector.broadcast %422 : f32 to vector<16x16xf32>
      %424 = arith.mulf %423, %412 : vector<16x16xf32>
      %425 = arith.addf %405, %424 : vector<16x16xf32>
      %c300_i32_164 = arith.constant 300 : i32
      %426 = arith.addi %c300_i32_164, %414 : i32
      %427 = arith.index_cast %426 : i32 to index
      %428 = memref.load %arg6[%427] : memref<450xf32, #tpu.memory_space<smem>>
      %429 = vector.broadcast %428 : f32 to vector<16x16xf32>
      %430 = arith.mulf %429, %412 : vector<16x16xf32>
      %431 = arith.addf %411, %430 : vector<16x16xf32>
      %432 = vector.extract_strided_slice %391 {offsets = [0, 3], sizes = [16, 16], strides = [1, 1]} : vector<16x22xf32> to vector<16x16xf32>
      %c10_i32_165 = arith.constant 10 : i32
      %433 = arith.addi %188, %c10_i32_165 : i32
      %c2_i32_166 = arith.constant 2 : i32
      %434 = arith.addi %433, %c2_i32_166 : i32
      %435 = arith.index_cast %434 : i32 to index
      %436 = memref.load %arg6[%435] : memref<450xf32, #tpu.memory_space<smem>>
      %437 = vector.broadcast %436 : f32 to vector<16x16xf32>
      %438 = arith.mulf %437, %432 : vector<16x16xf32>
      %439 = arith.addf %419, %438 : vector<16x16xf32>
      %c150_i32_167 = arith.constant 150 : i32
      %440 = arith.addi %c150_i32_167, %434 : i32
      %441 = arith.index_cast %440 : i32 to index
      %442 = memref.load %arg6[%441] : memref<450xf32, #tpu.memory_space<smem>>
      %443 = vector.broadcast %442 : f32 to vector<16x16xf32>
      %444 = arith.mulf %443, %432 : vector<16x16xf32>
      %445 = arith.addf %425, %444 : vector<16x16xf32>
      %c300_i32_168 = arith.constant 300 : i32
      %446 = arith.addi %c300_i32_168, %434 : i32
      %447 = arith.index_cast %446 : i32 to index
      %448 = memref.load %arg6[%447] : memref<450xf32, #tpu.memory_space<smem>>
      %449 = vector.broadcast %448 : f32 to vector<16x16xf32>
      %450 = arith.mulf %449, %432 : vector<16x16xf32>
      %451 = arith.addf %431, %450 : vector<16x16xf32>
      %452 = vector.extract_strided_slice %391 {offsets = [0, 4], sizes = [16, 16], strides = [1, 1]} : vector<16x22xf32> to vector<16x16xf32>
      %c10_i32_169 = arith.constant 10 : i32
      %453 = arith.addi %188, %c10_i32_169 : i32
      %c3_i32_170 = arith.constant 3 : i32
      %454 = arith.addi %453, %c3_i32_170 : i32
      %455 = arith.index_cast %454 : i32 to index
      %456 = memref.load %arg6[%455] : memref<450xf32, #tpu.memory_space<smem>>
      %457 = vector.broadcast %456 : f32 to vector<16x16xf32>
      %458 = arith.mulf %457, %452 : vector<16x16xf32>
      %459 = arith.addf %439, %458 : vector<16x16xf32>
      %c150_i32_171 = arith.constant 150 : i32
      %460 = arith.addi %c150_i32_171, %454 : i32
      %461 = arith.index_cast %460 : i32 to index
      %462 = memref.load %arg6[%461] : memref<450xf32, #tpu.memory_space<smem>>
      %463 = vector.broadcast %462 : f32 to vector<16x16xf32>
      %464 = arith.mulf %463, %452 : vector<16x16xf32>
      %465 = arith.addf %445, %464 : vector<16x16xf32>
      %c300_i32_172 = arith.constant 300 : i32
      %466 = arith.addi %c300_i32_172, %454 : i32
      %467 = arith.index_cast %466 : i32 to index
      %468 = memref.load %arg6[%467] : memref<450xf32, #tpu.memory_space<smem>>
      %469 = vector.broadcast %468 : f32 to vector<16x16xf32>
      %470 = arith.mulf %469, %452 : vector<16x16xf32>
      %471 = arith.addf %451, %470 : vector<16x16xf32>
      %472 = vector.extract_strided_slice %391 {offsets = [0, 5], sizes = [16, 16], strides = [1, 1]} : vector<16x22xf32> to vector<16x16xf32>
      %c10_i32_173 = arith.constant 10 : i32
      %473 = arith.addi %188, %c10_i32_173 : i32
      %c4_i32_174 = arith.constant 4 : i32
      %474 = arith.addi %473, %c4_i32_174 : i32
      %475 = arith.index_cast %474 : i32 to index
      %476 = memref.load %arg6[%475] : memref<450xf32, #tpu.memory_space<smem>>
      %477 = vector.broadcast %476 : f32 to vector<16x16xf32>
      %478 = arith.mulf %477, %472 : vector<16x16xf32>
      %479 = arith.addf %459, %478 : vector<16x16xf32>
      %c150_i32_175 = arith.constant 150 : i32
      %480 = arith.addi %c150_i32_175, %474 : i32
      %481 = arith.index_cast %480 : i32 to index
      %482 = memref.load %arg6[%481] : memref<450xf32, #tpu.memory_space<smem>>
      %483 = vector.broadcast %482 : f32 to vector<16x16xf32>
      %484 = arith.mulf %483, %472 : vector<16x16xf32>
      %485 = arith.addf %465, %484 : vector<16x16xf32>
      %c300_i32_176 = arith.constant 300 : i32
      %486 = arith.addi %c300_i32_176, %474 : i32
      %487 = arith.index_cast %486 : i32 to index
      %488 = memref.load %arg6[%487] : memref<450xf32, #tpu.memory_space<smem>>
      %489 = vector.broadcast %488 : f32 to vector<16x16xf32>
      %490 = arith.mulf %489, %472 : vector<16x16xf32>
      %491 = arith.addf %471, %490 : vector<16x16xf32>
      %492 = vector.extract_strided_slice %187 {offsets = [9, 0], sizes = [16, 22], strides = [1, 1]} : vector<27x22xf32> to vector<16x22xf32>
      %493 = vector.extract_strided_slice %492 {offsets = [0, 1], sizes = [16, 16], strides = [1, 1]} : vector<16x22xf32> to vector<16x16xf32>
      %c15_i32 = arith.constant 15 : i32
      %494 = arith.addi %188, %c15_i32 : i32
      %c0_i32_177 = arith.constant 0 : i32
      %495 = arith.addi %494, %c0_i32_177 : i32
      %496 = arith.index_cast %495 : i32 to index
      %497 = memref.load %arg6[%496] : memref<450xf32, #tpu.memory_space<smem>>
      %498 = vector.broadcast %497 : f32 to vector<16x16xf32>
      %499 = arith.mulf %498, %493 : vector<16x16xf32>
      %500 = arith.addf %479, %499 : vector<16x16xf32>
      %c150_i32_178 = arith.constant 150 : i32
      %501 = arith.addi %c150_i32_178, %495 : i32
      %502 = arith.index_cast %501 : i32 to index
      %503 = memref.load %arg6[%502] : memref<450xf32, #tpu.memory_space<smem>>
      %504 = vector.broadcast %503 : f32 to vector<16x16xf32>
      %505 = arith.mulf %504, %493 : vector<16x16xf32>
      %506 = arith.addf %485, %505 : vector<16x16xf32>
      %c300_i32_179 = arith.constant 300 : i32
      %507 = arith.addi %c300_i32_179, %495 : i32
      %508 = arith.index_cast %507 : i32 to index
      %509 = memref.load %arg6[%508] : memref<450xf32, #tpu.memory_space<smem>>
      %510 = vector.broadcast %509 : f32 to vector<16x16xf32>
      %511 = arith.mulf %510, %493 : vector<16x16xf32>
      %512 = arith.addf %491, %511 : vector<16x16xf32>
      %513 = vector.extract_strided_slice %492 {offsets = [0, 2], sizes = [16, 16], strides = [1, 1]} : vector<16x22xf32> to vector<16x16xf32>
      %c15_i32_180 = arith.constant 15 : i32
      %514 = arith.addi %188, %c15_i32_180 : i32
      %c1_i32_181 = arith.constant 1 : i32
      %515 = arith.addi %514, %c1_i32_181 : i32
      %516 = arith.index_cast %515 : i32 to index
      %517 = memref.load %arg6[%516] : memref<450xf32, #tpu.memory_space<smem>>
      %518 = vector.broadcast %517 : f32 to vector<16x16xf32>
      %519 = arith.mulf %518, %513 : vector<16x16xf32>
      %520 = arith.addf %500, %519 : vector<16x16xf32>
      %c150_i32_182 = arith.constant 150 : i32
      %521 = arith.addi %c150_i32_182, %515 : i32
      %522 = arith.index_cast %521 : i32 to index
      %523 = memref.load %arg6[%522] : memref<450xf32, #tpu.memory_space<smem>>
      %524 = vector.broadcast %523 : f32 to vector<16x16xf32>
      %525 = arith.mulf %524, %513 : vector<16x16xf32>
      %526 = arith.addf %506, %525 : vector<16x16xf32>
      %c300_i32_183 = arith.constant 300 : i32
      %527 = arith.addi %c300_i32_183, %515 : i32
      %528 = arith.index_cast %527 : i32 to index
      %529 = memref.load %arg6[%528] : memref<450xf32, #tpu.memory_space<smem>>
      %530 = vector.broadcast %529 : f32 to vector<16x16xf32>
      %531 = arith.mulf %530, %513 : vector<16x16xf32>
      %532 = arith.addf %512, %531 : vector<16x16xf32>
      %533 = vector.extract_strided_slice %492 {offsets = [0, 3], sizes = [16, 16], strides = [1, 1]} : vector<16x22xf32> to vector<16x16xf32>
      %c15_i32_184 = arith.constant 15 : i32
      %534 = arith.addi %188, %c15_i32_184 : i32
      %c2_i32_185 = arith.constant 2 : i32
      %535 = arith.addi %534, %c2_i32_185 : i32
      %536 = arith.index_cast %535 : i32 to index
      %537 = memref.load %arg6[%536] : memref<450xf32, #tpu.memory_space<smem>>
      %538 = vector.broadcast %537 : f32 to vector<16x16xf32>
      %539 = arith.mulf %538, %533 : vector<16x16xf32>
      %540 = arith.addf %520, %539 : vector<16x16xf32>
      %c150_i32_186 = arith.constant 150 : i32
      %541 = arith.addi %c150_i32_186, %535 : i32
      %542 = arith.index_cast %541 : i32 to index
      %543 = memref.load %arg6[%542] : memref<450xf32, #tpu.memory_space<smem>>
      %544 = vector.broadcast %543 : f32 to vector<16x16xf32>
      %545 = arith.mulf %544, %533 : vector<16x16xf32>
      %546 = arith.addf %526, %545 : vector<16x16xf32>
      %c300_i32_187 = arith.constant 300 : i32
      %547 = arith.addi %c300_i32_187, %535 : i32
      %548 = arith.index_cast %547 : i32 to index
      %549 = memref.load %arg6[%548] : memref<450xf32, #tpu.memory_space<smem>>
      %550 = vector.broadcast %549 : f32 to vector<16x16xf32>
      %551 = arith.mulf %550, %533 : vector<16x16xf32>
      %552 = arith.addf %532, %551 : vector<16x16xf32>
      %553 = vector.extract_strided_slice %492 {offsets = [0, 4], sizes = [16, 16], strides = [1, 1]} : vector<16x22xf32> to vector<16x16xf32>
      %c15_i32_188 = arith.constant 15 : i32
      %554 = arith.addi %188, %c15_i32_188 : i32
      %c3_i32_189 = arith.constant 3 : i32
      %555 = arith.addi %554, %c3_i32_189 : i32
      %556 = arith.index_cast %555 : i32 to index
      %557 = memref.load %arg6[%556] : memref<450xf32, #tpu.memory_space<smem>>
      %558 = vector.broadcast %557 : f32 to vector<16x16xf32>
      %559 = arith.mulf %558, %553 : vector<16x16xf32>
      %560 = arith.addf %540, %559 : vector<16x16xf32>
      %c150_i32_190 = arith.constant 150 : i32
      %561 = arith.addi %c150_i32_190, %555 : i32
      %562 = arith.index_cast %561 : i32 to index
      %563 = memref.load %arg6[%562] : memref<450xf32, #tpu.memory_space<smem>>
      %564 = vector.broadcast %563 : f32 to vector<16x16xf32>
      %565 = arith.mulf %564, %553 : vector<16x16xf32>
      %566 = arith.addf %546, %565 : vector<16x16xf32>
      %c300_i32_191 = arith.constant 300 : i32
      %567 = arith.addi %c300_i32_191, %555 : i32
      %568 = arith.index_cast %567 : i32 to index
      %569 = memref.load %arg6[%568] : memref<450xf32, #tpu.memory_space<smem>>
      %570 = vector.broadcast %569 : f32 to vector<16x16xf32>
      %571 = arith.mulf %570, %553 : vector<16x16xf32>
      %572 = arith.addf %552, %571 : vector<16x16xf32>
      %573 = vector.extract_strided_slice %492 {offsets = [0, 5], sizes = [16, 16], strides = [1, 1]} : vector<16x22xf32> to vector<16x16xf32>
      %c15_i32_192 = arith.constant 15 : i32
      %574 = arith.addi %188, %c15_i32_192 : i32
      %c4_i32_193 = arith.constant 4 : i32
      %575 = arith.addi %574, %c4_i32_193 : i32
      %576 = arith.index_cast %575 : i32 to index
      %577 = memref.load %arg6[%576] : memref<450xf32, #tpu.memory_space<smem>>
      %578 = vector.broadcast %577 : f32 to vector<16x16xf32>
      %579 = arith.mulf %578, %573 : vector<16x16xf32>
      %580 = arith.addf %560, %579 : vector<16x16xf32>
      %c150_i32_194 = arith.constant 150 : i32
      %581 = arith.addi %c150_i32_194, %575 : i32
      %582 = arith.index_cast %581 : i32 to index
      %583 = memref.load %arg6[%582] : memref<450xf32, #tpu.memory_space<smem>>
      %584 = vector.broadcast %583 : f32 to vector<16x16xf32>
      %585 = arith.mulf %584, %573 : vector<16x16xf32>
      %586 = arith.addf %566, %585 : vector<16x16xf32>
      %c300_i32_195 = arith.constant 300 : i32
      %587 = arith.addi %c300_i32_195, %575 : i32
      %588 = arith.index_cast %587 : i32 to index
      %589 = memref.load %arg6[%588] : memref<450xf32, #tpu.memory_space<smem>>
      %590 = vector.broadcast %589 : f32 to vector<16x16xf32>
      %591 = arith.mulf %590, %573 : vector<16x16xf32>
      %592 = arith.addf %572, %591 : vector<16x16xf32>
      %593 = vector.extract_strided_slice %187 {offsets = [10, 0], sizes = [16, 22], strides = [1, 1]} : vector<27x22xf32> to vector<16x22xf32>
      %594 = vector.extract_strided_slice %593 {offsets = [0, 1], sizes = [16, 16], strides = [1, 1]} : vector<16x22xf32> to vector<16x16xf32>
      %c20_i32 = arith.constant 20 : i32
      %595 = arith.addi %188, %c20_i32 : i32
      %c0_i32_196 = arith.constant 0 : i32
      %596 = arith.addi %595, %c0_i32_196 : i32
      %597 = arith.index_cast %596 : i32 to index
      %598 = memref.load %arg6[%597] : memref<450xf32, #tpu.memory_space<smem>>
      %599 = vector.broadcast %598 : f32 to vector<16x16xf32>
      %600 = arith.mulf %599, %594 : vector<16x16xf32>
      %601 = arith.addf %580, %600 : vector<16x16xf32>
      %c150_i32_197 = arith.constant 150 : i32
      %602 = arith.addi %c150_i32_197, %596 : i32
      %603 = arith.index_cast %602 : i32 to index
      %604 = memref.load %arg6[%603] : memref<450xf32, #tpu.memory_space<smem>>
      %605 = vector.broadcast %604 : f32 to vector<16x16xf32>
      %606 = arith.mulf %605, %594 : vector<16x16xf32>
      %607 = arith.addf %586, %606 : vector<16x16xf32>
      %c300_i32_198 = arith.constant 300 : i32
      %608 = arith.addi %c300_i32_198, %596 : i32
      %609 = arith.index_cast %608 : i32 to index
      %610 = memref.load %arg6[%609] : memref<450xf32, #tpu.memory_space<smem>>
      %611 = vector.broadcast %610 : f32 to vector<16x16xf32>
      %612 = arith.mulf %611, %594 : vector<16x16xf32>
      %613 = arith.addf %592, %612 : vector<16x16xf32>
      %614 = vector.extract_strided_slice %593 {offsets = [0, 2], sizes = [16, 16], strides = [1, 1]} : vector<16x22xf32> to vector<16x16xf32>
      %c20_i32_199 = arith.constant 20 : i32
      %615 = arith.addi %188, %c20_i32_199 : i32
      %c1_i32_200 = arith.constant 1 : i32
      %616 = arith.addi %615, %c1_i32_200 : i32
      %617 = arith.index_cast %616 : i32 to index
      %618 = memref.load %arg6[%617] : memref<450xf32, #tpu.memory_space<smem>>
      %619 = vector.broadcast %618 : f32 to vector<16x16xf32>
      %620 = arith.mulf %619, %614 : vector<16x16xf32>
      %621 = arith.addf %601, %620 : vector<16x16xf32>
      %c150_i32_201 = arith.constant 150 : i32
      %622 = arith.addi %c150_i32_201, %616 : i32
      %623 = arith.index_cast %622 : i32 to index
      %624 = memref.load %arg6[%623] : memref<450xf32, #tpu.memory_space<smem>>
      %625 = vector.broadcast %624 : f32 to vector<16x16xf32>
      %626 = arith.mulf %625, %614 : vector<16x16xf32>
      %627 = arith.addf %607, %626 : vector<16x16xf32>
      %c300_i32_202 = arith.constant 300 : i32
      %628 = arith.addi %c300_i32_202, %616 : i32
      %629 = arith.index_cast %628 : i32 to index
      %630 = memref.load %arg6[%629] : memref<450xf32, #tpu.memory_space<smem>>
      %631 = vector.broadcast %630 : f32 to vector<16x16xf32>
      %632 = arith.mulf %631, %614 : vector<16x16xf32>
      %633 = arith.addf %613, %632 : vector<16x16xf32>
      %634 = vector.extract_strided_slice %593 {offsets = [0, 3], sizes = [16, 16], strides = [1, 1]} : vector<16x22xf32> to vector<16x16xf32>
      %c20_i32_203 = arith.constant 20 : i32
      %635 = arith.addi %188, %c20_i32_203 : i32
      %c2_i32_204 = arith.constant 2 : i32
      %636 = arith.addi %635, %c2_i32_204 : i32
      %637 = arith.index_cast %636 : i32 to index
      %638 = memref.load %arg6[%637] : memref<450xf32, #tpu.memory_space<smem>>
      %639 = vector.broadcast %638 : f32 to vector<16x16xf32>
      %640 = arith.mulf %639, %634 : vector<16x16xf32>
      %641 = arith.addf %621, %640 : vector<16x16xf32>
      %c150_i32_205 = arith.constant 150 : i32
      %642 = arith.addi %c150_i32_205, %636 : i32
      %643 = arith.index_cast %642 : i32 to index
      %644 = memref.load %arg6[%643] : memref<450xf32, #tpu.memory_space<smem>>
      %645 = vector.broadcast %644 : f32 to vector<16x16xf32>
      %646 = arith.mulf %645, %634 : vector<16x16xf32>
      %647 = arith.addf %627, %646 : vector<16x16xf32>
      %c300_i32_206 = arith.constant 300 : i32
      %648 = arith.addi %c300_i32_206, %636 : i32
      %649 = arith.index_cast %648 : i32 to index
      %650 = memref.load %arg6[%649] : memref<450xf32, #tpu.memory_space<smem>>
      %651 = vector.broadcast %650 : f32 to vector<16x16xf32>
      %652 = arith.mulf %651, %634 : vector<16x16xf32>
      %653 = arith.addf %633, %652 : vector<16x16xf32>
      %654 = vector.extract_strided_slice %593 {offsets = [0, 4], sizes = [16, 16], strides = [1, 1]} : vector<16x22xf32> to vector<16x16xf32>
      %c20_i32_207 = arith.constant 20 : i32
      %655 = arith.addi %188, %c20_i32_207 : i32
      %c3_i32_208 = arith.constant 3 : i32
      %656 = arith.addi %655, %c3_i32_208 : i32
      %657 = arith.index_cast %656 : i32 to index
      %658 = memref.load %arg6[%657] : memref<450xf32, #tpu.memory_space<smem>>
      %659 = vector.broadcast %658 : f32 to vector<16x16xf32>
      %660 = arith.mulf %659, %654 : vector<16x16xf32>
      %661 = arith.addf %641, %660 : vector<16x16xf32>
      %c150_i32_209 = arith.constant 150 : i32
      %662 = arith.addi %c150_i32_209, %656 : i32
      %663 = arith.index_cast %662 : i32 to index
      %664 = memref.load %arg6[%663] : memref<450xf32, #tpu.memory_space<smem>>
      %665 = vector.broadcast %664 : f32 to vector<16x16xf32>
      %666 = arith.mulf %665, %654 : vector<16x16xf32>
      %667 = arith.addf %647, %666 : vector<16x16xf32>
      %c300_i32_210 = arith.constant 300 : i32
      %668 = arith.addi %c300_i32_210, %656 : i32
      %669 = arith.index_cast %668 : i32 to index
      %670 = memref.load %arg6[%669] : memref<450xf32, #tpu.memory_space<smem>>
      %671 = vector.broadcast %670 : f32 to vector<16x16xf32>
      %672 = arith.mulf %671, %654 : vector<16x16xf32>
      %673 = arith.addf %653, %672 : vector<16x16xf32>
      %674 = vector.extract_strided_slice %593 {offsets = [0, 5], sizes = [16, 16], strides = [1, 1]} : vector<16x22xf32> to vector<16x16xf32>
      %c20_i32_211 = arith.constant 20 : i32
      %675 = arith.addi %188, %c20_i32_211 : i32
      %c4_i32_212 = arith.constant 4 : i32
      %676 = arith.addi %675, %c4_i32_212 : i32
      %677 = arith.index_cast %676 : i32 to index
      %678 = memref.load %arg6[%677] : memref<450xf32, #tpu.memory_space<smem>>
      %679 = vector.broadcast %678 : f32 to vector<16x16xf32>
      %680 = arith.mulf %679, %674 : vector<16x16xf32>
      %681 = arith.addf %661, %680 : vector<16x16xf32>
      %c150_i32_213 = arith.constant 150 : i32
      %682 = arith.addi %c150_i32_213, %676 : i32
      %683 = arith.index_cast %682 : i32 to index
      %684 = memref.load %arg6[%683] : memref<450xf32, #tpu.memory_space<smem>>
      %685 = vector.broadcast %684 : f32 to vector<16x16xf32>
      %686 = arith.mulf %685, %674 : vector<16x16xf32>
      %687 = arith.addf %667, %686 : vector<16x16xf32>
      %c300_i32_214 = arith.constant 300 : i32
      %688 = arith.addi %c300_i32_214, %676 : i32
      %689 = arith.index_cast %688 : i32 to index
      %690 = memref.load %arg6[%689] : memref<450xf32, #tpu.memory_space<smem>>
      %691 = vector.broadcast %690 : f32 to vector<16x16xf32>
      %692 = arith.mulf %691, %674 : vector<16x16xf32>
      %693 = arith.addf %673, %692 : vector<16x16xf32>
      scf.yield %681, %687, %693 : vector<16x16xf32>, vector<16x16xf32>, vector<16x16xf32>
    }
    %c6_i32_61 = arith.constant 6 : i32
    %cst_62 = arith.constant 0.000000e+00 : f32
    %102 = vector.broadcast %cst_62 : f32 to vector<16x16xf32>
    %103 = arith.maximumf %101#0, %102 : vector<16x16xf32>
    %cst_63 = arith.constant 0.000000e+00 : f32
    %104 = vector.broadcast %cst_63 : f32 to vector<16x16xf32>
    %105 = arith.maximumf %101#1, %104 : vector<16x16xf32>
    %cst_64 = arith.constant 0.000000e+00 : f32
    %106 = vector.broadcast %cst_64 : f32 to vector<16x16xf32>
    %107 = arith.maximumf %101#2, %106 : vector<16x16xf32>
    %c6_65 = arith.constant 6 : index
    %c8_66 = arith.constant 8 : index
    %c3_67 = arith.constant 3 : index
    %108 = vector.load %arg13[%c6_65, %c8_66, %c3_67] : memref<12x27x22xf32, #tpu.memory_space<vmem>>, vector<1x16x16xf32>
    %109 = vector.shape_cast %108 : vector<1x16x16xf32> to vector<16x16xf32>
    %110 = vector.shape_cast %103 : vector<16x16xf32> to vector<1x16x16xf32>
    tpu.vector_store %arg13[%c6_65, %c8_66, %c3_67], %110 {strides = array<i32>} : memref<12x27x22xf32, #tpu.memory_space<vmem>>, vector<1x16x16xf32>,
    %c7_68 = arith.constant 7 : index
    %c8_69 = arith.constant 8 : index
    %c3_70 = arith.constant 3 : index
    %111 = vector.load %arg13[%c7_68, %c8_69, %c3_70] : memref<12x27x22xf32, #tpu.memory_space<vmem>>, vector<1x16x16xf32>
    %112 = vector.shape_cast %111 : vector<1x16x16xf32> to vector<16x16xf32>
    %113 = vector.shape_cast %105 : vector<16x16xf32> to vector<1x16x16xf32>
    tpu.vector_store %arg13[%c7_68, %c8_69, %c3_70], %113 {strides = array<i32>} : memref<12x27x22xf32, #tpu.memory_space<vmem>>, vector<1x16x16xf32>,
    %c8_71 = arith.constant 8 : index
    %c8_72 = arith.constant 8 : index
    %c3_73 = arith.constant 3 : index
    %114 = vector.load %arg13[%c8_71, %c8_72, %c3_73] : memref<12x27x22xf32, #tpu.memory_space<vmem>>, vector<1x16x16xf32>
    %115 = vector.shape_cast %114 : vector<1x16x16xf32> to vector<16x16xf32>
    %116 = vector.shape_cast %107 : vector<16x16xf32> to vector<1x16x16xf32>
    tpu.vector_store %arg13[%c8_71, %c8_72, %c3_73], %116 {strides = array<i32>} : memref<12x27x22xf32, #tpu.memory_space<vmem>>, vector<1x16x16xf32>,
    %c0_74 = arith.constant 0 : index
    %117 = memref.load %arg9[%c0_74] : memref<3xf32, #tpu.memory_space<smem>>
    %118 = vector.broadcast %117 : f32 to vector<16x16xf32>
    %c1_75 = arith.constant 1 : index
    %119 = memref.load %arg9[%c1_75] : memref<3xf32, #tpu.memory_space<smem>>
    %120 = vector.broadcast %119 : f32 to vector<16x16xf32>
    %c2_76 = arith.constant 2 : index
    %121 = memref.load %arg9[%c2_76] : memref<3xf32, #tpu.memory_space<smem>>
    %122 = vector.broadcast %121 : f32 to vector<16x16xf32>
    %c0_i32_77 = arith.constant 0 : i32
    %c6_i32_78 = arith.constant 6 : i32
    %123 = arith.addi %c0_i32_77, %c6_i32_78 : i32
    %c1_i32_79 = arith.constant 1 : i32
    %124:3 = scf.for %arg14 = %c0_i32_77 to %123 step %c1_i32_79 iter_args(%arg15 = %118, %arg16 = %120, %arg17 = %122) -> (vector<16x16xf32>, vector<16x16xf32>, vector<16x16xf32>)  : i32 {
      %c3_i32_120 = arith.constant 3 : i32
      %184 = arith.addi %c3_i32_120, %arg14 : i32
      %185 = arith.index_cast %184 : i32 to index
      %c0_121 = arith.constant 0 : index
      %c0_122 = arith.constant 0 : index
      %186 = vector.load %arg13[%185, %c0_121, %c0_122] : memref<12x27x22xf32, #tpu.memory_space<vmem>>, vector<1x27x22xf32>
      %187 = vector.shape_cast %186 : vector<1x27x22xf32> to vector<27x22xf32>
      %c49_i32 = arith.constant 49 : i32
      %188 = arith.muli %arg14, %c49_i32 : i32
      %189 = vector.extract_strided_slice %187 {offsets = [5, 0], sizes = [16, 22], strides = [1, 1]} : vector<27x22xf32> to vector<16x22xf32>
      %190 = vector.extract_strided_slice %189 {offsets = [0, 0], sizes = [16, 16], strides = [1, 1]} : vector<16x22xf32> to vector<16x16xf32>
      %c0_i32_123 = arith.constant 0 : i32
      %191 = arith.addi %188, %c0_i32_123 : i32
      %c0_i32_124 = arith.constant 0 : i32
      %192 = arith.addi %191, %c0_i32_124 : i32
      %193 = arith.index_cast %192 : i32 to index
      %194 = memref.load %arg8[%193] : memref<882xf32, #tpu.memory_space<smem>>
      %195 = vector.broadcast %194 : f32 to vector<16x16xf32>
      %196 = arith.mulf %195, %190 : vector<16x16xf32>
      %197 = arith.addf %arg15, %196 : vector<16x16xf32>
      %c294_i32 = arith.constant 294 : i32
      %198 = arith.addi %c294_i32, %192 : i32
      %199 = arith.index_cast %198 : i32 to index
      %200 = memref.load %arg8[%199] : memref<882xf32, #tpu.memory_space<smem>>
      %201 = vector.broadcast %200 : f32 to vector<16x16xf32>
      %202 = arith.mulf %201, %190 : vector<16x16xf32>
      %203 = arith.addf %arg16, %202 : vector<16x16xf32>
      %c588_i32 = arith.constant 588 : i32
      %204 = arith.addi %c588_i32, %192 : i32
      %205 = arith.index_cast %204 : i32 to index
      %206 = memref.load %arg8[%205] : memref<882xf32, #tpu.memory_space<smem>>
      %207 = vector.broadcast %206 : f32 to vector<16x16xf32>
      %208 = arith.mulf %207, %190 : vector<16x16xf32>
      %209 = arith.addf %arg17, %208 : vector<16x16xf32>
      %210 = vector.extract_strided_slice %189 {offsets = [0, 1], sizes = [16, 16], strides = [1, 1]} : vector<16x22xf32> to vector<16x16xf32>
      %c0_i32_125 = arith.constant 0 : i32
      %211 = arith.addi %188, %c0_i32_125 : i32
      %c1_i32_126 = arith.constant 1 : i32
      %212 = arith.addi %211, %c1_i32_126 : i32
      %213 = arith.index_cast %212 : i32 to index
      %214 = memref.load %arg8[%213] : memref<882xf32, #tpu.memory_space<smem>>
      %215 = vector.broadcast %214 : f32 to vector<16x16xf32>
      %216 = arith.mulf %215, %210 : vector<16x16xf32>
      %217 = arith.addf %197, %216 : vector<16x16xf32>
      %c294_i32_127 = arith.constant 294 : i32
      %218 = arith.addi %c294_i32_127, %212 : i32
      %219 = arith.index_cast %218 : i32 to index
      %220 = memref.load %arg8[%219] : memref<882xf32, #tpu.memory_space<smem>>
      %221 = vector.broadcast %220 : f32 to vector<16x16xf32>
      %222 = arith.mulf %221, %210 : vector<16x16xf32>
      %223 = arith.addf %203, %222 : vector<16x16xf32>
      %c588_i32_128 = arith.constant 588 : i32
      %224 = arith.addi %c588_i32_128, %212 : i32
      %225 = arith.index_cast %224 : i32 to index
      %226 = memref.load %arg8[%225] : memref<882xf32, #tpu.memory_space<smem>>
      %227 = vector.broadcast %226 : f32 to vector<16x16xf32>
      %228 = arith.mulf %227, %210 : vector<16x16xf32>
      %229 = arith.addf %209, %228 : vector<16x16xf32>
      %230 = vector.extract_strided_slice %189 {offsets = [0, 2], sizes = [16, 16], strides = [1, 1]} : vector<16x22xf32> to vector<16x16xf32>
      %c0_i32_129 = arith.constant 0 : i32
      %231 = arith.addi %188, %c0_i32_129 : i32
      %c2_i32 = arith.constant 2 : i32
      %232 = arith.addi %231, %c2_i32 : i32
      %233 = arith.index_cast %232 : i32 to index
      %234 = memref.load %arg8[%233] : memref<882xf32, #tpu.memory_space<smem>>
      %235 = vector.broadcast %234 : f32 to vector<16x16xf32>
      %236 = arith.mulf %235, %230 : vector<16x16xf32>
      %237 = arith.addf %217, %236 : vector<16x16xf32>
      %c294_i32_130 = arith.constant 294 : i32
      %238 = arith.addi %c294_i32_130, %232 : i32
      %239 = arith.index_cast %238 : i32 to index
      %240 = memref.load %arg8[%239] : memref<882xf32, #tpu.memory_space<smem>>
      %241 = vector.broadcast %240 : f32 to vector<16x16xf32>
      %242 = arith.mulf %241, %230 : vector<16x16xf32>
      %243 = arith.addf %223, %242 : vector<16x16xf32>
      %c588_i32_131 = arith.constant 588 : i32
      %244 = arith.addi %c588_i32_131, %232 : i32
      %245 = arith.index_cast %244 : i32 to index
      %246 = memref.load %arg8[%245] : memref<882xf32, #tpu.memory_space<smem>>
      %247 = vector.broadcast %246 : f32 to vector<16x16xf32>
      %248 = arith.mulf %247, %230 : vector<16x16xf32>
      %249 = arith.addf %229, %248 : vector<16x16xf32>
      %250 = vector.extract_strided_slice %189 {offsets = [0, 3], sizes = [16, 16], strides = [1, 1]} : vector<16x22xf32> to vector<16x16xf32>
      %c0_i32_132 = arith.constant 0 : i32
      %251 = arith.addi %188, %c0_i32_132 : i32
      %c3_i32_133 = arith.constant 3 : i32
      %252 = arith.addi %251, %c3_i32_133 : i32
      %253 = arith.index_cast %252 : i32 to index
      %254 = memref.load %arg8[%253] : memref<882xf32, #tpu.memory_space<smem>>
      %255 = vector.broadcast %254 : f32 to vector<16x16xf32>
      %256 = arith.mulf %255, %250 : vector<16x16xf32>
      %257 = arith.addf %237, %256 : vector<16x16xf32>
      %c294_i32_134 = arith.constant 294 : i32
      %258 = arith.addi %c294_i32_134, %252 : i32
      %259 = arith.index_cast %258 : i32 to index
      %260 = memref.load %arg8[%259] : memref<882xf32, #tpu.memory_space<smem>>
      %261 = vector.broadcast %260 : f32 to vector<16x16xf32>
      %262 = arith.mulf %261, %250 : vector<16x16xf32>
      %263 = arith.addf %243, %262 : vector<16x16xf32>
      %c588_i32_135 = arith.constant 588 : i32
      %264 = arith.addi %c588_i32_135, %252 : i32
      %265 = arith.index_cast %264 : i32 to index
      %266 = memref.load %arg8[%265] : memref<882xf32, #tpu.memory_space<smem>>
      %267 = vector.broadcast %266 : f32 to vector<16x16xf32>
      %268 = arith.mulf %267, %250 : vector<16x16xf32>
      %269 = arith.addf %249, %268 : vector<16x16xf32>
      %270 = vector.extract_strided_slice %189 {offsets = [0, 4], sizes = [16, 16], strides = [1, 1]} : vector<16x22xf32> to vector<16x16xf32>
      %c0_i32_136 = arith.constant 0 : i32
      %271 = arith.addi %188, %c0_i32_136 : i32
      %c4_i32 = arith.constant 4 : i32
      %272 = arith.addi %271, %c4_i32 : i32
      %273 = arith.index_cast %272 : i32 to index
      %274 = memref.load %arg8[%273] : memref<882xf32, #tpu.memory_space<smem>>
      %275 = vector.broadcast %274 : f32 to vector<16x16xf32>
      %276 = arith.mulf %275, %270 : vector<16x16xf32>
      %277 = arith.addf %257, %276 : vector<16x16xf32>
      %c294_i32_137 = arith.constant 294 : i32
      %278 = arith.addi %c294_i32_137, %272 : i32
      %279 = arith.index_cast %278 : i32 to index
      %280 = memref.load %arg8[%279] : memref<882xf32, #tpu.memory_space<smem>>
      %281 = vector.broadcast %280 : f32 to vector<16x16xf32>
      %282 = arith.mulf %281, %270 : vector<16x16xf32>
      %283 = arith.addf %263, %282 : vector<16x16xf32>
      %c588_i32_138 = arith.constant 588 : i32
      %284 = arith.addi %c588_i32_138, %272 : i32
      %285 = arith.index_cast %284 : i32 to index
      %286 = memref.load %arg8[%285] : memref<882xf32, #tpu.memory_space<smem>>
      %287 = vector.broadcast %286 : f32 to vector<16x16xf32>
      %288 = arith.mulf %287, %270 : vector<16x16xf32>
      %289 = arith.addf %269, %288 : vector<16x16xf32>
      %290 = vector.extract_strided_slice %189 {offsets = [0, 5], sizes = [16, 16], strides = [1, 1]} : vector<16x22xf32> to vector<16x16xf32>
      %c0_i32_139 = arith.constant 0 : i32
      %291 = arith.addi %188, %c0_i32_139 : i32
      %c5_i32 = arith.constant 5 : i32
      %292 = arith.addi %291, %c5_i32 : i32
      %293 = arith.index_cast %292 : i32 to index
      %294 = memref.load %arg8[%293] : memref<882xf32, #tpu.memory_space<smem>>
      %295 = vector.broadcast %294 : f32 to vector<16x16xf32>
      %296 = arith.mulf %295, %290 : vector<16x16xf32>
      %297 = arith.addf %277, %296 : vector<16x16xf32>
      %c294_i32_140 = arith.constant 294 : i32
      %298 = arith.addi %c294_i32_140, %292 : i32
      %299 = arith.index_cast %298 : i32 to index
      %300 = memref.load %arg8[%299] : memref<882xf32, #tpu.memory_space<smem>>
      %301 = vector.broadcast %300 : f32 to vector<16x16xf32>
      %302 = arith.mulf %301, %290 : vector<16x16xf32>
      %303 = arith.addf %283, %302 : vector<16x16xf32>
      %c588_i32_141 = arith.constant 588 : i32
      %304 = arith.addi %c588_i32_141, %292 : i32
      %305 = arith.index_cast %304 : i32 to index
      %306 = memref.load %arg8[%305] : memref<882xf32, #tpu.memory_space<smem>>
      %307 = vector.broadcast %306 : f32 to vector<16x16xf32>
      %308 = arith.mulf %307, %290 : vector<16x16xf32>
      %309 = arith.addf %289, %308 : vector<16x16xf32>
      %310 = vector.extract_strided_slice %189 {offsets = [0, 6], sizes = [16, 16], strides = [1, 1]} : vector<16x22xf32> to vector<16x16xf32>
      %c0_i32_142 = arith.constant 0 : i32
      %311 = arith.addi %188, %c0_i32_142 : i32
      %c6_i32_143 = arith.constant 6 : i32
      %312 = arith.addi %311, %c6_i32_143 : i32
      %313 = arith.index_cast %312 : i32 to index
      %314 = memref.load %arg8[%313] : memref<882xf32, #tpu.memory_space<smem>>
      %315 = vector.broadcast %314 : f32 to vector<16x16xf32>
      %316 = arith.mulf %315, %310 : vector<16x16xf32>
      %317 = arith.addf %297, %316 : vector<16x16xf32>
      %c294_i32_144 = arith.constant 294 : i32
      %318 = arith.addi %c294_i32_144, %312 : i32
      %319 = arith.index_cast %318 : i32 to index
      %320 = memref.load %arg8[%319] : memref<882xf32, #tpu.memory_space<smem>>
      %321 = vector.broadcast %320 : f32 to vector<16x16xf32>
      %322 = arith.mulf %321, %310 : vector<16x16xf32>
      %323 = arith.addf %303, %322 : vector<16x16xf32>
      %c588_i32_145 = arith.constant 588 : i32
      %324 = arith.addi %c588_i32_145, %312 : i32
      %325 = arith.index_cast %324 : i32 to index
      %326 = memref.load %arg8[%325] : memref<882xf32, #tpu.memory_space<smem>>
      %327 = vector.broadcast %326 : f32 to vector<16x16xf32>
      %328 = arith.mulf %327, %310 : vector<16x16xf32>
      %329 = arith.addf %309, %328 : vector<16x16xf32>
      %330 = vector.extract_strided_slice %187 {offsets = [6, 0], sizes = [16, 22], strides = [1, 1]} : vector<27x22xf32> to vector<16x22xf32>
      %331 = vector.extract_strided_slice %330 {offsets = [0, 0], sizes = [16, 16], strides = [1, 1]} : vector<16x22xf32> to vector<16x16xf32>
      %c7_i32 = arith.constant 7 : i32
      %332 = arith.addi %188, %c7_i32 : i32
      %c0_i32_146 = arith.constant 0 : i32
      %333 = arith.addi %332, %c0_i32_146 : i32
      %334 = arith.index_cast %333 : i32 to index
      %335 = memref.load %arg8[%334] : memref<882xf32, #tpu.memory_space<smem>>
      %336 = vector.broadcast %335 : f32 to vector<16x16xf32>
      %337 = arith.mulf %336, %331 : vector<16x16xf32>
      %338 = arith.addf %317, %337 : vector<16x16xf32>
      %c294_i32_147 = arith.constant 294 : i32
      %339 = arith.addi %c294_i32_147, %333 : i32
      %340 = arith.index_cast %339 : i32 to index
      %341 = memref.load %arg8[%340] : memref<882xf32, #tpu.memory_space<smem>>
      %342 = vector.broadcast %341 : f32 to vector<16x16xf32>
      %343 = arith.mulf %342, %331 : vector<16x16xf32>
      %344 = arith.addf %323, %343 : vector<16x16xf32>
      %c588_i32_148 = arith.constant 588 : i32
      %345 = arith.addi %c588_i32_148, %333 : i32
      %346 = arith.index_cast %345 : i32 to index
      %347 = memref.load %arg8[%346] : memref<882xf32, #tpu.memory_space<smem>>
      %348 = vector.broadcast %347 : f32 to vector<16x16xf32>
      %349 = arith.mulf %348, %331 : vector<16x16xf32>
      %350 = arith.addf %329, %349 : vector<16x16xf32>
      %351 = vector.extract_strided_slice %330 {offsets = [0, 1], sizes = [16, 16], strides = [1, 1]} : vector<16x22xf32> to vector<16x16xf32>
      %c7_i32_149 = arith.constant 7 : i32
      %352 = arith.addi %188, %c7_i32_149 : i32
      %c1_i32_150 = arith.constant 1 : i32
      %353 = arith.addi %352, %c1_i32_150 : i32
      %354 = arith.index_cast %353 : i32 to index
      %355 = memref.load %arg8[%354] : memref<882xf32, #tpu.memory_space<smem>>
      %356 = vector.broadcast %355 : f32 to vector<16x16xf32>
      %357 = arith.mulf %356, %351 : vector<16x16xf32>
      %358 = arith.addf %338, %357 : vector<16x16xf32>
      %c294_i32_151 = arith.constant 294 : i32
      %359 = arith.addi %c294_i32_151, %353 : i32
      %360 = arith.index_cast %359 : i32 to index
      %361 = memref.load %arg8[%360] : memref<882xf32, #tpu.memory_space<smem>>
      %362 = vector.broadcast %361 : f32 to vector<16x16xf32>
      %363 = arith.mulf %362, %351 : vector<16x16xf32>
      %364 = arith.addf %344, %363 : vector<16x16xf32>
      %c588_i32_152 = arith.constant 588 : i32
      %365 = arith.addi %c588_i32_152, %353 : i32
      %366 = arith.index_cast %365 : i32 to index
      %367 = memref.load %arg8[%366] : memref<882xf32, #tpu.memory_space<smem>>
      %368 = vector.broadcast %367 : f32 to vector<16x16xf32>
      %369 = arith.mulf %368, %351 : vector<16x16xf32>
      %370 = arith.addf %350, %369 : vector<16x16xf32>
      %371 = vector.extract_strided_slice %330 {offsets = [0, 2], sizes = [16, 16], strides = [1, 1]} : vector<16x22xf32> to vector<16x16xf32>
      %c7_i32_153 = arith.constant 7 : i32
      %372 = arith.addi %188, %c7_i32_153 : i32
      %c2_i32_154 = arith.constant 2 : i32
      %373 = arith.addi %372, %c2_i32_154 : i32
      %374 = arith.index_cast %373 : i32 to index
      %375 = memref.load %arg8[%374] : memref<882xf32, #tpu.memory_space<smem>>
      %376 = vector.broadcast %375 : f32 to vector<16x16xf32>
      %377 = arith.mulf %376, %371 : vector<16x16xf32>
      %378 = arith.addf %358, %377 : vector<16x16xf32>
      %c294_i32_155 = arith.constant 294 : i32
      %379 = arith.addi %c294_i32_155, %373 : i32
      %380 = arith.index_cast %379 : i32 to index
      %381 = memref.load %arg8[%380] : memref<882xf32, #tpu.memory_space<smem>>
      %382 = vector.broadcast %381 : f32 to vector<16x16xf32>
      %383 = arith.mulf %382, %371 : vector<16x16xf32>
      %384 = arith.addf %364, %383 : vector<16x16xf32>
      %c588_i32_156 = arith.constant 588 : i32
      %385 = arith.addi %c588_i32_156, %373 : i32
      %386 = arith.index_cast %385 : i32 to index
      %387 = memref.load %arg8[%386] : memref<882xf32, #tpu.memory_space<smem>>
      %388 = vector.broadcast %387 : f32 to vector<16x16xf32>
      %389 = arith.mulf %388, %371 : vector<16x16xf32>
      %390 = arith.addf %370, %389 : vector<16x16xf32>
      %391 = vector.extract_strided_slice %330 {offsets = [0, 3], sizes = [16, 16], strides = [1, 1]} : vector<16x22xf32> to vector<16x16xf32>
      %c7_i32_157 = arith.constant 7 : i32
      %392 = arith.addi %188, %c7_i32_157 : i32
      %c3_i32_158 = arith.constant 3 : i32
      %393 = arith.addi %392, %c3_i32_158 : i32
      %394 = arith.index_cast %393 : i32 to index
      %395 = memref.load %arg8[%394] : memref<882xf32, #tpu.memory_space<smem>>
      %396 = vector.broadcast %395 : f32 to vector<16x16xf32>
      %397 = arith.mulf %396, %391 : vector<16x16xf32>
      %398 = arith.addf %378, %397 : vector<16x16xf32>
      %c294_i32_159 = arith.constant 294 : i32
      %399 = arith.addi %c294_i32_159, %393 : i32
      %400 = arith.index_cast %399 : i32 to index
      %401 = memref.load %arg8[%400] : memref<882xf32, #tpu.memory_space<smem>>
      %402 = vector.broadcast %401 : f32 to vector<16x16xf32>
      %403 = arith.mulf %402, %391 : vector<16x16xf32>
      %404 = arith.addf %384, %403 : vector<16x16xf32>
      %c588_i32_160 = arith.constant 588 : i32
      %405 = arith.addi %c588_i32_160, %393 : i32
      %406 = arith.index_cast %405 : i32 to index
      %407 = memref.load %arg8[%406] : memref<882xf32, #tpu.memory_space<smem>>
      %408 = vector.broadcast %407 : f32 to vector<16x16xf32>
      %409 = arith.mulf %408, %391 : vector<16x16xf32>
      %410 = arith.addf %390, %409 : vector<16x16xf32>
      %411 = vector.extract_strided_slice %330 {offsets = [0, 4], sizes = [16, 16], strides = [1, 1]} : vector<16x22xf32> to vector<16x16xf32>
      %c7_i32_161 = arith.constant 7 : i32
      %412 = arith.addi %188, %c7_i32_161 : i32
      %c4_i32_162 = arith.constant 4 : i32
      %413 = arith.addi %412, %c4_i32_162 : i32
      %414 = arith.index_cast %413 : i32 to index
      %415 = memref.load %arg8[%414] : memref<882xf32, #tpu.memory_space<smem>>
      %416 = vector.broadcast %415 : f32 to vector<16x16xf32>
      %417 = arith.mulf %416, %411 : vector<16x16xf32>
      %418 = arith.addf %398, %417 : vector<16x16xf32>
      %c294_i32_163 = arith.constant 294 : i32
      %419 = arith.addi %c294_i32_163, %413 : i32
      %420 = arith.index_cast %419 : i32 to index
      %421 = memref.load %arg8[%420] : memref<882xf32, #tpu.memory_space<smem>>
      %422 = vector.broadcast %421 : f32 to vector<16x16xf32>
      %423 = arith.mulf %422, %411 : vector<16x16xf32>
      %424 = arith.addf %404, %423 : vector<16x16xf32>
      %c588_i32_164 = arith.constant 588 : i32
      %425 = arith.addi %c588_i32_164, %413 : i32
      %426 = arith.index_cast %425 : i32 to index
      %427 = memref.load %arg8[%426] : memref<882xf32, #tpu.memory_space<smem>>
      %428 = vector.broadcast %427 : f32 to vector<16x16xf32>
      %429 = arith.mulf %428, %411 : vector<16x16xf32>
      %430 = arith.addf %410, %429 : vector<16x16xf32>
      %431 = vector.extract_strided_slice %330 {offsets = [0, 5], sizes = [16, 16], strides = [1, 1]} : vector<16x22xf32> to vector<16x16xf32>
      %c7_i32_165 = arith.constant 7 : i32
      %432 = arith.addi %188, %c7_i32_165 : i32
      %c5_i32_166 = arith.constant 5 : i32
      %433 = arith.addi %432, %c5_i32_166 : i32
      %434 = arith.index_cast %433 : i32 to index
      %435 = memref.load %arg8[%434] : memref<882xf32, #tpu.memory_space<smem>>
      %436 = vector.broadcast %435 : f32 to vector<16x16xf32>
      %437 = arith.mulf %436, %431 : vector<16x16xf32>
      %438 = arith.addf %418, %437 : vector<16x16xf32>
      %c294_i32_167 = arith.constant 294 : i32
      %439 = arith.addi %c294_i32_167, %433 : i32
      %440 = arith.index_cast %439 : i32 to index
      %441 = memref.load %arg8[%440] : memref<882xf32, #tpu.memory_space<smem>>
      %442 = vector.broadcast %441 : f32 to vector<16x16xf32>
      %443 = arith.mulf %442, %431 : vector<16x16xf32>
      %444 = arith.addf %424, %443 : vector<16x16xf32>
      %c588_i32_168 = arith.constant 588 : i32
      %445 = arith.addi %c588_i32_168, %433 : i32
      %446 = arith.index_cast %445 : i32 to index
      %447 = memref.load %arg8[%446] : memref<882xf32, #tpu.memory_space<smem>>
      %448 = vector.broadcast %447 : f32 to vector<16x16xf32>
      %449 = arith.mulf %448, %431 : vector<16x16xf32>
      %450 = arith.addf %430, %449 : vector<16x16xf32>
      %451 = vector.extract_strided_slice %330 {offsets = [0, 6], sizes = [16, 16], strides = [1, 1]} : vector<16x22xf32> to vector<16x16xf32>
      %c7_i32_169 = arith.constant 7 : i32
      %452 = arith.addi %188, %c7_i32_169 : i32
      %c6_i32_170 = arith.constant 6 : i32
      %453 = arith.addi %452, %c6_i32_170 : i32
      %454 = arith.index_cast %453 : i32 to index
      %455 = memref.load %arg8[%454] : memref<882xf32, #tpu.memory_space<smem>>
      %456 = vector.broadcast %455 : f32 to vector<16x16xf32>
      %457 = arith.mulf %456, %451 : vector<16x16xf32>
      %458 = arith.addf %438, %457 : vector<16x16xf32>
      %c294_i32_171 = arith.constant 294 : i32
      %459 = arith.addi %c294_i32_171, %453 : i32
      %460 = arith.index_cast %459 : i32 to index
      %461 = memref.load %arg8[%460] : memref<882xf32, #tpu.memory_space<smem>>
      %462 = vector.broadcast %461 : f32 to vector<16x16xf32>
      %463 = arith.mulf %462, %451 : vector<16x16xf32>
      %464 = arith.addf %444, %463 : vector<16x16xf32>
      %c588_i32_172 = arith.constant 588 : i32
      %465 = arith.addi %c588_i32_172, %453 : i32
      %466 = arith.index_cast %465 : i32 to index
      %467 = memref.load %arg8[%466] : memref<882xf32, #tpu.memory_space<smem>>
      %468 = vector.broadcast %467 : f32 to vector<16x16xf32>
      %469 = arith.mulf %468, %451 : vector<16x16xf32>
      %470 = arith.addf %450, %469 : vector<16x16xf32>
      %471 = vector.extract_strided_slice %187 {offsets = [7, 0], sizes = [16, 22], strides = [1, 1]} : vector<27x22xf32> to vector<16x22xf32>
      %472 = vector.extract_strided_slice %471 {offsets = [0, 0], sizes = [16, 16], strides = [1, 1]} : vector<16x22xf32> to vector<16x16xf32>
      %c14_i32 = arith.constant 14 : i32
      %473 = arith.addi %188, %c14_i32 : i32
      %c0_i32_173 = arith.constant 0 : i32
      %474 = arith.addi %473, %c0_i32_173 : i32
      %475 = arith.index_cast %474 : i32 to index
      %476 = memref.load %arg8[%475] : memref<882xf32, #tpu.memory_space<smem>>
      %477 = vector.broadcast %476 : f32 to vector<16x16xf32>
      %478 = arith.mulf %477, %472 : vector<16x16xf32>
      %479 = arith.addf %458, %478 : vector<16x16xf32>
      %c294_i32_174 = arith.constant 294 : i32
      %480 = arith.addi %c294_i32_174, %474 : i32
      %481 = arith.index_cast %480 : i32 to index
      %482 = memref.load %arg8[%481] : memref<882xf32, #tpu.memory_space<smem>>
      %483 = vector.broadcast %482 : f32 to vector<16x16xf32>
      %484 = arith.mulf %483, %472 : vector<16x16xf32>
      %485 = arith.addf %464, %484 : vector<16x16xf32>
      %c588_i32_175 = arith.constant 588 : i32
      %486 = arith.addi %c588_i32_175, %474 : i32
      %487 = arith.index_cast %486 : i32 to index
      %488 = memref.load %arg8[%487] : memref<882xf32, #tpu.memory_space<smem>>
      %489 = vector.broadcast %488 : f32 to vector<16x16xf32>
      %490 = arith.mulf %489, %472 : vector<16x16xf32>
      %491 = arith.addf %470, %490 : vector<16x16xf32>
      %492 = vector.extract_strided_slice %471 {offsets = [0, 1], sizes = [16, 16], strides = [1, 1]} : vector<16x22xf32> to vector<16x16xf32>
      %c14_i32_176 = arith.constant 14 : i32
      %493 = arith.addi %188, %c14_i32_176 : i32
      %c1_i32_177 = arith.constant 1 : i32
      %494 = arith.addi %493, %c1_i32_177 : i32
      %495 = arith.index_cast %494 : i32 to index
      %496 = memref.load %arg8[%495] : memref<882xf32, #tpu.memory_space<smem>>
      %497 = vector.broadcast %496 : f32 to vector<16x16xf32>
      %498 = arith.mulf %497, %492 : vector<16x16xf32>
      %499 = arith.addf %479, %498 : vector<16x16xf32>
      %c294_i32_178 = arith.constant 294 : i32
      %500 = arith.addi %c294_i32_178, %494 : i32
      %501 = arith.index_cast %500 : i32 to index
      %502 = memref.load %arg8[%501] : memref<882xf32, #tpu.memory_space<smem>>
      %503 = vector.broadcast %502 : f32 to vector<16x16xf32>
      %504 = arith.mulf %503, %492 : vector<16x16xf32>
      %505 = arith.addf %485, %504 : vector<16x16xf32>
      %c588_i32_179 = arith.constant 588 : i32
      %506 = arith.addi %c588_i32_179, %494 : i32
      %507 = arith.index_cast %506 : i32 to index
      %508 = memref.load %arg8[%507] : memref<882xf32, #tpu.memory_space<smem>>
      %509 = vector.broadcast %508 : f32 to vector<16x16xf32>
      %510 = arith.mulf %509, %492 : vector<16x16xf32>
      %511 = arith.addf %491, %510 : vector<16x16xf32>
      %512 = vector.extract_strided_slice %471 {offsets = [0, 2], sizes = [16, 16], strides = [1, 1]} : vector<16x22xf32> to vector<16x16xf32>
      %c14_i32_180 = arith.constant 14 : i32
      %513 = arith.addi %188, %c14_i32_180 : i32
      %c2_i32_181 = arith.constant 2 : i32
      %514 = arith.addi %513, %c2_i32_181 : i32
      %515 = arith.index_cast %514 : i32 to index
      %516 = memref.load %arg8[%515] : memref<882xf32, #tpu.memory_space<smem>>
      %517 = vector.broadcast %516 : f32 to vector<16x16xf32>
      %518 = arith.mulf %517, %512 : vector<16x16xf32>
      %519 = arith.addf %499, %518 : vector<16x16xf32>
      %c294_i32_182 = arith.constant 294 : i32
      %520 = arith.addi %c294_i32_182, %514 : i32
      %521 = arith.index_cast %520 : i32 to index
      %522 = memref.load %arg8[%521] : memref<882xf32, #tpu.memory_space<smem>>
      %523 = vector.broadcast %522 : f32 to vector<16x16xf32>
      %524 = arith.mulf %523, %512 : vector<16x16xf32>
      %525 = arith.addf %505, %524 : vector<16x16xf32>
      %c588_i32_183 = arith.constant 588 : i32
      %526 = arith.addi %c588_i32_183, %514 : i32
      %527 = arith.index_cast %526 : i32 to index
      %528 = memref.load %arg8[%527] : memref<882xf32, #tpu.memory_space<smem>>
      %529 = vector.broadcast %528 : f32 to vector<16x16xf32>
      %530 = arith.mulf %529, %512 : vector<16x16xf32>
      %531 = arith.addf %511, %530 : vector<16x16xf32>
      %532 = vector.extract_strided_slice %471 {offsets = [0, 3], sizes = [16, 16], strides = [1, 1]} : vector<16x22xf32> to vector<16x16xf32>
      %c14_i32_184 = arith.constant 14 : i32
      %533 = arith.addi %188, %c14_i32_184 : i32
      %c3_i32_185 = arith.constant 3 : i32
      %534 = arith.addi %533, %c3_i32_185 : i32
      %535 = arith.index_cast %534 : i32 to index
      %536 = memref.load %arg8[%535] : memref<882xf32, #tpu.memory_space<smem>>
      %537 = vector.broadcast %536 : f32 to vector<16x16xf32>
      %538 = arith.mulf %537, %532 : vector<16x16xf32>
      %539 = arith.addf %519, %538 : vector<16x16xf32>
      %c294_i32_186 = arith.constant 294 : i32
      %540 = arith.addi %c294_i32_186, %534 : i32
      %541 = arith.index_cast %540 : i32 to index
      %542 = memref.load %arg8[%541] : memref<882xf32, #tpu.memory_space<smem>>
      %543 = vector.broadcast %542 : f32 to vector<16x16xf32>
      %544 = arith.mulf %543, %532 : vector<16x16xf32>
      %545 = arith.addf %525, %544 : vector<16x16xf32>
      %c588_i32_187 = arith.constant 588 : i32
      %546 = arith.addi %c588_i32_187, %534 : i32
      %547 = arith.index_cast %546 : i32 to index
      %548 = memref.load %arg8[%547] : memref<882xf32, #tpu.memory_space<smem>>
      %549 = vector.broadcast %548 : f32 to vector<16x16xf32>
      %550 = arith.mulf %549, %532 : vector<16x16xf32>
      %551 = arith.addf %531, %550 : vector<16x16xf32>
      %552 = vector.extract_strided_slice %471 {offsets = [0, 4], sizes = [16, 16], strides = [1, 1]} : vector<16x22xf32> to vector<16x16xf32>
      %c14_i32_188 = arith.constant 14 : i32
      %553 = arith.addi %188, %c14_i32_188 : i32
      %c4_i32_189 = arith.constant 4 : i32
      %554 = arith.addi %553, %c4_i32_189 : i32
      %555 = arith.index_cast %554 : i32 to index
      %556 = memref.load %arg8[%555] : memref<882xf32, #tpu.memory_space<smem>>
      %557 = vector.broadcast %556 : f32 to vector<16x16xf32>
      %558 = arith.mulf %557, %552 : vector<16x16xf32>
      %559 = arith.addf %539, %558 : vector<16x16xf32>
      %c294_i32_190 = arith.constant 294 : i32
      %560 = arith.addi %c294_i32_190, %554 : i32
      %561 = arith.index_cast %560 : i32 to index
      %562 = memref.load %arg8[%561] : memref<882xf32, #tpu.memory_space<smem>>
      %563 = vector.broadcast %562 : f32 to vector<16x16xf32>
      %564 = arith.mulf %563, %552 : vector<16x16xf32>
      %565 = arith.addf %545, %564 : vector<16x16xf32>
      %c588_i32_191 = arith.constant 588 : i32
      %566 = arith.addi %c588_i32_191, %554 : i32
      %567 = arith.index_cast %566 : i32 to index
      %568 = memref.load %arg8[%567] : memref<882xf32, #tpu.memory_space<smem>>
      %569 = vector.broadcast %568 : f32 to vector<16x16xf32>
      %570 = arith.mulf %569, %552 : vector<16x16xf32>
      %571 = arith.addf %551, %570 : vector<16x16xf32>
      %572 = vector.extract_strided_slice %471 {offsets = [0, 5], sizes = [16, 16], strides = [1, 1]} : vector<16x22xf32> to vector<16x16xf32>
      %c14_i32_192 = arith.constant 14 : i32
      %573 = arith.addi %188, %c14_i32_192 : i32
      %c5_i32_193 = arith.constant 5 : i32
      %574 = arith.addi %573, %c5_i32_193 : i32
      %575 = arith.index_cast %574 : i32 to index
      %576 = memref.load %arg8[%575] : memref<882xf32, #tpu.memory_space<smem>>
      %577 = vector.broadcast %576 : f32 to vector<16x16xf32>
      %578 = arith.mulf %577, %572 : vector<16x16xf32>
      %579 = arith.addf %559, %578 : vector<16x16xf32>
      %c294_i32_194 = arith.constant 294 : i32
      %580 = arith.addi %c294_i32_194, %574 : i32
      %581 = arith.index_cast %580 : i32 to index
      %582 = memref.load %arg8[%581] : memref<882xf32, #tpu.memory_space<smem>>
      %583 = vector.broadcast %582 : f32 to vector<16x16xf32>
      %584 = arith.mulf %583, %572 : vector<16x16xf32>
      %585 = arith.addf %565, %584 : vector<16x16xf32>
      %c588_i32_195 = arith.constant 588 : i32
      %586 = arith.addi %c588_i32_195, %574 : i32
      %587 = arith.index_cast %586 : i32 to index
      %588 = memref.load %arg8[%587] : memref<882xf32, #tpu.memory_space<smem>>
      %589 = vector.broadcast %588 : f32 to vector<16x16xf32>
      %590 = arith.mulf %589, %572 : vector<16x16xf32>
      %591 = arith.addf %571, %590 : vector<16x16xf32>
      %592 = vector.extract_strided_slice %471 {offsets = [0, 6], sizes = [16, 16], strides = [1, 1]} : vector<16x22xf32> to vector<16x16xf32>
      %c14_i32_196 = arith.constant 14 : i32
      %593 = arith.addi %188, %c14_i32_196 : i32
      %c6_i32_197 = arith.constant 6 : i32
      %594 = arith.addi %593, %c6_i32_197 : i32
      %595 = arith.index_cast %594 : i32 to index
      %596 = memref.load %arg8[%595] : memref<882xf32, #tpu.memory_space<smem>>
      %597 = vector.broadcast %596 : f32 to vector<16x16xf32>
      %598 = arith.mulf %597, %592 : vector<16x16xf32>
      %599 = arith.addf %579, %598 : vector<16x16xf32>
      %c294_i32_198 = arith.constant 294 : i32
      %600 = arith.addi %c294_i32_198, %594 : i32
      %601 = arith.index_cast %600 : i32 to index
      %602 = memref.load %arg8[%601] : memref<882xf32, #tpu.memory_space<smem>>
      %603 = vector.broadcast %602 : f32 to vector<16x16xf32>
      %604 = arith.mulf %603, %592 : vector<16x16xf32>
      %605 = arith.addf %585, %604 : vector<16x16xf32>
      %c588_i32_199 = arith.constant 588 : i32
      %606 = arith.addi %c588_i32_199, %594 : i32
      %607 = arith.index_cast %606 : i32 to index
      %608 = memref.load %arg8[%607] : memref<882xf32, #tpu.memory_space<smem>>
      %609 = vector.broadcast %608 : f32 to vector<16x16xf32>
      %610 = arith.mulf %609, %592 : vector<16x16xf32>
      %611 = arith.addf %591, %610 : vector<16x16xf32>
      %612 = vector.extract_strided_slice %187 {offsets = [8, 0], sizes = [16, 22], strides = [1, 1]} : vector<27x22xf32> to vector<16x22xf32>
      %613 = vector.extract_strided_slice %612 {offsets = [0, 0], sizes = [16, 16], strides = [1, 1]} : vector<16x22xf32> to vector<16x16xf32>
      %c21_i32 = arith.constant 21 : i32
      %614 = arith.addi %188, %c21_i32 : i32
      %c0_i32_200 = arith.constant 0 : i32
      %615 = arith.addi %614, %c0_i32_200 : i32
      %616 = arith.index_cast %615 : i32 to index
      %617 = memref.load %arg8[%616] : memref<882xf32, #tpu.memory_space<smem>>
      %618 = vector.broadcast %617 : f32 to vector<16x16xf32>
      %619 = arith.mulf %618, %613 : vector<16x16xf32>
      %620 = arith.addf %599, %619 : vector<16x16xf32>
      %c294_i32_201 = arith.constant 294 : i32
      %621 = arith.addi %c294_i32_201, %615 : i32
      %622 = arith.index_cast %621 : i32 to index
      %623 = memref.load %arg8[%622] : memref<882xf32, #tpu.memory_space<smem>>
      %624 = vector.broadcast %623 : f32 to vector<16x16xf32>
      %625 = arith.mulf %624, %613 : vector<16x16xf32>
      %626 = arith.addf %605, %625 : vector<16x16xf32>
      %c588_i32_202 = arith.constant 588 : i32
      %627 = arith.addi %c588_i32_202, %615 : i32
      %628 = arith.index_cast %627 : i32 to index
      %629 = memref.load %arg8[%628] : memref<882xf32, #tpu.memory_space<smem>>
      %630 = vector.broadcast %629 : f32 to vector<16x16xf32>
      %631 = arith.mulf %630, %613 : vector<16x16xf32>
      %632 = arith.addf %611, %631 : vector<16x16xf32>
      %633 = vector.extract_strided_slice %612 {offsets = [0, 1], sizes = [16, 16], strides = [1, 1]} : vector<16x22xf32> to vector<16x16xf32>
      %c21_i32_203 = arith.constant 21 : i32
      %634 = arith.addi %188, %c21_i32_203 : i32
      %c1_i32_204 = arith.constant 1 : i32
      %635 = arith.addi %634, %c1_i32_204 : i32
      %636 = arith.index_cast %635 : i32 to index
      %637 = memref.load %arg8[%636] : memref<882xf32, #tpu.memory_space<smem>>
      %638 = vector.broadcast %637 : f32 to vector<16x16xf32>
      %639 = arith.mulf %638, %633 : vector<16x16xf32>
      %640 = arith.addf %620, %639 : vector<16x16xf32>
      %c294_i32_205 = arith.constant 294 : i32
      %641 = arith.addi %c294_i32_205, %635 : i32
      %642 = arith.index_cast %641 : i32 to index
      %643 = memref.load %arg8[%642] : memref<882xf32, #tpu.memory_space<smem>>
      %644 = vector.broadcast %643 : f32 to vector<16x16xf32>
      %645 = arith.mulf %644, %633 : vector<16x16xf32>
      %646 = arith.addf %626, %645 : vector<16x16xf32>
      %c588_i32_206 = arith.constant 588 : i32
      %647 = arith.addi %c588_i32_206, %635 : i32
      %648 = arith.index_cast %647 : i32 to index
      %649 = memref.load %arg8[%648] : memref<882xf32, #tpu.memory_space<smem>>
      %650 = vector.broadcast %649 : f32 to vector<16x16xf32>
      %651 = arith.mulf %650, %633 : vector<16x16xf32>
      %652 = arith.addf %632, %651 : vector<16x16xf32>
      %653 = vector.extract_strided_slice %612 {offsets = [0, 2], sizes = [16, 16], strides = [1, 1]} : vector<16x22xf32> to vector<16x16xf32>
      %c21_i32_207 = arith.constant 21 : i32
      %654 = arith.addi %188, %c21_i32_207 : i32
      %c2_i32_208 = arith.constant 2 : i32
      %655 = arith.addi %654, %c2_i32_208 : i32
      %656 = arith.index_cast %655 : i32 to index
      %657 = memref.load %arg8[%656] : memref<882xf32, #tpu.memory_space<smem>>
      %658 = vector.broadcast %657 : f32 to vector<16x16xf32>
      %659 = arith.mulf %658, %653 : vector<16x16xf32>
      %660 = arith.addf %640, %659 : vector<16x16xf32>
      %c294_i32_209 = arith.constant 294 : i32
      %661 = arith.addi %c294_i32_209, %655 : i32
      %662 = arith.index_cast %661 : i32 to index
      %663 = memref.load %arg8[%662] : memref<882xf32, #tpu.memory_space<smem>>
      %664 = vector.broadcast %663 : f32 to vector<16x16xf32>
      %665 = arith.mulf %664, %653 : vector<16x16xf32>
      %666 = arith.addf %646, %665 : vector<16x16xf32>
      %c588_i32_210 = arith.constant 588 : i32
      %667 = arith.addi %c588_i32_210, %655 : i32
      %668 = arith.index_cast %667 : i32 to index
      %669 = memref.load %arg8[%668] : memref<882xf32, #tpu.memory_space<smem>>
      %670 = vector.broadcast %669 : f32 to vector<16x16xf32>
      %671 = arith.mulf %670, %653 : vector<16x16xf32>
      %672 = arith.addf %652, %671 : vector<16x16xf32>
      %673 = vector.extract_strided_slice %612 {offsets = [0, 3], sizes = [16, 16], strides = [1, 1]} : vector<16x22xf32> to vector<16x16xf32>
      %c21_i32_211 = arith.constant 21 : i32
      %674 = arith.addi %188, %c21_i32_211 : i32
      %c3_i32_212 = arith.constant 3 : i32
      %675 = arith.addi %674, %c3_i32_212 : i32
      %676 = arith.index_cast %675 : i32 to index
      %677 = memref.load %arg8[%676] : memref<882xf32, #tpu.memory_space<smem>>
      %678 = vector.broadcast %677 : f32 to vector<16x16xf32>
      %679 = arith.mulf %678, %673 : vector<16x16xf32>
      %680 = arith.addf %660, %679 : vector<16x16xf32>
      %c294_i32_213 = arith.constant 294 : i32
      %681 = arith.addi %c294_i32_213, %675 : i32
      %682 = arith.index_cast %681 : i32 to index
      %683 = memref.load %arg8[%682] : memref<882xf32, #tpu.memory_space<smem>>
      %684 = vector.broadcast %683 : f32 to vector<16x16xf32>
      %685 = arith.mulf %684, %673 : vector<16x16xf32>
      %686 = arith.addf %666, %685 : vector<16x16xf32>
      %c588_i32_214 = arith.constant 588 : i32
      %687 = arith.addi %c588_i32_214, %675 : i32
      %688 = arith.index_cast %687 : i32 to index
      %689 = memref.load %arg8[%688] : memref<882xf32, #tpu.memory_space<smem>>
      %690 = vector.broadcast %689 : f32 to vector<16x16xf32>
      %691 = arith.mulf %690, %673 : vector<16x16xf32>
      %692 = arith.addf %672, %691 : vector<16x16xf32>
      %693 = vector.extract_strided_slice %612 {offsets = [0, 4], sizes = [16, 16], strides = [1, 1]} : vector<16x22xf32> to vector<16x16xf32>
      %c21_i32_215 = arith.constant 21 : i32
      %694 = arith.addi %188, %c21_i32_215 : i32
      %c4_i32_216 = arith.constant 4 : i32
      %695 = arith.addi %694, %c4_i32_216 : i32
      %696 = arith.index_cast %695 : i32 to index
      %697 = memref.load %arg8[%696] : memref<882xf32, #tpu.memory_space<smem>>
      %698 = vector.broadcast %697 : f32 to vector<16x16xf32>
      %699 = arith.mulf %698, %693 : vector<16x16xf32>
      %700 = arith.addf %680, %699 : vector<16x16xf32>
      %c294_i32_217 = arith.constant 294 : i32
      %701 = arith.addi %c294_i32_217, %695 : i32
      %702 = arith.index_cast %701 : i32 to index
      %703 = memref.load %arg8[%702] : memref<882xf32, #tpu.memory_space<smem>>
      %704 = vector.broadcast %703 : f32 to vector<16x16xf32>
      %705 = arith.mulf %704, %693 : vector<16x16xf32>
      %706 = arith.addf %686, %705 : vector<16x16xf32>
      %c588_i32_218 = arith.constant 588 : i32
      %707 = arith.addi %c588_i32_218, %695 : i32
      %708 = arith.index_cast %707 : i32 to index
      %709 = memref.load %arg8[%708] : memref<882xf32, #tpu.memory_space<smem>>
      %710 = vector.broadcast %709 : f32 to vector<16x16xf32>
      %711 = arith.mulf %710, %693 : vector<16x16xf32>
      %712 = arith.addf %692, %711 : vector<16x16xf32>
      %713 = vector.extract_strided_slice %612 {offsets = [0, 5], sizes = [16, 16], strides = [1, 1]} : vector<16x22xf32> to vector<16x16xf32>
      %c21_i32_219 = arith.constant 21 : i32
      %714 = arith.addi %188, %c21_i32_219 : i32
      %c5_i32_220 = arith.constant 5 : i32
      %715 = arith.addi %714, %c5_i32_220 : i32
      %716 = arith.index_cast %715 : i32 to index
      %717 = memref.load %arg8[%716] : memref<882xf32, #tpu.memory_space<smem>>
      %718 = vector.broadcast %717 : f32 to vector<16x16xf32>
      %719 = arith.mulf %718, %713 : vector<16x16xf32>
      %720 = arith.addf %700, %719 : vector<16x16xf32>
      %c294_i32_221 = arith.constant 294 : i32
      %721 = arith.addi %c294_i32_221, %715 : i32
      %722 = arith.index_cast %721 : i32 to index
      %723 = memref.load %arg8[%722] : memref<882xf32, #tpu.memory_space<smem>>
      %724 = vector.broadcast %723 : f32 to vector<16x16xf32>
      %725 = arith.mulf %724, %713 : vector<16x16xf32>
      %726 = arith.addf %706, %725 : vector<16x16xf32>
      %c588_i32_222 = arith.constant 588 : i32
      %727 = arith.addi %c588_i32_222, %715 : i32
      %728 = arith.index_cast %727 : i32 to index
      %729 = memref.load %arg8[%728] : memref<882xf32, #tpu.memory_space<smem>>
      %730 = vector.broadcast %729 : f32 to vector<16x16xf32>
      %731 = arith.mulf %730, %713 : vector<16x16xf32>
      %732 = arith.addf %712, %731 : vector<16x16xf32>
      %733 = vector.extract_strided_slice %612 {offsets = [0, 6], sizes = [16, 16], strides = [1, 1]} : vector<16x22xf32> to vector<16x16xf32>
      %c21_i32_223 = arith.constant 21 : i32
      %734 = arith.addi %188, %c21_i32_223 : i32
      %c6_i32_224 = arith.constant 6 : i32
      %735 = arith.addi %734, %c6_i32_224 : i32
      %736 = arith.index_cast %735 : i32 to index
      %737 = memref.load %arg8[%736] : memref<882xf32, #tpu.memory_space<smem>>
      %738 = vector.broadcast %737 : f32 to vector<16x16xf32>
      %739 = arith.mulf %738, %733 : vector<16x16xf32>
      %740 = arith.addf %720, %739 : vector<16x16xf32>
      %c294_i32_225 = arith.constant 294 : i32
      %741 = arith.addi %c294_i32_225, %735 : i32
      %742 = arith.index_cast %741 : i32 to index
      %743 = memref.load %arg8[%742] : memref<882xf32, #tpu.memory_space<smem>>
      %744 = vector.broadcast %743 : f32 to vector<16x16xf32>
      %745 = arith.mulf %744, %733 : vector<16x16xf32>
      %746 = arith.addf %726, %745 : vector<16x16xf32>
      %c588_i32_226 = arith.constant 588 : i32
      %747 = arith.addi %c588_i32_226, %735 : i32
      %748 = arith.index_cast %747 : i32 to index
      %749 = memref.load %arg8[%748] : memref<882xf32, #tpu.memory_space<smem>>
      %750 = vector.broadcast %749 : f32 to vector<16x16xf32>
      %751 = arith.mulf %750, %733 : vector<16x16xf32>
      %752 = arith.addf %732, %751 : vector<16x16xf32>
      %753 = vector.extract_strided_slice %187 {offsets = [9, 0], sizes = [16, 22], strides = [1, 1]} : vector<27x22xf32> to vector<16x22xf32>
      %754 = vector.extract_strided_slice %753 {offsets = [0, 0], sizes = [16, 16], strides = [1, 1]} : vector<16x22xf32> to vector<16x16xf32>
      %c28_i32 = arith.constant 28 : i32
      %755 = arith.addi %188, %c28_i32 : i32
      %c0_i32_227 = arith.constant 0 : i32
      %756 = arith.addi %755, %c0_i32_227 : i32
      %757 = arith.index_cast %756 : i32 to index
      %758 = memref.load %arg8[%757] : memref<882xf32, #tpu.memory_space<smem>>
      %759 = vector.broadcast %758 : f32 to vector<16x16xf32>
      %760 = arith.mulf %759, %754 : vector<16x16xf32>
      %761 = arith.addf %740, %760 : vector<16x16xf32>
      %c294_i32_228 = arith.constant 294 : i32
      %762 = arith.addi %c294_i32_228, %756 : i32
      %763 = arith.index_cast %762 : i32 to index
      %764 = memref.load %arg8[%763] : memref<882xf32, #tpu.memory_space<smem>>
      %765 = vector.broadcast %764 : f32 to vector<16x16xf32>
      %766 = arith.mulf %765, %754 : vector<16x16xf32>
      %767 = arith.addf %746, %766 : vector<16x16xf32>
      %c588_i32_229 = arith.constant 588 : i32
      %768 = arith.addi %c588_i32_229, %756 : i32
      %769 = arith.index_cast %768 : i32 to index
      %770 = memref.load %arg8[%769] : memref<882xf32, #tpu.memory_space<smem>>
      %771 = vector.broadcast %770 : f32 to vector<16x16xf32>
      %772 = arith.mulf %771, %754 : vector<16x16xf32>
      %773 = arith.addf %752, %772 : vector<16x16xf32>
      %774 = vector.extract_strided_slice %753 {offsets = [0, 1], sizes = [16, 16], strides = [1, 1]} : vector<16x22xf32> to vector<16x16xf32>
      %c28_i32_230 = arith.constant 28 : i32
      %775 = arith.addi %188, %c28_i32_230 : i32
      %c1_i32_231 = arith.constant 1 : i32
      %776 = arith.addi %775, %c1_i32_231 : i32
      %777 = arith.index_cast %776 : i32 to index
      %778 = memref.load %arg8[%777] : memref<882xf32, #tpu.memory_space<smem>>
      %779 = vector.broadcast %778 : f32 to vector<16x16xf32>
      %780 = arith.mulf %779, %774 : vector<16x16xf32>
      %781 = arith.addf %761, %780 : vector<16x16xf32>
      %c294_i32_232 = arith.constant 294 : i32
      %782 = arith.addi %c294_i32_232, %776 : i32
      %783 = arith.index_cast %782 : i32 to index
      %784 = memref.load %arg8[%783] : memref<882xf32, #tpu.memory_space<smem>>
      %785 = vector.broadcast %784 : f32 to vector<16x16xf32>
      %786 = arith.mulf %785, %774 : vector<16x16xf32>
      %787 = arith.addf %767, %786 : vector<16x16xf32>
      %c588_i32_233 = arith.constant 588 : i32
      %788 = arith.addi %c588_i32_233, %776 : i32
      %789 = arith.index_cast %788 : i32 to index
      %790 = memref.load %arg8[%789] : memref<882xf32, #tpu.memory_space<smem>>
      %791 = vector.broadcast %790 : f32 to vector<16x16xf32>
      %792 = arith.mulf %791, %774 : vector<16x16xf32>
      %793 = arith.addf %773, %792 : vector<16x16xf32>
      %794 = vector.extract_strided_slice %753 {offsets = [0, 2], sizes = [16, 16], strides = [1, 1]} : vector<16x22xf32> to vector<16x16xf32>
      %c28_i32_234 = arith.constant 28 : i32
      %795 = arith.addi %188, %c28_i32_234 : i32
      %c2_i32_235 = arith.constant 2 : i32
      %796 = arith.addi %795, %c2_i32_235 : i32
      %797 = arith.index_cast %796 : i32 to index
      %798 = memref.load %arg8[%797] : memref<882xf32, #tpu.memory_space<smem>>
      %799 = vector.broadcast %798 : f32 to vector<16x16xf32>
      %800 = arith.mulf %799, %794 : vector<16x16xf32>
      %801 = arith.addf %781, %800 : vector<16x16xf32>
      %c294_i32_236 = arith.constant 294 : i32
      %802 = arith.addi %c294_i32_236, %796 : i32
      %803 = arith.index_cast %802 : i32 to index
      %804 = memref.load %arg8[%803] : memref<882xf32, #tpu.memory_space<smem>>
      %805 = vector.broadcast %804 : f32 to vector<16x16xf32>
      %806 = arith.mulf %805, %794 : vector<16x16xf32>
      %807 = arith.addf %787, %806 : vector<16x16xf32>
      %c588_i32_237 = arith.constant 588 : i32
      %808 = arith.addi %c588_i32_237, %796 : i32
      %809 = arith.index_cast %808 : i32 to index
      %810 = memref.load %arg8[%809] : memref<882xf32, #tpu.memory_space<smem>>
      %811 = vector.broadcast %810 : f32 to vector<16x16xf32>
      %812 = arith.mulf %811, %794 : vector<16x16xf32>
      %813 = arith.addf %793, %812 : vector<16x16xf32>
      %814 = vector.extract_strided_slice %753 {offsets = [0, 3], sizes = [16, 16], strides = [1, 1]} : vector<16x22xf32> to vector<16x16xf32>
      %c28_i32_238 = arith.constant 28 : i32
      %815 = arith.addi %188, %c28_i32_238 : i32
      %c3_i32_239 = arith.constant 3 : i32
      %816 = arith.addi %815, %c3_i32_239 : i32
      %817 = arith.index_cast %816 : i32 to index
      %818 = memref.load %arg8[%817] : memref<882xf32, #tpu.memory_space<smem>>
      %819 = vector.broadcast %818 : f32 to vector<16x16xf32>
      %820 = arith.mulf %819, %814 : vector<16x16xf32>
      %821 = arith.addf %801, %820 : vector<16x16xf32>
      %c294_i32_240 = arith.constant 294 : i32
      %822 = arith.addi %c294_i32_240, %816 : i32
      %823 = arith.index_cast %822 : i32 to index
      %824 = memref.load %arg8[%823] : memref<882xf32, #tpu.memory_space<smem>>
      %825 = vector.broadcast %824 : f32 to vector<16x16xf32>
      %826 = arith.mulf %825, %814 : vector<16x16xf32>
      %827 = arith.addf %807, %826 : vector<16x16xf32>
      %c588_i32_241 = arith.constant 588 : i32
      %828 = arith.addi %c588_i32_241, %816 : i32
      %829 = arith.index_cast %828 : i32 to index
      %830 = memref.load %arg8[%829] : memref<882xf32, #tpu.memory_space<smem>>
      %831 = vector.broadcast %830 : f32 to vector<16x16xf32>
      %832 = arith.mulf %831, %814 : vector<16x16xf32>
      %833 = arith.addf %813, %832 : vector<16x16xf32>
      %834 = vector.extract_strided_slice %753 {offsets = [0, 4], sizes = [16, 16], strides = [1, 1]} : vector<16x22xf32> to vector<16x16xf32>
      %c28_i32_242 = arith.constant 28 : i32
      %835 = arith.addi %188, %c28_i32_242 : i32
      %c4_i32_243 = arith.constant 4 : i32
      %836 = arith.addi %835, %c4_i32_243 : i32
      %837 = arith.index_cast %836 : i32 to index
      %838 = memref.load %arg8[%837] : memref<882xf32, #tpu.memory_space<smem>>
      %839 = vector.broadcast %838 : f32 to vector<16x16xf32>
      %840 = arith.mulf %839, %834 : vector<16x16xf32>
      %841 = arith.addf %821, %840 : vector<16x16xf32>
      %c294_i32_244 = arith.constant 294 : i32
      %842 = arith.addi %c294_i32_244, %836 : i32
      %843 = arith.index_cast %842 : i32 to index
      %844 = memref.load %arg8[%843] : memref<882xf32, #tpu.memory_space<smem>>
      %845 = vector.broadcast %844 : f32 to vector<16x16xf32>
      %846 = arith.mulf %845, %834 : vector<16x16xf32>
      %847 = arith.addf %827, %846 : vector<16x16xf32>
      %c588_i32_245 = arith.constant 588 : i32
      %848 = arith.addi %c588_i32_245, %836 : i32
      %849 = arith.index_cast %848 : i32 to index
      %850 = memref.load %arg8[%849] : memref<882xf32, #tpu.memory_space<smem>>
      %851 = vector.broadcast %850 : f32 to vector<16x16xf32>
      %852 = arith.mulf %851, %834 : vector<16x16xf32>
      %853 = arith.addf %833, %852 : vector<16x16xf32>
      %854 = vector.extract_strided_slice %753 {offsets = [0, 5], sizes = [16, 16], strides = [1, 1]} : vector<16x22xf32> to vector<16x16xf32>
      %c28_i32_246 = arith.constant 28 : i32
      %855 = arith.addi %188, %c28_i32_246 : i32
      %c5_i32_247 = arith.constant 5 : i32
      %856 = arith.addi %855, %c5_i32_247 : i32
      %857 = arith.index_cast %856 : i32 to index
      %858 = memref.load %arg8[%857] : memref<882xf32, #tpu.memory_space<smem>>
      %859 = vector.broadcast %858 : f32 to vector<16x16xf32>
      %860 = arith.mulf %859, %854 : vector<16x16xf32>
      %861 = arith.addf %841, %860 : vector<16x16xf32>
      %c294_i32_248 = arith.constant 294 : i32
      %862 = arith.addi %c294_i32_248, %856 : i32
      %863 = arith.index_cast %862 : i32 to index
      %864 = memref.load %arg8[%863] : memref<882xf32, #tpu.memory_space<smem>>
      %865 = vector.broadcast %864 : f32 to vector<16x16xf32>
      %866 = arith.mulf %865, %854 : vector<16x16xf32>
      %867 = arith.addf %847, %866 : vector<16x16xf32>
      %c588_i32_249 = arith.constant 588 : i32
      %868 = arith.addi %c588_i32_249, %856 : i32
      %869 = arith.index_cast %868 : i32 to index
      %870 = memref.load %arg8[%869] : memref<882xf32, #tpu.memory_space<smem>>
      %871 = vector.broadcast %870 : f32 to vector<16x16xf32>
      %872 = arith.mulf %871, %854 : vector<16x16xf32>
      %873 = arith.addf %853, %872 : vector<16x16xf32>
      %874 = vector.extract_strided_slice %753 {offsets = [0, 6], sizes = [16, 16], strides = [1, 1]} : vector<16x22xf32> to vector<16x16xf32>
      %c28_i32_250 = arith.constant 28 : i32
      %875 = arith.addi %188, %c28_i32_250 : i32
      %c6_i32_251 = arith.constant 6 : i32
      %876 = arith.addi %875, %c6_i32_251 : i32
      %877 = arith.index_cast %876 : i32 to index
      %878 = memref.load %arg8[%877] : memref<882xf32, #tpu.memory_space<smem>>
      %879 = vector.broadcast %878 : f32 to vector<16x16xf32>
      %880 = arith.mulf %879, %874 : vector<16x16xf32>
      %881 = arith.addf %861, %880 : vector<16x16xf32>
      %c294_i32_252 = arith.constant 294 : i32
      %882 = arith.addi %c294_i32_252, %876 : i32
      %883 = arith.index_cast %882 : i32 to index
      %884 = memref.load %arg8[%883] : memref<882xf32, #tpu.memory_space<smem>>
      %885 = vector.broadcast %884 : f32 to vector<16x16xf32>
      %886 = arith.mulf %885, %874 : vector<16x16xf32>
      %887 = arith.addf %867, %886 : vector<16x16xf32>
      %c588_i32_253 = arith.constant 588 : i32
      %888 = arith.addi %c588_i32_253, %876 : i32
      %889 = arith.index_cast %888 : i32 to index
      %890 = memref.load %arg8[%889] : memref<882xf32, #tpu.memory_space<smem>>
      %891 = vector.broadcast %890 : f32 to vector<16x16xf32>
      %892 = arith.mulf %891, %874 : vector<16x16xf32>
      %893 = arith.addf %873, %892 : vector<16x16xf32>
      %894 = vector.extract_strided_slice %187 {offsets = [10, 0], sizes = [16, 22], strides = [1, 1]} : vector<27x22xf32> to vector<16x22xf32>
      %895 = vector.extract_strided_slice %894 {offsets = [0, 0], sizes = [16, 16], strides = [1, 1]} : vector<16x22xf32> to vector<16x16xf32>
      %c35_i32 = arith.constant 35 : i32
      %896 = arith.addi %188, %c35_i32 : i32
      %c0_i32_254 = arith.constant 0 : i32
      %897 = arith.addi %896, %c0_i32_254 : i32
      %898 = arith.index_cast %897 : i32 to index
      %899 = memref.load %arg8[%898] : memref<882xf32, #tpu.memory_space<smem>>
      %900 = vector.broadcast %899 : f32 to vector<16x16xf32>
      %901 = arith.mulf %900, %895 : vector<16x16xf32>
      %902 = arith.addf %881, %901 : vector<16x16xf32>
      %c294_i32_255 = arith.constant 294 : i32
      %903 = arith.addi %c294_i32_255, %897 : i32
      %904 = arith.index_cast %903 : i32 to index
      %905 = memref.load %arg8[%904] : memref<882xf32, #tpu.memory_space<smem>>
      %906 = vector.broadcast %905 : f32 to vector<16x16xf32>
      %907 = arith.mulf %906, %895 : vector<16x16xf32>
      %908 = arith.addf %887, %907 : vector<16x16xf32>
      %c588_i32_256 = arith.constant 588 : i32
      %909 = arith.addi %c588_i32_256, %897 : i32
      %910 = arith.index_cast %909 : i32 to index
      %911 = memref.load %arg8[%910] : memref<882xf32, #tpu.memory_space<smem>>
      %912 = vector.broadcast %911 : f32 to vector<16x16xf32>
      %913 = arith.mulf %912, %895 : vector<16x16xf32>
      %914 = arith.addf %893, %913 : vector<16x16xf32>
      %915 = vector.extract_strided_slice %894 {offsets = [0, 1], sizes = [16, 16], strides = [1, 1]} : vector<16x22xf32> to vector<16x16xf32>
      %c35_i32_257 = arith.constant 35 : i32
      %916 = arith.addi %188, %c35_i32_257 : i32
      %c1_i32_258 = arith.constant 1 : i32
      %917 = arith.addi %916, %c1_i32_258 : i32
      %918 = arith.index_cast %917 : i32 to index
      %919 = memref.load %arg8[%918] : memref<882xf32, #tpu.memory_space<smem>>
      %920 = vector.broadcast %919 : f32 to vector<16x16xf32>
      %921 = arith.mulf %920, %915 : vector<16x16xf32>
      %922 = arith.addf %902, %921 : vector<16x16xf32>
      %c294_i32_259 = arith.constant 294 : i32
      %923 = arith.addi %c294_i32_259, %917 : i32
      %924 = arith.index_cast %923 : i32 to index
      %925 = memref.load %arg8[%924] : memref<882xf32, #tpu.memory_space<smem>>
      %926 = vector.broadcast %925 : f32 to vector<16x16xf32>
      %927 = arith.mulf %926, %915 : vector<16x16xf32>
      %928 = arith.addf %908, %927 : vector<16x16xf32>
      %c588_i32_260 = arith.constant 588 : i32
      %929 = arith.addi %c588_i32_260, %917 : i32
      %930 = arith.index_cast %929 : i32 to index
      %931 = memref.load %arg8[%930] : memref<882xf32, #tpu.memory_space<smem>>
      %932 = vector.broadcast %931 : f32 to vector<16x16xf32>
      %933 = arith.mulf %932, %915 : vector<16x16xf32>
      %934 = arith.addf %914, %933 : vector<16x16xf32>
      %935 = vector.extract_strided_slice %894 {offsets = [0, 2], sizes = [16, 16], strides = [1, 1]} : vector<16x22xf32> to vector<16x16xf32>
      %c35_i32_261 = arith.constant 35 : i32
      %936 = arith.addi %188, %c35_i32_261 : i32
      %c2_i32_262 = arith.constant 2 : i32
      %937 = arith.addi %936, %c2_i32_262 : i32
      %938 = arith.index_cast %937 : i32 to index
      %939 = memref.load %arg8[%938] : memref<882xf32, #tpu.memory_space<smem>>
      %940 = vector.broadcast %939 : f32 to vector<16x16xf32>
      %941 = arith.mulf %940, %935 : vector<16x16xf32>
      %942 = arith.addf %922, %941 : vector<16x16xf32>
      %c294_i32_263 = arith.constant 294 : i32
      %943 = arith.addi %c294_i32_263, %937 : i32
      %944 = arith.index_cast %943 : i32 to index
      %945 = memref.load %arg8[%944] : memref<882xf32, #tpu.memory_space<smem>>
      %946 = vector.broadcast %945 : f32 to vector<16x16xf32>
      %947 = arith.mulf %946, %935 : vector<16x16xf32>
      %948 = arith.addf %928, %947 : vector<16x16xf32>
      %c588_i32_264 = arith.constant 588 : i32
      %949 = arith.addi %c588_i32_264, %937 : i32
      %950 = arith.index_cast %949 : i32 to index
      %951 = memref.load %arg8[%950] : memref<882xf32, #tpu.memory_space<smem>>
      %952 = vector.broadcast %951 : f32 to vector<16x16xf32>
      %953 = arith.mulf %952, %935 : vector<16x16xf32>
      %954 = arith.addf %934, %953 : vector<16x16xf32>
      %955 = vector.extract_strided_slice %894 {offsets = [0, 3], sizes = [16, 16], strides = [1, 1]} : vector<16x22xf32> to vector<16x16xf32>
      %c35_i32_265 = arith.constant 35 : i32
      %956 = arith.addi %188, %c35_i32_265 : i32
      %c3_i32_266 = arith.constant 3 : i32
      %957 = arith.addi %956, %c3_i32_266 : i32
      %958 = arith.index_cast %957 : i32 to index
      %959 = memref.load %arg8[%958] : memref<882xf32, #tpu.memory_space<smem>>
      %960 = vector.broadcast %959 : f32 to vector<16x16xf32>
      %961 = arith.mulf %960, %955 : vector<16x16xf32>
      %962 = arith.addf %942, %961 : vector<16x16xf32>
      %c294_i32_267 = arith.constant 294 : i32
      %963 = arith.addi %c294_i32_267, %957 : i32
      %964 = arith.index_cast %963 : i32 to index
      %965 = memref.load %arg8[%964] : memref<882xf32, #tpu.memory_space<smem>>
      %966 = vector.broadcast %965 : f32 to vector<16x16xf32>
      %967 = arith.mulf %966, %955 : vector<16x16xf32>
      %968 = arith.addf %948, %967 : vector<16x16xf32>
      %c588_i32_268 = arith.constant 588 : i32
      %969 = arith.addi %c588_i32_268, %957 : i32
      %970 = arith.index_cast %969 : i32 to index
      %971 = memref.load %arg8[%970] : memref<882xf32, #tpu.memory_space<smem>>
      %972 = vector.broadcast %971 : f32 to vector<16x16xf32>
      %973 = arith.mulf %972, %955 : vector<16x16xf32>
      %974 = arith.addf %954, %973 : vector<16x16xf32>
      %975 = vector.extract_strided_slice %894 {offsets = [0, 4], sizes = [16, 16], strides = [1, 1]} : vector<16x22xf32> to vector<16x16xf32>
      %c35_i32_269 = arith.constant 35 : i32
      %976 = arith.addi %188, %c35_i32_269 : i32
      %c4_i32_270 = arith.constant 4 : i32
      %977 = arith.addi %976, %c4_i32_270 : i32
      %978 = arith.index_cast %977 : i32 to index
      %979 = memref.load %arg8[%978] : memref<882xf32, #tpu.memory_space<smem>>
      %980 = vector.broadcast %979 : f32 to vector<16x16xf32>
      %981 = arith.mulf %980, %975 : vector<16x16xf32>
      %982 = arith.addf %962, %981 : vector<16x16xf32>
      %c294_i32_271 = arith.constant 294 : i32
      %983 = arith.addi %c294_i32_271, %977 : i32
      %984 = arith.index_cast %983 : i32 to index
      %985 = memref.load %arg8[%984] : memref<882xf32, #tpu.memory_space<smem>>
      %986 = vector.broadcast %985 : f32 to vector<16x16xf32>
      %987 = arith.mulf %986, %975 : vector<16x16xf32>
      %988 = arith.addf %968, %987 : vector<16x16xf32>
      %c588_i32_272 = arith.constant 588 : i32
      %989 = arith.addi %c588_i32_272, %977 : i32
      %990 = arith.index_cast %989 : i32 to index
      %991 = memref.load %arg8[%990] : memref<882xf32, #tpu.memory_space<smem>>
      %992 = vector.broadcast %991 : f32 to vector<16x16xf32>
      %993 = arith.mulf %992, %975 : vector<16x16xf32>
      %994 = arith.addf %974, %993 : vector<16x16xf32>
      %995 = vector.extract_strided_slice %894 {offsets = [0, 5], sizes = [16, 16], strides = [1, 1]} : vector<16x22xf32> to vector<16x16xf32>
      %c35_i32_273 = arith.constant 35 : i32
      %996 = arith.addi %188, %c35_i32_273 : i32
      %c5_i32_274 = arith.constant 5 : i32
      %997 = arith.addi %996, %c5_i32_274 : i32
      %998 = arith.index_cast %997 : i32 to index
      %999 = memref.load %arg8[%998] : memref<882xf32, #tpu.memory_space<smem>>
      %1000 = vector.broadcast %999 : f32 to vector<16x16xf32>
      %1001 = arith.mulf %1000, %995 : vector<16x16xf32>
      %1002 = arith.addf %982, %1001 : vector<16x16xf32>
      %c294_i32_275 = arith.constant 294 : i32
      %1003 = arith.addi %c294_i32_275, %997 : i32
      %1004 = arith.index_cast %1003 : i32 to index
      %1005 = memref.load %arg8[%1004] : memref<882xf32, #tpu.memory_space<smem>>
      %1006 = vector.broadcast %1005 : f32 to vector<16x16xf32>
      %1007 = arith.mulf %1006, %995 : vector<16x16xf32>
      %1008 = arith.addf %988, %1007 : vector<16x16xf32>
      %c588_i32_276 = arith.constant 588 : i32
      %1009 = arith.addi %c588_i32_276, %997 : i32
      %1010 = arith.index_cast %1009 : i32 to index
      %1011 = memref.load %arg8[%1010] : memref<882xf32, #tpu.memory_space<smem>>
      %1012 = vector.broadcast %1011 : f32 to vector<16x16xf32>
      %1013 = arith.mulf %1012, %995 : vector<16x16xf32>
      %1014 = arith.addf %994, %1013 : vector<16x16xf32>
      %1015 = vector.extract_strided_slice %894 {offsets = [0, 6], sizes = [16, 16], strides = [1, 1]} : vector<16x22xf32> to vector<16x16xf32>
      %c35_i32_277 = arith.constant 35 : i32
      %1016 = arith.addi %188, %c35_i32_277 : i32
      %c6_i32_278 = arith.constant 6 : i32
      %1017 = arith.addi %1016, %c6_i32_278 : i32
      %1018 = arith.index_cast %1017 : i32 to index
      %1019 = memref.load %arg8[%1018] : memref<882xf32, #tpu.memory_space<smem>>
      %1020 = vector.broadcast %1019 : f32 to vector<16x16xf32>
      %1021 = arith.mulf %1020, %1015 : vector<16x16xf32>
      %1022 = arith.addf %1002, %1021 : vector<16x16xf32>
      %c294_i32_279 = arith.constant 294 : i32
      %1023 = arith.addi %c294_i32_279, %1017 : i32
      %1024 = arith.index_cast %1023 : i32 to index
      %1025 = memref.load %arg8[%1024] : memref<882xf32, #tpu.memory_space<smem>>
      %1026 = vector.broadcast %1025 : f32 to vector<16x16xf32>
      %1027 = arith.mulf %1026, %1015 : vector<16x16xf32>
      %1028 = arith.addf %1008, %1027 : vector<16x16xf32>
      %c588_i32_280 = arith.constant 588 : i32
      %1029 = arith.addi %c588_i32_280, %1017 : i32
      %1030 = arith.index_cast %1029 : i32 to index
      %1031 = memref.load %arg8[%1030] : memref<882xf32, #tpu.memory_space<smem>>
      %1032 = vector.broadcast %1031 : f32 to vector<16x16xf32>
      %1033 = arith.mulf %1032, %1015 : vector<16x16xf32>
      %1034 = arith.addf %1014, %1033 : vector<16x16xf32>
      %1035 = vector.extract_strided_slice %187 {offsets = [11, 0], sizes = [16, 22], strides = [1, 1]} : vector<27x22xf32> to vector<16x22xf32>
      %1036 = vector.extract_strided_slice %1035 {offsets = [0, 0], sizes = [16, 16], strides = [1, 1]} : vector<16x22xf32> to vector<16x16xf32>
      %c42_i32 = arith.constant 42 : i32
      %1037 = arith.addi %188, %c42_i32 : i32
      %c0_i32_281 = arith.constant 0 : i32
      %1038 = arith.addi %1037, %c0_i32_281 : i32
      %1039 = arith.index_cast %1038 : i32 to index
      %1040 = memref.load %arg8[%1039] : memref<882xf32, #tpu.memory_space<smem>>
      %1041 = vector.broadcast %1040 : f32 to vector<16x16xf32>
      %1042 = arith.mulf %1041, %1036 : vector<16x16xf32>
      %1043 = arith.addf %1022, %1042 : vector<16x16xf32>
      %c294_i32_282 = arith.constant 294 : i32
      %1044 = arith.addi %c294_i32_282, %1038 : i32
      %1045 = arith.index_cast %1044 : i32 to index
      %1046 = memref.load %arg8[%1045] : memref<882xf32, #tpu.memory_space<smem>>
      %1047 = vector.broadcast %1046 : f32 to vector<16x16xf32>
      %1048 = arith.mulf %1047, %1036 : vector<16x16xf32>
      %1049 = arith.addf %1028, %1048 : vector<16x16xf32>
      %c588_i32_283 = arith.constant 588 : i32
      %1050 = arith.addi %c588_i32_283, %1038 : i32
      %1051 = arith.index_cast %1050 : i32 to index
      %1052 = memref.load %arg8[%1051] : memref<882xf32, #tpu.memory_space<smem>>
      %1053 = vector.broadcast %1052 : f32 to vector<16x16xf32>
      %1054 = arith.mulf %1053, %1036 : vector<16x16xf32>
      %1055 = arith.addf %1034, %1054 : vector<16x16xf32>
      %1056 = vector.extract_strided_slice %1035 {offsets = [0, 1], sizes = [16, 16], strides = [1, 1]} : vector<16x22xf32> to vector<16x16xf32>
      %c42_i32_284 = arith.constant 42 : i32
      %1057 = arith.addi %188, %c42_i32_284 : i32
      %c1_i32_285 = arith.constant 1 : i32
      %1058 = arith.addi %1057, %c1_i32_285 : i32
      %1059 = arith.index_cast %1058 : i32 to index
      %1060 = memref.load %arg8[%1059] : memref<882xf32, #tpu.memory_space<smem>>
      %1061 = vector.broadcast %1060 : f32 to vector<16x16xf32>
      %1062 = arith.mulf %1061, %1056 : vector<16x16xf32>
      %1063 = arith.addf %1043, %1062 : vector<16x16xf32>
      %c294_i32_286 = arith.constant 294 : i32
      %1064 = arith.addi %c294_i32_286, %1058 : i32
      %1065 = arith.index_cast %1064 : i32 to index
      %1066 = memref.load %arg8[%1065] : memref<882xf32, #tpu.memory_space<smem>>
      %1067 = vector.broadcast %1066 : f32 to vector<16x16xf32>
      %1068 = arith.mulf %1067, %1056 : vector<16x16xf32>
      %1069 = arith.addf %1049, %1068 : vector<16x16xf32>
      %c588_i32_287 = arith.constant 588 : i32
      %1070 = arith.addi %c588_i32_287, %1058 : i32
      %1071 = arith.index_cast %1070 : i32 to index
      %1072 = memref.load %arg8[%1071] : memref<882xf32, #tpu.memory_space<smem>>
      %1073 = vector.broadcast %1072 : f32 to vector<16x16xf32>
      %1074 = arith.mulf %1073, %1056 : vector<16x16xf32>
      %1075 = arith.addf %1055, %1074 : vector<16x16xf32>
      %1076 = vector.extract_strided_slice %1035 {offsets = [0, 2], sizes = [16, 16], strides = [1, 1]} : vector<16x22xf32> to vector<16x16xf32>
      %c42_i32_288 = arith.constant 42 : i32
      %1077 = arith.addi %188, %c42_i32_288 : i32
      %c2_i32_289 = arith.constant 2 : i32
      %1078 = arith.addi %1077, %c2_i32_289 : i32
      %1079 = arith.index_cast %1078 : i32 to index
      %1080 = memref.load %arg8[%1079] : memref<882xf32, #tpu.memory_space<smem>>
      %1081 = vector.broadcast %1080 : f32 to vector<16x16xf32>
      %1082 = arith.mulf %1081, %1076 : vector<16x16xf32>
      %1083 = arith.addf %1063, %1082 : vector<16x16xf32>
      %c294_i32_290 = arith.constant 294 : i32
      %1084 = arith.addi %c294_i32_290, %1078 : i32
      %1085 = arith.index_cast %1084 : i32 to index
      %1086 = memref.load %arg8[%1085] : memref<882xf32, #tpu.memory_space<smem>>
      %1087 = vector.broadcast %1086 : f32 to vector<16x16xf32>
      %1088 = arith.mulf %1087, %1076 : vector<16x16xf32>
      %1089 = arith.addf %1069, %1088 : vector<16x16xf32>
      %c588_i32_291 = arith.constant 588 : i32
      %1090 = arith.addi %c588_i32_291, %1078 : i32
      %1091 = arith.index_cast %1090 : i32 to index
      %1092 = memref.load %arg8[%1091] : memref<882xf32, #tpu.memory_space<smem>>
      %1093 = vector.broadcast %1092 : f32 to vector<16x16xf32>
      %1094 = arith.mulf %1093, %1076 : vector<16x16xf32>
      %1095 = arith.addf %1075, %1094 : vector<16x16xf32>
      %1096 = vector.extract_strided_slice %1035 {offsets = [0, 3], sizes = [16, 16], strides = [1, 1]} : vector<16x22xf32> to vector<16x16xf32>
      %c42_i32_292 = arith.constant 42 : i32
      %1097 = arith.addi %188, %c42_i32_292 : i32
      %c3_i32_293 = arith.constant 3 : i32
      %1098 = arith.addi %1097, %c3_i32_293 : i32
      %1099 = arith.index_cast %1098 : i32 to index
      %1100 = memref.load %arg8[%1099] : memref<882xf32, #tpu.memory_space<smem>>
      %1101 = vector.broadcast %1100 : f32 to vector<16x16xf32>
      %1102 = arith.mulf %1101, %1096 : vector<16x16xf32>
      %1103 = arith.addf %1083, %1102 : vector<16x16xf32>
      %c294_i32_294 = arith.constant 294 : i32
      %1104 = arith.addi %c294_i32_294, %1098 : i32
      %1105 = arith.index_cast %1104 : i32 to index
      %1106 = memref.load %arg8[%1105] : memref<882xf32, #tpu.memory_space<smem>>
      %1107 = vector.broadcast %1106 : f32 to vector<16x16xf32>
      %1108 = arith.mulf %1107, %1096 : vector<16x16xf32>
      %1109 = arith.addf %1089, %1108 : vector<16x16xf32>
      %c588_i32_295 = arith.constant 588 : i32
      %1110 = arith.addi %c588_i32_295, %1098 : i32
      %1111 = arith.index_cast %1110 : i32 to index
      %1112 = memref.load %arg8[%1111] : memref<882xf32, #tpu.memory_space<smem>>
      %1113 = vector.broadcast %1112 : f32 to vector<16x16xf32>
      %1114 = arith.mulf %1113, %1096 : vector<16x16xf32>
      %1115 = arith.addf %1095, %1114 : vector<16x16xf32>
      %1116 = vector.extract_strided_slice %1035 {offsets = [0, 4], sizes = [16, 16], strides = [1, 1]} : vector<16x22xf32> to vector<16x16xf32>
      %c42_i32_296 = arith.constant 42 : i32
      %1117 = arith.addi %188, %c42_i32_296 : i32
      %c4_i32_297 = arith.constant 4 : i32
      %1118 = arith.addi %1117, %c4_i32_297 : i32
      %1119 = arith.index_cast %1118 : i32 to index
      %1120 = memref.load %arg8[%1119] : memref<882xf32, #tpu.memory_space<smem>>
      %1121 = vector.broadcast %1120 : f32 to vector<16x16xf32>
      %1122 = arith.mulf %1121, %1116 : vector<16x16xf32>
      %1123 = arith.addf %1103, %1122 : vector<16x16xf32>
      %c294_i32_298 = arith.constant 294 : i32
      %1124 = arith.addi %c294_i32_298, %1118 : i32
      %1125 = arith.index_cast %1124 : i32 to index
      %1126 = memref.load %arg8[%1125] : memref<882xf32, #tpu.memory_space<smem>>
      %1127 = vector.broadcast %1126 : f32 to vector<16x16xf32>
      %1128 = arith.mulf %1127, %1116 : vector<16x16xf32>
      %1129 = arith.addf %1109, %1128 : vector<16x16xf32>
      %c588_i32_299 = arith.constant 588 : i32
      %1130 = arith.addi %c588_i32_299, %1118 : i32
      %1131 = arith.index_cast %1130 : i32 to index
      %1132 = memref.load %arg8[%1131] : memref<882xf32, #tpu.memory_space<smem>>
      %1133 = vector.broadcast %1132 : f32 to vector<16x16xf32>
      %1134 = arith.mulf %1133, %1116 : vector<16x16xf32>
      %1135 = arith.addf %1115, %1134 : vector<16x16xf32>
      %1136 = vector.extract_strided_slice %1035 {offsets = [0, 5], sizes = [16, 16], strides = [1, 1]} : vector<16x22xf32> to vector<16x16xf32>
      %c42_i32_300 = arith.constant 42 : i32
      %1137 = arith.addi %188, %c42_i32_300 : i32
      %c5_i32_301 = arith.constant 5 : i32
      %1138 = arith.addi %1137, %c5_i32_301 : i32
      %1139 = arith.index_cast %1138 : i32 to index
      %1140 = memref.load %arg8[%1139] : memref<882xf32, #tpu.memory_space<smem>>
      %1141 = vector.broadcast %1140 : f32 to vector<16x16xf32>
      %1142 = arith.mulf %1141, %1136 : vector<16x16xf32>
      %1143 = arith.addf %1123, %1142 : vector<16x16xf32>
      %c294_i32_302 = arith.constant 294 : i32
      %1144 = arith.addi %c294_i32_302, %1138 : i32
      %1145 = arith.index_cast %1144 : i32 to index
      %1146 = memref.load %arg8[%1145] : memref<882xf32, #tpu.memory_space<smem>>
      %1147 = vector.broadcast %1146 : f32 to vector<16x16xf32>
      %1148 = arith.mulf %1147, %1136 : vector<16x16xf32>
      %1149 = arith.addf %1129, %1148 : vector<16x16xf32>
      %c588_i32_303 = arith.constant 588 : i32
      %1150 = arith.addi %c588_i32_303, %1138 : i32
      %1151 = arith.index_cast %1150 : i32 to index
      %1152 = memref.load %arg8[%1151] : memref<882xf32, #tpu.memory_space<smem>>
      %1153 = vector.broadcast %1152 : f32 to vector<16x16xf32>
      %1154 = arith.mulf %1153, %1136 : vector<16x16xf32>
      %1155 = arith.addf %1135, %1154 : vector<16x16xf32>
      %1156 = vector.extract_strided_slice %1035 {offsets = [0, 6], sizes = [16, 16], strides = [1, 1]} : vector<16x22xf32> to vector<16x16xf32>
      %c42_i32_304 = arith.constant 42 : i32
      %1157 = arith.addi %188, %c42_i32_304 : i32
      %c6_i32_305 = arith.constant 6 : i32
      %1158 = arith.addi %1157, %c6_i32_305 : i32
      %1159 = arith.index_cast %1158 : i32 to index
      %1160 = memref.load %arg8[%1159] : memref<882xf32, #tpu.memory_space<smem>>
      %1161 = vector.broadcast %1160 : f32 to vector<16x16xf32>
      %1162 = arith.mulf %1161, %1156 : vector<16x16xf32>
      %1163 = arith.addf %1143, %1162 : vector<16x16xf32>
      %c294_i32_306 = arith.constant 294 : i32
      %1164 = arith.addi %c294_i32_306, %1158 : i32
      %1165 = arith.index_cast %1164 : i32 to index
      %1166 = memref.load %arg8[%1165] : memref<882xf32, #tpu.memory_space<smem>>
      %1167 = vector.broadcast %1166 : f32 to vector<16x16xf32>
      %1168 = arith.mulf %1167, %1156 : vector<16x16xf32>
      %1169 = arith.addf %1149, %1168 : vector<16x16xf32>
      %c588_i32_307 = arith.constant 588 : i32
      %1170 = arith.addi %c588_i32_307, %1158 : i32
      %1171 = arith.index_cast %1170 : i32 to index
      %1172 = memref.load %arg8[%1171] : memref<882xf32, #tpu.memory_space<smem>>
      %1173 = vector.broadcast %1172 : f32 to vector<16x16xf32>
      %1174 = arith.mulf %1173, %1156 : vector<16x16xf32>
      %1175 = arith.addf %1155, %1174 : vector<16x16xf32>
      scf.yield %1163, %1169, %1175 : vector<16x16xf32>, vector<16x16xf32>, vector<16x16xf32>
    }
    %c6_i32_80 = arith.constant 6 : i32
    %cst_81 = arith.constant 0.000000e+00 : f32
    %125 = vector.broadcast %cst_81 : f32 to vector<16x16xf32>
    %126 = arith.maximumf %124#0, %125 : vector<16x16xf32>
    %cst_82 = arith.constant 0.000000e+00 : f32
    %127 = vector.broadcast %cst_82 : f32 to vector<16x16xf32>
    %128 = arith.maximumf %124#1, %127 : vector<16x16xf32>
    %cst_83 = arith.constant 0.000000e+00 : f32
    %129 = vector.broadcast %cst_83 : f32 to vector<16x16xf32>
    %130 = arith.maximumf %124#2, %129 : vector<16x16xf32>
    %c9 = arith.constant 9 : index
    %c8_84 = arith.constant 8 : index
    %c3_85 = arith.constant 3 : index
    %131 = vector.load %arg13[%c9, %c8_84, %c3_85] : memref<12x27x22xf32, #tpu.memory_space<vmem>>, vector<1x16x16xf32>
    %132 = vector.shape_cast %131 : vector<1x16x16xf32> to vector<16x16xf32>
    %133 = vector.shape_cast %126 : vector<16x16xf32> to vector<1x16x16xf32>
    tpu.vector_store %arg13[%c9, %c8_84, %c3_85], %133 {strides = array<i32>} : memref<12x27x22xf32, #tpu.memory_space<vmem>>, vector<1x16x16xf32>,
    %c10 = arith.constant 10 : index
    %c8_86 = arith.constant 8 : index
    %c3_87 = arith.constant 3 : index
    %134 = vector.load %arg13[%c10, %c8_86, %c3_87] : memref<12x27x22xf32, #tpu.memory_space<vmem>>, vector<1x16x16xf32>
    %135 = vector.shape_cast %134 : vector<1x16x16xf32> to vector<16x16xf32>
    %136 = vector.shape_cast %128 : vector<16x16xf32> to vector<1x16x16xf32>
    tpu.vector_store %arg13[%c10, %c8_86, %c3_87], %136 {strides = array<i32>} : memref<12x27x22xf32, #tpu.memory_space<vmem>>, vector<1x16x16xf32>,
    %c11 = arith.constant 11 : index
    %c8_88 = arith.constant 8 : index
    %c3_89 = arith.constant 3 : index
    %137 = vector.load %arg13[%c11, %c8_88, %c3_89] : memref<12x27x22xf32, #tpu.memory_space<vmem>>, vector<1x16x16xf32>
    %138 = vector.shape_cast %137 : vector<1x16x16xf32> to vector<16x16xf32>
    %139 = vector.shape_cast %130 : vector<16x16xf32> to vector<1x16x16xf32>
    tpu.vector_store %arg13[%c11, %c8_88, %c3_89], %139 {strides = array<i32>} : memref<12x27x22xf32, #tpu.memory_space<vmem>>, vector<1x16x16xf32>,
    %c0_90 = arith.constant 0 : index
    %140 = memref.load %arg11[%c0_90] : memref<3xf32, #tpu.memory_space<smem>>
    %141 = vector.broadcast %140 : f32 to vector<16x16xf32>
    %c1_91 = arith.constant 1 : index
    %142 = memref.load %arg11[%c1_91] : memref<3xf32, #tpu.memory_space<smem>>
    %143 = vector.broadcast %142 : f32 to vector<16x16xf32>
    %c2_92 = arith.constant 2 : index
    %144 = memref.load %arg11[%c2_92] : memref<3xf32, #tpu.memory_space<smem>>
    %145 = vector.broadcast %144 : f32 to vector<16x16xf32>
    %c0_i32_93 = arith.constant 0 : i32
    %c12_i32 = arith.constant 12 : i32
    %146 = arith.addi %c0_i32_93, %c12_i32 : i32
    %c1_i32_94 = arith.constant 1 : i32
    %147:3 = scf.for %arg14 = %c0_i32_93 to %146 step %c1_i32_94 iter_args(%arg15 = %141, %arg16 = %143, %arg17 = %145) -> (vector<16x16xf32>, vector<16x16xf32>, vector<16x16xf32>)  : i32 {
      %c0_i32_120 = arith.constant 0 : i32
      %184 = arith.addi %c0_i32_120, %arg14 : i32
      %185 = arith.index_cast %184 : i32 to index
      %c0_121 = arith.constant 0 : index
      %c0_122 = arith.constant 0 : index
      %186 = vector.load %arg13[%185, %c0_121, %c0_122] : memref<12x27x22xf32, #tpu.memory_space<vmem>>, vector<1x27x22xf32>
      %187 = vector.shape_cast %186 : vector<1x27x22xf32> to vector<27x22xf32>
      %c9_i32 = arith.constant 9 : i32
      %188 = arith.muli %arg14, %c9_i32 : i32
      %189 = vector.extract_strided_slice %187 {offsets = [7, 0], sizes = [16, 22], strides = [1, 1]} : vector<27x22xf32> to vector<16x22xf32>
      %190 = vector.extract_strided_slice %189 {offsets = [0, 2], sizes = [16, 16], strides = [1, 1]} : vector<16x22xf32> to vector<16x16xf32>
      %c0_i32_123 = arith.constant 0 : i32
      %191 = arith.addi %188, %c0_i32_123 : i32
      %c0_i32_124 = arith.constant 0 : i32
      %192 = arith.addi %191, %c0_i32_124 : i32
      %193 = arith.index_cast %192 : i32 to index
      %194 = memref.load %arg10[%193] : memref<324xf32, #tpu.memory_space<smem>>
      %195 = vector.broadcast %194 : f32 to vector<16x16xf32>
      %196 = arith.mulf %195, %190 : vector<16x16xf32>
      %197 = arith.addf %arg15, %196 : vector<16x16xf32>
      %c108_i32 = arith.constant 108 : i32
      %198 = arith.addi %c108_i32, %192 : i32
      %199 = arith.index_cast %198 : i32 to index
      %200 = memref.load %arg10[%199] : memref<324xf32, #tpu.memory_space<smem>>
      %201 = vector.broadcast %200 : f32 to vector<16x16xf32>
      %202 = arith.mulf %201, %190 : vector<16x16xf32>
      %203 = arith.addf %arg16, %202 : vector<16x16xf32>
      %c216_i32 = arith.constant 216 : i32
      %204 = arith.addi %c216_i32, %192 : i32
      %205 = arith.index_cast %204 : i32 to index
      %206 = memref.load %arg10[%205] : memref<324xf32, #tpu.memory_space<smem>>
      %207 = vector.broadcast %206 : f32 to vector<16x16xf32>
      %208 = arith.mulf %207, %190 : vector<16x16xf32>
      %209 = arith.addf %arg17, %208 : vector<16x16xf32>
      %210 = vector.extract_strided_slice %189 {offsets = [0, 3], sizes = [16, 16], strides = [1, 1]} : vector<16x22xf32> to vector<16x16xf32>
      %c0_i32_125 = arith.constant 0 : i32
      %211 = arith.addi %188, %c0_i32_125 : i32
      %c1_i32_126 = arith.constant 1 : i32
      %212 = arith.addi %211, %c1_i32_126 : i32
      %213 = arith.index_cast %212 : i32 to index
      %214 = memref.load %arg10[%213] : memref<324xf32, #tpu.memory_space<smem>>
      %215 = vector.broadcast %214 : f32 to vector<16x16xf32>
      %216 = arith.mulf %215, %210 : vector<16x16xf32>
      %217 = arith.addf %197, %216 : vector<16x16xf32>
      %c108_i32_127 = arith.constant 108 : i32
      %218 = arith.addi %c108_i32_127, %212 : i32
      %219 = arith.index_cast %218 : i32 to index
      %220 = memref.load %arg10[%219] : memref<324xf32, #tpu.memory_space<smem>>
      %221 = vector.broadcast %220 : f32 to vector<16x16xf32>
      %222 = arith.mulf %221, %210 : vector<16x16xf32>
      %223 = arith.addf %203, %222 : vector<16x16xf32>
      %c216_i32_128 = arith.constant 216 : i32
      %224 = arith.addi %c216_i32_128, %212 : i32
      %225 = arith.index_cast %224 : i32 to index
      %226 = memref.load %arg10[%225] : memref<324xf32, #tpu.memory_space<smem>>
      %227 = vector.broadcast %226 : f32 to vector<16x16xf32>
      %228 = arith.mulf %227, %210 : vector<16x16xf32>
      %229 = arith.addf %209, %228 : vector<16x16xf32>
      %230 = vector.extract_strided_slice %189 {offsets = [0, 4], sizes = [16, 16], strides = [1, 1]} : vector<16x22xf32> to vector<16x16xf32>
      %c0_i32_129 = arith.constant 0 : i32
      %231 = arith.addi %188, %c0_i32_129 : i32
      %c2_i32 = arith.constant 2 : i32
      %232 = arith.addi %231, %c2_i32 : i32
      %233 = arith.index_cast %232 : i32 to index
      %234 = memref.load %arg10[%233] : memref<324xf32, #tpu.memory_space<smem>>
      %235 = vector.broadcast %234 : f32 to vector<16x16xf32>
      %236 = arith.mulf %235, %230 : vector<16x16xf32>
      %237 = arith.addf %217, %236 : vector<16x16xf32>
      %c108_i32_130 = arith.constant 108 : i32
      %238 = arith.addi %c108_i32_130, %232 : i32
      %239 = arith.index_cast %238 : i32 to index
      %240 = memref.load %arg10[%239] : memref<324xf32, #tpu.memory_space<smem>>
      %241 = vector.broadcast %240 : f32 to vector<16x16xf32>
      %242 = arith.mulf %241, %230 : vector<16x16xf32>
      %243 = arith.addf %223, %242 : vector<16x16xf32>
      %c216_i32_131 = arith.constant 216 : i32
      %244 = arith.addi %c216_i32_131, %232 : i32
      %245 = arith.index_cast %244 : i32 to index
      %246 = memref.load %arg10[%245] : memref<324xf32, #tpu.memory_space<smem>>
      %247 = vector.broadcast %246 : f32 to vector<16x16xf32>
      %248 = arith.mulf %247, %230 : vector<16x16xf32>
      %249 = arith.addf %229, %248 : vector<16x16xf32>
      %250 = vector.extract_strided_slice %187 {offsets = [8, 0], sizes = [16, 22], strides = [1, 1]} : vector<27x22xf32> to vector<16x22xf32>
      %251 = vector.extract_strided_slice %250 {offsets = [0, 2], sizes = [16, 16], strides = [1, 1]} : vector<16x22xf32> to vector<16x16xf32>
      %c3_i32_132 = arith.constant 3 : i32
      %252 = arith.addi %188, %c3_i32_132 : i32
      %c0_i32_133 = arith.constant 0 : i32
      %253 = arith.addi %252, %c0_i32_133 : i32
      %254 = arith.index_cast %253 : i32 to index
      %255 = memref.load %arg10[%254] : memref<324xf32, #tpu.memory_space<smem>>
      %256 = vector.broadcast %255 : f32 to vector<16x16xf32>
      %257 = arith.mulf %256, %251 : vector<16x16xf32>
      %258 = arith.addf %237, %257 : vector<16x16xf32>
      %c108_i32_134 = arith.constant 108 : i32
      %259 = arith.addi %c108_i32_134, %253 : i32
      %260 = arith.index_cast %259 : i32 to index
      %261 = memref.load %arg10[%260] : memref<324xf32, #tpu.memory_space<smem>>
      %262 = vector.broadcast %261 : f32 to vector<16x16xf32>
      %263 = arith.mulf %262, %251 : vector<16x16xf32>
      %264 = arith.addf %243, %263 : vector<16x16xf32>
      %c216_i32_135 = arith.constant 216 : i32
      %265 = arith.addi %c216_i32_135, %253 : i32
      %266 = arith.index_cast %265 : i32 to index
      %267 = memref.load %arg10[%266] : memref<324xf32, #tpu.memory_space<smem>>
      %268 = vector.broadcast %267 : f32 to vector<16x16xf32>
      %269 = arith.mulf %268, %251 : vector<16x16xf32>
      %270 = arith.addf %249, %269 : vector<16x16xf32>
      %271 = vector.extract_strided_slice %250 {offsets = [0, 3], sizes = [16, 16], strides = [1, 1]} : vector<16x22xf32> to vector<16x16xf32>
      %c3_i32_136 = arith.constant 3 : i32
      %272 = arith.addi %188, %c3_i32_136 : i32
      %c1_i32_137 = arith.constant 1 : i32
      %273 = arith.addi %272, %c1_i32_137 : i32
      %274 = arith.index_cast %273 : i32 to index
      %275 = memref.load %arg10[%274] : memref<324xf32, #tpu.memory_space<smem>>
      %276 = vector.broadcast %275 : f32 to vector<16x16xf32>
      %277 = arith.mulf %276, %271 : vector<16x16xf32>
      %278 = arith.addf %258, %277 : vector<16x16xf32>
      %c108_i32_138 = arith.constant 108 : i32
      %279 = arith.addi %c108_i32_138, %273 : i32
      %280 = arith.index_cast %279 : i32 to index
      %281 = memref.load %arg10[%280] : memref<324xf32, #tpu.memory_space<smem>>
      %282 = vector.broadcast %281 : f32 to vector<16x16xf32>
      %283 = arith.mulf %282, %271 : vector<16x16xf32>
      %284 = arith.addf %264, %283 : vector<16x16xf32>
      %c216_i32_139 = arith.constant 216 : i32
      %285 = arith.addi %c216_i32_139, %273 : i32
      %286 = arith.index_cast %285 : i32 to index
      %287 = memref.load %arg10[%286] : memref<324xf32, #tpu.memory_space<smem>>
      %288 = vector.broadcast %287 : f32 to vector<16x16xf32>
      %289 = arith.mulf %288, %271 : vector<16x16xf32>
      %290 = arith.addf %270, %289 : vector<16x16xf32>
      %291 = vector.extract_strided_slice %250 {offsets = [0, 4], sizes = [16, 16], strides = [1, 1]} : vector<16x22xf32> to vector<16x16xf32>
      %c3_i32_140 = arith.constant 3 : i32
      %292 = arith.addi %188, %c3_i32_140 : i32
      %c2_i32_141 = arith.constant 2 : i32
      %293 = arith.addi %292, %c2_i32_141 : i32
      %294 = arith.index_cast %293 : i32 to index
      %295 = memref.load %arg10[%294] : memref<324xf32, #tpu.memory_space<smem>>
      %296 = vector.broadcast %295 : f32 to vector<16x16xf32>
      %297 = arith.mulf %296, %291 : vector<16x16xf32>
      %298 = arith.addf %278, %297 : vector<16x16xf32>
      %c108_i32_142 = arith.constant 108 : i32
      %299 = arith.addi %c108_i32_142, %293 : i32
      %300 = arith.index_cast %299 : i32 to index
      %301 = memref.load %arg10[%300] : memref<324xf32, #tpu.memory_space<smem>>
      %302 = vector.broadcast %301 : f32 to vector<16x16xf32>
      %303 = arith.mulf %302, %291 : vector<16x16xf32>
      %304 = arith.addf %284, %303 : vector<16x16xf32>
      %c216_i32_143 = arith.constant 216 : i32
      %305 = arith.addi %c216_i32_143, %293 : i32
      %306 = arith.index_cast %305 : i32 to index
      %307 = memref.load %arg10[%306] : memref<324xf32, #tpu.memory_space<smem>>
      %308 = vector.broadcast %307 : f32 to vector<16x16xf32>
      %309 = arith.mulf %308, %291 : vector<16x16xf32>
      %310 = arith.addf %290, %309 : vector<16x16xf32>
      %311 = vector.extract_strided_slice %187 {offsets = [9, 0], sizes = [16, 22], strides = [1, 1]} : vector<27x22xf32> to vector<16x22xf32>
      %312 = vector.extract_strided_slice %311 {offsets = [0, 2], sizes = [16, 16], strides = [1, 1]} : vector<16x22xf32> to vector<16x16xf32>
      %c6_i32_144 = arith.constant 6 : i32
      %313 = arith.addi %188, %c6_i32_144 : i32
      %c0_i32_145 = arith.constant 0 : i32
      %314 = arith.addi %313, %c0_i32_145 : i32
      %315 = arith.index_cast %314 : i32 to index
      %316 = memref.load %arg10[%315] : memref<324xf32, #tpu.memory_space<smem>>
      %317 = vector.broadcast %316 : f32 to vector<16x16xf32>
      %318 = arith.mulf %317, %312 : vector<16x16xf32>
      %319 = arith.addf %298, %318 : vector<16x16xf32>
      %c108_i32_146 = arith.constant 108 : i32
      %320 = arith.addi %c108_i32_146, %314 : i32
      %321 = arith.index_cast %320 : i32 to index
      %322 = memref.load %arg10[%321] : memref<324xf32, #tpu.memory_space<smem>>
      %323 = vector.broadcast %322 : f32 to vector<16x16xf32>
      %324 = arith.mulf %323, %312 : vector<16x16xf32>
      %325 = arith.addf %304, %324 : vector<16x16xf32>
      %c216_i32_147 = arith.constant 216 : i32
      %326 = arith.addi %c216_i32_147, %314 : i32
      %327 = arith.index_cast %326 : i32 to index
      %328 = memref.load %arg10[%327] : memref<324xf32, #tpu.memory_space<smem>>
      %329 = vector.broadcast %328 : f32 to vector<16x16xf32>
      %330 = arith.mulf %329, %312 : vector<16x16xf32>
      %331 = arith.addf %310, %330 : vector<16x16xf32>
      %332 = vector.extract_strided_slice %311 {offsets = [0, 3], sizes = [16, 16], strides = [1, 1]} : vector<16x22xf32> to vector<16x16xf32>
      %c6_i32_148 = arith.constant 6 : i32
      %333 = arith.addi %188, %c6_i32_148 : i32
      %c1_i32_149 = arith.constant 1 : i32
      %334 = arith.addi %333, %c1_i32_149 : i32
      %335 = arith.index_cast %334 : i32 to index
      %336 = memref.load %arg10[%335] : memref<324xf32, #tpu.memory_space<smem>>
      %337 = vector.broadcast %336 : f32 to vector<16x16xf32>
      %338 = arith.mulf %337, %332 : vector<16x16xf32>
      %339 = arith.addf %319, %338 : vector<16x16xf32>
      %c108_i32_150 = arith.constant 108 : i32
      %340 = arith.addi %c108_i32_150, %334 : i32
      %341 = arith.index_cast %340 : i32 to index
      %342 = memref.load %arg10[%341] : memref<324xf32, #tpu.memory_space<smem>>
      %343 = vector.broadcast %342 : f32 to vector<16x16xf32>
      %344 = arith.mulf %343, %332 : vector<16x16xf32>
      %345 = arith.addf %325, %344 : vector<16x16xf32>
      %c216_i32_151 = arith.constant 216 : i32
      %346 = arith.addi %c216_i32_151, %334 : i32
      %347 = arith.index_cast %346 : i32 to index
      %348 = memref.load %arg10[%347] : memref<324xf32, #tpu.memory_space<smem>>
      %349 = vector.broadcast %348 : f32 to vector<16x16xf32>
      %350 = arith.mulf %349, %332 : vector<16x16xf32>
      %351 = arith.addf %331, %350 : vector<16x16xf32>
      %352 = vector.extract_strided_slice %311 {offsets = [0, 4], sizes = [16, 16], strides = [1, 1]} : vector<16x22xf32> to vector<16x16xf32>
      %c6_i32_152 = arith.constant 6 : i32
      %353 = arith.addi %188, %c6_i32_152 : i32
      %c2_i32_153 = arith.constant 2 : i32
      %354 = arith.addi %353, %c2_i32_153 : i32
      %355 = arith.index_cast %354 : i32 to index
      %356 = memref.load %arg10[%355] : memref<324xf32, #tpu.memory_space<smem>>
      %357 = vector.broadcast %356 : f32 to vector<16x16xf32>
      %358 = arith.mulf %357, %352 : vector<16x16xf32>
      %359 = arith.addf %339, %358 : vector<16x16xf32>
      %c108_i32_154 = arith.constant 108 : i32
      %360 = arith.addi %c108_i32_154, %354 : i32
      %361 = arith.index_cast %360 : i32 to index
      %362 = memref.load %arg10[%361] : memref<324xf32, #tpu.memory_space<smem>>
      %363 = vector.broadcast %362 : f32 to vector<16x16xf32>
      %364 = arith.mulf %363, %352 : vector<16x16xf32>
      %365 = arith.addf %345, %364 : vector<16x16xf32>
      %c216_i32_155 = arith.constant 216 : i32
      %366 = arith.addi %c216_i32_155, %354 : i32
      %367 = arith.index_cast %366 : i32 to index
      %368 = memref.load %arg10[%367] : memref<324xf32, #tpu.memory_space<smem>>
      %369 = vector.broadcast %368 : f32 to vector<16x16xf32>
      %370 = arith.mulf %369, %352 : vector<16x16xf32>
      %371 = arith.addf %351, %370 : vector<16x16xf32>
      scf.yield %359, %365, %371 : vector<16x16xf32>, vector<16x16xf32>, vector<16x16xf32>
    }
    %c12_i32_95 = arith.constant 12 : i32
    %cst_96 = arith.constant 0.000000e+00 : f32
    %148 = vector.broadcast %cst_96 : f32 to vector<16x16xf32>
    %149 = arith.maximumf %147#0, %148 : vector<16x16xf32>
    %cst_97 = arith.constant 0.000000e+00 : f32
    %150 = vector.broadcast %cst_97 : f32 to vector<16x16xf32>
    %151 = arith.maximumf %147#1, %150 : vector<16x16xf32>
    %cst_98 = arith.constant 0.000000e+00 : f32
    %152 = vector.broadcast %cst_98 : f32 to vector<16x16xf32>
    %153 = arith.maximumf %147#2, %152 : vector<16x16xf32>
    %cst_99 = arith.constant 1.000000e+00 : f32
    %154 = vector.broadcast %cst_99 : f32 to vector<16x16xf32>
    %155 = arith.subf %9, %154 : vector<16x16xf32>
    %156 = arith.mulf %149, %155 : vector<16x16xf32>
    %cst_100 = arith.constant 1.000000e+00 : f32
    %157 = vector.broadcast %cst_100 : f32 to vector<16x16xf32>
    %158 = arith.addf %156, %157 : vector<16x16xf32>
    %cst_101 = arith.constant 0.000000e+00 : f32
    %159 = vector.broadcast %cst_101 : f32 to vector<16x16xf32>
    %160 = arith.maximumf %158, %159 : vector<16x16xf32>
    %c0_102 = arith.constant 0 : index
    %c0_103 = arith.constant 0 : index
    %c0_104 = arith.constant 0 : index
    %c0_105 = arith.constant 0 : index
    %161 = vector.load %arg12[%c0_102, %c0_103, %c0_104, %c0_105] : memref<1x3x16x16xf32, #tpu.memory_space<vmem>>, vector<1x1x16x16xf32>
    %162 = vector.shape_cast %161 : vector<1x1x16x16xf32> to vector<16x16xf32>
    %163 = vector.shape_cast %160 : vector<16x16xf32> to vector<1x1x16x16xf32>
    tpu.vector_store %arg12[%c0_102, %c0_103, %c0_104, %c0_105], %163 {strides = array<i32>} : memref<1x3x16x16xf32, #tpu.memory_space<vmem>>, vector<1x1x16x16xf32>,
    %cst_106 = arith.constant 1.000000e+00 : f32
    %164 = vector.broadcast %cst_106 : f32 to vector<16x16xf32>
    %165 = arith.subf %11, %164 : vector<16x16xf32>
    %166 = arith.mulf %151, %165 : vector<16x16xf32>
    %cst_107 = arith.constant 1.000000e+00 : f32
    %167 = vector.broadcast %cst_107 : f32 to vector<16x16xf32>
    %168 = arith.addf %166, %167 : vector<16x16xf32>
    %cst_108 = arith.constant 0.000000e+00 : f32
    %169 = vector.broadcast %cst_108 : f32 to vector<16x16xf32>
    %170 = arith.maximumf %168, %169 : vector<16x16xf32>
    %c0_109 = arith.constant 0 : index
    %c1_110 = arith.constant 1 : index
    %c0_111 = arith.constant 0 : index
    %c0_112 = arith.constant 0 : index
    %171 = vector.load %arg12[%c0_109, %c1_110, %c0_111, %c0_112] : memref<1x3x16x16xf32, #tpu.memory_space<vmem>>, vector<1x1x16x16xf32>
    %172 = vector.shape_cast %171 : vector<1x1x16x16xf32> to vector<16x16xf32>
    %173 = vector.shape_cast %170 : vector<16x16xf32> to vector<1x1x16x16xf32>
    tpu.vector_store %arg12[%c0_109, %c1_110, %c0_111, %c0_112], %173 {strides = array<i32>} : memref<1x3x16x16xf32, #tpu.memory_space<vmem>>, vector<1x1x16x16xf32>,
    %cst_113 = arith.constant 1.000000e+00 : f32
    %174 = vector.broadcast %cst_113 : f32 to vector<16x16xf32>
    %175 = arith.subf %13, %174 : vector<16x16xf32>
    %176 = arith.mulf %153, %175 : vector<16x16xf32>
    %cst_114 = arith.constant 1.000000e+00 : f32
    %177 = vector.broadcast %cst_114 : f32 to vector<16x16xf32>
    %178 = arith.addf %176, %177 : vector<16x16xf32>
    %cst_115 = arith.constant 0.000000e+00 : f32
    %179 = vector.broadcast %cst_115 : f32 to vector<16x16xf32>
    %180 = arith.maximumf %178, %179 : vector<16x16xf32>
    %c0_116 = arith.constant 0 : index
    %c2_117 = arith.constant 2 : index
    %c0_118 = arith.constant 0 : index
    %c0_119 = arith.constant 0 : index
    %181 = vector.load %arg12[%c0_116, %c2_117, %c0_118, %c0_119] : memref<1x3x16x16xf32, #tpu.memory_space<vmem>>, vector<1x1x16x16xf32>
    %182 = vector.shape_cast %181 : vector<1x1x16x16xf32> to vector<16x16xf32>
    %183 = vector.shape_cast %180 : vector<16x16xf32> to vector<1x1x16x16xf32>
    tpu.vector_store %arg12[%c0_116, %c2_117, %c0_118, %c0_119], %183 {strides = array<i32>} : memref<1x3x16x16xf32, #tpu.memory_space<vmem>>, vector<1x1x16x16xf32>,
    return
  }
  func.func @transform_0(%arg0: i32) -> (i32, i32, i32, i32) {
    %c0_i32 = arith.constant 0 : i32
    %c0_i32_0 = arith.constant 0 : i32
    %c0_i32_1 = arith.constant 0 : i32
    %c0_i32_2 = arith.constant 0 : i32
    return %arg0, %c0_i32, %c0_i32_0, %c0_i32_1 : i32, i32, i32, i32
  }
  func.func @transform_1(%arg0: i32) -> i32 {
    %c0_i32 = arith.constant 0 : i32
    %c0_i32_0 = arith.constant 0 : i32
    return %c0_i32 : i32
  }
  func.func @transform_2(%arg0: i32) -> i32 {
    %c0_i32 = arith.constant 0 : i32
    %c0_i32_0 = arith.constant 0 : i32
    return %c0_i32 : i32
  }
  func.func @transform_3(%arg0: i32) -> i32 {
    %c0_i32 = arith.constant 0 : i32
    %c0_i32_0 = arith.constant 0 : i32
    return %c0_i32 : i32
  }
  func.func @transform_4(%arg0: i32) -> i32 {
    %c0_i32 = arith.constant 0 : i32
    %c0_i32_0 = arith.constant 0 : i32
    return %c0_i32 : i32
  }
  func.func @transform_5(%arg0: i32) -> i32 {
    %c0_i32 = arith.constant 0 : i32
    %c0_i32_0 = arith.constant 0 : i32
    return %c0_i32 : i32
  }
  func.func @transform_6(%arg0: i32) -> i32 {
    %c0_i32 = arith.constant 0 : i32
    %c0_i32_0 = arith.constant 0 : i32
    return %c0_i32 : i32
  }
  func.func @transform_7(%arg0: i32) -> i32 {
    %c0_i32 = arith.constant 0 : i32
    %c0_i32_0 = arith.constant 0 : i32
    return %c0_i32 : i32
  }
  func.func @transform_8(%arg0: i32) -> i32 {
    %c0_i32 = arith.constant 0 : i32
    %c0_i32_0 = arith.constant 0 : i32
    return %c0_i32 : i32
  }
  func.func @transform_9(%arg0: i32) -> i32 {
    %c0_i32 = arith.constant 0 : i32
    %c0_i32_0 = arith.constant 0 : i32
    return %c0_i32 : i32
  }
  func.func @transform_10(%arg0: i32) -> i32 {
    %c0_i32 = arith.constant 0 : i32
    %c0_i32_0 = arith.constant 0 : i32
    return %c0_i32 : i32
  }
  func.func @transform_11(%arg0: i32) -> (i32, i32, i32, i32) {
    %c0_i32 = arith.constant 0 : i32
    %c0_i32_0 = arith.constant 0 : i32
    %c0_i32_1 = arith.constant 0 : i32
    %c0_i32_2 = arith.constant 0 : i32
    return %arg0, %c0_i32, %c0_i32_0, %c0_i32_1 : i32, i32, i32, i32
  }
}

</mosaic_0001>

<llo_original>
// kernel: tpu_custom_call.1
$region0: #{tpu_custom_call.1}
  #allocation0 [shape = 'u32[]', space=smem, size = 0x4, offset = 0x4, fixed_abs, tag = 'smem constant byte address 0x4 - core index']
  #allocation1 [shape = 'u32[144,128]{1,0:T(1,128)}', space=vmem, size = 0x12000, scoped, tag = 'internal scratch']
  #allocation2 [shape = 'f32[12,27,22]{2,1,0:T(8,128)}', space=vmem, size = 0x30000, scoped, tag = 'scratch operand']
  %s0 = inlined_call_operand.hbm [shape: f32[2,3,16,16], index: 0, kind: input, shape index: {}]
  %s1 = inlined_call_operand.hbm [shape: f32[9], index: 1, kind: input, shape index: {}]
  %s2 = inlined_call_operand.hbm [shape: f32[3], index: 2, kind: input, shape index: {}]
  %s3 = inlined_call_operand.hbm [shape: f32[81], index: 3, kind: input, shape index: {}]
  %s4 = inlined_call_operand.hbm [shape: f32[3], index: 4, kind: input, shape index: {}]
  %s5 = inlined_call_operand.vmem [shape: f32[450], index: 5, kind: input, shape index: {}]
  %s6 = inlined_call_operand.hbm [shape: f32[3], index: 6, kind: input, shape index: {}]
  %s7 = inlined_call_operand.vmem [shape: f32[882], index: 7, kind: input, shape index: {}]
  %s8 = inlined_call_operand.hbm [shape: f32[3], index: 8, kind: input, shape index: {}]
  %s9 = inlined_call_operand.vmem [shape: f32[324], index: 9, kind: input, shape index: {}]
  %s10 = inlined_call_operand.vmem [shape: f32[3], index: 10, kind: input, shape index: {}]
  %s11 = inlined_call_operand.hbm [shape: f32[2,3,16,16], index: 11, kind: output, shape index: {}]
  %s12 = sld [smem:[#allocation0]]
  $region149: #{tpu_custom_call.1} parent=0
    _
  %s14 = ssub.s32 1, %s12
  %s15 = scalar_select 0, %s14, %s12
  $region1: #{tpu_custom_call.1} parent=0
    #allocation3 [shape = 'u8[49152]{0}', space=vmem, size = 0xc000, scoped, tag = 'input window, operand 0']
    #allocation4 [shape = 's32[2]{0}', space=sflag, size = 0x8, scoped, tag = 'scoped memory for tpu_custom_call.1']
    #allocation5 [shape = 's32[2]{0}', space=sflag, size = 0x8, scoped, tag = 'scoped memory for tpu_custom_call.1']
    #allocation6 [shape = 's32[2]{0}', space=sflag, size = 0x8, scoped, tag = 'scoped memory for tpu_custom_call.1']
    #allocation7 [shape = 's32[2]{0}', space=sflag, size = 0x8, scoped, tag = 'scoped memory for tpu_custom_call.1']
    #allocation8 [shape = 'u8[512]{0}', space=smem, size = 0x200, scoped, tag = 'input window, operand 1, single buffered']
    #allocation9 [shape = 'u8[512]{0}', space=smem, size = 0x200, scoped, tag = 'input window, operand 2, single buffered']
    #allocation10 [shape = 's32[1]{0}', space=sflag, size = 0x4, scoped, tag = 'scoped memory for tpu_custom_call.1']
    #allocation11 [shape = 'u8[512]{0}', space=smem, size = 0x200, scoped, tag = 'input window, operand 3, single buffered']
    #allocation12 [shape = 'u8[512]{0}', space=smem, size = 0x200, scoped, tag = 'input window, operand 4, single buffered']
    #allocation13 [shape = 's32[1]{0}', space=sflag, size = 0x4, scoped, tag = 'scoped memory for tpu_custom_call.1']
    #allocation14 [shape = 'u8[2048]{0}', space=smem, size = 0x800, scoped, tag = 'input window, operand 5, single buffered']
    #allocation15 [shape = 'u8[512]{0}', space=smem, size = 0x200, scoped, tag = 'input window, operand 6, single buffered']
    #allocation16 [shape = 'u8[3584]{0}', space=smem, size = 0xe00, scoped, tag = 'input window, operand 7, single buffered']
    #allocation17 [shape = 's32[1]{0}', space=sflag, size = 0x4, scoped, tag = 'scoped memory for tpu_custom_call.1']
    #allocation18 [shape = 'u8[512]{0}', space=smem, size = 0x200, scoped, tag = 'input window, operand 8, single buffered']
    #allocation19 [shape = 's32[1]{0}', space=sflag, size = 0x4, scoped, tag = 'scoped memory for tpu_custom_call.1']
    #allocation20 [shape = 'u8[1536]{0}', space=smem, size = 0x600, scoped, tag = 'input window, operand 9, single buffered']
    #allocation21 [shape = 'u8[512]{0}', space=smem, size = 0x200, scoped, tag = 'input window, operand 10, single buffered']
    #allocation22 [shape = 's32[1]{0}', space=sflag, size = 0x4, scoped, tag = 'scoped memory for tpu_custom_call.1']
    #allocation23 [shape = 'u8[49152]{0}', space=vmem, size = 0xc000, scoped, tag = 'output window, operand 0']
    %16 = vsyncpa [#allocation4], 0
    %s17 = scalar_lea.sflag [#allocation4], 1
    %18 = vsyncpa %s17, 0
    %19 = vsyncpa [#allocation6], 0
    %20 = vsyncpa [#allocation10], 0
    %21 = vsyncpa [#allocation13], 0
    %22 = vsyncpa [#allocation7], 0
    %23 = vsyncpa [#allocation17], 0
    %24 = vsyncpa [#allocation19], 0
    %25 = vsyncpa [#allocation22], 0
    %26 = vsyncpa [#allocation5], 0
    %s27 = scalar_lea.sflag [#allocation5], 1
    %28 = vsyncpa %s27, 0
    loop: start=0, step=1, limit=4
    $region2: #{tpu_custom_call.1} parent=1 // loop_pre_header
      _
    $region3: #{tpu_custom_call.1} parent=1 // loop_header
      %s30 = sphi 0, %s34
      %p31 = scmp.ge.s32.totalorder %s30, 4
      %s40 = sphi 0, %s42
      %s43 = sphi 0, %s40
      %s44 = sphi 0, %s43
      %s60 = sphi 0, %s44
      %s64 = sphi 0, %s64
      %s66 = sphi 0, %s64
      %s67 = sphi 0, %s66
      %s81 = sphi 0, %s67
      %s85 = sphi 0, %s85
      %s87 = sphi 0, %s85
      %s88 = sphi 0, %s87
      %s102 = sphi 0, %s88
      %s106 = sphi 0, %s106
      %s108 = sphi 0, %s106
      %s109 = sphi 0, %s108
      %s123 = sphi 0, %s109
      %s127 = sphi 0, %s127
      %s129 = sphi 0, %s127
      %s130 = sphi 0, %s129
      %s144 = sphi 0, %s130
      %s148 = sphi 0, %s148
      %s150 = sphi 0, %s148
      %s151 = sphi 0, %s150
      %s165 = sphi 0, %s151
      %s169 = sphi 0, %s169
      %s171 = sphi 0, %s169
      %s172 = sphi 0, %s171
      %s186 = sphi 0, %s172
      %s190 = sphi 0, %s190
      %s192 = sphi 0, %s190
      %s193 = sphi 0, %s192
      %s207 = sphi 0, %s193
      %s211 = sphi 0, %s211
      %s213 = sphi 0, %s211
      %s214 = sphi 0, %s213
      %s228 = sphi 0, %s214
      %s232 = sphi 0, %s232
      %s234 = sphi 0, %s232
      %s235 = sphi 0, %s234
      %s249 = sphi 0, %s235
      %s253 = sphi 0, %s253
      %s255 = sphi 0, %s253
      %s256 = sphi 0, %s255
      %s270 = sphi 0, %s256
      %s276 = sphi 0, %s278
      %s279 = sphi 0, %s276
      %s280 = sphi 0, %s279
      %s296 = sphi 0, %s280
    $region4: #{tpu_custom_call.1} parent=1 // loop_header_branch
      %33 = sbr.rel (%p31) target = $region8
    $region5: #{tpu_custom_call.1} parent=1 // loop_body
      %s35 = ssub.s32 %s30, 1
      %s36 = ssub.s32 %s30, 2
      %s37 = sadd.s32 %s30, 1
      %s38 = ssub.s32 %s30, %s37
      %p39 = scmp.eq.s32.totalorder %s38, 0
      %s41 = sadd.s32 %s40, 1
      %s42 = scalar_select %p39, %s40, %s41
      %p45 = pneg %p39
      %p46 = scmp.eq.s32.totalorder %s30, 1
      %p47 = por %p45, %p46
      %p48 = scmp.ne.s32.totalorder %s40, %s43
      %p49 = scmp.eq.s32.totalorder %s30, 0
      %p50 = por %p48, %p49
      %p51 = scmp.ne.s32.totalorder %s40, %s43
      %p52 = scmp.eq.s32.totalorder %s35, 1
      %p53 = por %p51, %p52
      %p54 = scmp.ne.s32.totalorder %s43, %s44
      %p55 = scmp.eq.s32.totalorder %s35, 0
      %p56 = por %p54, %p55
      %p57 = scmp.ne.s32.totalorder %s43, %s44
      %p58 = scmp.eq.s32.totalorder %s36, 1
      %p59 = por %p57, %p58
      %p61 = scmp.ne.s32.totalorder %s44, %s60
      %p62 = scmp.eq.s32.totalorder %s36, 0
      %p63 = por %p61, %p62
      %s65 = sadd.s32 %s64, 1
      %p68 = scmp.eq.s32.totalorder %s30, 1
      %p69 = scmp.ne.s32.totalorder %s64, %s66
      %p70 = scmp.eq.s32.totalorder %s30, 0
      %p71 = por %p69, %p70
      %p72 = scmp.ne.s32.totalorder %s64, %s66
      %p73 = scmp.eq.s32.totalorder %s35, 1
      %p74 = por %p72, %p73
      %p75 = scmp.ne.s32.totalorder %s66, %s67
      %p76 = scmp.eq.s32.totalorder %s35, 0
      %p77 = por %p75, %p76
      %p78 = scmp.ne.s32.totalorder %s66, %s67
      %p79 = scmp.eq.s32.totalorder %s36, 1
      %p80 = por %p78, %p79
      %p82 = scmp.ne.s32.totalorder %s67, %s81
      %p83 = scmp.eq.s32.totalorder %s36, 0
      %p84 = por %p82, %p83
      %s86 = sadd.s32 %s85, 1
      %p89 = scmp.eq.s32.totalorder %s30, 1
      %p90 = scmp.ne.s32.totalorder %s85, %s87
      %p91 = scmp.eq.s32.totalorder %s30, 0
      %p92 = por %p90, %p91
      %p93 = scmp.ne.s32.totalorder %s85, %s87
      %p94 = scmp.eq.s32.totalorder %s35, 1
      %p95 = por %p93, %p94
      %p96 = scmp.ne.s32.totalorder %s87, %s88
      %p97 = scmp.eq.s32.totalorder %s35, 0
      %p98 = por %p96, %p97
      %p99 = scmp.ne.s32.totalorder %s87, %s88
      %p100 = scmp.eq.s32.totalorder %s36, 1
      %p101 = por %p99, %p100
      %p103 = scmp.ne.s32.totalorder %s88, %s102
      %p104 = scmp.eq.s32.totalorder %s36, 0
      %p105 = por %p103, %p104
      %s107 = sadd.s32 %s106, 1
      %p110 = scmp.eq.s32.totalorder %s30, 1
      %p111 = scmp.ne.s32.totalorder %s106, %s108
      %p112 = scmp.eq.s32.totalorder %s30, 0
      %p113 = por %p111, %p112
      %p114 = scmp.ne.s32.totalorder %s106, %s108
      %p115 = scmp.eq.s32.totalorder %s35, 1
      %p116 = por %p114, %p115
      %p117 = scmp.ne.s32.totalorder %s108, %s109
      %p118 = scmp.eq.s32.totalorder %s35, 0
      %p119 = por %p117, %p118
      %p120 = scmp.ne.s32.totalorder %s108, %s109
      %p121 = scmp.eq.s32.totalorder %s36, 1
      %p122 = por %p120, %p121
      %p124 = scmp.ne.s32.totalorder %s109, %s123
      %p125 = scmp.eq.s32.totalorder %s36, 0
      %p126 = por %p124, %p125
      %s128 = sadd.s32 %s127, 1
      %p131 = scmp.eq.s32.totalorder %s30, 1
      %p132 = scmp.ne.s32.totalorder %s127, %s129
      %p133 = scmp.eq.s32.totalorder %s30, 0
      %p134 = por %p132, %p133
      %p135 = scmp.ne.s32.totalorder %s127, %s129
      %p136 = scmp.eq.s32.totalorder %s35, 1
      %p137 = por %p135, %p136
      %p138 = scmp.ne.s32.totalorder %s129, %s130
      %p139 = scmp.eq.s32.totalorder %s35, 0
      %p140 = por %p138, %p139
      %p141 = scmp.ne.s32.totalorder %s129, %s130
      %p142 = scmp.eq.s32.totalorder %s36, 1
      %p143 = por %p141, %p142
      %p145 = scmp.ne.s32.totalorder %s130, %s144
      %p146 = scmp.eq.s32.totalorder %s36, 0
      %p147 = por %p145, %p146
      %s149 = sadd.s32 %s148, 1
      %p152 = scmp.eq.s32.totalorder %s30, 1
      %p153 = scmp.ne.s32.totalorder %s148, %s150
      %p154 = scmp.eq.s32.totalorder %s30, 0
      %p155 = por %p153, %p154
      %p156 = scmp.ne.s32.totalorder %s148, %s150
      %p157 = scmp.eq.s32.totalorder %s35, 1
      %p158 = por %p156, %p157
      %p159 = scmp.ne.s32.totalorder %s150, %s151
      %p160 = scmp.eq.s32.totalorder %s35, 0
      %p161 = por %p159, %p160
      %p162 = scmp.ne.s32.totalorder %s150, %s151
      %p163 = scmp.eq.s32.totalorder %s36, 1
      %p164 = por %p162, %p163
      %p166 = scmp.ne.s32.totalorder %s151, %s165
      %p167 = scmp.eq.s32.totalorder %s36, 0
      %p168 = por %p166, %p167
      %s170 = sadd.s32 %s169, 1
      %p173 = scmp.eq.s32.totalorder %s30, 1
      %p174 = scmp.ne.s32.totalorder %s169, %s171
      %p175 = scmp.eq.s32.totalorder %s30, 0
      %p176 = por %p174, %p175
      %p177 = scmp.ne.s32.totalorder %s169, %s171
      %p178 = scmp.eq.s32.totalorder %s35, 1
      %p179 = por %p177, %p178
      %p180 = scmp.ne.s32.totalorder %s171, %s172
      %p181 = scmp.eq.s32.totalorder %s35, 0
      %p182 = por %p180, %p181
      %p183 = scmp.ne.s32.totalorder %s171, %s172
      %p184 = scmp.eq.s32.totalorder %s36, 1
      %p185 = por %p183, %p184
      %p187 = scmp.ne.s32.totalorder %s172, %s186
      %p188 = scmp.eq.s32.totalorder %s36, 0
      %p189 = por %p187, %p188
      %s191 = sadd.s32 %s190, 1
      %p194 = scmp.eq.s32.totalorder %s30, 1
      %p195 = scmp.ne.s32.totalorder %s190, %s192
      %p196 = scmp.eq.s32.totalorder %s30, 0
      %p197 = por %p195, %p196
      %p198 = scmp.ne.s32.totalorder %s190, %s192
      %p199 = scmp.eq.s32.totalorder %s35, 1
      %p200 = por %p198, %p199
      %p201 = scmp.ne.s32.totalorder %s192, %s193
      %p202 = scmp.eq.s32.totalorder %s35, 0
      %p203 = por %p201, %p202
      %p204 = scmp.ne.s32.totalorder %s192, %s193
      %p205 = scmp.eq.s32.totalorder %s36, 1
      %p206 = por %p204, %p205
      %p208 = scmp.ne.s32.totalorder %s193, %s207
      %p209 = scmp.eq.s32.totalorder %s36, 0
      %p210 = por %p208, %p209
      %s212 = sadd.s32 %s211, 1
      %p215 = scmp.eq.s32.totalorder %s30, 1
      %p216 = scmp.ne.s32.totalorder %s211, %s213
      %p217 = scmp.eq.s32.totalorder %s30, 0
      %p218 = por %p216, %p217
      %p219 = scmp.ne.s32.totalorder %s211, %s213
      %p220 = scmp.eq.s32.totalorder %s35, 1
      %p221 = por %p219, %p220
      %p222 = scmp.ne.s32.totalorder %s213, %s214
      %p223 = scmp.eq.s32.totalorder %s35, 0
      %p224 = por %p222, %p223
      %p225 = scmp.ne.s32.totalorder %s213, %s214
      %p226 = scmp.eq.s32.totalorder %s36, 1
      %p227 = por %p225, %p226
      %p229 = scmp.ne.s32.totalorder %s214, %s228
      %p230 = scmp.eq.s32.totalorder %s36, 0
      %p231 = por %p229, %p230
      %s233 = sadd.s32 %s232, 1
      %p236 = scmp.eq.s32.totalorder %s30, 1
      %p237 = scmp.ne.s32.totalorder %s232, %s234
      %p238 = scmp.eq.s32.totalorder %s30, 0
      %p239 = por %p237, %p238
      %p240 = scmp.ne.s32.totalorder %s232, %s234
      %p241 = scmp.eq.s32.totalorder %s35, 1
      %p242 = por %p240, %p241
      %p243 = scmp.ne.s32.totalorder %s234, %s235
      %p244 = scmp.eq.s32.totalorder %s35, 0
      %p245 = por %p243, %p244
      %p246 = scmp.ne.s32.totalorder %s234, %s235
      %p247 = scmp.eq.s32.totalorder %s36, 1
      %p248 = por %p246, %p247
      %p250 = scmp.ne.s32.totalorder %s235, %s249
      %p251 = scmp.eq.s32.totalorder %s36, 0
      %p252 = por %p250, %p251
      %s254 = sadd.s32 %s253, 1
      %p257 = scmp.eq.s32.totalorder %s30, 1
      %p258 = scmp.ne.s32.totalorder %s253, %s255
      %p259 = scmp.eq.s32.totalorder %s30, 0
      %p260 = por %p258, %p259
      %p261 = scmp.ne.s32.totalorder %s253, %s255
      %p262 = scmp.eq.s32.totalorder %s35, 1
      %p263 = por %p261, %p262
      %p264 = scmp.ne.s32.totalorder %s255, %s256
      %p265 = scmp.eq.s32.totalorder %s35, 0
      %p266 = por %p264, %p265
      %p267 = scmp.ne.s32.totalorder %s255, %s256
      %p268 = scmp.eq.s32.totalorder %s36, 1
      %p269 = por %p267, %p268
      %p271 = scmp.ne.s32.totalorder %s256, %s270
      %p272 = scmp.eq.s32.totalorder %s36, 0
      %p273 = por %p271, %p272
      %s274 = ssub.s32 %s30, %s37
      %p275 = scmp.eq.s32.totalorder %s274, 0
      %s277 = sadd.s32 %s276, 1
      %s278 = scalar_select %p275, %s276, %s277
      %p281 = pneg %p275
      %p282 = scmp.eq.s32.totalorder %s30, 1
      %p283 = por %p281, %p282
      %p284 = scmp.ne.s32.totalorder %s276, %s279
      %p285 = scmp.eq.s32.totalorder %s30, 0
      %p286 = por %p284, %p285
      %p287 = scmp.ne.s32.totalorder %s276, %s279
      %p288 = scmp.eq.s32.totalorder %s35, 1
      %p289 = por %p287, %p288
      %p290 = scmp.ne.s32.totalorder %s279, %s280
      %p291 = scmp.eq.s32.totalorder %s35, 0
      %p292 = por %p290, %p291
      %p293 = scmp.ne.s32.totalorder %s279, %s280
      %p294 = scmp.eq.s32.totalorder %s36, 1
      %p295 = por %p293, %p294
      %p297 = scmp.ne.s32.totalorder %s280, %s296
      %p298 = scmp.eq.s32.totalorder %s36, 0
      %p299 = por %p297, %p298
      %p300 = scmp.le.s32.totalorder 1, %s30
      %p301 = scmp.lt.s32.totalorder %s30, 3
      %p302 = pnand %p300, %p301
      %p303 = pneg %p302
      // Predicated region
      $region9: #{tpu_custom_call.1} parent=5 // pred_check
        _
      $region10: #{tpu_custom_call.1} parent=5 // pred_check_branch
        %305 = sbr.rel (%p302) target = $region12
      $region11: #{tpu_custom_call.1} parent=5 // pred_region
        %s306 = ssub.s32 %s30, 1
        // Predicated region
        $region13: #{tpu_custom_call.1} parent=11 // pred_check
          %p307 = pneg %p77
        $region14: #{tpu_custom_call.1} parent=11 // pred_check_branch
          %309 = sbr.rel (%p307) target = $region16
        $region15: #{tpu_custom_call.1} parent=11 // pred_region
          %s311 = ssub.s32 16, 16
          %312 = vsyncadd [#allocation6], %s311
          %315 = dma.hbm_to_smem %s1, 16, [#allocation8], [#allocation6]
        $region16: #{tpu_custom_call.1} parent=11 // pred_fallthru
          _
        // Predicated region
        $region17: #{tpu_custom_call.1} parent=11 // pred_check
          %p316 = pneg %p98
        $region18: #{tpu_custom_call.1} parent=11 // pred_check_branch
          %318 = sbr.rel (%p316) target = $region20
        $region19: #{tpu_custom_call.1} parent=11 // pred_region
          %s320 = ssub.s32 16, 16
          %321 = vsyncadd [#allocation10], %s320
          %324 = dma.hbm_to_smem %s2, 16, [#allocation9], [#allocation10]
        $region20: #{tpu_custom_call.1} parent=11 // pred_fallthru
          _
        // Predicated region
        $region21: #{tpu_custom_call.1} parent=11 // pred_check
          %p325 = pneg %p119
        $region22: #{tpu_custom_call.1} parent=11 // pred_check_branch
          %327 = sbr.rel (%p325) target = $region24
        $region23: #{tpu_custom_call.1} parent=11 // pred_region
          %s329 = ssub.s32 16, 16
          %330 = vsyncadd [#allocation10], %s329
          %333 = dma.hbm_to_smem %s3, 16, [#allocation11], [#allocation10]
        $region24: #{tpu_custom_call.1} parent=11 // pred_fallthru
          _
        // Predicated region
        $region25: #{tpu_custom_call.1} parent=11 // pred_check
          %p334 = pneg %p140
        $region26: #{tpu_custom_call.1} parent=11 // pred_check_branch
          %336 = sbr.rel (%p334) target = $region28
        $region27: #{tpu_custom_call.1} parent=11 // pred_region
          %s338 = ssub.s32 16, 16
          %339 = vsyncadd [#allocation13], %s338
          %342 = dma.hbm_to_smem %s4, 16, [#allocation12], [#allocation13]
        $region28: #{tpu_custom_call.1} parent=11 // pred_fallthru
          _
        // Predicated region
        $region29: #{tpu_custom_call.1} parent=11 // pred_check
          %p343 = pneg %p161
        $region30: #{tpu_custom_call.1} parent=11 // pred_check_branch
          %345 = sbr.rel (%p343) target = $region32
        $region31: #{tpu_custom_call.1} parent=11 // pred_region
          %s347 = ssub.s32 64, 64
          %348 = vsyncadd [#allocation7], %s347
          %s350 = sshll.u32 %s5, 4
          %s351 = int_to_ptr.vmem [resolvable:$true] %s350
          %353 = dma.vmem_to_smem %s351, 64, [#allocation14], [#allocation7]
        $region32: #{tpu_custom_call.1} parent=11 // pred_fallthru
          _
        // Predicated region
        $region33: #{tpu_custom_call.1} parent=11 // pred_check
          %p354 = pneg %p182
        $region34: #{tpu_custom_call.1} parent=11 // pred_check_branch
          %356 = sbr.rel (%p354) target = $region36
        $region35: #{tpu_custom_call.1} parent=11 // pred_region
          %s358 = ssub.s32 16, 16
          %359 = vsyncadd [#allocation13], %s358
          %362 = dma.hbm_to_smem %s6, 16, [#allocation15], [#allocation13]
        $region36: #{tpu_custom_call.1} parent=11 // pred_fallthru
          _
        // Predicated region
        $region37: #{tpu_custom_call.1} parent=11 // pred_check
          %p363 = pneg %p203
        $region38: #{tpu_custom_call.1} parent=11 // pred_check_branch
          %365 = sbr.rel (%p363) target = $region40
        $region39: #{tpu_custom_call.1} parent=11 // pred_region
          %s367 = ssub.s32 112, 112
          %368 = vsyncadd [#allocation17], %s367
          %s370 = sshll.u32 %s7, 4
          %s371 = int_to_ptr.vmem [resolvable:$true] %s370
          %373 = dma.vmem_to_smem %s371, 112, [#allocation16], [#allocation17]
        $region40: #{tpu_custom_call.1} parent=11 // pred_fallthru
          _
        // Predicated region
        $region41: #{tpu_custom_call.1} parent=11 // pred_check
          %p374 = pneg %p224
        $region42: #{tpu_custom_call.1} parent=11 // pred_check_branch
          %376 = sbr.rel (%p374) target = $region44
        $region43: #{tpu_custom_call.1} parent=11 // pred_region
          %s378 = ssub.s32 16, 16
          %379 = vsyncadd [#allocation19], %s378
          %382 = dma.hbm_to_smem %s8, 16, [#allocation18], [#allocation19]
        $region44: #{tpu_custom_call.1} parent=11 // pred_fallthru
          _
        // Predicated region
        $region45: #{tpu_custom_call.1} parent=11 // pred_check
          %p383 = pneg %p245
        $region46: #{tpu_custom_call.1} parent=11 // pred_check_branch
          %385 = sbr.rel (%p383) target = $region48
        $region47: #{tpu_custom_call.1} parent=11 // pred_region
          %s387 = ssub.s32 48, 48
          %388 = vsyncadd [#allocation17], %s387
          %s390 = sshll.u32 %s9, 4
          %s391 = int_to_ptr.vmem [resolvable:$true] %s390
          %393 = dma.vmem_to_smem %s391, 48, [#allocation20], [#allocation17]
        $region48: #{tpu_custom_call.1} parent=11 // pred_fallthru
          _
        // Predicated region
        $region49: #{tpu_custom_call.1} parent=11 // pred_check
          %p394 = pneg %p266
        $region50: #{tpu_custom_call.1} parent=11 // pred_check_branch
          %396 = sbr.rel (%p394) target = $region52
        $region51: #{tpu_custom_call.1} parent=11 // pred_region
          %s398 = ssub.s32 16, 16
          %399 = vsyncadd [#allocation22], %s398
          %s401 = sshll.u32 %s10, 4
          %s402 = int_to_ptr.vmem [resolvable:$true] %s401
          %404 = dma.vmem_to_smem %s402, 16, [#allocation21], [#allocation22]
        $region52: #{tpu_custom_call.1} parent=11 // pred_fallthru
          _
      $region12: #{tpu_custom_call.1} parent=5 // pred_fallthru
        _
      %p405 = scmp.lt.s32.totalorder %s30, 2
      // Predicated region
      $region53: #{tpu_custom_call.1} parent=5 // pred_check
        %p406 = pneg %p405
      $region54: #{tpu_custom_call.1} parent=5 // pred_check_branch
        %408 = sbr.rel (%p406) target = $region56
      $region55: #{tpu_custom_call.1} parent=5 // pred_region
        // Predicated region
        $region57: #{tpu_custom_call.1} parent=55 // pred_check
          %p409 = pneg %p50
        $region58: #{tpu_custom_call.1} parent=55 // pred_check_branch
          %411 = sbr.rel (%p409) target = $region60
        $region59: #{tpu_custom_call.1} parent=55 // pred_region
          %s412 = sand.u32 %s40, 1
          %s413 = scalar_lea.sflag [#allocation4], %s412
          %s414 = sand.u32 %s40, 1
          %s415 = smul.addr %s414, 48
          %s416 = scalar_lea.vmem [#allocation3], %s415
          %s418 = ssub.s32 768, 768
          %419 = vsyncadd %s413, %s418
          %s420 = smul.addr %s30, 6
          %s421 = smul.addr %s420, 128
          %s422 = scalar_lea.hbm %s0, %s421
          %s423 = sshll.u32 %s416, 4
          %s424 = int_to_ptr.vmem [resolvable:$true] %s423
          %429 = dma.hbm_to_vmem [thread:$0]  %s422, 768, %s424, %s413, 128, 128, 8
        $region60: #{tpu_custom_call.1} parent=55 // pred_fallthru
          _
      $region56: #{tpu_custom_call.1} parent=5 // pred_fallthru
        _
      %p430 = scmp.le.s32.totalorder 1, %s30
      %p431 = scmp.lt.s32.totalorder %s30, 3
      %p432 = pnand %p430, %p431
      %p433 = pneg %p432
      // Predicated region
      $region61: #{tpu_custom_call.1} parent=5 // pred_check
        _
      $region62: #{tpu_custom_call.1} parent=5 // pred_check_branch
        %435 = sbr.rel (%p432) target = $region64
      $region63: #{tpu_custom_call.1} parent=5 // pred_region
        %s436 = ssub.s32 %s30, 1
        %s437 = sand.u32 %s43, 1
        %s438 = scalar_lea.sflag [#allocation4], %s437
        %s439 = sand.u32 %s43, 1
        %s440 = smul.addr %s439, 48
        %s441 = scalar_lea.vmem [#allocation3], %s440
        // Predicated region
        $region65: #{tpu_custom_call.1} parent=63 // pred_check
          %p442 = pneg %p56
        $region66: #{tpu_custom_call.1} parent=63 // pred_check_branch
          %444 = sbr.rel (%p442) target = $region68
        $region67: #{tpu_custom_call.1} parent=63 // pred_region
          %445 = dma.done %s438, 768
        $region68: #{tpu_custom_call.1} parent=63 // pred_fallthru
          _
        // Predicated region
        $region69: #{tpu_custom_call.1} parent=63 // pred_check
          %p446 = pneg %p77
        $region70: #{tpu_custom_call.1} parent=63 // pred_check_branch
          %448 = sbr.rel (%p446) target = $region72
        $region71: #{tpu_custom_call.1} parent=63 // pred_region
          %449 = dma.done [#allocation6], 16
        $region72: #{tpu_custom_call.1} parent=63 // pred_fallthru
          _
        // Predicated region
        $region73: #{tpu_custom_call.1} parent=63 // pred_check
          %p450 = pneg %p98
        $region74: #{tpu_custom_call.1} parent=63 // pred_check_branch
          %452 = sbr.rel (%p450) target = $region76
        $region75: #{tpu_custom_call.1} parent=63 // pred_region
          %453 = dma.done [#allocation10], 16
        $region76: #{tpu_custom_call.1} parent=63 // pred_fallthru
          _
        // Predicated region
        $region77: #{tpu_custom_call.1} parent=63 // pred_check
          %p454 = pneg %p119
        $region78: #{tpu_custom_call.1} parent=63 // pred_check_branch
          %456 = sbr.rel (%p454) target = $region80
        $region79: #{tpu_custom_call.1} parent=63 // pred_region
          %457 = dma.done [#allocation10], 16
        $region80: #{tpu_custom_call.1} parent=63 // pred_fallthru
          _
        // Predicated region
        $region81: #{tpu_custom_call.1} parent=63 // pred_check
          %p458 = pneg %p140
        $region82: #{tpu_custom_call.1} parent=63 // pred_check_branch
          %460 = sbr.rel (%p458) target = $region84
        $region83: #{tpu_custom_call.1} parent=63 // pred_region
          %461 = dma.done [#allocation13], 16
        $region84: #{tpu_custom_call.1} parent=63 // pred_fallthru
          _
        // Predicated region
        $region85: #{tpu_custom_call.1} parent=63 // pred_check
          %p462 = pneg %p161
        $region86: #{tpu_custom_call.1} parent=63 // pred_check_branch
          %464 = sbr.rel (%p462) target = $region88
        $region87: #{tpu_custom_call.1} parent=63 // pred_region
          %465 = dma.done [#allocation7], 64
        $region88: #{tpu_custom_call.1} parent=63 // pred_fallthru
          _
        // Predicated region
        $region89: #{tpu_custom_call.1} parent=63 // pred_check
          %p466 = pneg %p182
        $region90: #{tpu_custom_call.1} parent=63 // pred_check_branch
          %468 = sbr.rel (%p466) target = $region92
        $region91: #{tpu_custom_call.1} parent=63 // pred_region
          %469 = dma.done [#allocation13], 16
        $region92: #{tpu_custom_call.1} parent=63 // pred_fallthru
          _
        // Predicated region
        $region93: #{tpu_custom_call.1} parent=63 // pred_check
          %p470 = pneg %p203
        $region94: #{tpu_custom_call.1} parent=63 // pred_check_branch
          %472 = sbr.rel (%p470) target = $region96
        $region95: #{tpu_custom_call.1} parent=63 // pred_region
          %473 = dma.done [#allocation17], 112
        $region96: #{tpu_custom_call.1} parent=63 // pred_fallthru
          _
        // Predicated region
        $region97: #{tpu_custom_call.1} parent=63 // pred_check
          %p474 = pneg %p224
        $region98: #{tpu_custom_call.1} parent=63 // pred_check_branch
          %476 = sbr.rel (%p474) target = $region100
        $region99: #{tpu_custom_call.1} parent=63 // pred_region
          %477 = dma.done [#allocation19], 16
        $region100: #{tpu_custom_call.1} parent=63 // pred_fallthru
          _
        // Predicated region
        $region101: #{tpu_custom_call.1} parent=63 // pred_check
          %p478 = pneg %p245
        $region102: #{tpu_custom_call.1} parent=63 // pred_check_branch
          %480 = sbr.rel (%p478) target = $region104
        $region103: #{tpu_custom_call.1} parent=63 // pred_region
          %481 = dma.done [#allocation17], 48
        $region104: #{tpu_custom_call.1} parent=63 // pred_fallthru
          _
        // Predicated region
        $region105: #{tpu_custom_call.1} parent=63 // pred_check
          %p482 = pneg %p266
        $region106: #{tpu_custom_call.1} parent=63 // pred_check_branch
          %484 = sbr.rel (%p482) target = $region108
        $region107: #{tpu_custom_call.1} parent=63 // pred_region
          %485 = dma.done [#allocation22], 16
        $region108: #{tpu_custom_call.1} parent=63 // pred_fallthru
          _
        %486 = sfence
        %s487 = sand.u32 %s43, 1
        %s488 = scalar_lea.sflag [#allocation4], %s487
        %s489 = sand.u32 %s43, 1
        %s490 = smul.addr %s489, 48
        %s491 = scalar_lea.vmem [#allocation3], %s490
        %p492 = pneg %p56
        %p493 = pneg %p53
        %p494 = pneg %p77
        %p495 = pneg %p74
        %p496 = pneg %p98
        %p497 = pneg %p95
        %p498 = pneg %p119
        %p499 = pneg %p116
        %p500 = pneg %p140
        %p501 = pneg %p137
        %p502 = pneg %p161
        %p503 = pneg %p158
        %p504 = pneg %p182
        %p505 = pneg %p179
        %p506 = pneg %p203
        %p507 = pneg %p200
        %p508 = pneg %p224
        %p509 = pneg %p221
        %p510 = pneg %p245
        %p511 = pneg %p242
        %p512 = pneg %p266
        %p513 = pneg %p263
        %p514 = pneg %p292
        %p515 = pneg %p289
        %s516 = sand.u32 %s279, 1
        %s517 = scalar_lea.sflag [#allocation5], %s516
        %s518 = sand.u32 %s279, 1
        %s519 = smul.addr %s518, 48
        %s520 = scalar_lea.vmem [#allocation23], %s519
        %vm521 = vcmask 179200
        %522 = vst.msk [vmem:[#allocation2] sm:$0xff] %vm521, 0.0
        %523 = vst.msk [vmem:[#allocation2 + $0x20] sm:$0xff] %vm521, 0.0
        %524 = vst.msk [vmem:[#allocation2 + $0x40] sm:$0xff] %vm521, 0.0
        %525 = vst.msk [vmem:[#allocation2 + $0x60] sm:$0xff] %vm521, 0.0
        %526 = vst.msk [vmem:[#allocation2 + $0x80] sm:$0xff] %vm521, 0.0
        %527 = vst.msk [vmem:[#allocation2 + $0xa0] sm:$0xff] %vm521, 0.0
        %528 = vst.msk [vmem:[#allocation2 + $0xc0] sm:$0xff] %vm521, 0.0
        %529 = vst.msk [vmem:[#allocation2 + $0xe0] sm:$0xff] %vm521, 0.0
        %530 = vst.msk [vmem:[#allocation2 + $0x100] sm:$0xff] %vm521, 0.0
        %531 = vst.msk [vmem:[#allocation2 + $0x120] sm:$0xff] %vm521, 0.0
        %532 = vst.msk [vmem:[#allocation2 + $0x140] sm:$0xff] %vm521, 0.0
        %533 = vst.msk [vmem:[#allocation2 + $0x160] sm:$0xff] %vm521, 0.0
        %vm534 = vcmask 174080
        %535 = vst.msk [vmem:[#allocation2 + $0x18] sm:$0x7] %vm534, 0.0
        %536 = vst.msk [vmem:[#allocation2 + $0x38] sm:$0x7] %vm534, 0.0
        %537 = vst.msk [vmem:[#allocation2 + $0x58] sm:$0x7] %vm534, 0.0
        %538 = vst.msk [vmem:[#allocation2 + $0x78] sm:$0x7] %vm534, 0.0
        %539 = vst.msk [vmem:[#allocation2 + $0x98] sm:$0x7] %vm534, 0.0
        %540 = vst.msk [vmem:[#allocation2 + $0xb8] sm:$0x7] %vm534, 0.0
        %541 = vst.msk [vmem:[#allocation2 + $0xd8] sm:$0x7] %vm534, 0.0
        %542 = vst.msk [vmem:[#allocation2 + $0xf8] sm:$0x7] %vm534, 0.0
        %543 = vst.msk [vmem:[#allocation2 + $0x118] sm:$0x7] %vm534, 0.0
        %544 = vst.msk [vmem:[#allocation2 + $0x138] sm:$0x7] %vm534, 0.0
        %545 = vst.msk [vmem:[#allocation2 + $0x158] sm:$0x7] %vm534, 0.0
        %546 = vst.msk [vmem:[#allocation2 + $0x178] sm:$0x7] %vm534, 0.0
        %vm547 = vcmask 23552
        %548 = vst.msk [vmem:[#allocation2 + $0x8] sm:$0xff] %vm547, 0.0
        %549 = vst.msk [vmem:[#allocation2 + $0x10] sm:$0xff] %vm547, 0.0
        %550 = vst.msk [vmem:[#allocation2 + $0x28] sm:$0xff] %vm547, 0.0
        %551 = vst.msk [vmem:[#allocation2 + $0x30] sm:$0xff] %vm547, 0.0
        %552 = vst.msk [vmem:[#allocation2 + $0x48] sm:$0xff] %vm547, 0.0
        %553 = vst.msk [vmem:[#allocation2 + $0x50] sm:$0xff] %vm547, 0.0
        %554 = vst.msk [vmem:[#allocation2 + $0x68] sm:$0xff] %vm547, 0.0
        %555 = vst.msk [vmem:[#allocation2 + $0x70] sm:$0xff] %vm547, 0.0
        %556 = vst.msk [vmem:[#allocation2 + $0x88] sm:$0xff] %vm547, 0.0
        %557 = vst.msk [vmem:[#allocation2 + $0x90] sm:$0xff] %vm547, 0.0
        %558 = vst.msk [vmem:[#allocation2 + $0xa8] sm:$0xff] %vm547, 0.0
        %559 = vst.msk [vmem:[#allocation2 + $0xb0] sm:$0xff] %vm547, 0.0
        %560 = vst.msk [vmem:[#allocation2 + $0xc8] sm:$0xff] %vm547, 0.0
        %561 = vst.msk [vmem:[#allocation2 + $0xd0] sm:$0xff] %vm547, 0.0
        %562 = vst.msk [vmem:[#allocation2 + $0xe8] sm:$0xff] %vm547, 0.0
        %563 = vst.msk [vmem:[#allocation2 + $0xf0] sm:$0xff] %vm547, 0.0
        %564 = vst.msk [vmem:[#allocation2 + $0x108] sm:$0xff] %vm547, 0.0
        %565 = vst.msk [vmem:[#allocation2 + $0x110] sm:$0xff] %vm547, 0.0
        %566 = vst.msk [vmem:[#allocation2 + $0x128] sm:$0xff] %vm547, 0.0
        %567 = vst.msk [vmem:[#allocation2 + $0x130] sm:$0xff] %vm547, 0.0
        %568 = vst.msk [vmem:[#allocation2 + $0x148] sm:$0xff] %vm547, 0.0
        %569 = vst.msk [vmem:[#allocation2 + $0x150] sm:$0xff] %vm547, 0.0
        %570 = vst.msk [vmem:[#allocation2 + $0x168] sm:$0xff] %vm547, 0.0
        %571 = vst.msk [vmem:[#allocation2 + $0x170] sm:$0xff] %vm547, 0.0
        %vm572 = vcmask 179352
        %573 = vst.msk [vmem:[#allocation2 + $0x8] sm:$0xff] %vm572, 0.0
        %574 = vst.msk [vmem:[#allocation2 + $0x10] sm:$0xff] %vm572, 0.0
        %575 = vst.msk [vmem:[#allocation2 + $0x28] sm:$0xff] %vm572, 0.0
        %576 = vst.msk [vmem:[#allocation2 + $0x30] sm:$0xff] %vm572, 0.0
        %577 = vst.msk [vmem:[#allocation2 + $0x48] sm:$0xff] %vm572, 0.0
        %578 = vst.msk [vmem:[#allocation2 + $0x50] sm:$0xff] %vm572, 0.0
        %579 = vst.msk [vmem:[#allocation2 + $0x68] sm:$0xff] %vm572, 0.0
        %580 = vst.msk [vmem:[#allocation2 + $0x70] sm:$0xff] %vm572, 0.0
        %581 = vst.msk [vmem:[#allocation2 + $0x88] sm:$0xff] %vm572, 0.0
        %582 = vst.msk [vmem:[#allocation2 + $0x90] sm:$0xff] %vm572, 0.0
        %583 = vst.msk [vmem:[#allocation2 + $0xa8] sm:$0xff] %vm572, 0.0
        %584 = vst.msk [vmem:[#allocation2 + $0xb0] sm:$0xff] %vm572, 0.0
        %585 = vst.msk [vmem:[#allocation2 + $0xc8] sm:$0xff] %vm572, 0.0
        %586 = vst.msk [vmem:[#allocation2 + $0xd0] sm:$0xff] %vm572, 0.0
        %587 = vst.msk [vmem:[#allocation2 + $0xe8] sm:$0xff] %vm572, 0.0
        %588 = vst.msk [vmem:[#allocation2 + $0xf0] sm:$0xff] %vm572, 0.0
        %589 = vst.msk [vmem:[#allocation2 + $0x108] sm:$0xff] %vm572, 0.0
        %590 = vst.msk [vmem:[#allocation2 + $0x110] sm:$0xff] %vm572, 0.0
        %591 = vst.msk [vmem:[#allocation2 + $0x128] sm:$0xff] %vm572, 0.0
        %592 = vst.msk [vmem:[#allocation2 + $0x130] sm:$0xff] %vm572, 0.0
        %593 = vst.msk [vmem:[#allocation2 + $0x148] sm:$0xff] %vm572, 0.0
        %594 = vst.msk [vmem:[#allocation2 + $0x150] sm:$0xff] %vm572, 0.0
        %595 = vst.msk [vmem:[#allocation2 + $0x168] sm:$0xff] %vm572, 0.0
        %596 = vst.msk [vmem:[#allocation2 + $0x170] sm:$0xff] %vm572, 0.0
        %v597 = vld [vmem:[%s441] sm:$0xff]
        %v598 = vld [vmem:[%s441 + $0x8] sm:$0xff]
        %s599 = scalar_lea.vmem %s441, 16 [#allocation3]
        %v600 = vld [vmem:[%s599] sm:$0xff]
        %v601 = vld [vmem:[%s599 + $0x8] sm:$0xff]
        %s602 = scalar_lea.vmem %s441, 32 [#allocation3]
        %v603 = vld [vmem:[%s602] sm:$0xff]
        %v604 = vld [vmem:[%s602 + $0x8] sm:$0xff]
        %s605 = sld [smem:[#allocation9]]
        %v606 = vstv %s605
        %s607 = sld [smem:[#allocation8]]
        %v608 = vstv %s607
        %v609 = vmul.f32 %v608, %v597
        %v610 = vmul.f32 %v608, %v598
        %v611 = vadd.f32 %v606, %v609
        %v612 = vadd.f32 %v606, %v610
        %s613 = sld [smem:[#allocation8 + $0x1]]
        %v614 = vstv %s613
        %v615 = vmul.f32 %v614, %v600
        %v616 = vmul.f32 %v614, %v601
        %v617 = vadd.f32 %v611, %v615
        %v618 = vadd.f32 %v612, %v616
        %s619 = sld [smem:[#allocation8 + $0x2]]
        %v620 = vstv %s619
        %v621 = vmul.f32 %v620, %v603
        %v622 = vmul.f32 %v620, %v604
        %v623 = vadd.f32 %v617, %v621
        %v624 = vadd.f32 %v618, %v622
        %v625 = vmax.f32 %v623, 0.0
        %v626 = vmax.f32 %v624, 0.0
        %s627 = sld [smem:[#allocation9 + $0x1]]
        %v628 = vstv %s627
        %s629 = sld [smem:[#allocation8 + $0x3]]
        %v630 = vstv %s629
        %v631 = vmul.f32 %v630, %v597
        %v632 = vmul.f32 %v630, %v598
        %v633 = vadd.f32 %v628, %v631
        %v634 = vadd.f32 %v628, %v632
        %s635 = sld [smem:[#allocation8 + $0x4]]
        %v636 = vstv %s635
        %v637 = vmul.f32 %v636, %v600
        %v638 = vmul.f32 %v636, %v601
        %v639 = vadd.f32 %v633, %v637
        %v640 = vadd.f32 %v634, %v638
        %s641 = sld [smem:[#allocation8 + $0x5]]
        %v642 = vstv %s641
        %v643 = vmul.f32 %v642, %v603
        %v644 = vmul.f32 %v642, %v604
        %v645 = vadd.f32 %v639, %v643
        %v646 = vadd.f32 %v640, %v644
        %v647 = vmax.f32 %v645, 0.0
        %v648 = vmax.f32 %v646, 0.0
        %s649 = sld [smem:[#allocation9 + $0x2]]
        %v650 = vstv %s649
        %s651 = sld [smem:[#allocation8 + $0x6]]
        %v652 = vstv %s651
        %v653 = vmul.f32 %v652, %v597
        %v654 = vmul.f32 %v652, %v598
        %v655 = vadd.f32 %v650, %v653
        %v656 = vadd.f32 %v650, %v654
        %s657 = sld [smem:[#allocation8 + $0x7]]
        %v658 = vstv %s657
        %v659 = vmul.f32 %v658, %v600
        %v660 = vmul.f32 %v658, %v601
        %v661 = vadd.f32 %v655, %v659
        %v662 = vadd.f32 %v656, %v660
        %s663 = sld [smem:[#allocation8 + $0x8]]
        %v664 = vstv %s663
        %v665 = vmul.f32 %v664, %v603
        %v666 = vmul.f32 %v664, %v604
        %v667 = vadd.f32 %v661, %v665
        %v668 = vadd.f32 %v662, %v666
        %v669 = vmax.f32 %v667, 0.0
        %v670 = vmax.f32 %v668, 0.0
        %673 = vrot.lane.b32.xlu0 %v625, 3
        %v674 = vpop.permute.xlu0 %673
        %675 = vrot.lane.b32.xlu0 %v626, 3
        %v676 = vpop.permute.xlu0 %675
        %vm679 = vcmask 154648
        %680 = vst.msk [vmem:[#allocation2 + $0x8] sm:$0xff] %vm679, %v674
        %681 = vst.msk [vmem:[#allocation2 + $0x10] sm:$0xff] %vm679, %v676
        %684 = vrot.lane.b32.xlu0 %v647, 3
        %v685 = vpop.permute.xlu0 %684
        %686 = vrot.lane.b32.xlu0 %v648, 3
        %v687 = vpop.permute.xlu0 %686
        %s690 = scalar_lea.vmem [#allocation2], 32
        %691 = vst.msk [vmem:[%s690 + $0x8] sm:$0xff] %vm679, %v685
        %692 = vst.msk [vmem:[%s690 + $0x10] sm:$0xff] %vm679, %v687
        %695 = vrot.lane.b32.xlu0 %v669, 3
        %v696 = vpop.permute.xlu0 %695
        %697 = vrot.lane.b32.xlu0 %v670, 3
        %v698 = vpop.permute.xlu0 %697
        %s701 = scalar_lea.vmem [#allocation2], 64
        %702 = vst.msk [vmem:[%s701 + $0x8] sm:$0xff] %vm679, %v696
        %703 = vst.msk [vmem:[%s701 + $0x10] sm:$0xff] %vm679, %v698
        %s704 = sld [smem:[#allocation12]]
        %v705 = vstv %s704
        %s706 = sld [smem:[#allocation12 + $0x1]]
        %v707 = vstv %s706
        %s708 = sld [smem:[#allocation12 + $0x2]]
        %v709 = vstv %s708
        loop: start=0, step=1, limit=3
        $region109: #{tpu_custom_call.1} parent=63 // loop_pre_header
          _
        $region110: #{tpu_custom_call.1} parent=63 // loop_header
          %s711 = sphi 0, %s715
          %p712 = scmp.ge.s32.totalorder %s711, 3
          %v716 = vphi %v705, %v1227
          %v717 = vphi %v705, %v1228
          %v718 = vphi %v705, %v1229
          %v719 = vphi %v707, %v1253
          %v720 = vphi %v707, %v1254
          %v721 = vphi %v707, %v1255
          %v722 = vphi %v709, %v1279
          %v723 = vphi %v709, %v1280
          %v724 = vphi %v709, %v1281
        $region111: #{tpu_custom_call.1} parent=63 // loop_header_branch
          %714 = sbr.rel (%p712) target = $region115
        $region112: #{tpu_custom_call.1} parent=63 // loop_body
          %s725 = smul.u32 %s711, 32
          %s726 = scalar_lea.vmem [#allocation2], %s725
          %v727 = vld [vmem:[%s726] sm:$0xff]
          %v728 = vld [vmem:[%s726 + $0x8] sm:$0xff]
          %v729 = vld [vmem:[%s726 + $0x10] sm:$0xff]
          %v730 = vld [vmem:[%s726 + $0x18] sm:$0x7]
          %s731 = smul.u32 %s711, 9
          %s732 = sld [smem:[#allocation11 + %s731]]
          %v733 = vstv %s732
          %v734 = vmul.f32 %v733, %v727
          %v735 = vmul.f32 %v733, %v728
          %v736 = vmul.f32 %v733, %v729
          %v737 = vadd.f32 %v716, %v734
          %v738 = vadd.f32 %v717, %v735
          %v739 = vadd.f32 %v718, %v736
          %s740 = sadd.s32 %s731, 27
          %s741 = sld [smem:[#allocation11 + %s740]]
          %v742 = vstv %s741
          %v743 = vmul.f32 %v742, %v727
          %v744 = vmul.f32 %v742, %v728
          %v745 = vmul.f32 %v742, %v729
          %v746 = vadd.f32 %v719, %v743
          %v747 = vadd.f32 %v720, %v744
          %v748 = vadd.f32 %v721, %v745
          %s749 = sadd.s32 %s731, 54
          %s750 = sld [smem:[#allocation11 + %s749]]
          %v751 = vstv %s750
          %v752 = vmul.f32 %v751, %v727
          %v753 = vmul.f32 %v751, %v728
          %v754 = vmul.f32 %v751, %v729
          %v755 = vadd.f32 %v722, %v752
          %v756 = vadd.f32 %v723, %v753
          %v757 = vadd.f32 %v724, %v754
          %s758 = sadd.s32 %s731, 1
          %s759 = sld [smem:[#allocation11 + %s758]]
          %v760 = vstv %s759
          %v761 = vmul.f32 %v760, %v727
          %v762 = vmul.f32 %v760, %v728
          %v763 = vmul.f32 %v760, %v729
          %767 = vrot.lane.b32.xlu0 %v761, 127
          %v768 = vpop.permute.xlu0 %767
          %769 = vrot.lane.b32.xlu0 %v762, 127
          %v770 = vpop.permute.xlu0 %769
          %771 = vrot.lane.b32.xlu0 %v763, 127
          %v772 = vpop.permute.xlu0 %771
          %v776 = vadd.f32 %v737, %v768
          %v777 = vadd.f32 %v738, %v770
          %v778 = vadd.f32 %v739, %v772
          %s779 = sadd.s32 %s731, 28
          %s780 = sld [smem:[#allocation11 + %s779]]
          %v781 = vstv %s780
          %v782 = vmul.f32 %v781, %v727
          %v783 = vmul.f32 %v781, %v728
          %v784 = vmul.f32 %v781, %v729
          %788 = vrot.lane.b32.xlu0 %v782, 127
          %v789 = vpop.permute.xlu0 %788
          %790 = vrot.lane.b32.xlu0 %v783, 127
          %v791 = vpop.permute.xlu0 %790
          %792 = vrot.lane.b32.xlu0 %v784, 127
          %v793 = vpop.permute.xlu0 %792
          %v797 = vadd.f32 %v746, %v789
          %v798 = vadd.f32 %v747, %v791
          %v799 = vadd.f32 %v748, %v793
          %s800 = sadd.s32 %s731, 55
          %s801 = sld [smem:[#allocation11 + %s800]]
          %v802 = vstv %s801
          %v803 = vmul.f32 %v802, %v727
          %v804 = vmul.f32 %v802, %v728
          %v805 = vmul.f32 %v802, %v729
          %809 = vrot.lane.b32.xlu0 %v803, 127
          %v810 = vpop.permute.xlu0 %809
          %811 = vrot.lane.b32.xlu0 %v804, 127
          %v812 = vpop.permute.xlu0 %811
          %813 = vrot.lane.b32.xlu0 %v805, 127
          %v814 = vpop.permute.xlu0 %813
          %v818 = vadd.f32 %v755, %v810
          %v819 = vadd.f32 %v756, %v812
          %v820 = vadd.f32 %v757, %v814
          %s821 = sadd.s32 %s731, 2
          %s822 = sld [smem:[#allocation11 + %s821]]
          %v823 = vstv %s822
          %v824 = vmul.f32 %v823, %v727
          %v825 = vmul.f32 %v823, %v728
          %v826 = vmul.f32 %v823, %v729
          %830 = vrot.lane.b32.xlu0 %v824, 126
          %v831 = vpop.permute.xlu0 %830
          %832 = vrot.lane.b32.xlu0 %v825, 126
          %v833 = vpop.permute.xlu0 %832
          %834 = vrot.lane.b32.xlu0 %v826, 126
          %v835 = vpop.permute.xlu0 %834
          %v839 = vadd.f32 %v776, %v831
          %v840 = vadd.f32 %v777, %v833
          %v841 = vadd.f32 %v778, %v835
          %s842 = sadd.s32 %s731, 29
          %s843 = sld [smem:[#allocation11 + %s842]]
          %v844 = vstv %s843
          %v845 = vmul.f32 %v844, %v727
          %v846 = vmul.f32 %v844, %v728
          %v847 = vmul.f32 %v844, %v729
          %851 = vrot.lane.b32.xlu0 %v845, 126
          %v852 = vpop.permute.xlu0 %851
          %853 = vrot.lane.b32.xlu0 %v846, 126
          %v854 = vpop.permute.xlu0 %853
          %855 = vrot.lane.b32.xlu0 %v847, 126
          %v856 = vpop.permute.xlu0 %855
          %v860 = vadd.f32 %v797, %v852
          %v861 = vadd.f32 %v798, %v854
          %v862 = vadd.f32 %v799, %v856
          %s863 = sadd.s32 %s731, 56
          %s864 = sld [smem:[#allocation11 + %s863]]
          %v865 = vstv %s864
          %v866 = vmul.f32 %v865, %v727
          %v867 = vmul.f32 %v865, %v728
          %v868 = vmul.f32 %v865, %v729
          %872 = vrot.lane.b32.xlu0 %v866, 126
          %v873 = vpop.permute.xlu0 %872
          %874 = vrot.lane.b32.xlu0 %v867, 126
          %v875 = vpop.permute.xlu0 %874
          %876 = vrot.lane.b32.xlu0 %v868, 126
          %v877 = vpop.permute.xlu0 %876
          %v881 = vadd.f32 %v818, %v873
          %v882 = vadd.f32 %v819, %v875
          %v883 = vadd.f32 %v820, %v877
          %s884 = sadd.s32 %s731, 3
          %s885 = sld [smem:[#allocation11 + %s884]]
          %v886 = vstv %s885
          %v887 = vmul.f32 %v886, %v728
          %v888 = vmul.f32 %v886, %v729
          %vm891 = vcmask 1046528
          %v892 = vrot.slane %v887, 1
          %v893 = vrot.slane %v888, 1
          %v894 = vsel %vm891, %v892, %v893
          %v898 = vadd.f32 %v839, %v892
          %v899 = vadd.f32 %v840, %v894
          %v900 = vadd.f32 %v841, %v893
          %s901 = sadd.s32 %s731, 30
          %s902 = sld [smem:[#allocation11 + %s901]]
          %v903 = vstv %s902
          %v904 = vmul.f32 %v903, %v728
          %v905 = vmul.f32 %v903, %v729
          %v908 = vrot.slane %v904, 1
          %v909 = vrot.slane %v905, 1
          %v910 = vsel %vm891, %v908, %v909
          %v914 = vadd.f32 %v860, %v908
          %v915 = vadd.f32 %v861, %v910
          %v916 = vadd.f32 %v862, %v909
          %s917 = sadd.s32 %s731, 57
          %s918 = sld [smem:[#allocation11 + %s917]]
          %v919 = vstv %s918
          %v920 = vmul.f32 %v919, %v728
          %v921 = vmul.f32 %v919, %v729
          %v924 = vrot.slane %v920, 1
          %v925 = vrot.slane %v921, 1
          %v926 = vsel %vm891, %v924, %v925
          %v930 = vadd.f32 %v881, %v924
          %v931 = vadd.f32 %v882, %v926
          %v932 = vadd.f32 %v883, %v925
          %s933 = sadd.s32 %s731, 4
          %s934 = sld [smem:[#allocation11 + %s933]]
          %v935 = vstv %s934
          %v936 = vmul.f32 %v935, %v728
          %v937 = vmul.f32 %v935, %v729
          %v940 = vrot.slane %v936, 1
          %v941 = vrot.slane %v937, 1
          %v942 = vsel %vm891, %v940, %v941
          %943 = vrot.lane.b32.xlu0 %v940, 127
          %v944 = vpop.permute.xlu0 %943
          %945 = vrot.lane.b32.xlu0 %v942, 127
          %v946 = vpop.permute.xlu0 %945
          %947 = vrot.lane.b32.xlu0 %v941, 127
          %v948 = vpop.permute.xlu0 %947
          %v952 = vadd.f32 %v898, %v944
          %v953 = vadd.f32 %v899, %v946
          %v954 = vadd.f32 %v900, %v948
          %s955 = sadd.s32 %s731, 31
          %s956 = sld [smem:[#allocation11 + %s955]]
          %v957 = vstv %s956
          %v958 = vmul.f32 %v957, %v728
          %v959 = vmul.f32 %v957, %v729
          %v962 = vrot.slane %v958, 1
          %v963 = vrot.slane %v959, 1
          %v964 = vsel %vm891, %v962, %v963
          %965 = vrot.lane.b32.xlu0 %v962, 127
          %v966 = vpop.permute.xlu0 %965
          %967 = vrot.lane.b32.xlu0 %v964, 127
          %v968 = vpop.permute.xlu0 %967
          %969 = vrot.lane.b32.xlu0 %v963, 127
          %v970 = vpop.permute.xlu0 %969
          %v974 = vadd.f32 %v914, %v966
          %v975 = vadd.f32 %v915, %v968
          %v976 = vadd.f32 %v916, %v970
          %s977 = sadd.s32 %s731, 58
          %s978 = sld [smem:[#allocation11 + %s977]]
          %v979 = vstv %s978
          %v980 = vmul.f32 %v979, %v728
          %v981 = vmul.f32 %v979, %v729
          %v984 = vrot.slane %v980, 1
          %v985 = vrot.slane %v981, 1
          %v986 = vsel %vm891, %v984, %v985
          %987 = vrot.lane.b32.xlu0 %v984, 127
          %v988 = vpop.permute.xlu0 %987
          %989 = vrot.lane.b32.xlu0 %v986, 127
          %v990 = vpop.permute.xlu0 %989
          %991 = vrot.lane.b32.xlu0 %v985, 127
          %v992 = vpop.permute.xlu0 %991
          %v996 = vadd.f32 %v930, %v988
          %v997 = vadd.f32 %v931, %v990
          %v998 = vadd.f32 %v932, %v992
          %s999 = sadd.s32 %s731, 5
          %s1000 = sld [smem:[#allocation11 + %s999]]
          %v1001 = vstv %s1000
          %v1002 = vmul.f32 %v1001, %v728
          %v1003 = vmul.f32 %v1001, %v729
          %v1006 = vrot.slane %v1002, 1
          %v1007 = vrot.slane %v1003, 1
          %v1008 = vsel %vm891, %v1006, %v1007
          %1009 = vrot.lane.b32.xlu0 %v1006, 126
          %v1010 = vpop.permute.xlu0 %1009
          %1011 = vrot.lane.b32.xlu0 %v1008, 126
          %v1012 = vpop.permute.xlu0 %1011
          %1013 = vrot.lane.b32.xlu0 %v1007, 126
          %v1014 = vpop.permute.xlu0 %1013
          %v1018 = vadd.f32 %v952, %v1010
          %v1019 = vadd.f32 %v953, %v1012
          %v1020 = vadd.f32 %v954, %v1014
          %s1021 = sadd.s32 %s731, 32
          %s1022 = sld [smem:[#allocation11 + %s1021]]
          %v1023 = vstv %s1022
          %v1024 = vmul.f32 %v1023, %v728
          %v1025 = vmul.f32 %v1023, %v729
          %v1028 = vrot.slane %v1024, 1
          %v1029 = vrot.slane %v1025, 1
          %v1030 = vsel %vm891, %v1028, %v1029
          %1031 = vrot.lane.b32.xlu0 %v1028, 126
          %v1032 = vpop.permute.xlu0 %1031
          %1033 = vrot.lane.b32.xlu0 %v1030, 126
          %v1034 = vpop.permute.xlu0 %1033
          %1035 = vrot.lane.b32.xlu0 %v1029, 126
          %v1036 = vpop.permute.xlu0 %1035
          %v1040 = vadd.f32 %v974, %v1032
          %v1041 = vadd.f32 %v975, %v1034
          %v1042 = vadd.f32 %v976, %v1036
          %s1043 = sadd.s32 %s731, 59
          %s1044 = sld [smem:[#allocation11 + %s1043]]
          %v1045 = vstv %s1044
          %v1046 = vmul.f32 %v1045, %v728
          %v1047 = vmul.f32 %v1045, %v729
          %v1050 = vrot.slane %v1046, 1
          %v1051 = vrot.slane %v1047, 1
          %v1052 = vsel %vm891, %v1050, %v1051
          %1053 = vrot.lane.b32.xlu0 %v1050, 126
          %v1054 = vpop.permute.xlu0 %1053
          %1055 = vrot.lane.b32.xlu0 %v1052, 126
          %v1056 = vpop.permute.xlu0 %1055
          %1057 = vrot.lane.b32.xlu0 %v1051, 126
          %v1058 = vpop.permute.xlu0 %1057
          %v1062 = vadd.f32 %v996, %v1054
          %v1063 = vadd.f32 %v997, %v1056
          %v1064 = vadd.f32 %v998, %v1058
          %s1065 = sadd.s32 %s731, 6
          %s1066 = sld [smem:[#allocation11 + %s1065]]
          %v1067 = vstv %s1066
          %v1068 = vmul.f32 %v1067, %v728
          %v1069 = vmul.f32 %v1067, %v729
          %v1070 = vmul.f32 %v1067, %v730
          %vm1074 = vcmask 1045504
          %v1075 = vrot.slane %v1068, 2
          %v1076 = vrot.slane %v1069, 2
          %v1077 = vsel %vm1074, %v1075, %v1076
          %v1078 = vrot.slane %v1070, 2
          %v1079 = vsel %vm1074, %v1076, %v1078
          %v1083 = vadd.f32 %v1018, %v1075
          %v1084 = vadd.f32 %v1019, %v1077
          %v1085 = vadd.f32 %v1020, %v1079
          %s1086 = sadd.s32 %s731, 33
          %s1087 = sld [smem:[#allocation11 + %s1086]]
          %v1088 = vstv %s1087
          %v1089 = vmul.f32 %v1088, %v728
          %v1090 = vmul.f32 %v1088, %v729
          %v1091 = vmul.f32 %v1088, %v730
          %v1095 = vrot.slane %v1089, 2
          %v1096 = vrot.slane %v1090, 2
          %v1097 = vsel %vm1074, %v1095, %v1096
          %v1098 = vrot.slane %v1091, 2
          %v1099 = vsel %vm1074, %v1096, %v1098
          %v1103 = vadd.f32 %v1040, %v1095
          %v1104 = vadd.f32 %v1041, %v1097
          %v1105 = vadd.f32 %v1042, %v1099
          %s1106 = sadd.s32 %s731, 60
          %s1107 = sld [smem:[#allocation11 + %s1106]]
          %v1108 = vstv %s1107
          %v1109 = vmul.f32 %v1108, %v728
          %v1110 = vmul.f32 %v1108, %v729
          %v1111 = vmul.f32 %v1108, %v730
          %v1115 = vrot.slane %v1109, 2
          %v1116 = vrot.slane %v1110, 2
          %v1117 = vsel %vm1074, %v1115, %v1116
          %v1118 = vrot.slane %v1111, 2
          %v1119 = vsel %vm1074, %v1116, %v1118
          %v1123 = vadd.f32 %v1062, %v1115
          %v1124 = vadd.f32 %v1063, %v1117
          %v1125 = vadd.f32 %v1064, %v1119
          %s1126 = sadd.s32 %s731, 7
          %s1127 = sld [smem:[#allocation11 + %s1126]]
          %v1128 = vstv %s1127
          %v1129 = vmul.f32 %v1128, %v728
          %v1130 = vmul.f32 %v1128, %v729
          %v1131 = vmul.f32 %v1128, %v730
          %v1135 = vrot.slane %v1129, 2
          %v1136 = vrot.slane %v1130, 2
          %v1137 = vsel %vm1074, %v1135, %v1136
          %v1138 = vrot.slane %v1131, 2
          %v1139 = vsel %vm1074, %v1136, %v1138
          %1140 = vrot.lane.b32.xlu0 %v1135, 127
          %v1141 = vpop.permute.xlu0 %1140
          %1142 = vrot.lane.b32.xlu0 %v1137, 127
          %v1143 = vpop.permute.xlu0 %1142
          %1144 = vrot.lane.b32.xlu0 %v1139, 127
          %v1145 = vpop.permute.xlu0 %1144
          %v1149 = vadd.f32 %v1083, %v1141
          %v1150 = vadd.f32 %v1084, %v1143
          %v1151 = vadd.f32 %v1085, %v1145
          %s1152 = sadd.s32 %s731, 34
          %s1153 = sld [smem:[#allocation11 + %s1152]]
          %v1154 = vstv %s1153
          %v1155 = vmul.f32 %v1154, %v728
          %v1156 = vmul.f32 %v1154, %v729
          %v1157 = vmul.f32 %v1154, %v730
          %v1161 = vrot.slane %v1155, 2
          %v1162 = vrot.slane %v1156, 2
          %v1163 = vsel %vm1074, %v1161, %v1162
          %v1164 = vrot.slane %v1157, 2
          %v1165 = vsel %vm1074, %v1162, %v1164
          %1166 = vrot.lane.b32.xlu0 %v1161, 127
          %v1167 = vpop.permute.xlu0 %1166
          %1168 = vrot.lane.b32.xlu0 %v1163, 127
          %v1169 = vpop.permute.xlu0 %1168
          %1170 = vrot.lane.b32.xlu0 %v1165, 127
          %v1171 = vpop.permute.xlu0 %1170
          %v1175 = vadd.f32 %v1103, %v1167
          %v1176 = vadd.f32 %v1104, %v1169
          %v1177 = vadd.f32 %v1105, %v1171
          %s1178 = sadd.s32 %s731, 61
          %s1179 = sld [smem:[#allocation11 + %s1178]]
          %v1180 = vstv %s1179
          %v1181 = vmul.f32 %v1180, %v728
          %v1182 = vmul.f32 %v1180, %v729
          %v1183 = vmul.f32 %v1180, %v730
          %v1187 = vrot.slane %v1181, 2
          %v1188 = vrot.slane %v1182, 2
          %v1189 = vsel %vm1074, %v1187, %v1188
          %v1190 = vrot.slane %v1183, 2
          %v1191 = vsel %vm1074, %v1188, %v1190
          %1192 = vrot.lane.b32.xlu0 %v1187, 127
          %v1193 = vpop.permute.xlu0 %1192
          %1194 = vrot.lane.b32.xlu0 %v1189, 127
          %v1195 = vpop.permute.xlu0 %1194
          %1196 = vrot.lane.b32.xlu0 %v1191, 127
          %v1197 = vpop.permute.xlu0 %1196
          %v1201 = vadd.f32 %v1123, %v1193
          %v1202 = vadd.f32 %v1124, %v1195
          %v1203 = vadd.f32 %v1125, %v1197
          %s1204 = sadd.s32 %s731, 8
          %s1205 = sld [smem:[#allocation11 + %s1204]]
          %v1206 = vstv %s1205
          %v1207 = vmul.f32 %v1206, %v728
          %v1208 = vmul.f32 %v1206, %v729
          %v1209 = vmul.f32 %v1206, %v730
          %v1213 = vrot.slane %v1207, 2
          %v1214 = vrot.slane %v1208, 2
          %v1215 = vsel %vm1074, %v1213, %v1214
          %v1216 = vrot.slane %v1209, 2
          %v1217 = vsel %vm1074, %v1214, %v1216
          %1218 = vrot.lane.b32.xlu0 %v1213, 126
          %v1219 = vpop.permute.xlu0 %1218
          %1220 = vrot.lane.b32.xlu0 %v1215, 126
          %v1221 = vpop.permute.xlu0 %1220
          %1222 = vrot.lane.b32.xlu0 %v1217, 126
          %v1223 = vpop.permute.xlu0 %1222
          %v1227 = vadd.f32 %v1149, %v1219
          %v1228 = vadd.f32 %v1150, %v1221
          %v1229 = vadd.f32 %v1151, %v1223
          %s1230 = sadd.s32 %s731, 35
          %s1231 = sld [smem:[#allocation11 + %s1230]]
          %v1232 = vstv %s1231
          %v1233 = vmul.f32 %v1232, %v728
          %v1234 = vmul.f32 %v1232, %v729
          %v1235 = vmul.f32 %v1232, %v730
          %v1239 = vrot.slane %v1233, 2
          %v1240 = vrot.slane %v1234, 2
          %v1241 = vsel %vm1074, %v1239, %v1240
          %v1242 = vrot.slane %v1235, 2
          %v1243 = vsel %vm1074, %v1240, %v1242
          %1244 = vrot.lane.b32.xlu0 %v1239, 126
          %v1245 = vpop.permute.xlu0 %1244
          %1246 = vrot.lane.b32.xlu0 %v1241, 126
          %v1247 = vpop.permute.xlu0 %1246
          %1248 = vrot.lane.b32.xlu0 %v1243, 126
          %v1249 = vpop.permute.xlu0 %1248
          %v1253 = vadd.f32 %v1175, %v1245
          %v1254 = vadd.f32 %v1176, %v1247
          %v1255 = vadd.f32 %v1177, %v1249
          %s1256 = sadd.s32 %s731, 62
          %s1257 = sld [smem:[#allocation11 + %s1256]]
          %v1258 = vstv %s1257
          %v1259 = vmul.f32 %v1258, %v728
          %v1260 = vmul.f32 %v1258, %v729
          %v1261 = vmul.f32 %v1258, %v730
          %v1265 = vrot.slane %v1259, 2
          %v1266 = vrot.slane %v1260, 2
          %v1267 = vsel %vm1074, %v1265, %v1266
          %v1268 = vrot.slane %v1261, 2
          %v1269 = vsel %vm1074, %v1266, %v1268
          %1270 = vrot.lane.b32.xlu0 %v1265, 126
          %v1271 = vpop.permute.xlu0 %1270
          %1272 = vrot.lane.b32.xlu0 %v1267, 126
          %v1273 = vpop.permute.xlu0 %1272
          %1274 = vrot.lane.b32.xlu0 %v1269, 126
          %v1275 = vpop.permute.xlu0 %1274
          %v1279 = vadd.f32 %v1201, %v1271
          %v1280 = vadd.f32 %v1202, %v1273
          %v1281 = vadd.f32 %v1203, %v1275
        $region113: #{tpu_custom_call.1} parent=63 // loop_footer
          %s715 = sadd.s32 1, %s711
        $region114: #{tpu_custom_call.1} parent=63 // loop_footer_branch
          %710 = sbr.rel target = $region110
        $region115: #{tpu_custom_call.1} parent=63 // loop_exit
          _
        %v1282 = vmax.f32 %v716, 0.0
        %v1283 = vmax.f32 %v717, 0.0
        %v1284 = vmax.f32 %v718, 0.0
        %v1285 = vmax.f32 %v719, 0.0
        %v1286 = vmax.f32 %v720, 0.0
        %v1287 = vmax.f32 %v721, 0.0
        %v1288 = vmax.f32 %v722, 0.0
        %v1289 = vmax.f32 %v723, 0.0
        %v1290 = vmax.f32 %v724, 0.0
        %1294 = vrot.lane.b32.xlu0 %v1282, 1
        %v1295 = vpop.permute.xlu0 %1294
        %1296 = vrot.lane.b32.xlu0 %v1283, 1
        %v1297 = vpop.permute.xlu0 %1296
        %1298 = vrot.lane.b32.xlu0 %v1284, 1
        %v1299 = vpop.permute.xlu0 %1298
        %s1303 = scalar_lea.vmem [#allocation2], 96
        %vm1304 = vcmask 154655
        %1305 = vst.msk [vmem:[%s1303 + $0x1] sm:$0x80] %vm1304, %v1295
        %1306 = vst.msk [vmem:[%s1303 + $0x9] sm:$0xff] %vm679, %v1297
        %vm1307 = vcmask 153624
        %1308 = vst.msk [vmem:[%s1303 + $0x11] sm:$0x7f] %vm1307, %v1299
        %1312 = vrot.lane.b32.xlu0 %v1285, 1
        %v1313 = vpop.permute.xlu0 %1312
        %1314 = vrot.lane.b32.xlu0 %v1286, 1
        %v1315 = vpop.permute.xlu0 %1314
        %1316 = vrot.lane.b32.xlu0 %v1287, 1
        %v1317 = vpop.permute.xlu0 %1316
        %s1321 = scalar_lea.vmem [#allocation2], 128
        %1322 = vst.msk [vmem:[%s1321 + $0x1] sm:$0x80] %vm1304, %v1313
        %1323 = vst.msk [vmem:[%s1321 + $0x9] sm:$0xff] %vm679, %v1315
        %1324 = vst.msk [vmem:[%s1321 + $0x11] sm:$0x7f] %vm1307, %v1317
        %1328 = vrot.lane.b32.xlu0 %v1288, 1
        %v1329 = vpop.permute.xlu0 %1328
        %1330 = vrot.lane.b32.xlu0 %v1289, 1
        %v1331 = vpop.permute.xlu0 %1330
        %1332 = vrot.lane.b32.xlu0 %v1290, 1
        %v1333 = vpop.permute.xlu0 %1332
        %s1337 = scalar_lea.vmem [#allocation2], 160
        %1338 = vst.msk [vmem:[%s1337 + $0x1] sm:$0x80] %vm1304, %v1329
        %1339 = vst.msk [vmem:[%s1337 + $0x9] sm:$0xff] %vm679, %v1331
        %1340 = vst.msk [vmem:[%s1337 + $0x11] sm:$0x7f] %vm1307, %v1333
        %s1341 = sld [smem:[#allocation15]]
        %v1342 = vstv %s1341
        %s1343 = sld [smem:[#allocation15 + $0x1]]
        %v1344 = vstv %s1343
        %s1345 = sld [smem:[#allocation15 + $0x2]]
        %v1346 = vstv %s1345
        loop: start=0, step=1, limit=6
        $region116: #{tpu_custom_call.1} parent=63 // loop_pre_header
          _
        $region117: #{tpu_custom_call.1} parent=63 // loop_header
          %s1348 = sphi 0, %s1352
          %p1349 = scmp.ge.s32.totalorder %s1348, 6
          %v1353 = vphi %v1342, %v3024
          %v1354 = vphi %v1342, %v3025
          %v1355 = vphi %v1342, %v3026
          %v1356 = vphi %v1344, %v3050
          %v1357 = vphi %v1344, %v3051
          %v1358 = vphi %v1344, %v3052
          %v1359 = vphi %v1346, %v3076
          %v1360 = vphi %v1346, %v3077
          %v1361 = vphi %v1346, %v3078
        $region118: #{tpu_custom_call.1} parent=63 // loop_header_branch
          %1351 = sbr.rel (%p1349) target = $region122
        $region119: #{tpu_custom_call.1} parent=63 // loop_body
          %s1362 = smul.u32 %s1348, 32
          %s1363 = scalar_lea.vmem [#allocation2], %s1362
          %v1364 = vld [vmem:[%s1363] sm:$0xff]
          %v1365 = vld [vmem:[%s1363 + $0x8] sm:$0xff]
          %v1366 = vld [vmem:[%s1363 + $0x10] sm:$0xff]
          %v1367 = vld [vmem:[%s1363 + $0x18] sm:$0x7]
          %s1368 = smul.u32 %s1348, 25
          %s1369 = sld [smem:[#allocation14 + %s1368]]
          %v1370 = vstv %s1369
          %v1371 = vmul.f32 %v1370, %v1364
          %v1372 = vmul.f32 %v1370, %v1365
          %v1373 = vmul.f32 %v1370, %v1366
          %v1374 = vadd.f32 %v1353, %v1371
          %v1375 = vadd.f32 %v1354, %v1372
          %v1376 = vadd.f32 %v1355, %v1373
          %s1377 = sadd.s32 %s1368, 150
          %s1378 = sld [smem:[#allocation14 + %s1377]]
          %v1379 = vstv %s1378
          %v1380 = vmul.f32 %v1379, %v1364
          %v1381 = vmul.f32 %v1379, %v1365
          %v1382 = vmul.f32 %v1379, %v1366
          %v1383 = vadd.f32 %v1356, %v1380
          %v1384 = vadd.f32 %v1357, %v1381
          %v1385 = vadd.f32 %v1358, %v1382
          %s1386 = sadd.s32 %s1368, 300
          %s1387 = sld [smem:[#allocation14 + %s1386]]
          %v1388 = vstv %s1387
          %v1389 = vmul.f32 %v1388, %v1364
          %v1390 = vmul.f32 %v1388, %v1365
          %v1391 = vmul.f32 %v1388, %v1366
          %v1392 = vadd.f32 %v1359, %v1389
          %v1393 = vadd.f32 %v1360, %v1390
          %v1394 = vadd.f32 %v1361, %v1391
          %s1395 = sadd.s32 %s1368, 1
          %s1396 = sld [smem:[#allocation14 + %s1395]]
          %v1397 = vstv %s1396
          %v1398 = vmul.f32 %v1397, %v1364
          %v1399 = vmul.f32 %v1397, %v1365
          %v1400 = vmul.f32 %v1397, %v1366
          %1404 = vrot.lane.b32.xlu0 %v1398, 127
          %v1405 = vpop.permute.xlu0 %1404
          %1406 = vrot.lane.b32.xlu0 %v1399, 127
          %v1407 = vpop.permute.xlu0 %1406
          %1408 = vrot.lane.b32.xlu0 %v1400, 127
          %v1409 = vpop.permute.xlu0 %1408
          %v1413 = vadd.f32 %v1374, %v1405
          %v1414 = vadd.f32 %v1375, %v1407
          %v1415 = vadd.f32 %v1376, %v1409
          %s1416 = sadd.s32 %s1368, 151
          %s1417 = sld [smem:[#allocation14 + %s1416]]
          %v1418 = vstv %s1417
          %v1419 = vmul.f32 %v1418, %v1364
          %v1420 = vmul.f32 %v1418, %v1365
          %v1421 = vmul.f32 %v1418, %v1366
          %1425 = vrot.lane.b32.xlu0 %v1419, 127
          %v1426 = vpop.permute.xlu0 %1425
          %1427 = vrot.lane.b32.xlu0 %v1420, 127
          %v1428 = vpop.permute.xlu0 %1427
          %1429 = vrot.lane.b32.xlu0 %v1421, 127
          %v1430 = vpop.permute.xlu0 %1429
          %v1434 = vadd.f32 %v1383, %v1426
          %v1435 = vadd.f32 %v1384, %v1428
          %v1436 = vadd.f32 %v1385, %v1430
          %s1437 = sadd.s32 %s1368, 301
          %s1438 = sld [smem:[#allocation14 + %s1437]]
          %v1439 = vstv %s1438
          %v1440 = vmul.f32 %v1439, %v1364
          %v1441 = vmul.f32 %v1439, %v1365
          %v1442 = vmul.f32 %v1439, %v1366
          %1446 = vrot.lane.b32.xlu0 %v1440, 127
          %v1447 = vpop.permute.xlu0 %1446
          %1448 = vrot.lane.b32.xlu0 %v1441, 127
          %v1449 = vpop.permute.xlu0 %1448
          %1450 = vrot.lane.b32.xlu0 %v1442, 127
          %v1451 = vpop.permute.xlu0 %1450
          %v1455 = vadd.f32 %v1392, %v1447
          %v1456 = vadd.f32 %v1393, %v1449
          %v1457 = vadd.f32 %v1394, %v1451
          %s1458 = sadd.s32 %s1368, 2
          %s1459 = sld [smem:[#allocation14 + %s1458]]
          %v1460 = vstv %s1459
          %v1461 = vmul.f32 %v1460, %v1364
          %v1462 = vmul.f32 %v1460, %v1365
          %v1463 = vmul.f32 %v1460, %v1366
          %1467 = vrot.lane.b32.xlu0 %v1461, 126
          %v1468 = vpop.permute.xlu0 %1467
          %1469 = vrot.lane.b32.xlu0 %v1462, 126
          %v1470 = vpop.permute.xlu0 %1469
          %1471 = vrot.lane.b32.xlu0 %v1463, 126
          %v1472 = vpop.permute.xlu0 %1471
          %v1476 = vadd.f32 %v1413, %v1468
          %v1477 = vadd.f32 %v1414, %v1470
          %v1478 = vadd.f32 %v1415, %v1472
          %s1479 = sadd.s32 %s1368, 152
          %s1480 = sld [smem:[#allocation14 + %s1479]]
          %v1481 = vstv %s1480
          %v1482 = vmul.f32 %v1481, %v1364
          %v1483 = vmul.f32 %v1481, %v1365
          %v1484 = vmul.f32 %v1481, %v1366
          %1488 = vrot.lane.b32.xlu0 %v1482, 126
          %v1489 = vpop.permute.xlu0 %1488
          %1490 = vrot.lane.b32.xlu0 %v1483, 126
          %v1491 = vpop.permute.xlu0 %1490
          %1492 = vrot.lane.b32.xlu0 %v1484, 126
          %v1493 = vpop.permute.xlu0 %1492
          %v1497 = vadd.f32 %v1434, %v1489
          %v1498 = vadd.f32 %v1435, %v1491
          %v1499 = vadd.f32 %v1436, %v1493
          %s1500 = sadd.s32 %s1368, 302
          %s1501 = sld [smem:[#allocation14 + %s1500]]
          %v1502 = vstv %s1501
          %v1503 = vmul.f32 %v1502, %v1364
          %v1504 = vmul.f32 %v1502, %v1365
          %v1505 = vmul.f32 %v1502, %v1366
          %1509 = vrot.lane.b32.xlu0 %v1503, 126
          %v1510 = vpop.permute.xlu0 %1509
          %1511 = vrot.lane.b32.xlu0 %v1504, 126
          %v1512 = vpop.permute.xlu0 %1511
          %1513 = vrot.lane.b32.xlu0 %v1505, 126
          %v1514 = vpop.permute.xlu0 %1513
          %v1518 = vadd.f32 %v1455, %v1510
          %v1519 = vadd.f32 %v1456, %v1512
          %v1520 = vadd.f32 %v1457, %v1514
          %s1521 = sadd.s32 %s1368, 3
          %s1522 = sld [smem:[#allocation14 + %s1521]]
          %v1523 = vstv %s1522
          %v1524 = vmul.f32 %v1523, %v1364
          %v1525 = vmul.f32 %v1523, %v1365
          %v1526 = vmul.f32 %v1523, %v1366
          %1530 = vrot.lane.b32.xlu0 %v1524, 125
          %v1531 = vpop.permute.xlu0 %1530
          %1532 = vrot.lane.b32.xlu0 %v1525, 125
          %v1533 = vpop.permute.xlu0 %1532
          %1534 = vrot.lane.b32.xlu0 %v1526, 125
          %v1535 = vpop.permute.xlu0 %1534
          %v1539 = vadd.f32 %v1476, %v1531
          %v1540 = vadd.f32 %v1477, %v1533
          %v1541 = vadd.f32 %v1478, %v1535
          %s1542 = sadd.s32 %s1368, 153
          %s1543 = sld [smem:[#allocation14 + %s1542]]
          %v1544 = vstv %s1543
          %v1545 = vmul.f32 %v1544, %v1364
          %v1546 = vmul.f32 %v1544, %v1365
          %v1547 = vmul.f32 %v1544, %v1366
          %1551 = vrot.lane.b32.xlu0 %v1545, 125
          %v1552 = vpop.permute.xlu0 %1551
          %1553 = vrot.lane.b32.xlu0 %v1546, 125
          %v1554 = vpop.permute.xlu0 %1553
          %1555 = vrot.lane.b32.xlu0 %v1547, 125
          %v1556 = vpop.permute.xlu0 %1555
          %v1560 = vadd.f32 %v1497, %v1552
          %v1561 = vadd.f32 %v1498, %v1554
          %v1562 = vadd.f32 %v1499, %v1556
          %s1563 = sadd.s32 %s1368, 303
          %s1564 = sld [smem:[#allocation14 + %s1563]]
          %v1565 = vstv %s1564
          %v1566 = vmul.f32 %v1565, %v1364
          %v1567 = vmul.f32 %v1565, %v1365
          %v1568 = vmul.f32 %v1565, %v1366
          %1572 = vrot.lane.b32.xlu0 %v1566, 125
          %v1573 = vpop.permute.xlu0 %1572
          %1574 = vrot.lane.b32.xlu0 %v1567, 125
          %v1575 = vpop.permute.xlu0 %1574
          %1576 = vrot.lane.b32.xlu0 %v1568, 125
          %v1577 = vpop.permute.xlu0 %1576
          %v1581 = vadd.f32 %v1518, %v1573
          %v1582 = vadd.f32 %v1519, %v1575
          %v1583 = vadd.f32 %v1520, %v1577
          %s1584 = sadd.s32 %s1368, 4
          %s1585 = sld [smem:[#allocation14 + %s1584]]
          %v1586 = vstv %s1585
          %v1587 = vmul.f32 %v1586, %v1364
          %v1588 = vmul.f32 %v1586, %v1365
          %v1589 = vmul.f32 %v1586, %v1366
          %1593 = vrot.lane.b32.xlu0 %v1587, 124
          %v1594 = vpop.permute.xlu0 %1593
          %1595 = vrot.lane.b32.xlu0 %v1588, 124
          %v1596 = vpop.permute.xlu0 %1595
          %1597 = vrot.lane.b32.xlu0 %v1589, 124
          %v1598 = vpop.permute.xlu0 %1597
          %v1602 = vadd.f32 %v1539, %v1594
          %v1603 = vadd.f32 %v1540, %v1596
          %v1604 = vadd.f32 %v1541, %v1598
          %s1605 = sadd.s32 %s1368, 154
          %s1606 = sld [smem:[#allocation14 + %s1605]]
          %v1607 = vstv %s1606
          %v1608 = vmul.f32 %v1607, %v1364
          %v1609 = vmul.f32 %v1607, %v1365
          %v1610 = vmul.f32 %v1607, %v1366
          %1614 = vrot.lane.b32.xlu0 %v1608, 124
          %v1615 = vpop.permute.xlu0 %1614
          %1616 = vrot.lane.b32.xlu0 %v1609, 124
          %v1617 = vpop.permute.xlu0 %1616
          %1618 = vrot.lane.b32.xlu0 %v1610, 124
          %v1619 = vpop.permute.xlu0 %1618
          %v1623 = vadd.f32 %v1560, %v1615
          %v1624 = vadd.f32 %v1561, %v1617
          %v1625 = vadd.f32 %v1562, %v1619
          %s1626 = sadd.s32 %s1368, 304
          %s1627 = sld [smem:[#allocation14 + %s1626]]
          %v1628 = vstv %s1627
          %v1629 = vmul.f32 %v1628, %v1364
          %v1630 = vmul.f32 %v1628, %v1365
          %v1631 = vmul.f32 %v1628, %v1366
          %1635 = vrot.lane.b32.xlu0 %v1629, 124
          %v1636 = vpop.permute.xlu0 %1635
          %1637 = vrot.lane.b32.xlu0 %v1630, 124
          %v1638 = vpop.permute.xlu0 %1637
          %1639 = vrot.lane.b32.xlu0 %v1631, 124
          %v1640 = vpop.permute.xlu0 %1639
          %v1644 = vadd.f32 %v1581, %v1636
          %v1645 = vadd.f32 %v1582, %v1638
          %v1646 = vadd.f32 %v1583, %v1640
          %s1647 = sadd.s32 %s1368, 5
          %s1648 = sld [smem:[#allocation14 + %s1647]]
          %v1649 = vstv %s1648
          %v1650 = vmul.f32 %v1649, %v1364
          %v1651 = vmul.f32 %v1649, %v1365
          %v1652 = vmul.f32 %v1649, %v1366
          %vm1656 = vcmask 1046528
          %v1657 = vrot.slane %v1650, 1
          %v1658 = vrot.slane %v1651, 1
          %v1659 = vsel %vm1656, %v1657, %v1658
          %v1660 = vrot.slane %v1652, 1
          %v1661 = vsel %vm1656, %v1658, %v1660
          %v1665 = vadd.f32 %v1602, %v1659
          %v1666 = vadd.f32 %v1603, %v1661
          %v1667 = vadd.f32 %v1604, %v1660
          %s1668 = sadd.s32 %s1368, 155
          %s1669 = sld [smem:[#allocation14 + %s1668]]
          %v1670 = vstv %s1669
          %v1671 = vmul.f32 %v1670, %v1364
          %v1672 = vmul.f32 %v1670, %v1365
          %v1673 = vmul.f32 %v1670, %v1366
          %v1677 = vrot.slane %v1671, 1
          %v1678 = vrot.slane %v1672, 1
          %v1679 = vsel %vm1656, %v1677, %v1678
          %v1680 = vrot.slane %v1673, 1
          %v1681 = vsel %vm1656, %v1678, %v1680
          %v1685 = vadd.f32 %v1623, %v1679
          %v1686 = vadd.f32 %v1624, %v1681
          %v1687 = vadd.f32 %v1625, %v1680
          %s1688 = sadd.s32 %s1368, 305
          %s1689 = sld [smem:[#allocation14 + %s1688]]
          %v1690 = vstv %s1689
          %v1691 = vmul.f32 %v1690, %v1364
          %v1692 = vmul.f32 %v1690, %v1365
          %v1693 = vmul.f32 %v1690, %v1366
          %v1697 = vrot.slane %v1691, 1
          %v1698 = vrot.slane %v1692, 1
          %v1699 = vsel %vm1656, %v1697, %v1698
          %v1700 = vrot.slane %v1693, 1
          %v1701 = vsel %vm1656, %v1698, %v1700
          %v1705 = vadd.f32 %v1644, %v1699
          %v1706 = vadd.f32 %v1645, %v1701
          %v1707 = vadd.f32 %v1646, %v1700
          %s1708 = sadd.s32 %s1368, 6
          %s1709 = sld [smem:[#allocation14 + %s1708]]
          %v1710 = vstv %s1709
          %v1711 = vmul.f32 %v1710, %v1364
          %v1712 = vmul.f32 %v1710, %v1365
          %v1713 = vmul.f32 %v1710, %v1366
          %v1717 = vrot.slane %v1711, 1
          %v1718 = vrot.slane %v1712, 1
          %v1719 = vsel %vm1656, %v1717, %v1718
          %v1720 = vrot.slane %v1713, 1
          %v1721 = vsel %vm1656, %v1718, %v1720
          %1722 = vrot.lane.b32.xlu0 %v1719, 127
          %v1723 = vpop.permute.xlu0 %1722
          %1724 = vrot.lane.b32.xlu0 %v1721, 127
          %v1725 = vpop.permute.xlu0 %1724
          %1726 = vrot.lane.b32.xlu0 %v1720, 127
          %v1727 = vpop.permute.xlu0 %1726
          %v1731 = vadd.f32 %v1665, %v1723
          %v1732 = vadd.f32 %v1666, %v1725
          %v1733 = vadd.f32 %v1667, %v1727
          %s1734 = sadd.s32 %s1368, 156
          %s1735 = sld [smem:[#allocation14 + %s1734]]
          %v1736 = vstv %s1735
          %v1737 = vmul.f32 %v1736, %v1364
          %v1738 = vmul.f32 %v1736, %v1365
          %v1739 = vmul.f32 %v1736, %v1366
          %v1743 = vrot.slane %v1737, 1
          %v1744 = vrot.slane %v1738, 1
          %v1745 = vsel %vm1656, %v1743, %v1744
          %v1746 = vrot.slane %v1739, 1
          %v1747 = vsel %vm1656, %v1744, %v1746
          %1748 = vrot.lane.b32.xlu0 %v1745, 127
          %v1749 = vpop.permute.xlu0 %1748
          %1750 = vrot.lane.b32.xlu0 %v1747, 127
          %v1751 = vpop.permute.xlu0 %1750
          %1752 = vrot.lane.b32.xlu0 %v1746, 127
          %v1753 = vpop.permute.xlu0 %1752
          %v1757 = vadd.f32 %v1685, %v1749
          %v1758 = vadd.f32 %v1686, %v1751
          %v1759 = vadd.f32 %v1687, %v1753
          %s1760 = sadd.s32 %s1368, 306
          %s1761 = sld [smem:[#allocation14 + %s1760]]
          %v1762 = vstv %s1761
          %v1763 = vmul.f32 %v1762, %v1364
          %v1764 = vmul.f32 %v1762, %v1365
          %v1765 = vmul.f32 %v1762, %v1366
          %v1769 = vrot.slane %v1763, 1
          %v1770 = vrot.slane %v1764, 1
          %v1771 = vsel %vm1656, %v1769, %v1770
          %v1772 = vrot.slane %v1765, 1
          %v1773 = vsel %vm1656, %v1770, %v1772
          %1774 = vrot.lane.b32.xlu0 %v1771, 127
          %v1775 = vpop.permute.xlu0 %1774
          %1776 = vrot.lane.b32.xlu0 %v1773, 127
          %v1777 = vpop.permute.xlu0 %1776
          %1778 = vrot.lane.b32.xlu0 %v1772, 127
          %v1779 = vpop.permute.xlu0 %1778
          %v1783 = vadd.f32 %v1705, %v1775
          %v1784 = vadd.f32 %v1706, %v1777
          %v1785 = vadd.f32 %v1707, %v1779
          %s1786 = sadd.s32 %s1368, 7
          %s1787 = sld [smem:[#allocation14 + %s1786]]
          %v1788 = vstv %s1787
          %v1789 = vmul.f32 %v1788, %v1364
          %v1790 = vmul.f32 %v1788, %v1365
          %v1791 = vmul.f32 %v1788, %v1366
          %v1795 = vrot.slane %v1789, 1
          %v1796 = vrot.slane %v1790, 1
          %v1797 = vsel %vm1656, %v1795, %v1796
          %v1798 = vrot.slane %v1791, 1
          %v1799 = vsel %vm1656, %v1796, %v1798
          %1800 = vrot.lane.b32.xlu0 %v1797, 126
          %v1801 = vpop.permute.xlu0 %1800
          %1802 = vrot.lane.b32.xlu0 %v1799, 126
          %v1803 = vpop.permute.xlu0 %1802
          %1804 = vrot.lane.b32.xlu0 %v1798, 126
          %v1805 = vpop.permute.xlu0 %1804
          %v1809 = vadd.f32 %v1731, %v1801
          %v1810 = vadd.f32 %v1732, %v1803
          %v1811 = vadd.f32 %v1733, %v1805
          %s1812 = sadd.s32 %s1368, 157
          %s1813 = sld [smem:[#allocation14 + %s1812]]
          %v1814 = vstv %s1813
          %v1815 = vmul.f32 %v1814, %v1364
          %v1816 = vmul.f32 %v1814, %v1365
          %v1817 = vmul.f32 %v1814, %v1366
          %v1821 = vrot.slane %v1815, 1
          %v1822 = vrot.slane %v1816, 1
          %v1823 = vsel %vm1656, %v1821, %v1822
          %v1824 = vrot.slane %v1817, 1
          %v1825 = vsel %vm1656, %v1822, %v1824
          %1826 = vrot.lane.b32.xlu0 %v1823, 126
          %v1827 = vpop.permute.xlu0 %1826
          %1828 = vrot.lane.b32.xlu0 %v1825, 126
          %v1829 = vpop.permute.xlu0 %1828
          %1830 = vrot.lane.b32.xlu0 %v1824, 126
          %v1831 = vpop.permute.xlu0 %1830
          %v1835 = vadd.f32 %v1757, %v1827
          %v1836 = vadd.f32 %v1758, %v1829
          %v1837 = vadd.f32 %v1759, %v1831
          %s1838 = sadd.s32 %s1368, 307
          %s1839 = sld [smem:[#allocation14 + %s1838]]
          %v1840 = vstv %s1839
          %v1841 = vmul.f32 %v1840, %v1364
          %v1842 = vmul.f32 %v1840, %v1365
          %v1843 = vmul.f32 %v1840, %v1366
          %v1847 = vrot.slane %v1841, 1
          %v1848 = vrot.slane %v1842, 1
          %v1849 = vsel %vm1656, %v1847, %v1848
          %v1850 = vrot.slane %v1843, 1
          %v1851 = vsel %vm1656, %v1848, %v1850
          %1852 = vrot.lane.b32.xlu0 %v1849, 126
          %v1853 = vpop.permute.xlu0 %1852
          %1854 = vrot.lane.b32.xlu0 %v1851, 126
          %v1855 = vpop.permute.xlu0 %1854
          %1856 = vrot.lane.b32.xlu0 %v1850, 126
          %v1857 = vpop.permute.xlu0 %1856
          %v1861 = vadd.f32 %v1783, %v1853
          %v1862 = vadd.f32 %v1784, %v1855
          %v1863 = vadd.f32 %v1785, %v1857
          %s1864 = sadd.s32 %s1368, 8
          %s1865 = sld [smem:[#allocation14 + %s1864]]
          %v1866 = vstv %s1865
          %v1867 = vmul.f32 %v1866, %v1364
          %v1868 = vmul.f32 %v1866, %v1365
          %v1869 = vmul.f32 %v1866, %v1366
          %v1873 = vrot.slane %v1867, 1
          %v1874 = vrot.slane %v1868, 1
          %v1875 = vsel %vm1656, %v1873, %v1874
          %v1876 = vrot.slane %v1869, 1
          %v1877 = vsel %vm1656, %v1874, %v1876
          %1878 = vrot.lane.b32.xlu0 %v1875, 125
          %v1879 = vpop.permute.xlu0 %1878
          %1880 = vrot.lane.b32.xlu0 %v1877, 125
          %v1881 = vpop.permute.xlu0 %1880
          %1882 = vrot.lane.b32.xlu0 %v1876, 125
          %v1883 = vpop.permute.xlu0 %1882
          %v1887 = vadd.f32 %v1809, %v1879
          %v1888 = vadd.f32 %v1810, %v1881
          %v1889 = vadd.f32 %v1811, %v1883
          %s1890 = sadd.s32 %s1368, 158
          %s1891 = sld [smem:[#allocation14 + %s1890]]
          %v1892 = vstv %s1891
          %v1893 = vmul.f32 %v1892, %v1364
          %v1894 = vmul.f32 %v1892, %v1365
          %v1895 = vmul.f32 %v1892, %v1366
          %v1899 = vrot.slane %v1893, 1
          %v1900 = vrot.slane %v1894, 1
          %v1901 = vsel %vm1656, %v1899, %v1900
          %v1902 = vrot.slane %v1895, 1
          %v1903 = vsel %vm1656, %v1900, %v1902
          %1904 = vrot.lane.b32.xlu0 %v1901, 125
          %v1905 = vpop.permute.xlu0 %1904
          %1906 = vrot.lane.b32.xlu0 %v1903, 125
          %v1907 = vpop.permute.xlu0 %1906
          %1908 = vrot.lane.b32.xlu0 %v1902, 125
          %v1909 = vpop.permute.xlu0 %1908
          %v1913 = vadd.f32 %v1835, %v1905
          %v1914 = vadd.f32 %v1836, %v1907
          %v1915 = vadd.f32 %v1837, %v1909
          %s1916 = sadd.s32 %s1368, 308
          %s1917 = sld [smem:[#allocation14 + %s1916]]
          %v1918 = vstv %s1917
          %v1919 = vmul.f32 %v1918, %v1364
          %v1920 = vmul.f32 %v1918, %v1365
          %v1921 = vmul.f32 %v1918, %v1366
          %v1925 = vrot.slane %v1919, 1
          %v1926 = vrot.slane %v1920, 1
          %v1927 = vsel %vm1656, %v1925, %v1926
          %v1928 = vrot.slane %v1921, 1
          %v1929 = vsel %vm1656, %v1926, %v1928
          %1930 = vrot.lane.b32.xlu0 %v1927, 125
          %v1931 = vpop.permute.xlu0 %1930
          %1932 = vrot.lane.b32.xlu0 %v1929, 125
          %v1933 = vpop.permute.xlu0 %1932
          %1934 = vrot.lane.b32.xlu0 %v1928, 125
          %v1935 = vpop.permute.xlu0 %1934
          %v1939 = vadd.f32 %v1861, %v1931
          %v1940 = vadd.f32 %v1862, %v1933
          %v1941 = vadd.f32 %v1863, %v1935
          %s1942 = sadd.s32 %s1368, 9
          %s1943 = sld [smem:[#allocation14 + %s1942]]
          %v1944 = vstv %s1943
          %v1945 = vmul.f32 %v1944, %v1364
          %v1946 = vmul.f32 %v1944, %v1365
          %v1947 = vmul.f32 %v1944, %v1366
          %v1951 = vrot.slane %v1945, 1
          %v1952 = vrot.slane %v1946, 1
          %v1953 = vsel %vm1656, %v1951, %v1952
          %v1954 = vrot.slane %v1947, 1
          %v1955 = vsel %vm1656, %v1952, %v1954
          %1956 = vrot.lane.b32.xlu0 %v1953, 124
          %v1957 = vpop.permute.xlu0 %1956
          %1958 = vrot.lane.b32.xlu0 %v1955, 124
          %v1959 = vpop.permute.xlu0 %1958
          %1960 = vrot.lane.b32.xlu0 %v1954, 124
          %v1961 = vpop.permute.xlu0 %1960
          %v1965 = vadd.f32 %v1887, %v1957
          %v1966 = vadd.f32 %v1888, %v1959
          %v1967 = vadd.f32 %v1889, %v1961
          %s1968 = sadd.s32 %s1368, 159
          %s1969 = sld [smem:[#allocation14 + %s1968]]
          %v1970 = vstv %s1969
          %v1971 = vmul.f32 %v1970, %v1364
          %v1972 = vmul.f32 %v1970, %v1365
          %v1973 = vmul.f32 %v1970, %v1366
          %v1977 = vrot.slane %v1971, 1
          %v1978 = vrot.slane %v1972, 1
          %v1979 = vsel %vm1656, %v1977, %v1978
          %v1980 = vrot.slane %v1973, 1
          %v1981 = vsel %vm1656, %v1978, %v1980
          %1982 = vrot.lane.b32.xlu0 %v1979, 124
          %v1983 = vpop.permute.xlu0 %1982
          %1984 = vrot.lane.b32.xlu0 %v1981, 124
          %v1985 = vpop.permute.xlu0 %1984
          %1986 = vrot.lane.b32.xlu0 %v1980, 124
          %v1987 = vpop.permute.xlu0 %1986
          %v1991 = vadd.f32 %v1913, %v1983
          %v1992 = vadd.f32 %v1914, %v1985
          %v1993 = vadd.f32 %v1915, %v1987
          %s1994 = sadd.s32 %s1368, 309
          %s1995 = sld [smem:[#allocation14 + %s1994]]
          %v1996 = vstv %s1995
          %v1997 = vmul.f32 %v1996, %v1364
          %v1998 = vmul.f32 %v1996, %v1365
          %v1999 = vmul.f32 %v1996, %v1366
          %v2003 = vrot.slane %v1997, 1
          %v2004 = vrot.slane %v1998, 1
          %v2005 = vsel %vm1656, %v2003, %v2004
          %v2006 = vrot.slane %v1999, 1
          %v2007 = vsel %vm1656, %v2004, %v2006
          %2008 = vrot.lane.b32.xlu0 %v2005, 124
          %v2009 = vpop.permute.xlu0 %2008
          %2010 = vrot.lane.b32.xlu0 %v2007, 124
          %v2011 = vpop.permute.xlu0 %2010
          %2012 = vrot.lane.b32.xlu0 %v2006, 124
          %v2013 = vpop.permute.xlu0 %2012
          %v2017 = vadd.f32 %v1939, %v2009
          %v2018 = vadd.f32 %v1940, %v2011
          %v2019 = vadd.f32 %v1941, %v2013
          %s2020 = sadd.s32 %s1368, 10
          %s2021 = sld [smem:[#allocation14 + %s2020]]
          %v2022 = vstv %s2021
          %v2023 = vmul.f32 %v2022, %v1365
          %v2024 = vmul.f32 %v2022, %v1366
          %vm2027 = vcmask 1045504
          %v2028 = vrot.slane %v2023, 2
          %v2029 = vrot.slane %v2024, 2
          %v2030 = vsel %vm2027, %v2028, %v2029
          %v2034 = vadd.f32 %v1965, %v2028
          %v2035 = vadd.f32 %v1966, %v2030
          %v2036 = vadd.f32 %v1967, %v2029
          %s2037 = sadd.s32 %s1368, 160
          %s2038 = sld [smem:[#allocation14 + %s2037]]
          %v2039 = vstv %s2038
          %v2040 = vmul.f32 %v2039, %v1365
          %v2041 = vmul.f32 %v2039, %v1366
          %v2044 = vrot.slane %v2040, 2
          %v2045 = vrot.slane %v2041, 2
          %v2046 = vsel %vm2027, %v2044, %v2045
          %v2050 = vadd.f32 %v1991, %v2044
          %v2051 = vadd.f32 %v1992, %v2046
          %v2052 = vadd.f32 %v1993, %v2045
          %s2053 = sadd.s32 %s1368, 310
          %s2054 = sld [smem:[#allocation14 + %s2053]]
          %v2055 = vstv %s2054
          %v2056 = vmul.f32 %v2055, %v1365
          %v2057 = vmul.f32 %v2055, %v1366
          %v2060 = vrot.slane %v2056, 2
          %v2061 = vrot.slane %v2057, 2
          %v2062 = vsel %vm2027, %v2060, %v2061
          %v2066 = vadd.f32 %v2017, %v2060
          %v2067 = vadd.f32 %v2018, %v2062
          %v2068 = vadd.f32 %v2019, %v2061
          %s2069 = sadd.s32 %s1368, 11
          %s2070 = sld [smem:[#allocation14 + %s2069]]
          %v2071 = vstv %s2070
          %v2072 = vmul.f32 %v2071, %v1365
          %v2073 = vmul.f32 %v2071, %v1366
          %v2076 = vrot.slane %v2072, 2
          %v2077 = vrot.slane %v2073, 2
          %v2078 = vsel %vm2027, %v2076, %v2077
          %2079 = vrot.lane.b32.xlu0 %v2076, 127
          %v2080 = vpop.permute.xlu0 %2079
          %2081 = vrot.lane.b32.xlu0 %v2078, 127
          %v2082 = vpop.permute.xlu0 %2081
          %2083 = vrot.lane.b32.xlu0 %v2077, 127
          %v2084 = vpop.permute.xlu0 %2083
          %v2088 = vadd.f32 %v2034, %v2080
          %v2089 = vadd.f32 %v2035, %v2082
          %v2090 = vadd.f32 %v2036, %v2084
          %s2091 = sadd.s32 %s1368, 161
          %s2092 = sld [smem:[#allocation14 + %s2091]]
          %v2093 = vstv %s2092
          %v2094 = vmul.f32 %v2093, %v1365
          %v2095 = vmul.f32 %v2093, %v1366
          %v2098 = vrot.slane %v2094, 2
          %v2099 = vrot.slane %v2095, 2
          %v2100 = vsel %vm2027, %v2098, %v2099
          %2101 = vrot.lane.b32.xlu0 %v2098, 127
          %v2102 = vpop.permute.xlu0 %2101
          %2103 = vrot.lane.b32.xlu0 %v2100, 127
          %v2104 = vpop.permute.xlu0 %2103
          %2105 = vrot.lane.b32.xlu0 %v2099, 127
          %v2106 = vpop.permute.xlu0 %2105
          %v2110 = vadd.f32 %v2050, %v2102
          %v2111 = vadd.f32 %v2051, %v2104
          %v2112 = vadd.f32 %v2052, %v2106
          %s2113 = sadd.s32 %s1368, 311
          %s2114 = sld [smem:[#allocation14 + %s2113]]
          %v2115 = vstv %s2114
          %v2116 = vmul.f32 %v2115, %v1365
          %v2117 = vmul.f32 %v2115, %v1366
          %v2120 = vrot.slane %v2116, 2
          %v2121 = vrot.slane %v2117, 2
          %v2122 = vsel %vm2027, %v2120, %v2121
          %2123 = vrot.lane.b32.xlu0 %v2120, 127
          %v2124 = vpop.permute.xlu0 %2123
          %2125 = vrot.lane.b32.xlu0 %v2122, 127
          %v2126 = vpop.permute.xlu0 %2125
          %2127 = vrot.lane.b32.xlu0 %v2121, 127
          %v2128 = vpop.permute.xlu0 %2127
          %v2132 = vadd.f32 %v2066, %v2124
          %v2133 = vadd.f32 %v2067, %v2126
          %v2134 = vadd.f32 %v2068, %v2128
          %s2135 = sadd.s32 %s1368, 12
          %s2136 = sld [smem:[#allocation14 + %s2135]]
          %v2137 = vstv %s2136
          %v2138 = vmul.f32 %v2137, %v1365
          %v2139 = vmul.f32 %v2137, %v1366
          %v2142 = vrot.slane %v2138, 2
          %v2143 = vrot.slane %v2139, 2
          %v2144 = vsel %vm2027, %v2142, %v2143
          %2145 = vrot.lane.b32.xlu0 %v2142, 126
          %v2146 = vpop.permute.xlu0 %2145
          %2147 = vrot.lane.b32.xlu0 %v2144, 126
          %v2148 = vpop.permute.xlu0 %2147
          %2149 = vrot.lane.b32.xlu0 %v2143, 126
          %v2150 = vpop.permute.xlu0 %2149
          %v2154 = vadd.f32 %v2088, %v2146
          %v2155 = vadd.f32 %v2089, %v2148
          %v2156 = vadd.f32 %v2090, %v2150
          %s2157 = sadd.s32 %s1368, 162
          %s2158 = sld [smem:[#allocation14 + %s2157]]
          %v2159 = vstv %s2158
          %v2160 = vmul.f32 %v2159, %v1365
          %v2161 = vmul.f32 %v2159, %v1366
          %v2164 = vrot.slane %v2160, 2
          %v2165 = vrot.slane %v2161, 2
          %v2166 = vsel %vm2027, %v2164, %v2165
          %2167 = vrot.lane.b32.xlu0 %v2164, 126
          %v2168 = vpop.permute.xlu0 %2167
          %2169 = vrot.lane.b32.xlu0 %v2166, 126
          %v2170 = vpop.permute.xlu0 %2169
          %2171 = vrot.lane.b32.xlu0 %v2165, 126
          %v2172 = vpop.permute.xlu0 %2171
          %v2176 = vadd.f32 %v2110, %v2168
          %v2177 = vadd.f32 %v2111, %v2170
          %v2178 = vadd.f32 %v2112, %v2172
          %s2179 = sadd.s32 %s1368, 312
          %s2180 = sld [smem:[#allocation14 + %s2179]]
          %v2181 = vstv %s2180
          %v2182 = vmul.f32 %v2181, %v1365
          %v2183 = vmul.f32 %v2181, %v1366
          %v2186 = vrot.slane %v2182, 2
          %v2187 = vrot.slane %v2183, 2
          %v2188 = vsel %vm2027, %v2186, %v2187
          %2189 = vrot.lane.b32.xlu0 %v2186, 126
          %v2190 = vpop.permute.xlu0 %2189
          %2191 = vrot.lane.b32.xlu0 %v2188, 126
          %v2192 = vpop.permute.xlu0 %2191
          %2193 = vrot.lane.b32.xlu0 %v2187, 126
          %v2194 = vpop.permute.xlu0 %2193
          %v2198 = vadd.f32 %v2132, %v2190
          %v2199 = vadd.f32 %v2133, %v2192
          %v2200 = vadd.f32 %v2134, %v2194
          %s2201 = sadd.s32 %s1368, 13
          %s2202 = sld [smem:[#allocation14 + %s2201]]
          %v2203 = vstv %s2202
          %v2204 = vmul.f32 %v2203, %v1365
          %v2205 = vmul.f32 %v2203, %v1366
          %v2208 = vrot.slane %v2204, 2
          %v2209 = vrot.slane %v2205, 2
          %v2210 = vsel %vm2027, %v2208, %v2209
          %2211 = vrot.lane.b32.xlu0 %v2208, 125
          %v2212 = vpop.permute.xlu0 %2211
          %2213 = vrot.lane.b32.xlu0 %v2210, 125
          %v2214 = vpop.permute.xlu0 %2213
          %2215 = vrot.lane.b32.xlu0 %v2209, 125
          %v2216 = vpop.permute.xlu0 %2215
          %v2220 = vadd.f32 %v2154, %v2212
          %v2221 = vadd.f32 %v2155, %v2214
          %v2222 = vadd.f32 %v2156, %v2216
          %s2223 = sadd.s32 %s1368, 163
          %s2224 = sld [smem:[#allocation14 + %s2223]]
          %v2225 = vstv %s2224
          %v2226 = vmul.f32 %v2225, %v1365
          %v2227 = vmul.f32 %v2225, %v1366
          %v2230 = vrot.slane %v2226, 2
          %v2231 = vrot.slane %v2227, 2
          %v2232 = vsel %vm2027, %v2230, %v2231
          %2233 = vrot.lane.b32.xlu0 %v2230, 125
          %v2234 = vpop.permute.xlu0 %2233
          %2235 = vrot.lane.b32.xlu0 %v2232, 125
          %v2236 = vpop.permute.xlu0 %2235
          %2237 = vrot.lane.b32.xlu0 %v2231, 125
          %v2238 = vpop.permute.xlu0 %2237
          %v2242 = vadd.f32 %v2176, %v2234
          %v2243 = vadd.f32 %v2177, %v2236
          %v2244 = vadd.f32 %v2178, %v2238
          %s2245 = sadd.s32 %s1368, 313
          %s2246 = sld [smem:[#allocation14 + %s2245]]
          %v2247 = vstv %s2246
          %v2248 = vmul.f32 %v2247, %v1365
          %v2249 = vmul.f32 %v2247, %v1366
          %v2252 = vrot.slane %v2248, 2
          %v2253 = vrot.slane %v2249, 2
          %v2254 = vsel %vm2027, %v2252, %v2253
          %2255 = vrot.lane.b32.xlu0 %v2252, 125
          %v2256 = vpop.permute.xlu0 %2255
          %2257 = vrot.lane.b32.xlu0 %v2254, 125
          %v2258 = vpop.permute.xlu0 %2257
          %2259 = vrot.lane.b32.xlu0 %v2253, 125
          %v2260 = vpop.permute.xlu0 %2259
          %v2264 = vadd.f32 %v2198, %v2256
          %v2265 = vadd.f32 %v2199, %v2258
          %v2266 = vadd.f32 %v2200, %v2260
          %s2267 = sadd.s32 %s1368, 14
          %s2268 = sld [smem:[#allocation14 + %s2267]]
          %v2269 = vstv %s2268
          %v2270 = vmul.f32 %v2269, %v1365
          %v2271 = vmul.f32 %v2269, %v1366
          %v2274 = vrot.slane %v2270, 2
          %v2275 = vrot.slane %v2271, 2
          %v2276 = vsel %vm2027, %v2274, %v2275
          %2277 = vrot.lane.b32.xlu0 %v2274, 124
          %v2278 = vpop.permute.xlu0 %2277
          %2279 = vrot.lane.b32.xlu0 %v2276, 124
          %v2280 = vpop.permute.xlu0 %2279
          %2281 = vrot.lane.b32.xlu0 %v2275, 124
          %v2282 = vpop.permute.xlu0 %2281
          %v2286 = vadd.f32 %v2220, %v2278
          %v2287 = vadd.f32 %v2221, %v2280
          %v2288 = vadd.f32 %v2222, %v2282
          %s2289 = sadd.s32 %s1368, 164
          %s2290 = sld [smem:[#allocation14 + %s2289]]
          %v2291 = vstv %s2290
          %v2292 = vmul.f32 %v2291, %v1365
          %v2293 = vmul.f32 %v2291, %v1366
          %v2296 = vrot.slane %v2292, 2
          %v2297 = vrot.slane %v2293, 2
          %v2298 = vsel %vm2027, %v2296, %v2297
          %2299 = vrot.lane.b32.xlu0 %v2296, 124
          %v2300 = vpop.permute.xlu0 %2299
          %2301 = vrot.lane.b32.xlu0 %v2298, 124
          %v2302 = vpop.permute.xlu0 %2301
          %2303 = vrot.lane.b32.xlu0 %v2297, 124
          %v2304 = vpop.permute.xlu0 %2303
          %v2308 = vadd.f32 %v2242, %v2300
          %v2309 = vadd.f32 %v2243, %v2302
          %v2310 = vadd.f32 %v2244, %v2304
          %s2311 = sadd.s32 %s1368, 314
          %s2312 = sld [smem:[#allocation14 + %s2311]]
          %v2313 = vstv %s2312
          %v2314 = vmul.f32 %v2313, %v1365
          %v2315 = vmul.f32 %v2313, %v1366
          %v2318 = vrot.slane %v2314, 2
          %v2319 = vrot.slane %v2315, 2
          %v2320 = vsel %vm2027, %v2318, %v2319
          %2321 = vrot.lane.b32.xlu0 %v2318, 124
          %v2322 = vpop.permute.xlu0 %2321
          %2323 = vrot.lane.b32.xlu0 %v2320, 124
          %v2324 = vpop.permute.xlu0 %2323
          %2325 = vrot.lane.b32.xlu0 %v2319, 124
          %v2326 = vpop.permute.xlu0 %2325
          %v2330 = vadd.f32 %v2264, %v2322
          %v2331 = vadd.f32 %v2265, %v2324
          %v2332 = vadd.f32 %v2266, %v2326
          %s2333 = sadd.s32 %s1368, 15
          %s2334 = sld [smem:[#allocation14 + %s2333]]
          %v2335 = vstv %s2334
          %v2336 = vmul.f32 %v2335, %v1365
          %v2337 = vmul.f32 %v2335, %v1366
          %v2338 = vmul.f32 %v2335, %v1367
          %vm2342 = vcmask 1044480
          %v2343 = vrot.slane %v2336, 3
          %v2344 = vrot.slane %v2337, 3
          %v2345 = vsel %vm2342, %v2343, %v2344
          %v2346 = vrot.slane %v2338, 3
          %v2347 = vsel %vm2342, %v2344, %v2346
          %v2351 = vadd.f32 %v2286, %v2343
          %v2352 = vadd.f32 %v2287, %v2345
          %v2353 = vadd.f32 %v2288, %v2347
          %s2354 = sadd.s32 %s1368, 165
          %s2355 = sld [smem:[#allocation14 + %s2354]]
          %v2356 = vstv %s2355
          %v2357 = vmul.f32 %v2356, %v1365
          %v2358 = vmul.f32 %v2356, %v1366
          %v2359 = vmul.f32 %v2356, %v1367
          %v2363 = vrot.slane %v2357, 3
          %v2364 = vrot.slane %v2358, 3
          %v2365 = vsel %vm2342, %v2363, %v2364
          %v2366 = vrot.slane %v2359, 3
          %v2367 = vsel %vm2342, %v2364, %v2366
          %v2371 = vadd.f32 %v2308, %v2363
          %v2372 = vadd.f32 %v2309, %v2365
          %v2373 = vadd.f32 %v2310, %v2367
          %s2374 = sadd.s32 %s1368, 315
          %s2375 = sld [smem:[#allocation14 + %s2374]]
          %v2376 = vstv %s2375
          %v2377 = vmul.f32 %v2376, %v1365
          %v2378 = vmul.f32 %v2376, %v1366
          %v2379 = vmul.f32 %v2376, %v1367
          %v2383 = vrot.slane %v2377, 3
          %v2384 = vrot.slane %v2378, 3
          %v2385 = vsel %vm2342, %v2383, %v2384
          %v2386 = vrot.slane %v2379, 3
          %v2387 = vsel %vm2342, %v2384, %v2386
          %v2391 = vadd.f32 %v2330, %v2383
          %v2392 = vadd.f32 %v2331, %v2385
          %v2393 = vadd.f32 %v2332, %v2387
          %s2394 = sadd.s32 %s1368, 16
          %s2395 = sld [smem:[#allocation14 + %s2394]]
          %v2396 = vstv %s2395
          %v2397 = vmul.f32 %v2396, %v1365
          %v2398 = vmul.f32 %v2396, %v1366
          %v2399 = vmul.f32 %v2396, %v1367
          %v2403 = vrot.slane %v2397, 3
          %v2404 = vrot.slane %v2398, 3
          %v2405 = vsel %vm2342, %v2403, %v2404
          %v2406 = vrot.slane %v2399, 3
          %v2407 = vsel %vm2342, %v2404, %v2406
          %2408 = vrot.lane.b32.xlu0 %v2403, 127
          %v2409 = vpop.permute.xlu0 %2408
          %2410 = vrot.lane.b32.xlu0 %v2405, 127
          %v2411 = vpop.permute.xlu0 %2410
          %2412 = vrot.lane.b32.xlu0 %v2407, 127
          %v2413 = vpop.permute.xlu0 %2412
          %v2417 = vadd.f32 %v2351, %v2409
          %v2418 = vadd.f32 %v2352, %v2411
          %v2419 = vadd.f32 %v2353, %v2413
          %s2420 = sadd.s32 %s1368, 166
          %s2421 = sld [smem:[#allocation14 + %s2420]]
          %v2422 = vstv %s2421
          %v2423 = vmul.f32 %v2422, %v1365
          %v2424 = vmul.f32 %v2422, %v1366
          %v2425 = vmul.f32 %v2422, %v1367
          %v2429 = vrot.slane %v2423, 3
          %v2430 = vrot.slane %v2424, 3
          %v2431 = vsel %vm2342, %v2429, %v2430
          %v2432 = vrot.slane %v2425, 3
          %v2433 = vsel %vm2342, %v2430, %v2432
          %2434 = vrot.lane.b32.xlu0 %v2429, 127
          %v2435 = vpop.permute.xlu0 %2434
          %2436 = vrot.lane.b32.xlu0 %v2431, 127
          %v2437 = vpop.permute.xlu0 %2436
          %2438 = vrot.lane.b32.xlu0 %v2433, 127
          %v2439 = vpop.permute.xlu0 %2438
          %v2443 = vadd.f32 %v2371, %v2435
          %v2444 = vadd.f32 %v2372, %v2437
          %v2445 = vadd.f32 %v2373, %v2439
          %s2446 = sadd.s32 %s1368, 316
          %s2447 = sld [smem:[#allocation14 + %s2446]]
          %v2448 = vstv %s2447
          %v2449 = vmul.f32 %v2448, %v1365
          %v2450 = vmul.f32 %v2448, %v1366
          %v2451 = vmul.f32 %v2448, %v1367
          %v2455 = vrot.slane %v2449, 3
          %v2456 = vrot.slane %v2450, 3
          %v2457 = vsel %vm2342, %v2455, %v2456
          %v2458 = vrot.slane %v2451, 3
          %v2459 = vsel %vm2342, %v2456, %v2458
          %2460 = vrot.lane.b32.xlu0 %v2455, 127
          %v2461 = vpop.permute.xlu0 %2460
          %2462 = vrot.lane.b32.xlu0 %v2457, 127
          %v2463 = vpop.permute.xlu0 %2462
          %2464 = vrot.lane.b32.xlu0 %v2459, 127
          %v2465 = vpop.permute.xlu0 %2464
          %v2469 = vadd.f32 %v2391, %v2461
          %v2470 = vadd.f32 %v2392, %v2463
          %v2471 = vadd.f32 %v2393, %v2465
          %s2472 = sadd.s32 %s1368, 17
          %s2473 = sld [smem:[#allocation14 + %s2472]]
          %v2474 = vstv %s2473
          %v2475 = vmul.f32 %v2474, %v1365
          %v2476 = vmul.f32 %v2474, %v1366
          %v2477 = vmul.f32 %v2474, %v1367
          %v2481 = vrot.slane %v2475, 3
          %v2482 = vrot.slane %v2476, 3
          %v2483 = vsel %vm2342, %v2481, %v2482
          %v2484 = vrot.slane %v2477, 3
          %v2485 = vsel %vm2342, %v2482, %v2484
          %2486 = vrot.lane.b32.xlu0 %v2481, 126
          %v2487 = vpop.permute.xlu0 %2486
          %2488 = vrot.lane.b32.xlu0 %v2483, 126
          %v2489 = vpop.permute.xlu0 %2488
          %2490 = vrot.lane.b32.xlu0 %v2485, 126
          %v2491 = vpop.permute.xlu0 %2490
          %v2495 = vadd.f32 %v2417, %v2487
          %v2496 = vadd.f32 %v2418, %v2489
          %v2497 = vadd.f32 %v2419, %v2491
          %s2498 = sadd.s32 %s1368, 167
          %s2499 = sld [smem:[#allocation14 + %s2498]]
          %v2500 = vstv %s2499
          %v2501 = vmul.f32 %v2500, %v1365
          %v2502 = vmul.f32 %v2500, %v1366
          %v2503 = vmul.f32 %v2500, %v1367
          %v2507 = vrot.slane %v2501, 3
          %v2508 = vrot.slane %v2502, 3
          %v2509 = vsel %vm2342, %v2507, %v2508
          %v2510 = vrot.slane %v2503, 3
          %v2511 = vsel %vm2342, %v2508, %v2510
          %2512 = vrot.lane.b32.xlu0 %v2507, 126
          %v2513 = vpop.permute.xlu0 %2512
          %2514 = vrot.lane.b32.xlu0 %v2509, 126
          %v2515 = vpop.permute.xlu0 %2514
          %2516 = vrot.lane.b32.xlu0 %v2511, 126
          %v2517 = vpop.permute.xlu0 %2516
          %v2521 = vadd.f32 %v2443, %v2513
          %v2522 = vadd.f32 %v2444, %v2515
          %v2523 = vadd.f32 %v2445, %v2517
          %s2524 = sadd.s32 %s1368, 317
          %s2525 = sld [smem:[#allocation14 + %s2524]]
          %v2526 = vstv %s2525
          %v2527 = vmul.f32 %v2526, %v1365
          %v2528 = vmul.f32 %v2526, %v1366
          %v2529 = vmul.f32 %v2526, %v1367
          %v2533 = vrot.slane %v2527, 3
          %v2534 = vrot.slane %v2528, 3
          %v2535 = vsel %vm2342, %v2533, %v2534
          %v2536 = vrot.slane %v2529, 3
          %v2537 = vsel %vm2342, %v2534, %v2536
          %2538 = vrot.lane.b32.xlu0 %v2533, 126
          %v2539 = vpop.permute.xlu0 %2538
          %2540 = vrot.lane.b32.xlu0 %v2535, 126
          %v2541 = vpop.permute.xlu0 %2540
          %2542 = vrot.lane.b32.xlu0 %v2537, 126
          %v2543 = vpop.permute.xlu0 %2542
          %v2547 = vadd.f32 %v2469, %v2539
          %v2548 = vadd.f32 %v2470, %v2541
          %v2549 = vadd.f32 %v2471, %v2543
          %s2550 = sadd.s32 %s1368, 18
          %s2551 = sld [smem:[#allocation14 + %s2550]]
          %v2552 = vstv %s2551
          %v2553 = vmul.f32 %v2552, %v1365
          %v2554 = vmul.f32 %v2552, %v1366
          %v2555 = vmul.f32 %v2552, %v1367
          %v2559 = vrot.slane %v2553, 3
          %v2560 = vrot.slane %v2554, 3
          %v2561 = vsel %vm2342, %v2559, %v2560
          %v2562 = vrot.slane %v2555, 3
          %v2563 = vsel %vm2342, %v2560, %v2562
          %2564 = vrot.lane.b32.xlu0 %v2559, 125
          %v2565 = vpop.permute.xlu0 %2564
          %2566 = vrot.lane.b32.xlu0 %v2561, 125
          %v2567 = vpop.permute.xlu0 %2566
          %2568 = vrot.lane.b32.xlu0 %v2563, 125
          %v2569 = vpop.permute.xlu0 %2568
          %v2573 = vadd.f32 %v2495, %v2565
          %v2574 = vadd.f32 %v2496, %v2567
          %v2575 = vadd.f32 %v2497, %v2569
          %s2576 = sadd.s32 %s1368, 168
          %s2577 = sld [smem:[#allocation14 + %s2576]]
          %v2578 = vstv %s2577
          %v2579 = vmul.f32 %v2578, %v1365
          %v2580 = vmul.f32 %v2578, %v1366
          %v2581 = vmul.f32 %v2578, %v1367
          %v2585 = vrot.slane %v2579, 3
          %v2586 = vrot.slane %v2580, 3
          %v2587 = vsel %vm2342, %v2585, %v2586
          %v2588 = vrot.slane %v2581, 3
          %v2589 = vsel %vm2342, %v2586, %v2588
          %2590 = vrot.lane.b32.xlu0 %v2585, 125
          %v2591 = vpop.permute.xlu0 %2590
          %2592 = vrot.lane.b32.xlu0 %v2587, 125
          %v2593 = vpop.permute.xlu0 %2592
          %2594 = vrot.lane.b32.xlu0 %v2589, 125
          %v2595 = vpop.permute.xlu0 %2594
          %v2599 = vadd.f32 %v2521, %v2591
          %v2600 = vadd.f32 %v2522, %v2593
          %v2601 = vadd.f32 %v2523, %v2595
          %s2602 = sadd.s32 %s1368, 318
          %s2603 = sld [smem:[#allocation14 + %s2602]]
          %v2604 = vstv %s2603
          %v2605 = vmul.f32 %v2604, %v1365
          %v2606 = vmul.f32 %v2604, %v1366
          %v2607 = vmul.f32 %v2604, %v1367
          %v2611 = vrot.slane %v2605, 3
          %v2612 = vrot.slane %v2606, 3
          %v2613 = vsel %vm2342, %v2611, %v2612
          %v2614 = vrot.slane %v2607, 3
          %v2615 = vsel %vm2342, %v2612, %v2614
          %2616 = vrot.lane.b32.xlu0 %v2611, 125
          %v2617 = vpop.permute.xlu0 %2616
          %2618 = vrot.lane.b32.xlu0 %v2613, 125
          %v2619 = vpop.permute.xlu0 %2618
          %2620 = vrot.lane.b32.xlu0 %v2615, 125
          %v2621 = vpop.permute.xlu0 %2620
          %v2625 = vadd.f32 %v2547, %v2617
          %v2626 = vadd.f32 %v2548, %v2619
          %v2627 = vadd.f32 %v2549, %v2621
          %s2628 = sadd.s32 %s1368, 19
          %s2629 = sld [smem:[#allocation14 + %s2628]]
          %v2630 = vstv %s2629
          %v2631 = vmul.f32 %v2630, %v1365
          %v2632 = vmul.f32 %v2630, %v1366
          %v2633 = vmul.f32 %v2630, %v1367
          %v2637 = vrot.slane %v2631, 3
          %v2638 = vrot.slane %v2632, 3
          %v2639 = vsel %vm2342, %v2637, %v2638
          %v2640 = vrot.slane %v2633, 3
          %v2641 = vsel %vm2342, %v2638, %v2640
          %2642 = vrot.lane.b32.xlu0 %v2637, 124
          %v2643 = vpop.permute.xlu0 %2642
          %2644 = vrot.lane.b32.xlu0 %v2639, 124
          %v2645 = vpop.permute.xlu0 %2644
          %2646 = vrot.lane.b32.xlu0 %v2641, 124
          %v2647 = vpop.permute.xlu0 %2646
          %v2651 = vadd.f32 %v2573, %v2643
          %v2652 = vadd.f32 %v2574, %v2645
          %v2653 = vadd.f32 %v2575, %v2647
          %s2654 = sadd.s32 %s1368, 169
          %s2655 = sld [smem:[#allocation14 + %s2654]]
          %v2656 = vstv %s2655
          %v2657 = vmul.f32 %v2656, %v1365
          %v2658 = vmul.f32 %v2656, %v1366
          %v2659 = vmul.f32 %v2656, %v1367
          %v2663 = vrot.slane %v2657, 3
          %v2664 = vrot.slane %v2658, 3
          %v2665 = vsel %vm2342, %v2663, %v2664
          %v2666 = vrot.slane %v2659, 3
          %v2667 = vsel %vm2342, %v2664, %v2666
          %2668 = vrot.lane.b32.xlu0 %v2663, 124
          %v2669 = vpop.permute.xlu0 %2668
          %2670 = vrot.lane.b32.xlu0 %v2665, 124
          %v2671 = vpop.permute.xlu0 %2670
          %2672 = vrot.lane.b32.xlu0 %v2667, 124
          %v2673 = vpop.permute.xlu0 %2672
          %v2677 = vadd.f32 %v2599, %v2669
          %v2678 = vadd.f32 %v2600, %v2671
          %v2679 = vadd.f32 %v2601, %v2673
          %s2680 = sadd.s32 %s1368, 319
          %s2681 = sld [smem:[#allocation14 + %s2680]]
          %v2682 = vstv %s2681
          %v2683 = vmul.f32 %v2682, %v1365
          %v2684 = vmul.f32 %v2682, %v1366
          %v2685 = vmul.f32 %v2682, %v1367
          %v2689 = vrot.slane %v2683, 3
          %v2690 = vrot.slane %v2684, 3
          %v2691 = vsel %vm2342, %v2689, %v2690
          %v2692 = vrot.slane %v2685, 3
          %v2693 = vsel %vm2342, %v2690, %v2692
          %2694 = vrot.lane.b32.xlu0 %v2689, 124
          %v2695 = vpop.permute.xlu0 %2694
          %2696 = vrot.lane.b32.xlu0 %v2691, 124
          %v2697 = vpop.permute.xlu0 %2696
          %2698 = vrot.lane.b32.xlu0 %v2693, 124
          %v2699 = vpop.permute.xlu0 %2698
          %v2703 = vadd.f32 %v2625, %v2695
          %v2704 = vadd.f32 %v2626, %v2697
          %v2705 = vadd.f32 %v2627, %v2699
          %s2706 = sadd.s32 %s1368, 20
          %s2707 = sld [smem:[#allocation14 + %s2706]]
          %v2708 = vstv %s2707
          %v2709 = vmul.f32 %v2708, %v1365
          %v2710 = vmul.f32 %v2708, %v1366
          %v2711 = vmul.f32 %v2708, %v1367
          %vm2715 = vcmask 1043456
          %v2716 = vrot.slane %v2709, 4
          %v2717 = vrot.slane %v2710, 4
          %v2718 = vsel %vm2715, %v2716, %v2717
          %v2719 = vrot.slane %v2711, 4
          %v2720 = vsel %vm2715, %v2717, %v2719
          %v2724 = vadd.f32 %v2651, %v2716
          %v2725 = vadd.f32 %v2652, %v2718
          %v2726 = vadd.f32 %v2653, %v2720
          %s2727 = sadd.s32 %s1368, 170
          %s2728 = sld [smem:[#allocation14 + %s2727]]
          %v2729 = vstv %s2728
          %v2730 = vmul.f32 %v2729, %v1365
          %v2731 = vmul.f32 %v2729, %v1366
          %v2732 = vmul.f32 %v2729, %v1367
          %v2736 = vrot.slane %v2730, 4
          %v2737 = vrot.slane %v2731, 4
          %v2738 = vsel %vm2715, %v2736, %v2737
          %v2739 = vrot.slane %v2732, 4
          %v2740 = vsel %vm2715, %v2737, %v2739
          %v2744 = vadd.f32 %v2677, %v2736
          %v2745 = vadd.f32 %v2678, %v2738
          %v2746 = vadd.f32 %v2679, %v2740
          %s2747 = sadd.s32 %s1368, 320
          %s2748 = sld [smem:[#allocation14 + %s2747]]
          %v2749 = vstv %s2748
          %v2750 = vmul.f32 %v2749, %v1365
          %v2751 = vmul.f32 %v2749, %v1366
          %v2752 = vmul.f32 %v2749, %v1367
          %v2756 = vrot.slane %v2750, 4
          %v2757 = vrot.slane %v2751, 4
          %v2758 = vsel %vm2715, %v2756, %v2757
          %v2759 = vrot.slane %v2752, 4
          %v2760 = vsel %vm2715, %v2757, %v2759
          %v2764 = vadd.f32 %v2703, %v2756
          %v2765 = vadd.f32 %v2704, %v2758
          %v2766 = vadd.f32 %v2705, %v2760
          %s2767 = sadd.s32 %s1368, 21
          %s2768 = sld [smem:[#allocation14 + %s2767]]
          %v2769 = vstv %s2768
          %v2770 = vmul.f32 %v2769, %v1365
          %v2771 = vmul.f32 %v2769, %v1366
          %v2772 = vmul.f32 %v2769, %v1367
          %v2776 = vrot.slane %v2770, 4
          %v2777 = vrot.slane %v2771, 4
          %v2778 = vsel %vm2715, %v2776, %v2777
          %v2779 = vrot.slane %v2772, 4
          %v2780 = vsel %vm2715, %v2777, %v2779
          %2781 = vrot.lane.b32.xlu0 %v2776, 127
          %v2782 = vpop.permute.xlu0 %2781
          %2783 = vrot.lane.b32.xlu0 %v2778, 127
          %v2784 = vpop.permute.xlu0 %2783
          %2785 = vrot.lane.b32.xlu0 %v2780, 127
          %v2786 = vpop.permute.xlu0 %2785
          %v2790 = vadd.f32 %v2724, %v2782
          %v2791 = vadd.f32 %v2725, %v2784
          %v2792 = vadd.f32 %v2726, %v2786
          %s2793 = sadd.s32 %s1368, 171
          %s2794 = sld [smem:[#allocation14 + %s2793]]
          %v2795 = vstv %s2794
          %v2796 = vmul.f32 %v2795, %v1365
          %v2797 = vmul.f32 %v2795, %v1366
          %v2798 = vmul.f32 %v2795, %v1367
          %v2802 = vrot.slane %v2796, 4
          %v2803 = vrot.slane %v2797, 4
          %v2804 = vsel %vm2715, %v2802, %v2803
          %v2805 = vrot.slane %v2798, 4
          %v2806 = vsel %vm2715, %v2803, %v2805
          %2807 = vrot.lane.b32.xlu0 %v2802, 127
          %v2808 = vpop.permute.xlu0 %2807
          %2809 = vrot.lane.b32.xlu0 %v2804, 127
          %v2810 = vpop.permute.xlu0 %2809
          %2811 = vrot.lane.b32.xlu0 %v2806, 127
          %v2812 = vpop.permute.xlu0 %2811
          %v2816 = vadd.f32 %v2744, %v2808
          %v2817 = vadd.f32 %v2745, %v2810
          %v2818 = vadd.f32 %v2746, %v2812
          %s2819 = sadd.s32 %s1368, 321
          %s2820 = sld [smem:[#allocation14 + %s2819]]
          %v2821 = vstv %s2820
          %v2822 = vmul.f32 %v2821, %v1365
          %v2823 = vmul.f32 %v2821, %v1366
          %v2824 = vmul.f32 %v2821, %v1367
          %v2828 = vrot.slane %v2822, 4
          %v2829 = vrot.slane %v2823, 4
          %v2830 = vsel %vm2715, %v2828, %v2829
          %v2831 = vrot.slane %v2824, 4
          %v2832 = vsel %vm2715, %v2829, %v2831
          %2833 = vrot.lane.b32.xlu0 %v2828, 127
          %v2834 = vpop.permute.xlu0 %2833
          %2835 = vrot.lane.b32.xlu0 %v2830, 127
          %v2836 = vpop.permute.xlu0 %2835
          %2837 = vrot.lane.b32.xlu0 %v2832, 127
          %v2838 = vpop.permute.xlu0 %2837
          %v2842 = vadd.f32 %v2764, %v2834
          %v2843 = vadd.f32 %v2765, %v2836
          %v2844 = vadd.f32 %v2766, %v2838
          %s2845 = sadd.s32 %s1368, 22
          %s2846 = sld [smem:[#allocation14 + %s2845]]
          %v2847 = vstv %s2846
          %v2848 = vmul.f32 %v2847, %v1365
          %v2849 = vmul.f32 %v2847, %v1366
          %v2850 = vmul.f32 %v2847, %v1367
          %v2854 = vrot.slane %v2848, 4
          %v2855 = vrot.slane %v2849, 4
          %v2856 = vsel %vm2715, %v2854, %v2855
          %v2857 = vrot.slane %v2850, 4
          %v2858 = vsel %vm2715, %v2855, %v2857
          %2859 = vrot.lane.b32.xlu0 %v2854, 126
          %v2860 = vpop.permute.xlu0 %2859
          %2861 = vrot.lane.b32.xlu0 %v2856, 126
          %v2862 = vpop.permute.xlu0 %2861
          %2863 = vrot.lane.b32.xlu0 %v2858, 126
          %v2864 = vpop.permute.xlu0 %2863
          %v2868 = vadd.f32 %v2790, %v2860
          %v2869 = vadd.f32 %v2791, %v2862
          %v2870 = vadd.f32 %v2792, %v2864
          %s2871 = sadd.s32 %s1368, 172
          %s2872 = sld [smem:[#allocation14 + %s2871]]
          %v2873 = vstv %s2872
          %v2874 = vmul.f32 %v2873, %v1365
          %v2875 = vmul.f32 %v2873, %v1366
          %v2876 = vmul.f32 %v2873, %v1367
          %v2880 = vrot.slane %v2874, 4
          %v2881 = vrot.slane %v2875, 4
          %v2882 = vsel %vm2715, %v2880, %v2881
          %v2883 = vrot.slane %v2876, 4
          %v2884 = vsel %vm2715, %v2881, %v2883
          %2885 = vrot.lane.b32.xlu0 %v2880, 126
          %v2886 = vpop.permute.xlu0 %2885
          %2887 = vrot.lane.b32.xlu0 %v2882, 126
          %v2888 = vpop.permute.xlu0 %2887
          %2889 = vrot.lane.b32.xlu0 %v2884, 126
          %v2890 = vpop.permute.xlu0 %2889
          %v2894 = vadd.f32 %v2816, %v2886
          %v2895 = vadd.f32 %v2817, %v2888
          %v2896 = vadd.f32 %v2818, %v2890
          %s2897 = sadd.s32 %s1368, 322
          %s2898 = sld [smem:[#allocation14 + %s2897]]
          %v2899 = vstv %s2898
          %v2900 = vmul.f32 %v2899, %v1365
          %v2901 = vmul.f32 %v2899, %v1366
          %v2902 = vmul.f32 %v2899, %v1367
          %v2906 = vrot.slane %v2900, 4
          %v2907 = vrot.slane %v2901, 4
          %v2908 = vsel %vm2715, %v2906, %v2907
          %v2909 = vrot.slane %v2902, 4
          %v2910 = vsel %vm2715, %v2907, %v2909
          %2911 = vrot.lane.b32.xlu0 %v2906, 126
          %v2912 = vpop.permute.xlu0 %2911
          %2913 = vrot.lane.b32.xlu0 %v2908, 126
          %v2914 = vpop.permute.xlu0 %2913
          %2915 = vrot.lane.b32.xlu0 %v2910, 126
          %v2916 = vpop.permute.xlu0 %2915
          %v2920 = vadd.f32 %v2842, %v2912
          %v2921 = vadd.f32 %v2843, %v2914
          %v2922 = vadd.f32 %v2844, %v2916
          %s2923 = sadd.s32 %s1368, 23
          %s2924 = sld [smem:[#allocation14 + %s2923]]
          %v2925 = vstv %s2924
          %v2926 = vmul.f32 %v2925, %v1365
          %v2927 = vmul.f32 %v2925, %v1366
          %v2928 = vmul.f32 %v2925, %v1367
          %v2932 = vrot.slane %v2926, 4
          %v2933 = vrot.slane %v2927, 4
          %v2934 = vsel %vm2715, %v2932, %v2933
          %v2935 = vrot.slane %v2928, 4
          %v2936 = vsel %vm2715, %v2933, %v2935
          %2937 = vrot.lane.b32.xlu0 %v2932, 125
          %v2938 = vpop.permute.xlu0 %2937
          %2939 = vrot.lane.b32.xlu0 %v2934, 125
          %v2940 = vpop.permute.xlu0 %2939
          %2941 = vrot.lane.b32.xlu0 %v2936, 125
          %v2942 = vpop.permute.xlu0 %2941
          %v2946 = vadd.f32 %v2868, %v2938
          %v2947 = vadd.f32 %v2869, %v2940
          %v2948 = vadd.f32 %v2870, %v2942
          %s2949 = sadd.s32 %s1368, 173
          %s2950 = sld [smem:[#allocation14 + %s2949]]
          %v2951 = vstv %s2950
          %v2952 = vmul.f32 %v2951, %v1365
          %v2953 = vmul.f32 %v2951, %v1366
          %v2954 = vmul.f32 %v2951, %v1367
          %v2958 = vrot.slane %v2952, 4
          %v2959 = vrot.slane %v2953, 4
          %v2960 = vsel %vm2715, %v2958, %v2959
          %v2961 = vrot.slane %v2954, 4
          %v2962 = vsel %vm2715, %v2959, %v2961
          %2963 = vrot.lane.b32.xlu0 %v2958, 125
          %v2964 = vpop.permute.xlu0 %2963
          %2965 = vrot.lane.b32.xlu0 %v2960, 125
          %v2966 = vpop.permute.xlu0 %2965
          %2967 = vrot.lane.b32.xlu0 %v2962, 125
          %v2968 = vpop.permute.xlu0 %2967
          %v2972 = vadd.f32 %v2894, %v2964
          %v2973 = vadd.f32 %v2895, %v2966
          %v2974 = vadd.f32 %v2896, %v2968
          %s2975 = sadd.s32 %s1368, 323
          %s2976 = sld [smem:[#allocation14 + %s2975]]
          %v2977 = vstv %s2976
          %v2978 = vmul.f32 %v2977, %v1365
          %v2979 = vmul.f32 %v2977, %v1366
          %v2980 = vmul.f32 %v2977, %v1367
          %v2984 = vrot.slane %v2978, 4
          %v2985 = vrot.slane %v2979, 4
          %v2986 = vsel %vm2715, %v2984, %v2985
          %v2987 = vrot.slane %v2980, 4
          %v2988 = vsel %vm2715, %v2985, %v2987
          %2989 = vrot.lane.b32.xlu0 %v2984, 125
          %v2990 = vpop.permute.xlu0 %2989
          %2991 = vrot.lane.b32.xlu0 %v2986, 125
          %v2992 = vpop.permute.xlu0 %2991
          %2993 = vrot.lane.b32.xlu0 %v2988, 125
          %v2994 = vpop.permute.xlu0 %2993
          %v2998 = vadd.f32 %v2920, %v2990
          %v2999 = vadd.f32 %v2921, %v2992
          %v3000 = vadd.f32 %v2922, %v2994
          %s3001 = sadd.s32 %s1368, 24
          %s3002 = sld [smem:[#allocation14 + %s3001]]
          %v3003 = vstv %s3002
          %v3004 = vmul.f32 %v3003, %v1365
          %v3005 = vmul.f32 %v3003, %v1366
          %v3006 = vmul.f32 %v3003, %v1367
          %v3010 = vrot.slane %v3004, 4
          %v3011 = vrot.slane %v3005, 4
          %v3012 = vsel %vm2715, %v3010, %v3011
          %v3013 = vrot.slane %v3006, 4
          %v3014 = vsel %vm2715, %v3011, %v3013
          %3015 = vrot.lane.b32.xlu0 %v3010, 124
          %v3016 = vpop.permute.xlu0 %3015
          %3017 = vrot.lane.b32.xlu0 %v3012, 124
          %v3018 = vpop.permute.xlu0 %3017
          %3019 = vrot.lane.b32.xlu0 %v3014, 124
          %v3020 = vpop.permute.xlu0 %3019
          %v3024 = vadd.f32 %v2946, %v3016
          %v3025 = vadd.f32 %v2947, %v3018
          %v3026 = vadd.f32 %v2948, %v3020
          %s3027 = sadd.s32 %s1368, 174
          %s3028 = sld [smem:[#allocation14 + %s3027]]
          %v3029 = vstv %s3028
          %v3030 = vmul.f32 %v3029, %v1365
          %v3031 = vmul.f32 %v3029, %v1366
          %v3032 = vmul.f32 %v3029, %v1367
          %v3036 = vrot.slane %v3030, 4
          %v3037 = vrot.slane %v3031, 4
          %v3038 = vsel %vm2715, %v3036, %v3037
          %v3039 = vrot.slane %v3032, 4
          %v3040 = vsel %vm2715, %v3037, %v3039
          %3041 = vrot.lane.b32.xlu0 %v3036, 124
          %v3042 = vpop.permute.xlu0 %3041
          %3043 = vrot.lane.b32.xlu0 %v3038, 124
          %v3044 = vpop.permute.xlu0 %3043
          %3045 = vrot.lane.b32.xlu0 %v3040, 124
          %v3046 = vpop.permute.xlu0 %3045
          %v3050 = vadd.f32 %v2972, %v3042
          %v3051 = vadd.f32 %v2973, %v3044
          %v3052 = vadd.f32 %v2974, %v3046
          %s3053 = sadd.s32 %s1368, 324
          %s3054 = sld [smem:[#allocation14 + %s3053]]
          %v3055 = vstv %s3054
          %v3056 = vmul.f32 %v3055, %v1365
          %v3057 = vmul.f32 %v3055, %v1366
          %v3058 = vmul.f32 %v3055, %v1367
          %v3062 = vrot.slane %v3056, 4
          %v3063 = vrot.slane %v3057, 4
          %v3064 = vsel %vm2715, %v3062, %v3063
          %v3065 = vrot.slane %v3058, 4
          %v3066 = vsel %vm2715, %v3063, %v3065
          %3067 = vrot.lane.b32.xlu0 %v3062, 124
          %v3068 = vpop.permute.xlu0 %3067
          %3069 = vrot.lane.b32.xlu0 %v3064, 124
          %v3070 = vpop.permute.xlu0 %3069
          %3071 = vrot.lane.b32.xlu0 %v3066, 124
          %v3072 = vpop.permute.xlu0 %3071
          %v3076 = vadd.f32 %v2998, %v3068
          %v3077 = vadd.f32 %v2999, %v3070
          %v3078 = vadd.f32 %v3000, %v3072
        $region120: #{tpu_custom_call.1} parent=63 // loop_footer
          %s1352 = sadd.s32 1, %s1348
        $region121: #{tpu_custom_call.1} parent=63 // loop_footer_branch
          %1347 = sbr.rel target = $region117
        $region122: #{tpu_custom_call.1} parent=63 // loop_exit
          _
        %v3079 = vmax.f32 %v1353, 0.0
        %v3080 = vmax.f32 %v1354, 0.0
        %v3081 = vmax.f32 %v1355, 0.0
        %v3082 = vmax.f32 %v1356, 0.0
        %v3083 = vmax.f32 %v1357, 0.0
        %v3084 = vmax.f32 %v1358, 0.0
        %v3085 = vmax.f32 %v1359, 0.0
        %v3086 = vmax.f32 %v1360, 0.0
        %v3087 = vmax.f32 %v1361, 0.0
        %3091 = vrot.lane.b32.xlu0 %v3079, 2
        %v3092 = vpop.permute.xlu0 %3091
        %3093 = vrot.lane.b32.xlu0 %v3080, 2
        %v3094 = vpop.permute.xlu0 %3093
        %3095 = vrot.lane.b32.xlu0 %v3081, 2
        %v3096 = vpop.permute.xlu0 %3095
        %s3100 = scalar_lea.vmem [#allocation2], 192
        %vm3101 = vcmask 154654
        %3102 = vst.msk [vmem:[%s3100 + $0x2] sm:$0xc0] %vm3101, %v3092
        %3103 = vst.msk [vmem:[%s3100 + $0xa] sm:$0xff] %vm679, %v3094
        %vm3104 = vcmask 152600
        %3105 = vst.msk [vmem:[%s3100 + $0x12] sm:$0x3f] %vm3104, %v3096
        %3109 = vrot.lane.b32.xlu0 %v3082, 2
        %v3110 = vpop.permute.xlu0 %3109
        %3111 = vrot.lane.b32.xlu0 %v3083, 2
        %v3112 = vpop.permute.xlu0 %3111
        %3113 = vrot.lane.b32.xlu0 %v3084, 2
        %v3114 = vpop.permute.xlu0 %3113
        %s3118 = scalar_lea.vmem [#allocation2], 224
        %3119 = vst.msk [vmem:[%s3118 + $0x2] sm:$0xc0] %vm3101, %v3110
        %3120 = vst.msk [vmem:[%s3118 + $0xa] sm:$0xff] %vm679, %v3112
        %3121 = vst.msk [vmem:[%s3118 + $0x12] sm:$0x3f] %vm3104, %v3114
        %3125 = vrot.lane.b32.xlu0 %v3085, 2
        %v3126 = vpop.permute.xlu0 %3125
        %3127 = vrot.lane.b32.xlu0 %v3086, 2
        %v3128 = vpop.permute.xlu0 %3127
        %3129 = vrot.lane.b32.xlu0 %v3087, 2
        %v3130 = vpop.permute.xlu0 %3129
        %s3134 = scalar_lea.vmem [#allocation2], 256
        %3135 = vst.msk [vmem:[%s3134 + $0x2] sm:$0xc0] %vm3101, %v3126
        %3136 = vst.msk [vmem:[%s3134 + $0xa] sm:$0xff] %vm679, %v3128
        %3137 = vst.msk [vmem:[%s3134 + $0x12] sm:$0x3f] %vm3104, %v3130
        %s3138 = sld [smem:[#allocation18]]
        %v3139 = vstv %s3138
        %s3140 = sld [smem:[#allocation18 + $0x1]]
        %v3141 = vstv %s3140
        %s3142 = sld [smem:[#allocation18 + $0x2]]
        %v3143 = vstv %s3142
        loop: start=0, step=1, limit=6
        $region123: #{tpu_custom_call.1} parent=63 // loop_pre_header
          _
        $region124: #{tpu_custom_call.1} parent=63 // loop_header
          %s3145 = sphi 0, %s3149
          %p3146 = scmp.ge.s32.totalorder %s3145, 6
          %v3150 = vphi %v3139, %v6606
          %v3151 = vphi %v3139, %v6607
          %v3152 = vphi %v3139, %v6608
          %v3153 = vphi %v3141, %v6632
          %v3154 = vphi %v3141, %v6633
          %v3155 = vphi %v3141, %v6634
          %v3156 = vphi %v3143, %v6658
          %v3157 = vphi %v3143, %v6659
          %v3158 = vphi %v3143, %v6660
        $region125: #{tpu_custom_call.1} parent=63 // loop_header_branch
          %3148 = sbr.rel (%p3146) target = $region129
        $region126: #{tpu_custom_call.1} parent=63 // loop_body
          %s3159 = sadd.s32 %s3145, 3
          %s3160 = smul.u32 %s3159, 32
          %s3161 = scalar_lea.vmem [#allocation2], %s3160
          %v3162 = vld [vmem:[%s3161] sm:$0xff]
          %v3163 = vld [vmem:[%s3161 + $0x8] sm:$0xff]
          %v3164 = vld [vmem:[%s3161 + $0x10] sm:$0xff]
          %v3165 = vld [vmem:[%s3161 + $0x18] sm:$0x7]
          %s3166 = smul.u32 %s3145, 49
          %s3167 = sld [smem:[#allocation16 + %s3166]]
          %v3168 = vstv %s3167
          %v3169 = vmul.f32 %v3168, %v3162
          %v3170 = vmul.f32 %v3168, %v3163
          %v3171 = vmul.f32 %v3168, %v3164
          %v3172 = vadd.f32 %v3150, %v3169
          %v3173 = vadd.f32 %v3151, %v3170
          %v3174 = vadd.f32 %v3152, %v3171
          %s3175 = sadd.s32 %s3166, 294
          %s3176 = sld [smem:[#allocation16 + %s3175]]
          %v3177 = vstv %s3176
          %v3178 = vmul.f32 %v3177, %v3162
          %v3179 = vmul.f32 %v3177, %v3163
          %v3180 = vmul.f32 %v3177, %v3164
          %v3181 = vadd.f32 %v3153, %v3178
          %v3182 = vadd.f32 %v3154, %v3179
          %v3183 = vadd.f32 %v3155, %v3180
          %s3184 = sadd.s32 %s3166, 588
          %s3185 = sld [smem:[#allocation16 + %s3184]]
          %v3186 = vstv %s3185
          %v3187 = vmul.f32 %v3186, %v3162
          %v3188 = vmul.f32 %v3186, %v3163
          %v3189 = vmul.f32 %v3186, %v3164
          %v3190 = vadd.f32 %v3156, %v3187
          %v3191 = vadd.f32 %v3157, %v3188
          %v3192 = vadd.f32 %v3158, %v3189
          %s3193 = sadd.s32 %s3166, 1
          %s3194 = sld [smem:[#allocation16 + %s3193]]
          %v3195 = vstv %s3194
          %v3196 = vmul.f32 %v3195, %v3162
          %v3197 = vmul.f32 %v3195, %v3163
          %v3198 = vmul.f32 %v3195, %v3164
          %3202 = vrot.lane.b32.xlu0 %v3196, 127
          %v3203 = vpop.permute.xlu0 %3202
          %3204 = vrot.lane.b32.xlu0 %v3197, 127
          %v3205 = vpop.permute.xlu0 %3204
          %3206 = vrot.lane.b32.xlu0 %v3198, 127
          %v3207 = vpop.permute.xlu0 %3206
          %v3211 = vadd.f32 %v3172, %v3203
          %v3212 = vadd.f32 %v3173, %v3205
          %v3213 = vadd.f32 %v3174, %v3207
          %s3214 = sadd.s32 %s3166, 295
          %s3215 = sld [smem:[#allocation16 + %s3214]]
          %v3216 = vstv %s3215
          %v3217 = vmul.f32 %v3216, %v3162
          %v3218 = vmul.f32 %v3216, %v3163
          %v3219 = vmul.f32 %v3216, %v3164
          %3223 = vrot.lane.b32.xlu0 %v3217, 127
          %v3224 = vpop.permute.xlu0 %3223
          %3225 = vrot.lane.b32.xlu0 %v3218, 127
          %v3226 = vpop.permute.xlu0 %3225
          %3227 = vrot.lane.b32.xlu0 %v3219, 127
          %v3228 = vpop.permute.xlu0 %3227
          %v3232 = vadd.f32 %v3181, %v3224
          %v3233 = vadd.f32 %v3182, %v3226
          %v3234 = vadd.f32 %v3183, %v3228
          %s3235 = sadd.s32 %s3166, 589
          %s3236 = sld [smem:[#allocation16 + %s3235]]
          %v3237 = vstv %s3236
          %v3238 = vmul.f32 %v3237, %v3162
          %v3239 = vmul.f32 %v3237, %v3163
          %v3240 = vmul.f32 %v3237, %v3164
          %3244 = vrot.lane.b32.xlu0 %v3238, 127
          %v3245 = vpop.permute.xlu0 %3244
          %3246 = vrot.lane.b32.xlu0 %v3239, 127
          %v3247 = vpop.permute.xlu0 %3246
          %3248 = vrot.lane.b32.xlu0 %v3240, 127
          %v3249 = vpop.permute.xlu0 %3248
          %v3253 = vadd.f32 %v3190, %v3245
          %v3254 = vadd.f32 %v3191, %v3247
          %v3255 = vadd.f32 %v3192, %v3249
          %s3256 = sadd.s32 %s3166, 2
          %s3257 = sld [smem:[#allocation16 + %s3256]]
          %v3258 = vstv %s3257
          %v3259 = vmul.f32 %v3258, %v3162
          %v3260 = vmul.f32 %v3258, %v3163
          %v3261 = vmul.f32 %v3258, %v3164
          %3265 = vrot.lane.b32.xlu0 %v3259, 126
          %v3266 = vpop.permute.xlu0 %3265
          %3267 = vrot.lane.b32.xlu0 %v3260, 126
          %v3268 = vpop.permute.xlu0 %3267
          %3269 = vrot.lane.b32.xlu0 %v3261, 126
          %v3270 = vpop.permute.xlu0 %3269
          %v3274 = vadd.f32 %v3211, %v3266
          %v3275 = vadd.f32 %v3212, %v3268
          %v3276 = vadd.f32 %v3213, %v3270
          %s3277 = sadd.s32 %s3166, 296
          %s3278 = sld [smem:[#allocation16 + %s3277]]
          %v3279 = vstv %s3278
          %v3280 = vmul.f32 %v3279, %v3162
          %v3281 = vmul.f32 %v3279, %v3163
          %v3282 = vmul.f32 %v3279, %v3164
          %3286 = vrot.lane.b32.xlu0 %v3280, 126
          %v3287 = vpop.permute.xlu0 %3286
          %3288 = vrot.lane.b32.xlu0 %v3281, 126
          %v3289 = vpop.permute.xlu0 %3288
          %3290 = vrot.lane.b32.xlu0 %v3282, 126
          %v3291 = vpop.permute.xlu0 %3290
          %v3295 = vadd.f32 %v3232, %v3287
          %v3296 = vadd.f32 %v3233, %v3289
          %v3297 = vadd.f32 %v3234, %v3291
          %s3298 = sadd.s32 %s3166, 590
          %s3299 = sld [smem:[#allocation16 + %s3298]]
          %v3300 = vstv %s3299
          %v3301 = vmul.f32 %v3300, %v3162
          %v3302 = vmul.f32 %v3300, %v3163
          %v3303 = vmul.f32 %v3300, %v3164
          %3307 = vrot.lane.b32.xlu0 %v3301, 126
          %v3308 = vpop.permute.xlu0 %3307
          %3309 = vrot.lane.b32.xlu0 %v3302, 126
          %v3310 = vpop.permute.xlu0 %3309
          %3311 = vrot.lane.b32.xlu0 %v3303, 126
          %v3312 = vpop.permute.xlu0 %3311
          %v3316 = vadd.f32 %v3253, %v3308
          %v3317 = vadd.f32 %v3254, %v3310
          %v3318 = vadd.f32 %v3255, %v3312
          %s3319 = sadd.s32 %s3166, 3
          %s3320 = sld [smem:[#allocation16 + %s3319]]
          %v3321 = vstv %s3320
          %v3322 = vmul.f32 %v3321, %v3162
          %v3323 = vmul.f32 %v3321, %v3163
          %v3324 = vmul.f32 %v3321, %v3164
          %3328 = vrot.lane.b32.xlu0 %v3322, 125
          %v3329 = vpop.permute.xlu0 %3328
          %3330 = vrot.lane.b32.xlu0 %v3323, 125
          %v3331 = vpop.permute.xlu0 %3330
          %3332 = vrot.lane.b32.xlu0 %v3324, 125
          %v3333 = vpop.permute.xlu0 %3332
          %v3337 = vadd.f32 %v3274, %v3329
          %v3338 = vadd.f32 %v3275, %v3331
          %v3339 = vadd.f32 %v3276, %v3333
          %s3340 = sadd.s32 %s3166, 297
          %s3341 = sld [smem:[#allocation16 + %s3340]]
          %v3342 = vstv %s3341
          %v3343 = vmul.f32 %v3342, %v3162
          %v3344 = vmul.f32 %v3342, %v3163
          %v3345 = vmul.f32 %v3342, %v3164
          %3349 = vrot.lane.b32.xlu0 %v3343, 125
          %v3350 = vpop.permute.xlu0 %3349
          %3351 = vrot.lane.b32.xlu0 %v3344, 125
          %v3352 = vpop.permute.xlu0 %3351
          %3353 = vrot.lane.b32.xlu0 %v3345, 125
          %v3354 = vpop.permute.xlu0 %3353
          %v3358 = vadd.f32 %v3295, %v3350
          %v3359 = vadd.f32 %v3296, %v3352
          %v3360 = vadd.f32 %v3297, %v3354
          %s3361 = sadd.s32 %s3166, 591
          %s3362 = sld [smem:[#allocation16 + %s3361]]
          %v3363 = vstv %s3362
          %v3364 = vmul.f32 %v3363, %v3162
          %v3365 = vmul.f32 %v3363, %v3163
          %v3366 = vmul.f32 %v3363, %v3164
          %3370 = vrot.lane.b32.xlu0 %v3364, 125
          %v3371 = vpop.permute.xlu0 %3370
          %3372 = vrot.lane.b32.xlu0 %v3365, 125
          %v3373 = vpop.permute.xlu0 %3372
          %3374 = vrot.lane.b32.xlu0 %v3366, 125
          %v3375 = vpop.permute.xlu0 %3374
          %v3379 = vadd.f32 %v3316, %v3371
          %v3380 = vadd.f32 %v3317, %v3373
          %v3381 = vadd.f32 %v3318, %v3375
          %s3382 = sadd.s32 %s3166, 4
          %s3383 = sld [smem:[#allocation16 + %s3382]]
          %v3384 = vstv %s3383
          %v3385 = vmul.f32 %v3384, %v3162
          %v3386 = vmul.f32 %v3384, %v3163
          %v3387 = vmul.f32 %v3384, %v3164
          %3391 = vrot.lane.b32.xlu0 %v3385, 124
          %v3392 = vpop.permute.xlu0 %3391
          %3393 = vrot.lane.b32.xlu0 %v3386, 124
          %v3394 = vpop.permute.xlu0 %3393
          %3395 = vrot.lane.b32.xlu0 %v3387, 124
          %v3396 = vpop.permute.xlu0 %3395
          %v3400 = vadd.f32 %v3337, %v3392
          %v3401 = vadd.f32 %v3338, %v3394
          %v3402 = vadd.f32 %v3339, %v3396
          %s3403 = sadd.s32 %s3166, 298
          %s3404 = sld [smem:[#allocation16 + %s3403]]
          %v3405 = vstv %s3404
          %v3406 = vmul.f32 %v3405, %v3162
          %v3407 = vmul.f32 %v3405, %v3163
          %v3408 = vmul.f32 %v3405, %v3164
          %3412 = vrot.lane.b32.xlu0 %v3406, 124
          %v3413 = vpop.permute.xlu0 %3412
          %3414 = vrot.lane.b32.xlu0 %v3407, 124
          %v3415 = vpop.permute.xlu0 %3414
          %3416 = vrot.lane.b32.xlu0 %v3408, 124
          %v3417 = vpop.permute.xlu0 %3416
          %v3421 = vadd.f32 %v3358, %v3413
          %v3422 = vadd.f32 %v3359, %v3415
          %v3423 = vadd.f32 %v3360, %v3417
          %s3424 = sadd.s32 %s3166, 592
          %s3425 = sld [smem:[#allocation16 + %s3424]]
          %v3426 = vstv %s3425
          %v3427 = vmul.f32 %v3426, %v3162
          %v3428 = vmul.f32 %v3426, %v3163
          %v3429 = vmul.f32 %v3426, %v3164
          %3433 = vrot.lane.b32.xlu0 %v3427, 124
          %v3434 = vpop.permute.xlu0 %3433
          %3435 = vrot.lane.b32.xlu0 %v3428, 124
          %v3436 = vpop.permute.xlu0 %3435
          %3437 = vrot.lane.b32.xlu0 %v3429, 124
          %v3438 = vpop.permute.xlu0 %3437
          %v3442 = vadd.f32 %v3379, %v3434
          %v3443 = vadd.f32 %v3380, %v3436
          %v3444 = vadd.f32 %v3381, %v3438
          %s3445 = sadd.s32 %s3166, 5
          %s3446 = sld [smem:[#allocation16 + %s3445]]
          %v3447 = vstv %s3446
          %v3448 = vmul.f32 %v3447, %v3162
          %v3449 = vmul.f32 %v3447, %v3163
          %v3450 = vmul.f32 %v3447, %v3164
          %3454 = vrot.lane.b32.xlu0 %v3448, 123
          %v3455 = vpop.permute.xlu0 %3454
          %3456 = vrot.lane.b32.xlu0 %v3449, 123
          %v3457 = vpop.permute.xlu0 %3456
          %3458 = vrot.lane.b32.xlu0 %v3450, 123
          %v3459 = vpop.permute.xlu0 %3458
          %v3463 = vadd.f32 %v3400, %v3455
          %v3464 = vadd.f32 %v3401, %v3457
          %v3465 = vadd.f32 %v3402, %v3459
          %s3466 = sadd.s32 %s3166, 299
          %s3467 = sld [smem:[#allocation16 + %s3466]]
          %v3468 = vstv %s3467
          %v3469 = vmul.f32 %v3468, %v3162
          %v3470 = vmul.f32 %v3468, %v3163
          %v3471 = vmul.f32 %v3468, %v3164
          %3475 = vrot.lane.b32.xlu0 %v3469, 123
          %v3476 = vpop.permute.xlu0 %3475
          %3477 = vrot.lane.b32.xlu0 %v3470, 123
          %v3478 = vpop.permute.xlu0 %3477
          %3479 = vrot.lane.b32.xlu0 %v3471, 123
          %v3480 = vpop.permute.xlu0 %3479
          %v3484 = vadd.f32 %v3421, %v3476
          %v3485 = vadd.f32 %v3422, %v3478
          %v3486 = vadd.f32 %v3423, %v3480
          %s3487 = sadd.s32 %s3166, 593
          %s3488 = sld [smem:[#allocation16 + %s3487]]
          %v3489 = vstv %s3488
          %v3490 = vmul.f32 %v3489, %v3162
          %v3491 = vmul.f32 %v3489, %v3163
          %v3492 = vmul.f32 %v3489, %v3164
          %3496 = vrot.lane.b32.xlu0 %v3490, 123
          %v3497 = vpop.permute.xlu0 %3496
          %3498 = vrot.lane.b32.xlu0 %v3491, 123
          %v3499 = vpop.permute.xlu0 %3498
          %3500 = vrot.lane.b32.xlu0 %v3492, 123
          %v3501 = vpop.permute.xlu0 %3500
          %v3505 = vadd.f32 %v3442, %v3497
          %v3506 = vadd.f32 %v3443, %v3499
          %v3507 = vadd.f32 %v3444, %v3501
          %s3508 = sadd.s32 %s3166, 6
          %s3509 = sld [smem:[#allocation16 + %s3508]]
          %v3510 = vstv %s3509
          %v3511 = vmul.f32 %v3510, %v3162
          %v3512 = vmul.f32 %v3510, %v3163
          %v3513 = vmul.f32 %v3510, %v3164
          %3517 = vrot.lane.b32.xlu0 %v3511, 122
          %v3518 = vpop.permute.xlu0 %3517
          %3519 = vrot.lane.b32.xlu0 %v3512, 122
          %v3520 = vpop.permute.xlu0 %3519
          %3521 = vrot.lane.b32.xlu0 %v3513, 122
          %v3522 = vpop.permute.xlu0 %3521
          %v3526 = vadd.f32 %v3463, %v3518
          %v3527 = vadd.f32 %v3464, %v3520
          %v3528 = vadd.f32 %v3465, %v3522
          %s3529 = sadd.s32 %s3166, 300
          %s3530 = sld [smem:[#allocation16 + %s3529]]
          %v3531 = vstv %s3530
          %v3532 = vmul.f32 %v3531, %v3162
          %v3533 = vmul.f32 %v3531, %v3163
          %v3534 = vmul.f32 %v3531, %v3164
          %3538 = vrot.lane.b32.xlu0 %v3532, 122
          %v3539 = vpop.permute.xlu0 %3538
          %3540 = vrot.lane.b32.xlu0 %v3533, 122
          %v3541 = vpop.permute.xlu0 %3540
          %3542 = vrot.lane.b32.xlu0 %v3534, 122
          %v3543 = vpop.permute.xlu0 %3542
          %v3547 = vadd.f32 %v3484, %v3539
          %v3548 = vadd.f32 %v3485, %v3541
          %v3549 = vadd.f32 %v3486, %v3543
          %s3550 = sadd.s32 %s3166, 594
          %s3551 = sld [smem:[#allocation16 + %s3550]]
          %v3552 = vstv %s3551
          %v3553 = vmul.f32 %v3552, %v3162
          %v3554 = vmul.f32 %v3552, %v3163
          %v3555 = vmul.f32 %v3552, %v3164
          %3559 = vrot.lane.b32.xlu0 %v3553, 122
          %v3560 = vpop.permute.xlu0 %3559
          %3561 = vrot.lane.b32.xlu0 %v3554, 122
          %v3562 = vpop.permute.xlu0 %3561
          %3563 = vrot.lane.b32.xlu0 %v3555, 122
          %v3564 = vpop.permute.xlu0 %3563
          %v3568 = vadd.f32 %v3505, %v3560
          %v3569 = vadd.f32 %v3506, %v3562
          %v3570 = vadd.f32 %v3507, %v3564
          %s3571 = sadd.s32 %s3166, 7
          %s3572 = sld [smem:[#allocation16 + %s3571]]
          %v3573 = vstv %s3572
          %v3574 = vmul.f32 %v3573, %v3162
          %v3575 = vmul.f32 %v3573, %v3163
          %v3576 = vmul.f32 %v3573, %v3164
          %vm3580 = vcmask 1046528
          %v3581 = vrot.slane %v3574, 1
          %v3582 = vrot.slane %v3575, 1
          %v3583 = vsel %vm3580, %v3581, %v3582
          %v3584 = vrot.slane %v3576, 1
          %v3585 = vsel %vm3580, %v3582, %v3584
          %v3589 = vadd.f32 %v3526, %v3583
          %v3590 = vadd.f32 %v3527, %v3585
          %v3591 = vadd.f32 %v3528, %v3584
          %s3592 = sadd.s32 %s3166, 301
          %s3593 = sld [smem:[#allocation16 + %s3592]]
          %v3594 = vstv %s3593
          %v3595 = vmul.f32 %v3594, %v3162
          %v3596 = vmul.f32 %v3594, %v3163
          %v3597 = vmul.f32 %v3594, %v3164
          %v3601 = vrot.slane %v3595, 1
          %v3602 = vrot.slane %v3596, 1
          %v3603 = vsel %vm3580, %v3601, %v3602
          %v3604 = vrot.slane %v3597, 1
          %v3605 = vsel %vm3580, %v3602, %v3604
          %v3609 = vadd.f32 %v3547, %v3603
          %v3610 = vadd.f32 %v3548, %v3605
          %v3611 = vadd.f32 %v3549, %v3604
          %s3612 = sadd.s32 %s3166, 595
          %s3613 = sld [smem:[#allocation16 + %s3612]]
          %v3614 = vstv %s3613
          %v3615 = vmul.f32 %v3614, %v3162
          %v3616 = vmul.f32 %v3614, %v3163
          %v3617 = vmul.f32 %v3614, %v3164
          %v3621 = vrot.slane %v3615, 1
          %v3622 = vrot.slane %v3616, 1
          %v3623 = vsel %vm3580, %v3621, %v3622
          %v3624 = vrot.slane %v3617, 1
          %v3625 = vsel %vm3580, %v3622, %v3624
          %v3629 = vadd.f32 %v3568, %v3623
          %v3630 = vadd.f32 %v3569, %v3625
          %v3631 = vadd.f32 %v3570, %v3624
          %s3632 = sadd.s32 %s3166, 8
          %s3633 = sld [smem:[#allocation16 + %s3632]]
          %v3634 = vstv %s3633
          %v3635 = vmul.f32 %v3634, %v3162
          %v3636 = vmul.f32 %v3634, %v3163
          %v3637 = vmul.f32 %v3634, %v3164
          %v3641 = vrot.slane %v3635, 1
          %v3642 = vrot.slane %v3636, 1
          %v3643 = vsel %vm3580, %v3641, %v3642
          %v3644 = vrot.slane %v3637, 1
          %v3645 = vsel %vm3580, %v3642, %v3644
          %3646 = vrot.lane.b32.xlu0 %v3643, 127
          %v3647 = vpop.permute.xlu0 %3646
          %3648 = vrot.lane.b32.xlu0 %v3645, 127
          %v3649 = vpop.permute.xlu0 %3648
          %3650 = vrot.lane.b32.xlu0 %v3644, 127
          %v3651 = vpop.permute.xlu0 %3650
          %v3655 = vadd.f32 %v3589, %v3647
          %v3656 = vadd.f32 %v3590, %v3649
          %v3657 = vadd.f32 %v3591, %v3651
          %s3658 = sadd.s32 %s3166, 302
          %s3659 = sld [smem:[#allocation16 + %s3658]]
          %v3660 = vstv %s3659
          %v3661 = vmul.f32 %v3660, %v3162
          %v3662 = vmul.f32 %v3660, %v3163
          %v3663 = vmul.f32 %v3660, %v3164
          %v3667 = vrot.slane %v3661, 1
          %v3668 = vrot.slane %v3662, 1
          %v3669 = vsel %vm3580, %v3667, %v3668
          %v3670 = vrot.slane %v3663, 1
          %v3671 = vsel %vm3580, %v3668, %v3670
          %3672 = vrot.lane.b32.xlu0 %v3669, 127
          %v3673 = vpop.permute.xlu0 %3672
          %3674 = vrot.lane.b32.xlu0 %v3671, 127
          %v3675 = vpop.permute.xlu0 %3674
          %3676 = vrot.lane.b32.xlu0 %v3670, 127
          %v3677 = vpop.permute.xlu0 %3676
          %v3681 = vadd.f32 %v3609, %v3673
          %v3682 = vadd.f32 %v3610, %v3675
          %v3683 = vadd.f32 %v3611, %v3677
          %s3684 = sadd.s32 %s3166, 596
          %s3685 = sld [smem:[#allocation16 + %s3684]]
          %v3686 = vstv %s3685
          %v3687 = vmul.f32 %v3686, %v3162
          %v3688 = vmul.f32 %v3686, %v3163
          %v3689 = vmul.f32 %v3686, %v3164
          %v3693 = vrot.slane %v3687, 1
          %v3694 = vrot.slane %v3688, 1
          %v3695 = vsel %vm3580, %v3693, %v3694
          %v3696 = vrot.slane %v3689, 1
          %v3697 = vsel %vm3580, %v3694, %v3696
          %3698 = vrot.lane.b32.xlu0 %v3695, 127
          %v3699 = vpop.permute.xlu0 %3698
          %3700 = vrot.lane.b32.xlu0 %v3697, 127
          %v3701 = vpop.permute.xlu0 %3700
          %3702 = vrot.lane.b32.xlu0 %v3696, 127
          %v3703 = vpop.permute.xlu0 %3702
          %v3707 = vadd.f32 %v3629, %v3699
          %v3708 = vadd.f32 %v3630, %v3701
          %v3709 = vadd.f32 %v3631, %v3703
          %s3710 = sadd.s32 %s3166, 9
          %s3711 = sld [smem:[#allocation16 + %s3710]]
          %v3712 = vstv %s3711
          %v3713 = vmul.f32 %v3712, %v3162
          %v3714 = vmul.f32 %v3712, %v3163
          %v3715 = vmul.f32 %v3712, %v3164
          %v3719 = vrot.slane %v3713, 1
          %v3720 = vrot.slane %v3714, 1
          %v3721 = vsel %vm3580, %v3719, %v3720
          %v3722 = vrot.slane %v3715, 1
          %v3723 = vsel %vm3580, %v3720, %v3722
          %3724 = vrot.lane.b32.xlu0 %v3721, 126
          %v3725 = vpop.permute.xlu0 %3724
          %3726 = vrot.lane.b32.xlu0 %v3723, 126
          %v3727 = vpop.permute.xlu0 %3726
          %3728 = vrot.lane.b32.xlu0 %v3722, 126
          %v3729 = vpop.permute.xlu0 %3728
          %v3733 = vadd.f32 %v3655, %v3725
          %v3734 = vadd.f32 %v3656, %v3727
          %v3735 = vadd.f32 %v3657, %v3729
          %s3736 = sadd.s32 %s3166, 303
          %s3737 = sld [smem:[#allocation16 + %s3736]]
          %v3738 = vstv %s3737
          %v3739 = vmul.f32 %v3738, %v3162
          %v3740 = vmul.f32 %v3738, %v3163
          %v3741 = vmul.f32 %v3738, %v3164
          %v3745 = vrot.slane %v3739, 1
          %v3746 = vrot.slane %v3740, 1
          %v3747 = vsel %vm3580, %v3745, %v3746
          %v3748 = vrot.slane %v3741, 1
          %v3749 = vsel %vm3580, %v3746, %v3748
          %3750 = vrot.lane.b32.xlu0 %v3747, 126
          %v3751 = vpop.permute.xlu0 %3750
          %3752 = vrot.lane.b32.xlu0 %v3749, 126
          %v3753 = vpop.permute.xlu0 %3752
          %3754 = vrot.lane.b32.xlu0 %v3748, 126
          %v3755 = vpop.permute.xlu0 %3754
          %v3759 = vadd.f32 %v3681, %v3751
          %v3760 = vadd.f32 %v3682, %v3753
          %v3761 = vadd.f32 %v3683, %v3755
          %s3762 = sadd.s32 %s3166, 597
          %s3763 = sld [smem:[#allocation16 + %s3762]]
          %v3764 = vstv %s3763
          %v3765 = vmul.f32 %v3764, %v3162
          %v3766 = vmul.f32 %v3764, %v3163
          %v3767 = vmul.f32 %v3764, %v3164
          %v3771 = vrot.slane %v3765, 1
          %v3772 = vrot.slane %v3766, 1
          %v3773 = vsel %vm3580, %v3771, %v3772
          %v3774 = vrot.slane %v3767, 1
          %v3775 = vsel %vm3580, %v3772, %v3774
          %3776 = vrot.lane.b32.xlu0 %v3773, 126
          %v3777 = vpop.permute.xlu0 %3776
          %3778 = vrot.lane.b32.xlu0 %v3775, 126
          %v3779 = vpop.permute.xlu0 %3778
          %3780 = vrot.lane.b32.xlu0 %v3774, 126
          %v3781 = vpop.permute.xlu0 %3780
          %v3785 = vadd.f32 %v3707, %v3777
          %v3786 = vadd.f32 %v3708, %v3779
          %v3787 = vadd.f32 %v3709, %v3781
          %s3788 = sadd.s32 %s3166, 10
          %s3789 = sld [smem:[#allocation16 + %s3788]]
          %v3790 = vstv %s3789
          %v3791 = vmul.f32 %v3790, %v3162
          %v3792 = vmul.f32 %v3790, %v3163
          %v3793 = vmul.f32 %v3790, %v3164
          %v3797 = vrot.slane %v3791, 1
          %v3798 = vrot.slane %v3792, 1
          %v3799 = vsel %vm3580, %v3797, %v3798
          %v3800 = vrot.slane %v3793, 1
          %v3801 = vsel %vm3580, %v3798, %v3800
          %3802 = vrot.lane.b32.xlu0 %v3799, 125
          %v3803 = vpop.permute.xlu0 %3802
          %3804 = vrot.lane.b32.xlu0 %v3801, 125
          %v3805 = vpop.permute.xlu0 %3804
          %3806 = vrot.lane.b32.xlu0 %v3800, 125
          %v3807 = vpop.permute.xlu0 %3806
          %v3811 = vadd.f32 %v3733, %v3803
          %v3812 = vadd.f32 %v3734, %v3805
          %v3813 = vadd.f32 %v3735, %v3807
          %s3814 = sadd.s32 %s3166, 304
          %s3815 = sld [smem:[#allocation16 + %s3814]]
          %v3816 = vstv %s3815
          %v3817 = vmul.f32 %v3816, %v3162
          %v3818 = vmul.f32 %v3816, %v3163
          %v3819 = vmul.f32 %v3816, %v3164
          %v3823 = vrot.slane %v3817, 1
          %v3824 = vrot.slane %v3818, 1
          %v3825 = vsel %vm3580, %v3823, %v3824
          %v3826 = vrot.slane %v3819, 1
          %v3827 = vsel %vm3580, %v3824, %v3826
          %3828 = vrot.lane.b32.xlu0 %v3825, 125
          %v3829 = vpop.permute.xlu0 %3828
          %3830 = vrot.lane.b32.xlu0 %v3827, 125
          %v3831 = vpop.permute.xlu0 %3830
          %3832 = vrot.lane.b32.xlu0 %v3826, 125
          %v3833 = vpop.permute.xlu0 %3832
          %v3837 = vadd.f32 %v3759, %v3829
          %v3838 = vadd.f32 %v3760, %v3831
          %v3839 = vadd.f32 %v3761, %v3833
          %s3840 = sadd.s32 %s3166, 598
          %s3841 = sld [smem:[#allocation16 + %s3840]]
          %v3842 = vstv %s3841
          %v3843 = vmul.f32 %v3842, %v3162
          %v3844 = vmul.f32 %v3842, %v3163
          %v3845 = vmul.f32 %v3842, %v3164
          %v3849 = vrot.slane %v3843, 1
          %v3850 = vrot.slane %v3844, 1
          %v3851 = vsel %vm3580, %v3849, %v3850
          %v3852 = vrot.slane %v3845, 1
          %v3853 = vsel %vm3580, %v3850, %v3852
          %3854 = vrot.lane.b32.xlu0 %v3851, 125
          %v3855 = vpop.permute.xlu0 %3854
          %3856 = vrot.lane.b32.xlu0 %v3853, 125
          %v3857 = vpop.permute.xlu0 %3856
          %3858 = vrot.lane.b32.xlu0 %v3852, 125
          %v3859 = vpop.permute.xlu0 %3858
          %v3863 = vadd.f32 %v3785, %v3855
          %v3864 = vadd.f32 %v3786, %v3857
          %v3865 = vadd.f32 %v3787, %v3859
          %s3866 = sadd.s32 %s3166, 11
          %s3867 = sld [smem:[#allocation16 + %s3866]]
          %v3868 = vstv %s3867
          %v3869 = vmul.f32 %v3868, %v3162
          %v3870 = vmul.f32 %v3868, %v3163
          %v3871 = vmul.f32 %v3868, %v3164
          %v3875 = vrot.slane %v3869, 1
          %v3876 = vrot.slane %v3870, 1
          %v3877 = vsel %vm3580, %v3875, %v3876
          %v3878 = vrot.slane %v3871, 1
          %v3879 = vsel %vm3580, %v3876, %v3878
          %3880 = vrot.lane.b32.xlu0 %v3877, 124
          %v3881 = vpop.permute.xlu0 %3880
          %3882 = vrot.lane.b32.xlu0 %v3879, 124
          %v3883 = vpop.permute.xlu0 %3882
          %3884 = vrot.lane.b32.xlu0 %v3878, 124
          %v3885 = vpop.permute.xlu0 %3884
          %v3889 = vadd.f32 %v3811, %v3881
          %v3890 = vadd.f32 %v3812, %v3883
          %v3891 = vadd.f32 %v3813, %v3885
          %s3892 = sadd.s32 %s3166, 305
          %s3893 = sld [smem:[#allocation16 + %s3892]]
          %v3894 = vstv %s3893
          %v3895 = vmul.f32 %v3894, %v3162
          %v3896 = vmul.f32 %v3894, %v3163
          %v3897 = vmul.f32 %v3894, %v3164
          %v3901 = vrot.slane %v3895, 1
          %v3902 = vrot.slane %v3896, 1
          %v3903 = vsel %vm3580, %v3901, %v3902
          %v3904 = vrot.slane %v3897, 1
          %v3905 = vsel %vm3580, %v3902, %v3904
          %3906 = vrot.lane.b32.xlu0 %v3903, 124
          %v3907 = vpop.permute.xlu0 %3906
          %3908 = vrot.lane.b32.xlu0 %v3905, 124
          %v3909 = vpop.permute.xlu0 %3908
          %3910 = vrot.lane.b32.xlu0 %v3904, 124
          %v3911 = vpop.permute.xlu0 %3910
          %v3915 = vadd.f32 %v3837, %v3907
          %v3916 = vadd.f32 %v3838, %v3909
          %v3917 = vadd.f32 %v3839, %v3911
          %s3918 = sadd.s32 %s3166, 599
          %s3919 = sld [smem:[#allocation16 + %s3918]]
          %v3920 = vstv %s3919
          %v3921 = vmul.f32 %v3920, %v3162
          %v3922 = vmul.f32 %v3920, %v3163
          %v3923 = vmul.f32 %v3920, %v3164
          %v3927 = vrot.slane %v3921, 1
          %v3928 = vrot.slane %v3922, 1
          %v3929 = vsel %vm3580, %v3927, %v3928
          %v3930 = vrot.slane %v3923, 1
          %v3931 = vsel %vm3580, %v3928, %v3930
          %3932 = vrot.lane.b32.xlu0 %v3929, 124
          %v3933 = vpop.permute.xlu0 %3932
          %3934 = vrot.lane.b32.xlu0 %v3931, 124
          %v3935 = vpop.permute.xlu0 %3934
          %3936 = vrot.lane.b32.xlu0 %v3930, 124
          %v3937 = vpop.permute.xlu0 %3936
          %v3941 = vadd.f32 %v3863, %v3933
          %v3942 = vadd.f32 %v3864, %v3935
          %v3943 = vadd.f32 %v3865, %v3937
          %s3944 = sadd.s32 %s3166, 12
          %s3945 = sld [smem:[#allocation16 + %s3944]]
          %v3946 = vstv %s3945
          %v3947 = vmul.f32 %v3946, %v3162
          %v3948 = vmul.f32 %v3946, %v3163
          %v3949 = vmul.f32 %v3946, %v3164
          %v3953 = vrot.slane %v3947, 1
          %v3954 = vrot.slane %v3948, 1
          %v3955 = vsel %vm3580, %v3953, %v3954
          %v3956 = vrot.slane %v3949, 1
          %v3957 = vsel %vm3580, %v3954, %v3956
          %3958 = vrot.lane.b32.xlu0 %v3955, 123
          %v3959 = vpop.permute.xlu0 %3958
          %3960 = vrot.lane.b32.xlu0 %v3957, 123
          %v3961 = vpop.permute.xlu0 %3960
          %3962 = vrot.lane.b32.xlu0 %v3956, 123
          %v3963 = vpop.permute.xlu0 %3962
          %v3967 = vadd.f32 %v3889, %v3959
          %v3968 = vadd.f32 %v3890, %v3961
          %v3969 = vadd.f32 %v3891, %v3963
          %s3970 = sadd.s32 %s3166, 306
          %s3971 = sld [smem:[#allocation16 + %s3970]]
          %v3972 = vstv %s3971
          %v3973 = vmul.f32 %v3972, %v3162
          %v3974 = vmul.f32 %v3972, %v3163
          %v3975 = vmul.f32 %v3972, %v3164
          %v3979 = vrot.slane %v3973, 1
          %v3980 = vrot.slane %v3974, 1
          %v3981 = vsel %vm3580, %v3979, %v3980
          %v3982 = vrot.slane %v3975, 1
          %v3983 = vsel %vm3580, %v3980, %v3982
          %3984 = vrot.lane.b32.xlu0 %v3981, 123
          %v3985 = vpop.permute.xlu0 %3984
          %3986 = vrot.lane.b32.xlu0 %v3983, 123
          %v3987 = vpop.permute.xlu0 %3986
          %3988 = vrot.lane.b32.xlu0 %v3982, 123
          %v3989 = vpop.permute.xlu0 %3988
          %v3993 = vadd.f32 %v3915, %v3985
          %v3994 = vadd.f32 %v3916, %v3987
          %v3995 = vadd.f32 %v3917, %v3989
          %s3996 = sadd.s32 %s3166, 600
          %s3997 = sld [smem:[#allocation16 + %s3996]]
          %v3998 = vstv %s3997
          %v3999 = vmul.f32 %v3998, %v3162
          %v4000 = vmul.f32 %v3998, %v3163
          %v4001 = vmul.f32 %v3998, %v3164
          %v4005 = vrot.slane %v3999, 1
          %v4006 = vrot.slane %v4000, 1
          %v4007 = vsel %vm3580, %v4005, %v4006
          %v4008 = vrot.slane %v4001, 1
          %v4009 = vsel %vm3580, %v4006, %v4008
          %4010 = vrot.lane.b32.xlu0 %v4007, 123
          %v4011 = vpop.permute.xlu0 %4010
          %4012 = vrot.lane.b32.xlu0 %v4009, 123
          %v4013 = vpop.permute.xlu0 %4012
          %4014 = vrot.lane.b32.xlu0 %v4008, 123
          %v4015 = vpop.permute.xlu0 %4014
          %v4019 = vadd.f32 %v3941, %v4011
          %v4020 = vadd.f32 %v3942, %v4013
          %v4021 = vadd.f32 %v3943, %v4015
          %s4022 = sadd.s32 %s3166, 13
          %s4023 = sld [smem:[#allocation16 + %s4022]]
          %v4024 = vstv %s4023
          %v4025 = vmul.f32 %v4024, %v3162
          %v4026 = vmul.f32 %v4024, %v3163
          %v4027 = vmul.f32 %v4024, %v3164
          %v4031 = vrot.slane %v4025, 1
          %v4032 = vrot.slane %v4026, 1
          %v4033 = vsel %vm3580, %v4031, %v4032
          %v4034 = vrot.slane %v4027, 1
          %v4035 = vsel %vm3580, %v4032, %v4034
          %4036 = vrot.lane.b32.xlu0 %v4033, 122
          %v4037 = vpop.permute.xlu0 %4036
          %4038 = vrot.lane.b32.xlu0 %v4035, 122
          %v4039 = vpop.permute.xlu0 %4038
          %4040 = vrot.lane.b32.xlu0 %v4034, 122
          %v4041 = vpop.permute.xlu0 %4040
          %v4045 = vadd.f32 %v3967, %v4037
          %v4046 = vadd.f32 %v3968, %v4039
          %v4047 = vadd.f32 %v3969, %v4041
          %s4048 = sadd.s32 %s3166, 307
          %s4049 = sld [smem:[#allocation16 + %s4048]]
          %v4050 = vstv %s4049
          %v4051 = vmul.f32 %v4050, %v3162
          %v4052 = vmul.f32 %v4050, %v3163
          %v4053 = vmul.f32 %v4050, %v3164
          %v4057 = vrot.slane %v4051, 1
          %v4058 = vrot.slane %v4052, 1
          %v4059 = vsel %vm3580, %v4057, %v4058
          %v4060 = vrot.slane %v4053, 1
          %v4061 = vsel %vm3580, %v4058, %v4060
          %4062 = vrot.lane.b32.xlu0 %v4059, 122
          %v4063 = vpop.permute.xlu0 %4062
          %4064 = vrot.lane.b32.xlu0 %v4061, 122
          %v4065 = vpop.permute.xlu0 %4064
          %4066 = vrot.lane.b32.xlu0 %v4060, 122
          %v4067 = vpop.permute.xlu0 %4066
          %v4071 = vadd.f32 %v3993, %v4063
          %v4072 = vadd.f32 %v3994, %v4065
          %v4073 = vadd.f32 %v3995, %v4067
          %s4074 = sadd.s32 %s3166, 601
          %s4075 = sld [smem:[#allocation16 + %s4074]]
          %v4076 = vstv %s4075
          %v4077 = vmul.f32 %v4076, %v3162
          %v4078 = vmul.f32 %v4076, %v3163
          %v4079 = vmul.f32 %v4076, %v3164
          %v4083 = vrot.slane %v4077, 1
          %v4084 = vrot.slane %v4078, 1
          %v4085 = vsel %vm3580, %v4083, %v4084
          %v4086 = vrot.slane %v4079, 1
          %v4087 = vsel %vm3580, %v4084, %v4086
          %4088 = vrot.lane.b32.xlu0 %v4085, 122
          %v4089 = vpop.permute.xlu0 %4088
          %4090 = vrot.lane.b32.xlu0 %v4087, 122
          %v4091 = vpop.permute.xlu0 %4090
          %4092 = vrot.lane.b32.xlu0 %v4086, 122
          %v4093 = vpop.permute.xlu0 %4092
          %v4097 = vadd.f32 %v4019, %v4089
          %v4098 = vadd.f32 %v4020, %v4091
          %v4099 = vadd.f32 %v4021, %v4093
          %s4100 = sadd.s32 %s3166, 14
          %s4101 = sld [smem:[#allocation16 + %s4100]]
          %v4102 = vstv %s4101
          %v4103 = vmul.f32 %v4102, %v3162
          %v4104 = vmul.f32 %v4102, %v3163
          %v4105 = vmul.f32 %v4102, %v3164
          %vm4109 = vcmask 1045504
          %v4110 = vrot.slane %v4103, 2
          %v4111 = vrot.slane %v4104, 2
          %v4112 = vsel %vm4109, %v4110, %v4111
          %v4113 = vrot.slane %v4105, 2
          %v4114 = vsel %vm4109, %v4111, %v4113
          %v4118 = vadd.f32 %v4045, %v4112
          %v4119 = vadd.f32 %v4046, %v4114
          %v4120 = vadd.f32 %v4047, %v4113
          %s4121 = sadd.s32 %s3166, 308
          %s4122 = sld [smem:[#allocation16 + %s4121]]
          %v4123 = vstv %s4122
          %v4124 = vmul.f32 %v4123, %v3162
          %v4125 = vmul.f32 %v4123, %v3163
          %v4126 = vmul.f32 %v4123, %v3164
          %v4130 = vrot.slane %v4124, 2
          %v4131 = vrot.slane %v4125, 2
          %v4132 = vsel %vm4109, %v4130, %v4131
          %v4133 = vrot.slane %v4126, 2
          %v4134 = vsel %vm4109, %v4131, %v4133
          %v4138 = vadd.f32 %v4071, %v4132
          %v4139 = vadd.f32 %v4072, %v4134
          %v4140 = vadd.f32 %v4073, %v4133
          %s4141 = sadd.s32 %s3166, 602
          %s4142 = sld [smem:[#allocation16 + %s4141]]
          %v4143 = vstv %s4142
          %v4144 = vmul.f32 %v4143, %v3162
          %v4145 = vmul.f32 %v4143, %v3163
          %v4146 = vmul.f32 %v4143, %v3164
          %v4150 = vrot.slane %v4144, 2
          %v4151 = vrot.slane %v4145, 2
          %v4152 = vsel %vm4109, %v4150, %v4151
          %v4153 = vrot.slane %v4146, 2
          %v4154 = vsel %vm4109, %v4151, %v4153
          %v4158 = vadd.f32 %v4097, %v4152
          %v4159 = vadd.f32 %v4098, %v4154
          %v4160 = vadd.f32 %v4099, %v4153
          %s4161 = sadd.s32 %s3166, 15
          %s4162 = sld [smem:[#allocation16 + %s4161]]
          %v4163 = vstv %s4162
          %v4164 = vmul.f32 %v4163, %v3162
          %v4165 = vmul.f32 %v4163, %v3163
          %v4166 = vmul.f32 %v4163, %v3164
          %v4170 = vrot.slane %v4164, 2
          %v4171 = vrot.slane %v4165, 2
          %v4172 = vsel %vm4109, %v4170, %v4171
          %v4173 = vrot.slane %v4166, 2
          %v4174 = vsel %vm4109, %v4171, %v4173
          %4175 = vrot.lane.b32.xlu0 %v4172, 127
          %v4176 = vpop.permute.xlu0 %4175
          %4177 = vrot.lane.b32.xlu0 %v4174, 127
          %v4178 = vpop.permute.xlu0 %4177
          %4179 = vrot.lane.b32.xlu0 %v4173, 127
          %v4180 = vpop.permute.xlu0 %4179
          %v4184 = vadd.f32 %v4118, %v4176
          %v4185 = vadd.f32 %v4119, %v4178
          %v4186 = vadd.f32 %v4120, %v4180
          %s4187 = sadd.s32 %s3166, 309
          %s4188 = sld [smem:[#allocation16 + %s4187]]
          %v4189 = vstv %s4188
          %v4190 = vmul.f32 %v4189, %v3162
          %v4191 = vmul.f32 %v4189, %v3163
          %v4192 = vmul.f32 %v4189, %v3164
          %v4196 = vrot.slane %v4190, 2
          %v4197 = vrot.slane %v4191, 2
          %v4198 = vsel %vm4109, %v4196, %v4197
          %v4199 = vrot.slane %v4192, 2
          %v4200 = vsel %vm4109, %v4197, %v4199
          %4201 = vrot.lane.b32.xlu0 %v4198, 127
          %v4202 = vpop.permute.xlu0 %4201
          %4203 = vrot.lane.b32.xlu0 %v4200, 127
          %v4204 = vpop.permute.xlu0 %4203
          %4205 = vrot.lane.b32.xlu0 %v4199, 127
          %v4206 = vpop.permute.xlu0 %4205
          %v4210 = vadd.f32 %v4138, %v4202
          %v4211 = vadd.f32 %v4139, %v4204
          %v4212 = vadd.f32 %v4140, %v4206
          %s4213 = sadd.s32 %s3166, 603
          %s4214 = sld [smem:[#allocation16 + %s4213]]
          %v4215 = vstv %s4214
          %v4216 = vmul.f32 %v4215, %v3162
          %v4217 = vmul.f32 %v4215, %v3163
          %v4218 = vmul.f32 %v4215, %v3164
          %v4222 = vrot.slane %v4216, 2
          %v4223 = vrot.slane %v4217, 2
          %v4224 = vsel %vm4109, %v4222, %v4223
          %v4225 = vrot.slane %v4218, 2
          %v4226 = vsel %vm4109, %v4223, %v4225
          %4227 = vrot.lane.b32.xlu0 %v4224, 127
          %v4228 = vpop.permute.xlu0 %4227
          %4229 = vrot.lane.b32.xlu0 %v4226, 127
          %v4230 = vpop.permute.xlu0 %4229
          %4231 = vrot.lane.b32.xlu0 %v4225, 127
          %v4232 = vpop.permute.xlu0 %4231
          %v4236 = vadd.f32 %v4158, %v4228
          %v4237 = vadd.f32 %v4159, %v4230
          %v4238 = vadd.f32 %v4160, %v4232
          %s4239 = sadd.s32 %s3166, 16
          %s4240 = sld [smem:[#allocation16 + %s4239]]
          %v4241 = vstv %s4240
          %v4242 = vmul.f32 %v4241, %v3162
          %v4243 = vmul.f32 %v4241, %v3163
          %v4244 = vmul.f32 %v4241, %v3164
          %v4248 = vrot.slane %v4242, 2
          %v4249 = vrot.slane %v4243, 2
          %v4250 = vsel %vm4109, %v4248, %v4249
          %v4251 = vrot.slane %v4244, 2
          %v4252 = vsel %vm4109, %v4249, %v4251
          %4253 = vrot.lane.b32.xlu0 %v4250, 126
          %v4254 = vpop.permute.xlu0 %4253
          %4255 = vrot.lane.b32.xlu0 %v4252, 126
          %v4256 = vpop.permute.xlu0 %4255
          %4257 = vrot.lane.b32.xlu0 %v4251, 126
          %v4258 = vpop.permute.xlu0 %4257
          %v4262 = vadd.f32 %v4184, %v4254
          %v4263 = vadd.f32 %v4185, %v4256
          %v4264 = vadd.f32 %v4186, %v4258
          %s4265 = sadd.s32 %s3166, 310
          %s4266 = sld [smem:[#allocation16 + %s4265]]
          %v4267 = vstv %s4266
          %v4268 = vmul.f32 %v4267, %v3162
          %v4269 = vmul.f32 %v4267, %v3163
          %v4270 = vmul.f32 %v4267, %v3164
          %v4274 = vrot.slane %v4268, 2
          %v4275 = vrot.slane %v4269, 2
          %v4276 = vsel %vm4109, %v4274, %v4275
          %v4277 = vrot.slane %v4270, 2
          %v4278 = vsel %vm4109, %v4275, %v4277
          %4279 = vrot.lane.b32.xlu0 %v4276, 126
          %v4280 = vpop.permute.xlu0 %4279
          %4281 = vrot.lane.b32.xlu0 %v4278, 126
          %v4282 = vpop.permute.xlu0 %4281
          %4283 = vrot.lane.b32.xlu0 %v4277, 126
          %v4284 = vpop.permute.xlu0 %4283
          %v4288 = vadd.f32 %v4210, %v4280
          %v4289 = vadd.f32 %v4211, %v4282
          %v4290 = vadd.f32 %v4212, %v4284
          %s4291 = sadd.s32 %s3166, 604
          %s4292 = sld [smem:[#allocation16 + %s4291]]
          %v4293 = vstv %s4292
          %v4294 = vmul.f32 %v4293, %v3162
          %v4295 = vmul.f32 %v4293, %v3163
          %v4296 = vmul.f32 %v4293, %v3164
          %v4300 = vrot.slane %v4294, 2
          %v4301 = vrot.slane %v4295, 2
          %v4302 = vsel %vm4109, %v4300, %v4301
          %v4303 = vrot.slane %v4296, 2
          %v4304 = vsel %vm4109, %v4301, %v4303
          %4305 = vrot.lane.b32.xlu0 %v4302, 126
          %v4306 = vpop.permute.xlu0 %4305
          %4307 = vrot.lane.b32.xlu0 %v4304, 126
          %v4308 = vpop.permute.xlu0 %4307
          %4309 = vrot.lane.b32.xlu0 %v4303, 126
          %v4310 = vpop.permute.xlu0 %4309
          %v4314 = vadd.f32 %v4236, %v4306
          %v4315 = vadd.f32 %v4237, %v4308
          %v4316 = vadd.f32 %v4238, %v4310
          %s4317 = sadd.s32 %s3166, 17
          %s4318 = sld [smem:[#allocation16 + %s4317]]
          %v4319 = vstv %s4318
          %v4320 = vmul.f32 %v4319, %v3162
          %v4321 = vmul.f32 %v4319, %v3163
          %v4322 = vmul.f32 %v4319, %v3164
          %v4326 = vrot.slane %v4320, 2
          %v4327 = vrot.slane %v4321, 2
          %v4328 = vsel %vm4109, %v4326, %v4327
          %v4329 = vrot.slane %v4322, 2
          %v4330 = vsel %vm4109, %v4327, %v4329
          %4331 = vrot.lane.b32.xlu0 %v4328, 125
          %v4332 = vpop.permute.xlu0 %4331
          %4333 = vrot.lane.b32.xlu0 %v4330, 125
          %v4334 = vpop.permute.xlu0 %4333
          %4335 = vrot.lane.b32.xlu0 %v4329, 125
          %v4336 = vpop.permute.xlu0 %4335
          %v4340 = vadd.f32 %v4262, %v4332
          %v4341 = vadd.f32 %v4263, %v4334
          %v4342 = vadd.f32 %v4264, %v4336
          %s4343 = sadd.s32 %s3166, 311
          %s4344 = sld [smem:[#allocation16 + %s4343]]
          %v4345 = vstv %s4344
          %v4346 = vmul.f32 %v4345, %v3162
          %v4347 = vmul.f32 %v4345, %v3163
          %v4348 = vmul.f32 %v4345, %v3164
          %v4352 = vrot.slane %v4346, 2
          %v4353 = vrot.slane %v4347, 2
          %v4354 = vsel %vm4109, %v4352, %v4353
          %v4355 = vrot.slane %v4348, 2
          %v4356 = vsel %vm4109, %v4353, %v4355
          %4357 = vrot.lane.b32.xlu0 %v4354, 125
          %v4358 = vpop.permute.xlu0 %4357
          %4359 = vrot.lane.b32.xlu0 %v4356, 125
          %v4360 = vpop.permute.xlu0 %4359
          %4361 = vrot.lane.b32.xlu0 %v4355, 125
          %v4362 = vpop.permute.xlu0 %4361
          %v4366 = vadd.f32 %v4288, %v4358
          %v4367 = vadd.f32 %v4289, %v4360
          %v4368 = vadd.f32 %v4290, %v4362
          %s4369 = sadd.s32 %s3166, 605
          %s4370 = sld [smem:[#allocation16 + %s4369]]
          %v4371 = vstv %s4370
          %v4372 = vmul.f32 %v4371, %v3162
          %v4373 = vmul.f32 %v4371, %v3163
          %v4374 = vmul.f32 %v4371, %v3164
          %v4378 = vrot.slane %v4372, 2
          %v4379 = vrot.slane %v4373, 2
          %v4380 = vsel %vm4109, %v4378, %v4379
          %v4381 = vrot.slane %v4374, 2
          %v4382 = vsel %vm4109, %v4379, %v4381
          %4383 = vrot.lane.b32.xlu0 %v4380, 125
          %v4384 = vpop.permute.xlu0 %4383
          %4385 = vrot.lane.b32.xlu0 %v4382, 125
          %v4386 = vpop.permute.xlu0 %4385
          %4387 = vrot.lane.b32.xlu0 %v4381, 125
          %v4388 = vpop.permute.xlu0 %4387
          %v4392 = vadd.f32 %v4314, %v4384
          %v4393 = vadd.f32 %v4315, %v4386
          %v4394 = vadd.f32 %v4316, %v4388
          %s4395 = sadd.s32 %s3166, 18
          %s4396 = sld [smem:[#allocation16 + %s4395]]
          %v4397 = vstv %s4396
          %v4398 = vmul.f32 %v4397, %v3162
          %v4399 = vmul.f32 %v4397, %v3163
          %v4400 = vmul.f32 %v4397, %v3164
          %v4404 = vrot.slane %v4398, 2
          %v4405 = vrot.slane %v4399, 2
          %v4406 = vsel %vm4109, %v4404, %v4405
          %v4407 = vrot.slane %v4400, 2
          %v4408 = vsel %vm4109, %v4405, %v4407
          %4409 = vrot.lane.b32.xlu0 %v4406, 124
          %v4410 = vpop.permute.xlu0 %4409
          %4411 = vrot.lane.b32.xlu0 %v4408, 124
          %v4412 = vpop.permute.xlu0 %4411
          %4413 = vrot.lane.b32.xlu0 %v4407, 124
          %v4414 = vpop.permute.xlu0 %4413
          %v4418 = vadd.f32 %v4340, %v4410
          %v4419 = vadd.f32 %v4341, %v4412
          %v4420 = vadd.f32 %v4342, %v4414
          %s4421 = sadd.s32 %s3166, 312
          %s4422 = sld [smem:[#allocation16 + %s4421]]
          %v4423 = vstv %s4422
          %v4424 = vmul.f32 %v4423, %v3162
          %v4425 = vmul.f32 %v4423, %v3163
          %v4426 = vmul.f32 %v4423, %v3164
          %v4430 = vrot.slane %v4424, 2
          %v4431 = vrot.slane %v4425, 2
          %v4432 = vsel %vm4109, %v4430, %v4431
          %v4433 = vrot.slane %v4426, 2
          %v4434 = vsel %vm4109, %v4431, %v4433
          %4435 = vrot.lane.b32.xlu0 %v4432, 124
          %v4436 = vpop.permute.xlu0 %4435
          %4437 = vrot.lane.b32.xlu0 %v4434, 124
          %v4438 = vpop.permute.xlu0 %4437
          %4439 = vrot.lane.b32.xlu0 %v4433, 124
          %v4440 = vpop.permute.xlu0 %4439
          %v4444 = vadd.f32 %v4366, %v4436
          %v4445 = vadd.f32 %v4367, %v4438
          %v4446 = vadd.f32 %v4368, %v4440
          %s4447 = sadd.s32 %s3166, 606
          %s4448 = sld [smem:[#allocation16 + %s4447]]
          %v4449 = vstv %s4448
          %v4450 = vmul.f32 %v4449, %v3162
          %v4451 = vmul.f32 %v4449, %v3163
          %v4452 = vmul.f32 %v4449, %v3164
          %v4456 = vrot.slane %v4450, 2
          %v4457 = vrot.slane %v4451, 2
          %v4458 = vsel %vm4109, %v4456, %v4457
          %v4459 = vrot.slane %v4452, 2
          %v4460 = vsel %vm4109, %v4457, %v4459
          %4461 = vrot.lane.b32.xlu0 %v4458, 124
          %v4462 = vpop.permute.xlu0 %4461
          %4463 = vrot.lane.b32.xlu0 %v4460, 124
          %v4464 = vpop.permute.xlu0 %4463
          %4465 = vrot.lane.b32.xlu0 %v4459, 124
          %v4466 = vpop.permute.xlu0 %4465
          %v4470 = vadd.f32 %v4392, %v4462
          %v4471 = vadd.f32 %v4393, %v4464
          %v4472 = vadd.f32 %v4394, %v4466
          %s4473 = sadd.s32 %s3166, 19
          %s4474 = sld [smem:[#allocation16 + %s4473]]
          %v4475 = vstv %s4474
          %v4476 = vmul.f32 %v4475, %v3162
          %v4477 = vmul.f32 %v4475, %v3163
          %v4478 = vmul.f32 %v4475, %v3164
          %v4482 = vrot.slane %v4476, 2
          %v4483 = vrot.slane %v4477, 2
          %v4484 = vsel %vm4109, %v4482, %v4483
          %v4485 = vrot.slane %v4478, 2
          %v4486 = vsel %vm4109, %v4483, %v4485
          %4487 = vrot.lane.b32.xlu0 %v4484, 123
          %v4488 = vpop.permute.xlu0 %4487
          %4489 = vrot.lane.b32.xlu0 %v4486, 123
          %v4490 = vpop.permute.xlu0 %4489
          %4491 = vrot.lane.b32.xlu0 %v4485, 123
          %v4492 = vpop.permute.xlu0 %4491
          %v4496 = vadd.f32 %v4418, %v4488
          %v4497 = vadd.f32 %v4419, %v4490
          %v4498 = vadd.f32 %v4420, %v4492
          %s4499 = sadd.s32 %s3166, 313
          %s4500 = sld [smem:[#allocation16 + %s4499]]
          %v4501 = vstv %s4500
          %v4502 = vmul.f32 %v4501, %v3162
          %v4503 = vmul.f32 %v4501, %v3163
          %v4504 = vmul.f32 %v4501, %v3164
          %v4508 = vrot.slane %v4502, 2
          %v4509 = vrot.slane %v4503, 2
          %v4510 = vsel %vm4109, %v4508, %v4509
          %v4511 = vrot.slane %v4504, 2
          %v4512 = vsel %vm4109, %v4509, %v4511
          %4513 = vrot.lane.b32.xlu0 %v4510, 123
          %v4514 = vpop.permute.xlu0 %4513
          %4515 = vrot.lane.b32.xlu0 %v4512, 123
          %v4516 = vpop.permute.xlu0 %4515
          %4517 = vrot.lane.b32.xlu0 %v4511, 123
          %v4518 = vpop.permute.xlu0 %4517
          %v4522 = vadd.f32 %v4444, %v4514
          %v4523 = vadd.f32 %v4445, %v4516
          %v4524 = vadd.f32 %v4446, %v4518
          %s4525 = sadd.s32 %s3166, 607
          %s4526 = sld [smem:[#allocation16 + %s4525]]
          %v4527 = vstv %s4526
          %v4528 = vmul.f32 %v4527, %v3162
          %v4529 = vmul.f32 %v4527, %v3163
          %v4530 = vmul.f32 %v4527, %v3164
          %v4534 = vrot.slane %v4528, 2
          %v4535 = vrot.slane %v4529, 2
          %v4536 = vsel %vm4109, %v4534, %v4535
          %v4537 = vrot.slane %v4530, 2
          %v4538 = vsel %vm4109, %v4535, %v4537
          %4539 = vrot.lane.b32.xlu0 %v4536, 123
          %v4540 = vpop.permute.xlu0 %4539
          %4541 = vrot.lane.b32.xlu0 %v4538, 123
          %v4542 = vpop.permute.xlu0 %4541
          %4543 = vrot.lane.b32.xlu0 %v4537, 123
          %v4544 = vpop.permute.xlu0 %4543
          %v4548 = vadd.f32 %v4470, %v4540
          %v4549 = vadd.f32 %v4471, %v4542
          %v4550 = vadd.f32 %v4472, %v4544
          %s4551 = sadd.s32 %s3166, 20
          %s4552 = sld [smem:[#allocation16 + %s4551]]
          %v4553 = vstv %s4552
          %v4554 = vmul.f32 %v4553, %v3162
          %v4555 = vmul.f32 %v4553, %v3163
          %v4556 = vmul.f32 %v4553, %v3164
          %v4560 = vrot.slane %v4554, 2
          %v4561 = vrot.slane %v4555, 2
          %v4562 = vsel %vm4109, %v4560, %v4561
          %v4563 = vrot.slane %v4556, 2
          %v4564 = vsel %vm4109, %v4561, %v4563
          %4565 = vrot.lane.b32.xlu0 %v4562, 122
          %v4566 = vpop.permute.xlu0 %4565
          %4567 = vrot.lane.b32.xlu0 %v4564, 122
          %v4568 = vpop.permute.xlu0 %4567
          %4569 = vrot.lane.b32.xlu0 %v4563, 122
          %v4570 = vpop.permute.xlu0 %4569
          %v4574 = vadd.f32 %v4496, %v4566
          %v4575 = vadd.f32 %v4497, %v4568
          %v4576 = vadd.f32 %v4498, %v4570
          %s4577 = sadd.s32 %s3166, 314
          %s4578 = sld [smem:[#allocation16 + %s4577]]
          %v4579 = vstv %s4578
          %v4580 = vmul.f32 %v4579, %v3162
          %v4581 = vmul.f32 %v4579, %v3163
          %v4582 = vmul.f32 %v4579, %v3164
          %v4586 = vrot.slane %v4580, 2
          %v4587 = vrot.slane %v4581, 2
          %v4588 = vsel %vm4109, %v4586, %v4587
          %v4589 = vrot.slane %v4582, 2
          %v4590 = vsel %vm4109, %v4587, %v4589
          %4591 = vrot.lane.b32.xlu0 %v4588, 122
          %v4592 = vpop.permute.xlu0 %4591
          %4593 = vrot.lane.b32.xlu0 %v4590, 122
          %v4594 = vpop.permute.xlu0 %4593
          %4595 = vrot.lane.b32.xlu0 %v4589, 122
          %v4596 = vpop.permute.xlu0 %4595
          %v4600 = vadd.f32 %v4522, %v4592
          %v4601 = vadd.f32 %v4523, %v4594
          %v4602 = vadd.f32 %v4524, %v4596
          %s4603 = sadd.s32 %s3166, 608
          %s4604 = sld [smem:[#allocation16 + %s4603]]
          %v4605 = vstv %s4604
          %v4606 = vmul.f32 %v4605, %v3162
          %v4607 = vmul.f32 %v4605, %v3163
          %v4608 = vmul.f32 %v4605, %v3164
          %v4612 = vrot.slane %v4606, 2
          %v4613 = vrot.slane %v4607, 2
          %v4614 = vsel %vm4109, %v4612, %v4613
          %v4615 = vrot.slane %v4608, 2
          %v4616 = vsel %vm4109, %v4613, %v4615
          %4617 = vrot.lane.b32.xlu0 %v4614, 122
          %v4618 = vpop.permute.xlu0 %4617
          %4619 = vrot.lane.b32.xlu0 %v4616, 122
          %v4620 = vpop.permute.xlu0 %4619
          %4621 = vrot.lane.b32.xlu0 %v4615, 122
          %v4622 = vpop.permute.xlu0 %4621
          %v4626 = vadd.f32 %v4548, %v4618
          %v4627 = vadd.f32 %v4549, %v4620
          %v4628 = vadd.f32 %v4550, %v4622
          %s4629 = sadd.s32 %s3166, 21
          %s4630 = sld [smem:[#allocation16 + %s4629]]
          %v4631 = vstv %s4630
          %v4632 = vmul.f32 %v4631, %v3163
          %v4633 = vmul.f32 %v4631, %v3164
          %vm4636 = vcmask 1044480
          %v4637 = vrot.slane %v4632, 3
          %v4638 = vrot.slane %v4633, 3
          %v4639 = vsel %vm4636, %v4637, %v4638
          %v4643 = vadd.f32 %v4574, %v4637
          %v4644 = vadd.f32 %v4575, %v4639
          %v4645 = vadd.f32 %v4576, %v4638
          %s4646 = sadd.s32 %s3166, 315
          %s4647 = sld [smem:[#allocation16 + %s4646]]
          %v4648 = vstv %s4647
          %v4649 = vmul.f32 %v4648, %v3163
          %v4650 = vmul.f32 %v4648, %v3164
          %v4653 = vrot.slane %v4649, 3
          %v4654 = vrot.slane %v4650, 3
          %v4655 = vsel %vm4636, %v4653, %v4654
          %v4659 = vadd.f32 %v4600, %v4653
          %v4660 = vadd.f32 %v4601, %v4655
          %v4661 = vadd.f32 %v4602, %v4654
          %s4662 = sadd.s32 %s3166, 609
          %s4663 = sld [smem:[#allocation16 + %s4662]]
          %v4664 = vstv %s4663
          %v4665 = vmul.f32 %v4664, %v3163
          %v4666 = vmul.f32 %v4664, %v3164
          %v4669 = vrot.slane %v4665, 3
          %v4670 = vrot.slane %v4666, 3
          %v4671 = vsel %vm4636, %v4669, %v4670
          %v4675 = vadd.f32 %v4626, %v4669
          %v4676 = vadd.f32 %v4627, %v4671
          %v4677 = vadd.f32 %v4628, %v4670
          %s4678 = sadd.s32 %s3166, 22
          %s4679 = sld [smem:[#allocation16 + %s4678]]
          %v4680 = vstv %s4679
          %v4681 = vmul.f32 %v4680, %v3163
          %v4682 = vmul.f32 %v4680, %v3164
          %v4685 = vrot.slane %v4681, 3
          %v4686 = vrot.slane %v4682, 3
          %v4687 = vsel %vm4636, %v4685, %v4686
          %4688 = vrot.lane.b32.xlu0 %v4685, 127
          %v4689 = vpop.permute.xlu0 %4688
          %4690 = vrot.lane.b32.xlu0 %v4687, 127
          %v4691 = vpop.permute.xlu0 %4690
          %4692 = vrot.lane.b32.xlu0 %v4686, 127
          %v4693 = vpop.permute.xlu0 %4692
          %v4697 = vadd.f32 %v4643, %v4689
          %v4698 = vadd.f32 %v4644, %v4691
          %v4699 = vadd.f32 %v4645, %v4693
          %s4700 = sadd.s32 %s3166, 316
          %s4701 = sld [smem:[#allocation16 + %s4700]]
          %v4702 = vstv %s4701
          %v4703 = vmul.f32 %v4702, %v3163
          %v4704 = vmul.f32 %v4702, %v3164
          %v4707 = vrot.slane %v4703, 3
          %v4708 = vrot.slane %v4704, 3
          %v4709 = vsel %vm4636, %v4707, %v4708
          %4710 = vrot.lane.b32.xlu0 %v4707, 127
          %v4711 = vpop.permute.xlu0 %4710
          %4712 = vrot.lane.b32.xlu0 %v4709, 127
          %v4713 = vpop.permute.xlu0 %4712
          %4714 = vrot.lane.b32.xlu0 %v4708, 127
          %v4715 = vpop.permute.xlu0 %4714
          %v4719 = vadd.f32 %v4659, %v4711
          %v4720 = vadd.f32 %v4660, %v4713
          %v4721 = vadd.f32 %v4661, %v4715
          %s4722 = sadd.s32 %s3166, 610
          %s4723 = sld [smem:[#allocation16 + %s4722]]
          %v4724 = vstv %s4723
          %v4725 = vmul.f32 %v4724, %v3163
          %v4726 = vmul.f32 %v4724, %v3164
          %v4729 = vrot.slane %v4725, 3
          %v4730 = vrot.slane %v4726, 3
          %v4731 = vsel %vm4636, %v4729, %v4730
          %4732 = vrot.lane.b32.xlu0 %v4729, 127
          %v4733 = vpop.permute.xlu0 %4732
          %4734 = vrot.lane.b32.xlu0 %v4731, 127
          %v4735 = vpop.permute.xlu0 %4734
          %4736 = vrot.lane.b32.xlu0 %v4730, 127
          %v4737 = vpop.permute.xlu0 %4736
          %v4741 = vadd.f32 %v4675, %v4733
          %v4742 = vadd.f32 %v4676, %v4735
          %v4743 = vadd.f32 %v4677, %v4737
          %s4744 = sadd.s32 %s3166, 23
          %s4745 = sld [smem:[#allocation16 + %s4744]]
          %v4746 = vstv %s4745
          %v4747 = vmul.f32 %v4746, %v3163
          %v4748 = vmul.f32 %v4746, %v3164
          %v4751 = vrot.slane %v4747, 3
          %v4752 = vrot.slane %v4748, 3
          %v4753 = vsel %vm4636, %v4751, %v4752
          %4754 = vrot.lane.b32.xlu0 %v4751, 126
          %v4755 = vpop.permute.xlu0 %4754
          %4756 = vrot.lane.b32.xlu0 %v4753, 126
          %v4757 = vpop.permute.xlu0 %4756
          %4758 = vrot.lane.b32.xlu0 %v4752, 126
          %v4759 = vpop.permute.xlu0 %4758
          %v4763 = vadd.f32 %v4697, %v4755
          %v4764 = vadd.f32 %v4698, %v4757
          %v4765 = vadd.f32 %v4699, %v4759
          %s4766 = sadd.s32 %s3166, 317
          %s4767 = sld [smem:[#allocation16 + %s4766]]
          %v4768 = vstv %s4767
          %v4769 = vmul.f32 %v4768, %v3163
          %v4770 = vmul.f32 %v4768, %v3164
          %v4773 = vrot.slane %v4769, 3
          %v4774 = vrot.slane %v4770, 3
          %v4775 = vsel %vm4636, %v4773, %v4774
          %4776 = vrot.lane.b32.xlu0 %v4773, 126
          %v4777 = vpop.permute.xlu0 %4776
          %4778 = vrot.lane.b32.xlu0 %v4775, 126
          %v4779 = vpop.permute.xlu0 %4778
          %4780 = vrot.lane.b32.xlu0 %v4774, 126
          %v4781 = vpop.permute.xlu0 %4780
          %v4785 = vadd.f32 %v4719, %v4777
          %v4786 = vadd.f32 %v4720, %v4779
          %v4787 = vadd.f32 %v4721, %v4781
          %s4788 = sadd.s32 %s3166, 611
          %s4789 = sld [smem:[#allocation16 + %s4788]]
          %v4790 = vstv %s4789
          %v4791 = vmul.f32 %v4790, %v3163
          %v4792 = vmul.f32 %v4790, %v3164
          %v4795 = vrot.slane %v4791, 3
          %v4796 = vrot.slane %v4792, 3
          %v4797 = vsel %vm4636, %v4795, %v4796
          %4798 = vrot.lane.b32.xlu0 %v4795, 126
          %v4799 = vpop.permute.xlu0 %4798
          %4800 = vrot.lane.b32.xlu0 %v4797, 126
          %v4801 = vpop.permute.xlu0 %4800
          %4802 = vrot.lane.b32.xlu0 %v4796, 126
          %v4803 = vpop.permute.xlu0 %4802
          %v4807 = vadd.f32 %v4741, %v4799
          %v4808 = vadd.f32 %v4742, %v4801
          %v4809 = vadd.f32 %v4743, %v4803
          %s4810 = sadd.s32 %s3166, 24
          %s4811 = sld [smem:[#allocation16 + %s4810]]
          %v4812 = vstv %s4811
          %v4813 = vmul.f32 %v4812, %v3163
          %v4814 = vmul.f32 %v4812, %v3164
          %v4817 = vrot.slane %v4813, 3
          %v4818 = vrot.slane %v4814, 3
          %v4819 = vsel %vm4636, %v4817, %v4818
          %4820 = vrot.lane.b32.xlu0 %v4817, 125
          %v4821 = vpop.permute.xlu0 %4820
          %4822 = vrot.lane.b32.xlu0 %v4819, 125
          %v4823 = vpop.permute.xlu0 %4822
          %4824 = vrot.lane.b32.xlu0 %v4818, 125
          %v4825 = vpop.permute.xlu0 %4824
          %v4829 = vadd.f32 %v4763, %v4821
          %v4830 = vadd.f32 %v4764, %v4823
          %v4831 = vadd.f32 %v4765, %v4825
          %s4832 = sadd.s32 %s3166, 318
          %s4833 = sld [smem:[#allocation16 + %s4832]]
          %v4834 = vstv %s4833
          %v4835 = vmul.f32 %v4834, %v3163
          %v4836 = vmul.f32 %v4834, %v3164
          %v4839 = vrot.slane %v4835, 3
          %v4840 = vrot.slane %v4836, 3
          %v4841 = vsel %vm4636, %v4839, %v4840
          %4842 = vrot.lane.b32.xlu0 %v4839, 125
          %v4843 = vpop.permute.xlu0 %4842
          %4844 = vrot.lane.b32.xlu0 %v4841, 125
          %v4845 = vpop.permute.xlu0 %4844
          %4846 = vrot.lane.b32.xlu0 %v4840, 125
          %v4847 = vpop.permute.xlu0 %4846
          %v4851 = vadd.f32 %v4785, %v4843
          %v4852 = vadd.f32 %v4786, %v4845
          %v4853 = vadd.f32 %v4787, %v4847
          %s4854 = sadd.s32 %s3166, 612
          %s4855 = sld [smem:[#allocation16 + %s4854]]
          %v4856 = vstv %s4855
          %v4857 = vmul.f32 %v4856, %v3163
          %v4858 = vmul.f32 %v4856, %v3164
          %v4861 = vrot.slane %v4857, 3
          %v4862 = vrot.slane %v4858, 3
          %v4863 = vsel %vm4636, %v4861, %v4862
          %4864 = vrot.lane.b32.xlu0 %v4861, 125
          %v4865 = vpop.permute.xlu0 %4864
          %4866 = vrot.lane.b32.xlu0 %v4863, 125
          %v4867 = vpop.permute.xlu0 %4866
          %4868 = vrot.lane.b32.xlu0 %v4862, 125
          %v4869 = vpop.permute.xlu0 %4868
          %v4873 = vadd.f32 %v4807, %v4865
          %v4874 = vadd.f32 %v4808, %v4867
          %v4875 = vadd.f32 %v4809, %v4869
          %s4876 = sadd.s32 %s3166, 25
          %s4877 = sld [smem:[#allocation16 + %s4876]]
          %v4878 = vstv %s4877
          %v4879 = vmul.f32 %v4878, %v3163
          %v4880 = vmul.f32 %v4878, %v3164
          %v4883 = vrot.slane %v4879, 3
          %v4884 = vrot.slane %v4880, 3
          %v4885 = vsel %vm4636, %v4883, %v4884
          %4886 = vrot.lane.b32.xlu0 %v4883, 124
          %v4887 = vpop.permute.xlu0 %4886
          %4888 = vrot.lane.b32.xlu0 %v4885, 124
          %v4889 = vpop.permute.xlu0 %4888
          %4890 = vrot.lane.b32.xlu0 %v4884, 124
          %v4891 = vpop.permute.xlu0 %4890
          %v4895 = vadd.f32 %v4829, %v4887
          %v4896 = vadd.f32 %v4830, %v4889
          %v4897 = vadd.f32 %v4831, %v4891
          %s4898 = sadd.s32 %s3166, 319
          %s4899 = sld [smem:[#allocation16 + %s4898]]
          %v4900 = vstv %s4899
          %v4901 = vmul.f32 %v4900, %v3163
          %v4902 = vmul.f32 %v4900, %v3164
          %v4905 = vrot.slane %v4901, 3
          %v4906 = vrot.slane %v4902, 3
          %v4907 = vsel %vm4636, %v4905, %v4906
          %4908 = vrot.lane.b32.xlu0 %v4905, 124
          %v4909 = vpop.permute.xlu0 %4908
          %4910 = vrot.lane.b32.xlu0 %v4907, 124
          %v4911 = vpop.permute.xlu0 %4910
          %4912 = vrot.lane.b32.xlu0 %v4906, 124
          %v4913 = vpop.permute.xlu0 %4912
          %v4917 = vadd.f32 %v4851, %v4909
          %v4918 = vadd.f32 %v4852, %v4911
          %v4919 = vadd.f32 %v4853, %v4913
          %s4920 = sadd.s32 %s3166, 613
          %s4921 = sld [smem:[#allocation16 + %s4920]]
          %v4922 = vstv %s4921
          %v4923 = vmul.f32 %v4922, %v3163
          %v4924 = vmul.f32 %v4922, %v3164
          %v4927 = vrot.slane %v4923, 3
          %v4928 = vrot.slane %v4924, 3
          %v4929 = vsel %vm4636, %v4927, %v4928
          %4930 = vrot.lane.b32.xlu0 %v4927, 124
          %v4931 = vpop.permute.xlu0 %4930
          %4932 = vrot.lane.b32.xlu0 %v4929, 124
          %v4933 = vpop.permute.xlu0 %4932
          %4934 = vrot.lane.b32.xlu0 %v4928, 124
          %v4935 = vpop.permute.xlu0 %4934
          %v4939 = vadd.f32 %v4873, %v4931
          %v4940 = vadd.f32 %v4874, %v4933
          %v4941 = vadd.f32 %v4875, %v4935
          %s4942 = sadd.s32 %s3166, 26
          %s4943 = sld [smem:[#allocation16 + %s4942]]
          %v4944 = vstv %s4943
          %v4945 = vmul.f32 %v4944, %v3163
          %v4946 = vmul.f32 %v4944, %v3164
          %v4949 = vrot.slane %v4945, 3
          %v4950 = vrot.slane %v4946, 3
          %v4951 = vsel %vm4636, %v4949, %v4950
          %4952 = vrot.lane.b32.xlu0 %v4949, 123
          %v4953 = vpop.permute.xlu0 %4952
          %4954 = vrot.lane.b32.xlu0 %v4951, 123
          %v4955 = vpop.permute.xlu0 %4954
          %4956 = vrot.lane.b32.xlu0 %v4950, 123
          %v4957 = vpop.permute.xlu0 %4956
          %v4961 = vadd.f32 %v4895, %v4953
          %v4962 = vadd.f32 %v4896, %v4955
          %v4963 = vadd.f32 %v4897, %v4957
          %s4964 = sadd.s32 %s3166, 320
          %s4965 = sld [smem:[#allocation16 + %s4964]]
          %v4966 = vstv %s4965
          %v4967 = vmul.f32 %v4966, %v3163
          %v4968 = vmul.f32 %v4966, %v3164
          %v4971 = vrot.slane %v4967, 3
          %v4972 = vrot.slane %v4968, 3
          %v4973 = vsel %vm4636, %v4971, %v4972
          %4974 = vrot.lane.b32.xlu0 %v4971, 123
          %v4975 = vpop.permute.xlu0 %4974
          %4976 = vrot.lane.b32.xlu0 %v4973, 123
          %v4977 = vpop.permute.xlu0 %4976
          %4978 = vrot.lane.b32.xlu0 %v4972, 123
          %v4979 = vpop.permute.xlu0 %4978
          %v4983 = vadd.f32 %v4917, %v4975
          %v4984 = vadd.f32 %v4918, %v4977
          %v4985 = vadd.f32 %v4919, %v4979
          %s4986 = sadd.s32 %s3166, 614
          %s4987 = sld [smem:[#allocation16 + %s4986]]
          %v4988 = vstv %s4987
          %v4989 = vmul.f32 %v4988, %v3163
          %v4990 = vmul.f32 %v4988, %v3164
          %v4993 = vrot.slane %v4989, 3
          %v4994 = vrot.slane %v4990, 3
          %v4995 = vsel %vm4636, %v4993, %v4994
          %4996 = vrot.lane.b32.xlu0 %v4993, 123
          %v4997 = vpop.permute.xlu0 %4996
          %4998 = vrot.lane.b32.xlu0 %v4995, 123
          %v4999 = vpop.permute.xlu0 %4998
          %5000 = vrot.lane.b32.xlu0 %v4994, 123
          %v5001 = vpop.permute.xlu0 %5000
          %v5005 = vadd.f32 %v4939, %v4997
          %v5006 = vadd.f32 %v4940, %v4999
          %v5007 = vadd.f32 %v4941, %v5001
          %s5008 = sadd.s32 %s3166, 27
          %s5009 = sld [smem:[#allocation16 + %s5008]]
          %v5010 = vstv %s5009
          %v5011 = vmul.f32 %v5010, %v3163
          %v5012 = vmul.f32 %v5010, %v3164
          %v5015 = vrot.slane %v5011, 3
          %v5016 = vrot.slane %v5012, 3
          %v5017 = vsel %vm4636, %v5015, %v5016
          %5018 = vrot.lane.b32.xlu0 %v5015, 122
          %v5019 = vpop.permute.xlu0 %5018
          %5020 = vrot.lane.b32.xlu0 %v5017, 122
          %v5021 = vpop.permute.xlu0 %5020
          %5022 = vrot.lane.b32.xlu0 %v5016, 122
          %v5023 = vpop.permute.xlu0 %5022
          %v5027 = vadd.f32 %v4961, %v5019
          %v5028 = vadd.f32 %v4962, %v5021
          %v5029 = vadd.f32 %v4963, %v5023
          %s5030 = sadd.s32 %s3166, 321
          %s5031 = sld [smem:[#allocation16 + %s5030]]
          %v5032 = vstv %s5031
          %v5033 = vmul.f32 %v5032, %v3163
          %v5034 = vmul.f32 %v5032, %v3164
          %v5037 = vrot.slane %v5033, 3
          %v5038 = vrot.slane %v5034, 3
          %v5039 = vsel %vm4636, %v5037, %v5038
          %5040 = vrot.lane.b32.xlu0 %v5037, 122
          %v5041 = vpop.permute.xlu0 %5040
          %5042 = vrot.lane.b32.xlu0 %v5039, 122
          %v5043 = vpop.permute.xlu0 %5042
          %5044 = vrot.lane.b32.xlu0 %v5038, 122
          %v5045 = vpop.permute.xlu0 %5044
          %v5049 = vadd.f32 %v4983, %v5041
          %v5050 = vadd.f32 %v4984, %v5043
          %v5051 = vadd.f32 %v4985, %v5045
          %s5052 = sadd.s32 %s3166, 615
          %s5053 = sld [smem:[#allocation16 + %s5052]]
          %v5054 = vstv %s5053
          %v5055 = vmul.f32 %v5054, %v3163
          %v5056 = vmul.f32 %v5054, %v3164
          %v5059 = vrot.slane %v5055, 3
          %v5060 = vrot.slane %v5056, 3
          %v5061 = vsel %vm4636, %v5059, %v5060
          %5062 = vrot.lane.b32.xlu0 %v5059, 122
          %v5063 = vpop.permute.xlu0 %5062
          %5064 = vrot.lane.b32.xlu0 %v5061, 122
          %v5065 = vpop.permute.xlu0 %5064
          %5066 = vrot.lane.b32.xlu0 %v5060, 122
          %v5067 = vpop.permute.xlu0 %5066
          %v5071 = vadd.f32 %v5005, %v5063
          %v5072 = vadd.f32 %v5006, %v5065
          %v5073 = vadd.f32 %v5007, %v5067
          %s5074 = sadd.s32 %s3166, 28
          %s5075 = sld [smem:[#allocation16 + %s5074]]
          %v5076 = vstv %s5075
          %v5077 = vmul.f32 %v5076, %v3163
          %v5078 = vmul.f32 %v5076, %v3164
          %v5079 = vmul.f32 %v5076, %v3165
          %vm5083 = vcmask 1043456
          %v5084 = vrot.slane %v5077, 4
          %v5085 = vrot.slane %v5078, 4
          %v5086 = vsel %vm5083, %v5084, %v5085
          %v5087 = vrot.slane %v5079, 4
          %v5088 = vsel %vm5083, %v5085, %v5087
          %v5092 = vadd.f32 %v5027, %v5084
          %v5093 = vadd.f32 %v5028, %v5086
          %v5094 = vadd.f32 %v5029, %v5088
          %s5095 = sadd.s32 %s3166, 322
          %s5096 = sld [smem:[#allocation16 + %s5095]]
          %v5097 = vstv %s5096
          %v5098 = vmul.f32 %v5097, %v3163
          %v5099 = vmul.f32 %v5097, %v3164
          %v5100 = vmul.f32 %v5097, %v3165
          %v5104 = vrot.slane %v5098, 4
          %v5105 = vrot.slane %v5099, 4
          %v5106 = vsel %vm5083, %v5104, %v5105
          %v5107 = vrot.slane %v5100, 4
          %v5108 = vsel %vm5083, %v5105, %v5107
          %v5112 = vadd.f32 %v5049, %v5104
          %v5113 = vadd.f32 %v5050, %v5106
          %v5114 = vadd.f32 %v5051, %v5108
          %s5115 = sadd.s32 %s3166, 616
          %s5116 = sld [smem:[#allocation16 + %s5115]]
          %v5117 = vstv %s5116
          %v5118 = vmul.f32 %v5117, %v3163
          %v5119 = vmul.f32 %v5117, %v3164
          %v5120 = vmul.f32 %v5117, %v3165
          %v5124 = vrot.slane %v5118, 4
          %v5125 = vrot.slane %v5119, 4
          %v5126 = vsel %vm5083, %v5124, %v5125
          %v5127 = vrot.slane %v5120, 4
          %v5128 = vsel %vm5083, %v5125, %v5127
          %v5132 = vadd.f32 %v5071, %v5124
          %v5133 = vadd.f32 %v5072, %v5126
          %v5134 = vadd.f32 %v5073, %v5128
          %s5135 = sadd.s32 %s3166, 29
          %s5136 = sld [smem:[#allocation16 + %s5135]]
          %v5137 = vstv %s5136
          %v5138 = vmul.f32 %v5137, %v3163
          %v5139 = vmul.f32 %v5137, %v3164
          %v5140 = vmul.f32 %v5137, %v3165
          %v5144 = vrot.slane %v5138, 4
          %v5145 = vrot.slane %v5139, 4
          %v5146 = vsel %vm5083, %v5144, %v5145
          %v5147 = vrot.slane %v5140, 4
          %v5148 = vsel %vm5083, %v5145, %v5147
          %5149 = vrot.lane.b32.xlu0 %v5144, 127
          %v5150 = vpop.permute.xlu0 %5149
          %5151 = vrot.lane.b32.xlu0 %v5146, 127
          %v5152 = vpop.permute.xlu0 %5151
          %5153 = vrot.lane.b32.xlu0 %v5148, 127
          %v5154 = vpop.permute.xlu0 %5153
          %v5158 = vadd.f32 %v5092, %v5150
          %v5159 = vadd.f32 %v5093, %v5152
          %v5160 = vadd.f32 %v5094, %v5154
          %s5161 = sadd.s32 %s3166, 323
          %s5162 = sld [smem:[#allocation16 + %s5161]]
          %v5163 = vstv %s5162
          %v5164 = vmul.f32 %v5163, %v3163
          %v5165 = vmul.f32 %v5163, %v3164
          %v5166 = vmul.f32 %v5163, %v3165
          %v5170 = vrot.slane %v5164, 4
          %v5171 = vrot.slane %v5165, 4
          %v5172 = vsel %vm5083, %v5170, %v5171
          %v5173 = vrot.slane %v5166, 4
          %v5174 = vsel %vm5083, %v5171, %v5173
          %5175 = vrot.lane.b32.xlu0 %v5170, 127
          %v5176 = vpop.permute.xlu0 %5175
          %5177 = vrot.lane.b32.xlu0 %v5172, 127
          %v5178 = vpop.permute.xlu0 %5177
          %5179 = vrot.lane.b32.xlu0 %v5174, 127
          %v5180 = vpop.permute.xlu0 %5179
          %v5184 = vadd.f32 %v5112, %v5176
          %v5185 = vadd.f32 %v5113, %v5178
          %v5186 = vadd.f32 %v5114, %v5180
          %s5187 = sadd.s32 %s3166, 617
          %s5188 = sld [smem:[#allocation16 + %s5187]]
          %v5189 = vstv %s5188
          %v5190 = vmul.f32 %v5189, %v3163
          %v5191 = vmul.f32 %v5189, %v3164
          %v5192 = vmul.f32 %v5189, %v3165
          %v5196 = vrot.slane %v5190, 4
          %v5197 = vrot.slane %v5191, 4
          %v5198 = vsel %vm5083, %v5196, %v5197
          %v5199 = vrot.slane %v5192, 4
          %v5200 = vsel %vm5083, %v5197, %v5199
          %5201 = vrot.lane.b32.xlu0 %v5196, 127
          %v5202 = vpop.permute.xlu0 %5201
          %5203 = vrot.lane.b32.xlu0 %v5198, 127
          %v5204 = vpop.permute.xlu0 %5203
          %5205 = vrot.lane.b32.xlu0 %v5200, 127
          %v5206 = vpop.permute.xlu0 %5205
          %v5210 = vadd.f32 %v5132, %v5202
          %v5211 = vadd.f32 %v5133, %v5204
          %v5212 = vadd.f32 %v5134, %v5206
          %s5213 = sadd.s32 %s3166, 30
          %s5214 = sld [smem:[#allocation16 + %s5213]]
          %v5215 = vstv %s5214
          %v5216 = vmul.f32 %v5215, %v3163
          %v5217 = vmul.f32 %v5215, %v3164
          %v5218 = vmul.f32 %v5215, %v3165
          %v5222 = vrot.slane %v5216, 4
          %v5223 = vrot.slane %v5217, 4
          %v5224 = vsel %vm5083, %v5222, %v5223
          %v5225 = vrot.slane %v5218, 4
          %v5226 = vsel %vm5083, %v5223, %v5225
          %5227 = vrot.lane.b32.xlu0 %v5222, 126
          %v5228 = vpop.permute.xlu0 %5227
          %5229 = vrot.lane.b32.xlu0 %v5224, 126
          %v5230 = vpop.permute.xlu0 %5229
          %5231 = vrot.lane.b32.xlu0 %v5226, 126
          %v5232 = vpop.permute.xlu0 %5231
          %v5236 = vadd.f32 %v5158, %v5228
          %v5237 = vadd.f32 %v5159, %v5230
          %v5238 = vadd.f32 %v5160, %v5232
          %s5239 = sadd.s32 %s3166, 324
          %s5240 = sld [smem:[#allocation16 + %s5239]]
          %v5241 = vstv %s5240
          %v5242 = vmul.f32 %v5241, %v3163
          %v5243 = vmul.f32 %v5241, %v3164
          %v5244 = vmul.f32 %v5241, %v3165
          %v5248 = vrot.slane %v5242, 4
          %v5249 = vrot.slane %v5243, 4
          %v5250 = vsel %vm5083, %v5248, %v5249
          %v5251 = vrot.slane %v5244, 4
          %v5252 = vsel %vm5083, %v5249, %v5251
          %5253 = vrot.lane.b32.xlu0 %v5248, 126
          %v5254 = vpop.permute.xlu0 %5253
          %5255 = vrot.lane.b32.xlu0 %v5250, 126
          %v5256 = vpop.permute.xlu0 %5255
          %5257 = vrot.lane.b32.xlu0 %v5252, 126
          %v5258 = vpop.permute.xlu0 %5257
          %v5262 = vadd.f32 %v5184, %v5254
          %v5263 = vadd.f32 %v5185, %v5256
          %v5264 = vadd.f32 %v5186, %v5258
          %s5265 = sadd.s32 %s3166, 618
          %s5266 = sld [smem:[#allocation16 + %s5265]]
          %v5267 = vstv %s5266
          %v5268 = vmul.f32 %v5267, %v3163
          %v5269 = vmul.f32 %v5267, %v3164
          %v5270 = vmul.f32 %v5267, %v3165
          %v5274 = vrot.slane %v5268, 4
          %v5275 = vrot.slane %v5269, 4
          %v5276 = vsel %vm5083, %v5274, %v5275
          %v5277 = vrot.slane %v5270, 4
          %v5278 = vsel %vm5083, %v5275, %v5277
          %5279 = vrot.lane.b32.xlu0 %v5274, 126
          %v5280 = vpop.permute.xlu0 %5279
          %5281 = vrot.lane.b32.xlu0 %v5276, 126
          %v5282 = vpop.permute.xlu0 %5281
          %5283 = vrot.lane.b32.xlu0 %v5278, 126
          %v5284 = vpop.permute.xlu0 %5283
          %v5288 = vadd.f32 %v5210, %v5280
          %v5289 = vadd.f32 %v5211, %v5282
          %v5290 = vadd.f32 %v5212, %v5284
          %s5291 = sadd.s32 %s3166, 31
          %s5292 = sld [smem:[#allocation16 + %s5291]]
          %v5293 = vstv %s5292
          %v5294 = vmul.f32 %v5293, %v3163
          %v5295 = vmul.f32 %v5293, %v3164
          %v5296 = vmul.f32 %v5293, %v3165
          %v5300 = vrot.slane %v5294, 4
          %v5301 = vrot.slane %v5295, 4
          %v5302 = vsel %vm5083, %v5300, %v5301
          %v5303 = vrot.slane %v5296, 4
          %v5304 = vsel %vm5083, %v5301, %v5303
          %5305 = vrot.lane.b32.xlu0 %v5300, 125
          %v5306 = vpop.permute.xlu0 %5305
          %5307 = vrot.lane.b32.xlu0 %v5302, 125
          %v5308 = vpop.permute.xlu0 %5307
          %5309 = vrot.lane.b32.xlu0 %v5304, 125
          %v5310 = vpop.permute.xlu0 %5309
          %v5314 = vadd.f32 %v5236, %v5306
          %v5315 = vadd.f32 %v5237, %v5308
          %v5316 = vadd.f32 %v5238, %v5310
          %s5317 = sadd.s32 %s3166, 325
          %s5318 = sld [smem:[#allocation16 + %s5317]]
          %v5319 = vstv %s5318
          %v5320 = vmul.f32 %v5319, %v3163
          %v5321 = vmul.f32 %v5319, %v3164
          %v5322 = vmul.f32 %v5319, %v3165
          %v5326 = vrot.slane %v5320, 4
          %v5327 = vrot.slane %v5321, 4
          %v5328 = vsel %vm5083, %v5326, %v5327
          %v5329 = vrot.slane %v5322, 4
          %v5330 = vsel %vm5083, %v5327, %v5329
          %5331 = vrot.lane.b32.xlu0 %v5326, 125
          %v5332 = vpop.permute.xlu0 %5331
          %5333 = vrot.lane.b32.xlu0 %v5328, 125
          %v5334 = vpop.permute.xlu0 %5333
          %5335 = vrot.lane.b32.xlu0 %v5330, 125
          %v5336 = vpop.permute.xlu0 %5335
          %v5340 = vadd.f32 %v5262, %v5332
          %v5341 = vadd.f32 %v5263, %v5334
          %v5342 = vadd.f32 %v5264, %v5336
          %s5343 = sadd.s32 %s3166, 619
          %s5344 = sld [smem:[#allocation16 + %s5343]]
          %v5345 = vstv %s5344
          %v5346 = vmul.f32 %v5345, %v3163
          %v5347 = vmul.f32 %v5345, %v3164
          %v5348 = vmul.f32 %v5345, %v3165
          %v5352 = vrot.slane %v5346, 4
          %v5353 = vrot.slane %v5347, 4
          %v5354 = vsel %vm5083, %v5352, %v5353
          %v5355 = vrot.slane %v5348, 4
          %v5356 = vsel %vm5083, %v5353, %v5355
          %5357 = vrot.lane.b32.xlu0 %v5352, 125
          %v5358 = vpop.permute.xlu0 %5357
          %5359 = vrot.lane.b32.xlu0 %v5354, 125
          %v5360 = vpop.permute.xlu0 %5359
          %5361 = vrot.lane.b32.xlu0 %v5356, 125
          %v5362 = vpop.permute.xlu0 %5361
          %v5366 = vadd.f32 %v5288, %v5358
          %v5367 = vadd.f32 %v5289, %v5360
          %v5368 = vadd.f32 %v5290, %v5362
          %s5369 = sadd.s32 %s3166, 32
          %s5370 = sld [smem:[#allocation16 + %s5369]]
          %v5371 = vstv %s5370
          %v5372 = vmul.f32 %v5371, %v3163
          %v5373 = vmul.f32 %v5371, %v3164
          %v5374 = vmul.f32 %v5371, %v3165
          %v5378 = vrot.slane %v5372, 4
          %v5379 = vrot.slane %v5373, 4
          %v5380 = vsel %vm5083, %v5378, %v5379
          %v5381 = vrot.slane %v5374, 4
          %v5382 = vsel %vm5083, %v5379, %v5381
          %5383 = vrot.lane.b32.xlu0 %v5378, 124
          %v5384 = vpop.permute.xlu0 %5383
          %5385 = vrot.lane.b32.xlu0 %v5380, 124
          %v5386 = vpop.permute.xlu0 %5385
          %5387 = vrot.lane.b32.xlu0 %v5382, 124
          %v5388 = vpop.permute.xlu0 %5387
          %v5392 = vadd.f32 %v5314, %v5384
          %v5393 = vadd.f32 %v5315, %v5386
          %v5394 = vadd.f32 %v5316, %v5388
          %s5395 = sadd.s32 %s3166, 326
          %s5396 = sld [smem:[#allocation16 + %s5395]]
          %v5397 = vstv %s5396
          %v5398 = vmul.f32 %v5397, %v3163
          %v5399 = vmul.f32 %v5397, %v3164
          %v5400 = vmul.f32 %v5397, %v3165
          %v5404 = vrot.slane %v5398, 4
          %v5405 = vrot.slane %v5399, 4
          %v5406 = vsel %vm5083, %v5404, %v5405
          %v5407 = vrot.slane %v5400, 4
          %v5408 = vsel %vm5083, %v5405, %v5407
          %5409 = vrot.lane.b32.xlu0 %v5404, 124
          %v5410 = vpop.permute.xlu0 %5409
          %5411 = vrot.lane.b32.xlu0 %v5406, 124
          %v5412 = vpop.permute.xlu0 %5411
          %5413 = vrot.lane.b32.xlu0 %v5408, 124
          %v5414 = vpop.permute.xlu0 %5413
          %v5418 = vadd.f32 %v5340, %v5410
          %v5419 = vadd.f32 %v5341, %v5412
          %v5420 = vadd.f32 %v5342, %v5414
          %s5421 = sadd.s32 %s3166, 620
          %s5422 = sld [smem:[#allocation16 + %s5421]]
          %v5423 = vstv %s5422
          %v5424 = vmul.f32 %v5423, %v3163
          %v5425 = vmul.f32 %v5423, %v3164
          %v5426 = vmul.f32 %v5423, %v3165
          %v5430 = vrot.slane %v5424, 4
          %v5431 = vrot.slane %v5425, 4
          %v5432 = vsel %vm5083, %v5430, %v5431
          %v5433 = vrot.slane %v5426, 4
          %v5434 = vsel %vm5083, %v5431, %v5433
          %5435 = vrot.lane.b32.xlu0 %v5430, 124
          %v5436 = vpop.permute.xlu0 %5435
          %5437 = vrot.lane.b32.xlu0 %v5432, 124
          %v5438 = vpop.permute.xlu0 %5437
          %5439 = vrot.lane.b32.xlu0 %v5434, 124
          %v5440 = vpop.permute.xlu0 %5439
          %v5444 = vadd.f32 %v5366, %v5436
          %v5445 = vadd.f32 %v5367, %v5438
          %v5446 = vadd.f32 %v5368, %v5440
          %s5447 = sadd.s32 %s3166, 33
          %s5448 = sld [smem:[#allocation16 + %s5447]]
          %v5449 = vstv %s5448
          %v5450 = vmul.f32 %v5449, %v3163
          %v5451 = vmul.f32 %v5449, %v3164
          %v5452 = vmul.f32 %v5449, %v3165
          %v5456 = vrot.slane %v5450, 4
          %v5457 = vrot.slane %v5451, 4
          %v5458 = vsel %vm5083, %v5456, %v5457
          %v5459 = vrot.slane %v5452, 4
          %v5460 = vsel %vm5083, %v5457, %v5459
          %5461 = vrot.lane.b32.xlu0 %v5456, 123
          %v5462 = vpop.permute.xlu0 %5461
          %5463 = vrot.lane.b32.xlu0 %v5458, 123
          %v5464 = vpop.permute.xlu0 %5463
          %5465 = vrot.lane.b32.xlu0 %v5460, 123
          %v5466 = vpop.permute.xlu0 %5465
          %v5470 = vadd.f32 %v5392, %v5462
          %v5471 = vadd.f32 %v5393, %v5464
          %v5472 = vadd.f32 %v5394, %v5466
          %s5473 = sadd.s32 %s3166, 327
          %s5474 = sld [smem:[#allocation16 + %s5473]]
          %v5475 = vstv %s5474
          %v5476 = vmul.f32 %v5475, %v3163
          %v5477 = vmul.f32 %v5475, %v3164
          %v5478 = vmul.f32 %v5475, %v3165
          %v5482 = vrot.slane %v5476, 4
          %v5483 = vrot.slane %v5477, 4
          %v5484 = vsel %vm5083, %v5482, %v5483
          %v5485 = vrot.slane %v5478, 4
          %v5486 = vsel %vm5083, %v5483, %v5485
          %5487 = vrot.lane.b32.xlu0 %v5482, 123
          %v5488 = vpop.permute.xlu0 %5487
          %5489 = vrot.lane.b32.xlu0 %v5484, 123
          %v5490 = vpop.permute.xlu0 %5489
          %5491 = vrot.lane.b32.xlu0 %v5486, 123
          %v5492 = vpop.permute.xlu0 %5491
          %v5496 = vadd.f32 %v5418, %v5488
          %v5497 = vadd.f32 %v5419, %v5490
          %v5498 = vadd.f32 %v5420, %v5492
          %s5499 = sadd.s32 %s3166, 621
          %s5500 = sld [smem:[#allocation16 + %s5499]]
          %v5501 = vstv %s5500
          %v5502 = vmul.f32 %v5501, %v3163
          %v5503 = vmul.f32 %v5501, %v3164
          %v5504 = vmul.f32 %v5501, %v3165
          %v5508 = vrot.slane %v5502, 4
          %v5509 = vrot.slane %v5503, 4
          %v5510 = vsel %vm5083, %v5508, %v5509
          %v5511 = vrot.slane %v5504, 4
          %v5512 = vsel %vm5083, %v5509, %v5511
          %5513 = vrot.lane.b32.xlu0 %v5508, 123
          %v5514 = vpop.permute.xlu0 %5513
          %5515 = vrot.lane.b32.xlu0 %v5510, 123
          %v5516 = vpop.permute.xlu0 %5515
          %5517 = vrot.lane.b32.xlu0 %v5512, 123
          %v5518 = vpop.permute.xlu0 %5517
          %v5522 = vadd.f32 %v5444, %v5514
          %v5523 = vadd.f32 %v5445, %v5516
          %v5524 = vadd.f32 %v5446, %v5518
          %s5525 = sadd.s32 %s3166, 34
          %s5526 = sld [smem:[#allocation16 + %s5525]]
          %v5527 = vstv %s5526
          %v5528 = vmul.f32 %v5527, %v3163
          %v5529 = vmul.f32 %v5527, %v3164
          %v5530 = vmul.f32 %v5527, %v3165
          %v5534 = vrot.slane %v5528, 4
          %v5535 = vrot.slane %v5529, 4
          %v5536 = vsel %vm5083, %v5534, %v5535
          %v5537 = vrot.slane %v5530, 4
          %v5538 = vsel %vm5083, %v5535, %v5537
          %5539 = vrot.lane.b32.xlu0 %v5534, 122
          %v5540 = vpop.permute.xlu0 %5539
          %5541 = vrot.lane.b32.xlu0 %v5536, 122
          %v5542 = vpop.permute.xlu0 %5541
          %5543 = vrot.lane.b32.xlu0 %v5538, 122
          %v5544 = vpop.permute.xlu0 %5543
          %v5548 = vadd.f32 %v5470, %v5540
          %v5549 = vadd.f32 %v5471, %v5542
          %v5550 = vadd.f32 %v5472, %v5544
          %s5551 = sadd.s32 %s3166, 328
          %s5552 = sld [smem:[#allocation16 + %s5551]]
          %v5553 = vstv %s5552
          %v5554 = vmul.f32 %v5553, %v3163
          %v5555 = vmul.f32 %v5553, %v3164
          %v5556 = vmul.f32 %v5553, %v3165
          %v5560 = vrot.slane %v5554, 4
          %v5561 = vrot.slane %v5555, 4
          %v5562 = vsel %vm5083, %v5560, %v5561
          %v5563 = vrot.slane %v5556, 4
          %v5564 = vsel %vm5083, %v5561, %v5563
          %5565 = vrot.lane.b32.xlu0 %v5560, 122
          %v5566 = vpop.permute.xlu0 %5565
          %5567 = vrot.lane.b32.xlu0 %v5562, 122
          %v5568 = vpop.permute.xlu0 %5567
          %5569 = vrot.lane.b32.xlu0 %v5564, 122
          %v5570 = vpop.permute.xlu0 %5569
          %v5574 = vadd.f32 %v5496, %v5566
          %v5575 = vadd.f32 %v5497, %v5568
          %v5576 = vadd.f32 %v5498, %v5570
          %s5577 = sadd.s32 %s3166, 622
          %s5578 = sld [smem:[#allocation16 + %s5577]]
          %v5579 = vstv %s5578
          %v5580 = vmul.f32 %v5579, %v3163
          %v5581 = vmul.f32 %v5579, %v3164
          %v5582 = vmul.f32 %v5579, %v3165
          %v5586 = vrot.slane %v5580, 4
          %v5587 = vrot.slane %v5581, 4
          %v5588 = vsel %vm5083, %v5586, %v5587
          %v5589 = vrot.slane %v5582, 4
          %v5590 = vsel %vm5083, %v5587, %v5589
          %5591 = vrot.lane.b32.xlu0 %v5586, 122
          %v5592 = vpop.permute.xlu0 %5591
          %5593 = vrot.lane.b32.xlu0 %v5588, 122
          %v5594 = vpop.permute.xlu0 %5593
          %5595 = vrot.lane.b32.xlu0 %v5590, 122
          %v5596 = vpop.permute.xlu0 %5595
          %v5600 = vadd.f32 %v5522, %v5592
          %v5601 = vadd.f32 %v5523, %v5594
          %v5602 = vadd.f32 %v5524, %v5596
          %s5603 = sadd.s32 %s3166, 35
          %s5604 = sld [smem:[#allocation16 + %s5603]]
          %v5605 = vstv %s5604
          %v5606 = vmul.f32 %v5605, %v3163
          %v5607 = vmul.f32 %v5605, %v3164
          %v5608 = vmul.f32 %v5605, %v3165
          %vm5612 = vcmask 1042432
          %v5613 = vrot.slane %v5606, 5
          %v5614 = vrot.slane %v5607, 5
          %v5615 = vsel %vm5612, %v5613, %v5614
          %v5616 = vrot.slane %v5608, 5
          %v5617 = vsel %vm5612, %v5614, %v5616
          %v5621 = vadd.f32 %v5548, %v5613
          %v5622 = vadd.f32 %v5549, %v5615
          %v5623 = vadd.f32 %v5550, %v5617
          %s5624 = sadd.s32 %s3166, 329
          %s5625 = sld [smem:[#allocation16 + %s5624]]
          %v5626 = vstv %s5625
          %v5627 = vmul.f32 %v5626, %v3163
          %v5628 = vmul.f32 %v5626, %v3164
          %v5629 = vmul.f32 %v5626, %v3165
          %v5633 = vrot.slane %v5627, 5
          %v5634 = vrot.slane %v5628, 5
          %v5635 = vsel %vm5612, %v5633, %v5634
          %v5636 = vrot.slane %v5629, 5
          %v5637 = vsel %vm5612, %v5634, %v5636
          %v5641 = vadd.f32 %v5574, %v5633
          %v5642 = vadd.f32 %v5575, %v5635
          %v5643 = vadd.f32 %v5576, %v5637
          %s5644 = sadd.s32 %s3166, 623
          %s5645 = sld [smem:[#allocation16 + %s5644]]
          %v5646 = vstv %s5645
          %v5647 = vmul.f32 %v5646, %v3163
          %v5648 = vmul.f32 %v5646, %v3164
          %v5649 = vmul.f32 %v5646, %v3165
          %v5653 = vrot.slane %v5647, 5
          %v5654 = vrot.slane %v5648, 5
          %v5655 = vsel %vm5612, %v5653, %v5654
          %v5656 = vrot.slane %v5649, 5
          %v5657 = vsel %vm5612, %v5654, %v5656
          %v5661 = vadd.f32 %v5600, %v5653
          %v5662 = vadd.f32 %v5601, %v5655
          %v5663 = vadd.f32 %v5602, %v5657
          %s5664 = sadd.s32 %s3166, 36
          %s5665 = sld [smem:[#allocation16 + %s5664]]
          %v5666 = vstv %s5665
          %v5667 = vmul.f32 %v5666, %v3163
          %v5668 = vmul.f32 %v5666, %v3164
          %v5669 = vmul.f32 %v5666, %v3165
          %v5673 = vrot.slane %v5667, 5
          %v5674 = vrot.slane %v5668, 5
          %v5675 = vsel %vm5612, %v5673, %v5674
          %v5676 = vrot.slane %v5669, 5
          %v5677 = vsel %vm5612, %v5674, %v5676
          %5678 = vrot.lane.b32.xlu0 %v5673, 127
          %v5679 = vpop.permute.xlu0 %5678
          %5680 = vrot.lane.b32.xlu0 %v5675, 127
          %v5681 = vpop.permute.xlu0 %5680
          %5682 = vrot.lane.b32.xlu0 %v5677, 127
          %v5683 = vpop.permute.xlu0 %5682
          %v5687 = vadd.f32 %v5621, %v5679
          %v5688 = vadd.f32 %v5622, %v5681
          %v5689 = vadd.f32 %v5623, %v5683
          %s5690 = sadd.s32 %s3166, 330
          %s5691 = sld [smem:[#allocation16 + %s5690]]
          %v5692 = vstv %s5691
          %v5693 = vmul.f32 %v5692, %v3163
          %v5694 = vmul.f32 %v5692, %v3164
          %v5695 = vmul.f32 %v5692, %v3165
          %v5699 = vrot.slane %v5693, 5
          %v5700 = vrot.slane %v5694, 5
          %v5701 = vsel %vm5612, %v5699, %v5700
          %v5702 = vrot.slane %v5695, 5
          %v5703 = vsel %vm5612, %v5700, %v5702
          %5704 = vrot.lane.b32.xlu0 %v5699, 127
          %v5705 = vpop.permute.xlu0 %5704
          %5706 = vrot.lane.b32.xlu0 %v5701, 127
          %v5707 = vpop.permute.xlu0 %5706
          %5708 = vrot.lane.b32.xlu0 %v5703, 127
          %v5709 = vpop.permute.xlu0 %5708
          %v5713 = vadd.f32 %v5641, %v5705
          %v5714 = vadd.f32 %v5642, %v5707
          %v5715 = vadd.f32 %v5643, %v5709
          %s5716 = sadd.s32 %s3166, 624
          %s5717 = sld [smem:[#allocation16 + %s5716]]
          %v5718 = vstv %s5717
          %v5719 = vmul.f32 %v5718, %v3163
          %v5720 = vmul.f32 %v5718, %v3164
          %v5721 = vmul.f32 %v5718, %v3165
          %v5725 = vrot.slane %v5719, 5
          %v5726 = vrot.slane %v5720, 5
          %v5727 = vsel %vm5612, %v5725, %v5726
          %v5728 = vrot.slane %v5721, 5
          %v5729 = vsel %vm5612, %v5726, %v5728
          %5730 = vrot.lane.b32.xlu0 %v5725, 127
          %v5731 = vpop.permute.xlu0 %5730
          %5732 = vrot.lane.b32.xlu0 %v5727, 127
          %v5733 = vpop.permute.xlu0 %5732
          %5734 = vrot.lane.b32.xlu0 %v5729, 127
          %v5735 = vpop.permute.xlu0 %5734
          %v5739 = vadd.f32 %v5661, %v5731
          %v5740 = vadd.f32 %v5662, %v5733
          %v5741 = vadd.f32 %v5663, %v5735
          %s5742 = sadd.s32 %s3166, 37
          %s5743 = sld [smem:[#allocation16 + %s5742]]
          %v5744 = vstv %s5743
          %v5745 = vmul.f32 %v5744, %v3163
          %v5746 = vmul.f32 %v5744, %v3164
          %v5747 = vmul.f32 %v5744, %v3165
          %v5751 = vrot.slane %v5745, 5
          %v5752 = vrot.slane %v5746, 5
          %v5753 = vsel %vm5612, %v5751, %v5752
          %v5754 = vrot.slane %v5747, 5
          %v5755 = vsel %vm5612, %v5752, %v5754
          %5756 = vrot.lane.b32.xlu0 %v5751, 126
          %v5757 = vpop.permute.xlu0 %5756
          %5758 = vrot.lane.b32.xlu0 %v5753, 126
          %v5759 = vpop.permute.xlu0 %5758
          %5760 = vrot.lane.b32.xlu0 %v5755, 126
          %v5761 = vpop.permute.xlu0 %5760
          %v5765 = vadd.f32 %v5687, %v5757
          %v5766 = vadd.f32 %v5688, %v5759
          %v5767 = vadd.f32 %v5689, %v5761
          %s5768 = sadd.s32 %s3166, 331
          %s5769 = sld [smem:[#allocation16 + %s5768]]
          %v5770 = vstv %s5769
          %v5771 = vmul.f32 %v5770, %v3163
          %v5772 = vmul.f32 %v5770, %v3164
          %v5773 = vmul.f32 %v5770, %v3165
          %v5777 = vrot.slane %v5771, 5
          %v5778 = vrot.slane %v5772, 5
          %v5779 = vsel %vm5612, %v5777, %v5778
          %v5780 = vrot.slane %v5773, 5
          %v5781 = vsel %vm5612, %v5778, %v5780
          %5782 = vrot.lane.b32.xlu0 %v5777, 126
          %v5783 = vpop.permute.xlu0 %5782
          %5784 = vrot.lane.b32.xlu0 %v5779, 126
          %v5785 = vpop.permute.xlu0 %5784
          %5786 = vrot.lane.b32.xlu0 %v5781, 126
          %v5787 = vpop.permute.xlu0 %5786
          %v5791 = vadd.f32 %v5713, %v5783
          %v5792 = vadd.f32 %v5714, %v5785
          %v5793 = vadd.f32 %v5715, %v5787
          %s5794 = sadd.s32 %s3166, 625
          %s5795 = sld [smem:[#allocation16 + %s5794]]
          %v5796 = vstv %s5795
          %v5797 = vmul.f32 %v5796, %v3163
          %v5798 = vmul.f32 %v5796, %v3164
          %v5799 = vmul.f32 %v5796, %v3165
          %v5803 = vrot.slane %v5797, 5
          %v5804 = vrot.slane %v5798, 5
          %v5805 = vsel %vm5612, %v5803, %v5804
          %v5806 = vrot.slane %v5799, 5
          %v5807 = vsel %vm5612, %v5804, %v5806
          %5808 = vrot.lane.b32.xlu0 %v5803, 126
          %v5809 = vpop.permute.xlu0 %5808
          %5810 = vrot.lane.b32.xlu0 %v5805, 126
          %v5811 = vpop.permute.xlu0 %5810
          %5812 = vrot.lane.b32.xlu0 %v5807, 126
          %v5813 = vpop.permute.xlu0 %5812
          %v5817 = vadd.f32 %v5739, %v5809
          %v5818 = vadd.f32 %v5740, %v5811
          %v5819 = vadd.f32 %v5741, %v5813
          %s5820 = sadd.s32 %s3166, 38
          %s5821 = sld [smem:[#allocation16 + %s5820]]
          %v5822 = vstv %s5821
          %v5823 = vmul.f32 %v5822, %v3163
          %v5824 = vmul.f32 %v5822, %v3164
          %v5825 = vmul.f32 %v5822, %v3165
          %v5829 = vrot.slane %v5823, 5
          %v5830 = vrot.slane %v5824, 5
          %v5831 = vsel %vm5612, %v5829, %v5830
          %v5832 = vrot.slane %v5825, 5
          %v5833 = vsel %vm5612, %v5830, %v5832
          %5834 = vrot.lane.b32.xlu0 %v5829, 125
          %v5835 = vpop.permute.xlu0 %5834
          %5836 = vrot.lane.b32.xlu0 %v5831, 125
          %v5837 = vpop.permute.xlu0 %5836
          %5838 = vrot.lane.b32.xlu0 %v5833, 125
          %v5839 = vpop.permute.xlu0 %5838
          %v5843 = vadd.f32 %v5765, %v5835
          %v5844 = vadd.f32 %v5766, %v5837
          %v5845 = vadd.f32 %v5767, %v5839
          %s5846 = sadd.s32 %s3166, 332
          %s5847 = sld [smem:[#allocation16 + %s5846]]
          %v5848 = vstv %s5847
          %v5849 = vmul.f32 %v5848, %v3163
          %v5850 = vmul.f32 %v5848, %v3164
          %v5851 = vmul.f32 %v5848, %v3165
          %v5855 = vrot.slane %v5849, 5
          %v5856 = vrot.slane %v5850, 5
          %v5857 = vsel %vm5612, %v5855, %v5856
          %v5858 = vrot.slane %v5851, 5
          %v5859 = vsel %vm5612, %v5856, %v5858
          %5860 = vrot.lane.b32.xlu0 %v5855, 125
          %v5861 = vpop.permute.xlu0 %5860
          %5862 = vrot.lane.b32.xlu0 %v5857, 125
          %v5863 = vpop.permute.xlu0 %5862
          %5864 = vrot.lane.b32.xlu0 %v5859, 125
          %v5865 = vpop.permute.xlu0 %5864
          %v5869 = vadd.f32 %v5791, %v5861
          %v5870 = vadd.f32 %v5792, %v5863
          %v5871 = vadd.f32 %v5793, %v5865
          %s5872 = sadd.s32 %s3166, 626
          %s5873 = sld [smem:[#allocation16 + %s5872]]
          %v5874 = vstv %s5873
          %v5875 = vmul.f32 %v5874, %v3163
          %v5876 = vmul.f32 %v5874, %v3164
          %v5877 = vmul.f32 %v5874, %v3165
          %v5881 = vrot.slane %v5875, 5
          %v5882 = vrot.slane %v5876, 5
          %v5883 = vsel %vm5612, %v5881, %v5882
          %v5884 = vrot.slane %v5877, 5
          %v5885 = vsel %vm5612, %v5882, %v5884
          %5886 = vrot.lane.b32.xlu0 %v5881, 125
          %v5887 = vpop.permute.xlu0 %5886
          %5888 = vrot.lane.b32.xlu0 %v5883, 125
          %v5889 = vpop.permute.xlu0 %5888
          %5890 = vrot.lane.b32.xlu0 %v5885, 125
          %v5891 = vpop.permute.xlu0 %5890
          %v5895 = vadd.f32 %v5817, %v5887
          %v5896 = vadd.f32 %v5818, %v5889
          %v5897 = vadd.f32 %v5819, %v5891
          %s5898 = sadd.s32 %s3166, 39
          %s5899 = sld [smem:[#allocation16 + %s5898]]
          %v5900 = vstv %s5899
          %v5901 = vmul.f32 %v5900, %v3163
          %v5902 = vmul.f32 %v5900, %v3164
          %v5903 = vmul.f32 %v5900, %v3165
          %v5907 = vrot.slane %v5901, 5
          %v5908 = vrot.slane %v5902, 5
          %v5909 = vsel %vm5612, %v5907, %v5908
          %v5910 = vrot.slane %v5903, 5
          %v5911 = vsel %vm5612, %v5908, %v5910
          %5912 = vrot.lane.b32.xlu0 %v5907, 124
          %v5913 = vpop.permute.xlu0 %5912
          %5914 = vrot.lane.b32.xlu0 %v5909, 124
          %v5915 = vpop.permute.xlu0 %5914
          %5916 = vrot.lane.b32.xlu0 %v5911, 124
          %v5917 = vpop.permute.xlu0 %5916
          %v5921 = vadd.f32 %v5843, %v5913
          %v5922 = vadd.f32 %v5844, %v5915
          %v5923 = vadd.f32 %v5845, %v5917
          %s5924 = sadd.s32 %s3166, 333
          %s5925 = sld [smem:[#allocation16 + %s5924]]
          %v5926 = vstv %s5925
          %v5927 = vmul.f32 %v5926, %v3163
          %v5928 = vmul.f32 %v5926, %v3164
          %v5929 = vmul.f32 %v5926, %v3165
          %v5933 = vrot.slane %v5927, 5
          %v5934 = vrot.slane %v5928, 5
          %v5935 = vsel %vm5612, %v5933, %v5934
          %v5936 = vrot.slane %v5929, 5
          %v5937 = vsel %vm5612, %v5934, %v5936
          %5938 = vrot.lane.b32.xlu0 %v5933, 124
          %v5939 = vpop.permute.xlu0 %5938
          %5940 = vrot.lane.b32.xlu0 %v5935, 124
          %v5941 = vpop.permute.xlu0 %5940
          %5942 = vrot.lane.b32.xlu0 %v5937, 124
          %v5943 = vpop.permute.xlu0 %5942
          %v5947 = vadd.f32 %v5869, %v5939
          %v5948 = vadd.f32 %v5870, %v5941
          %v5949 = vadd.f32 %v5871, %v5943
          %s5950 = sadd.s32 %s3166, 627
          %s5951 = sld [smem:[#allocation16 + %s5950]]
          %v5952 = vstv %s5951
          %v5953 = vmul.f32 %v5952, %v3163
          %v5954 = vmul.f32 %v5952, %v3164
          %v5955 = vmul.f32 %v5952, %v3165
          %v5959 = vrot.slane %v5953, 5
          %v5960 = vrot.slane %v5954, 5
          %v5961 = vsel %vm5612, %v5959, %v5960
          %v5962 = vrot.slane %v5955, 5
          %v5963 = vsel %vm5612, %v5960, %v5962
          %5964 = vrot.lane.b32.xlu0 %v5959, 124
          %v5965 = vpop.permute.xlu0 %5964
          %5966 = vrot.lane.b32.xlu0 %v5961, 124
          %v5967 = vpop.permute.xlu0 %5966
          %5968 = vrot.lane.b32.xlu0 %v5963, 124
          %v5969 = vpop.permute.xlu0 %5968
          %v5973 = vadd.f32 %v5895, %v5965
          %v5974 = vadd.f32 %v5896, %v5967
          %v5975 = vadd.f32 %v5897, %v5969
          %s5976 = sadd.s32 %s3166, 40
          %s5977 = sld [smem:[#allocation16 + %s5976]]
          %v5978 = vstv %s5977
          %v5979 = vmul.f32 %v5978, %v3163
          %v5980 = vmul.f32 %v5978, %v3164
          %v5981 = vmul.f32 %v5978, %v3165
          %v5985 = vrot.slane %v5979, 5
          %v5986 = vrot.slane %v5980, 5
          %v5987 = vsel %vm5612, %v5985, %v5986
          %v5988 = vrot.slane %v5981, 5
          %v5989 = vsel %vm5612, %v5986, %v5988
          %5990 = vrot.lane.b32.xlu0 %v5985, 123
          %v5991 = vpop.permute.xlu0 %5990
          %5992 = vrot.lane.b32.xlu0 %v5987, 123
          %v5993 = vpop.permute.xlu0 %5992
          %5994 = vrot.lane.b32.xlu0 %v5989, 123
          %v5995 = vpop.permute.xlu0 %5994
          %v5999 = vadd.f32 %v5921, %v5991
          %v6000 = vadd.f32 %v5922, %v5993
          %v6001 = vadd.f32 %v5923, %v5995
          %s6002 = sadd.s32 %s3166, 334
          %s6003 = sld [smem:[#allocation16 + %s6002]]
          %v6004 = vstv %s6003
          %v6005 = vmul.f32 %v6004, %v3163
          %v6006 = vmul.f32 %v6004, %v3164
          %v6007 = vmul.f32 %v6004, %v3165
          %v6011 = vrot.slane %v6005, 5
          %v6012 = vrot.slane %v6006, 5
          %v6013 = vsel %vm5612, %v6011, %v6012
          %v6014 = vrot.slane %v6007, 5
          %v6015 = vsel %vm5612, %v6012, %v6014
          %6016 = vrot.lane.b32.xlu0 %v6011, 123
          %v6017 = vpop.permute.xlu0 %6016
          %6018 = vrot.lane.b32.xlu0 %v6013, 123
          %v6019 = vpop.permute.xlu0 %6018
          %6020 = vrot.lane.b32.xlu0 %v6015, 123
          %v6021 = vpop.permute.xlu0 %6020
          %v6025 = vadd.f32 %v5947, %v6017
          %v6026 = vadd.f32 %v5948, %v6019
          %v6027 = vadd.f32 %v5949, %v6021
          %s6028 = sadd.s32 %s3166, 628
          %s6029 = sld [smem:[#allocation16 + %s6028]]
          %v6030 = vstv %s6029
          %v6031 = vmul.f32 %v6030, %v3163
          %v6032 = vmul.f32 %v6030, %v3164
          %v6033 = vmul.f32 %v6030, %v3165
          %v6037 = vrot.slane %v6031, 5
          %v6038 = vrot.slane %v6032, 5
          %v6039 = vsel %vm5612, %v6037, %v6038
          %v6040 = vrot.slane %v6033, 5
          %v6041 = vsel %vm5612, %v6038, %v6040
          %6042 = vrot.lane.b32.xlu0 %v6037, 123
          %v6043 = vpop.permute.xlu0 %6042
          %6044 = vrot.lane.b32.xlu0 %v6039, 123
          %v6045 = vpop.permute.xlu0 %6044
          %6046 = vrot.lane.b32.xlu0 %v6041, 123
          %v6047 = vpop.permute.xlu0 %6046
          %v6051 = vadd.f32 %v5973, %v6043
          %v6052 = vadd.f32 %v5974, %v6045
          %v6053 = vadd.f32 %v5975, %v6047
          %s6054 = sadd.s32 %s3166, 41
          %s6055 = sld [smem:[#allocation16 + %s6054]]
          %v6056 = vstv %s6055
          %v6057 = vmul.f32 %v6056, %v3163
          %v6058 = vmul.f32 %v6056, %v3164
          %v6059 = vmul.f32 %v6056, %v3165
          %v6063 = vrot.slane %v6057, 5
          %v6064 = vrot.slane %v6058, 5
          %v6065 = vsel %vm5612, %v6063, %v6064
          %v6066 = vrot.slane %v6059, 5
          %v6067 = vsel %vm5612, %v6064, %v6066
          %6068 = vrot.lane.b32.xlu0 %v6063, 122
          %v6069 = vpop.permute.xlu0 %6068
          %6070 = vrot.lane.b32.xlu0 %v6065, 122
          %v6071 = vpop.permute.xlu0 %6070
          %6072 = vrot.lane.b32.xlu0 %v6067, 122
          %v6073 = vpop.permute.xlu0 %6072
          %v6077 = vadd.f32 %v5999, %v6069
          %v6078 = vadd.f32 %v6000, %v6071
          %v6079 = vadd.f32 %v6001, %v6073
          %s6080 = sadd.s32 %s3166, 335
          %s6081 = sld [smem:[#allocation16 + %s6080]]
          %v6082 = vstv %s6081
          %v6083 = vmul.f32 %v6082, %v3163
          %v6084 = vmul.f32 %v6082, %v3164
          %v6085 = vmul.f32 %v6082, %v3165
          %v6089 = vrot.slane %v6083, 5
          %v6090 = vrot.slane %v6084, 5
          %v6091 = vsel %vm5612, %v6089, %v6090
          %v6092 = vrot.slane %v6085, 5
          %v6093 = vsel %vm5612, %v6090, %v6092
          %6094 = vrot.lane.b32.xlu0 %v6089, 122
          %v6095 = vpop.permute.xlu0 %6094
          %6096 = vrot.lane.b32.xlu0 %v6091, 122
          %v6097 = vpop.permute.xlu0 %6096
          %6098 = vrot.lane.b32.xlu0 %v6093, 122
          %v6099 = vpop.permute.xlu0 %6098
          %v6103 = vadd.f32 %v6025, %v6095
          %v6104 = vadd.f32 %v6026, %v6097
          %v6105 = vadd.f32 %v6027, %v6099
          %s6106 = sadd.s32 %s3166, 629
          %s6107 = sld [smem:[#allocation16 + %s6106]]
          %v6108 = vstv %s6107
          %v6109 = vmul.f32 %v6108, %v3163
          %v6110 = vmul.f32 %v6108, %v3164
          %v6111 = vmul.f32 %v6108, %v3165
          %v6115 = vrot.slane %v6109, 5
          %v6116 = vrot.slane %v6110, 5
          %v6117 = vsel %vm5612, %v6115, %v6116
          %v6118 = vrot.slane %v6111, 5
          %v6119 = vsel %vm5612, %v6116, %v6118
          %6120 = vrot.lane.b32.xlu0 %v6115, 122
          %v6121 = vpop.permute.xlu0 %6120
          %6122 = vrot.lane.b32.xlu0 %v6117, 122
          %v6123 = vpop.permute.xlu0 %6122
          %6124 = vrot.lane.b32.xlu0 %v6119, 122
          %v6125 = vpop.permute.xlu0 %6124
          %v6129 = vadd.f32 %v6051, %v6121
          %v6130 = vadd.f32 %v6052, %v6123
          %v6131 = vadd.f32 %v6053, %v6125
          %s6132 = sadd.s32 %s3166, 42
          %s6133 = sld [smem:[#allocation16 + %s6132]]
          %v6134 = vstv %s6133
          %v6135 = vmul.f32 %v6134, %v3163
          %v6136 = vmul.f32 %v6134, %v3164
          %v6137 = vmul.f32 %v6134, %v3165
          %vm6141 = vcmask 1041408
          %v6142 = vrot.slane %v6135, 6
          %v6143 = vrot.slane %v6136, 6
          %v6144 = vsel %vm6141, %v6142, %v6143
          %v6145 = vrot.slane %v6137, 6
          %v6146 = vsel %vm6141, %v6143, %v6145
          %v6150 = vadd.f32 %v6077, %v6142
          %v6151 = vadd.f32 %v6078, %v6144
          %v6152 = vadd.f32 %v6079, %v6146
          %s6153 = sadd.s32 %s3166, 336
          %s6154 = sld [smem:[#allocation16 + %s6153]]
          %v6155 = vstv %s6154
          %v6156 = vmul.f32 %v6155, %v3163
          %v6157 = vmul.f32 %v6155, %v3164
          %v6158 = vmul.f32 %v6155, %v3165
          %v6162 = vrot.slane %v6156, 6
          %v6163 = vrot.slane %v6157, 6
          %v6164 = vsel %vm6141, %v6162, %v6163
          %v6165 = vrot.slane %v6158, 6
          %v6166 = vsel %vm6141, %v6163, %v6165
          %v6170 = vadd.f32 %v6103, %v6162
          %v6171 = vadd.f32 %v6104, %v6164
          %v6172 = vadd.f32 %v6105, %v6166
          %s6173 = sadd.s32 %s3166, 630
          %s6174 = sld [smem:[#allocation16 + %s6173]]
          %v6175 = vstv %s6174
          %v6176 = vmul.f32 %v6175, %v3163
          %v6177 = vmul.f32 %v6175, %v3164
          %v6178 = vmul.f32 %v6175, %v3165
          %v6182 = vrot.slane %v6176, 6
          %v6183 = vrot.slane %v6177, 6
          %v6184 = vsel %vm6141, %v6182, %v6183
          %v6185 = vrot.slane %v6178, 6
          %v6186 = vsel %vm6141, %v6183, %v6185
          %v6190 = vadd.f32 %v6129, %v6182
          %v6191 = vadd.f32 %v6130, %v6184
          %v6192 = vadd.f32 %v6131, %v6186
          %s6193 = sadd.s32 %s3166, 43
          %s6194 = sld [smem:[#allocation16 + %s6193]]
          %v6195 = vstv %s6194
          %v6196 = vmul.f32 %v6195, %v3163
          %v6197 = vmul.f32 %v6195, %v3164
          %v6198 = vmul.f32 %v6195, %v3165
          %v6202 = vrot.slane %v6196, 6
          %v6203 = vrot.slane %v6197, 6
          %v6204 = vsel %vm6141, %v6202, %v6203
          %v6205 = vrot.slane %v6198, 6
          %v6206 = vsel %vm6141, %v6203, %v6205
          %6207 = vrot.lane.b32.xlu0 %v6202, 127
          %v6208 = vpop.permute.xlu0 %6207
          %6209 = vrot.lane.b32.xlu0 %v6204, 127
          %v6210 = vpop.permute.xlu0 %6209
          %6211 = vrot.lane.b32.xlu0 %v6206, 127
          %v6212 = vpop.permute.xlu0 %6211
          %v6216 = vadd.f32 %v6150, %v6208
          %v6217 = vadd.f32 %v6151, %v6210
          %v6218 = vadd.f32 %v6152, %v6212
          %s6219 = sadd.s32 %s3166, 337
          %s6220 = sld [smem:[#allocation16 + %s6219]]
          %v6221 = vstv %s6220
          %v6222 = vmul.f32 %v6221, %v3163
          %v6223 = vmul.f32 %v6221, %v3164
          %v6224 = vmul.f32 %v6221, %v3165
          %v6228 = vrot.slane %v6222, 6
          %v6229 = vrot.slane %v6223, 6
          %v6230 = vsel %vm6141, %v6228, %v6229
          %v6231 = vrot.slane %v6224, 6
          %v6232 = vsel %vm6141, %v6229, %v6231
          %6233 = vrot.lane.b32.xlu0 %v6228, 127
          %v6234 = vpop.permute.xlu0 %6233
          %6235 = vrot.lane.b32.xlu0 %v6230, 127
          %v6236 = vpop.permute.xlu0 %6235
          %6237 = vrot.lane.b32.xlu0 %v6232, 127
          %v6238 = vpop.permute.xlu0 %6237
          %v6242 = vadd.f32 %v6170, %v6234
          %v6243 = vadd.f32 %v6171, %v6236
          %v6244 = vadd.f32 %v6172, %v6238
          %s6245 = sadd.s32 %s3166, 631
          %s6246 = sld [smem:[#allocation16 + %s6245]]
          %v6247 = vstv %s6246
          %v6248 = vmul.f32 %v6247, %v3163
          %v6249 = vmul.f32 %v6247, %v3164
          %v6250 = vmul.f32 %v6247, %v3165
          %v6254 = vrot.slane %v6248, 6
          %v6255 = vrot.slane %v6249, 6
          %v6256 = vsel %vm6141, %v6254, %v6255
          %v6257 = vrot.slane %v6250, 6
          %v6258 = vsel %vm6141, %v6255, %v6257
          %6259 = vrot.lane.b32.xlu0 %v6254, 127
          %v6260 = vpop.permute.xlu0 %6259
          %6261 = vrot.lane.b32.xlu0 %v6256, 127
          %v6262 = vpop.permute.xlu0 %6261
          %6263 = vrot.lane.b32.xlu0 %v6258, 127
          %v6264 = vpop.permute.xlu0 %6263
          %v6268 = vadd.f32 %v6190, %v6260
          %v6269 = vadd.f32 %v6191, %v6262
          %v6270 = vadd.f32 %v6192, %v6264
          %s6271 = sadd.s32 %s3166, 44
          %s6272 = sld [smem:[#allocation16 + %s6271]]
          %v6273 = vstv %s6272
          %v6274 = vmul.f32 %v6273, %v3163
          %v6275 = vmul.f32 %v6273, %v3164
          %v6276 = vmul.f32 %v6273, %v3165
          %v6280 = vrot.slane %v6274, 6
          %v6281 = vrot.slane %v6275, 6
          %v6282 = vsel %vm6141, %v6280, %v6281
          %v6283 = vrot.slane %v6276, 6
          %v6284 = vsel %vm6141, %v6281, %v6283
          %6285 = vrot.lane.b32.xlu0 %v6280, 126
          %v6286 = vpop.permute.xlu0 %6285
          %6287 = vrot.lane.b32.xlu0 %v6282, 126
          %v6288 = vpop.permute.xlu0 %6287
          %6289 = vrot.lane.b32.xlu0 %v6284, 126
          %v6290 = vpop.permute.xlu0 %6289
          %v6294 = vadd.f32 %v6216, %v6286
          %v6295 = vadd.f32 %v6217, %v6288
          %v6296 = vadd.f32 %v6218, %v6290
          %s6297 = sadd.s32 %s3166, 338
          %s6298 = sld [smem:[#allocation16 + %s6297]]
          %v6299 = vstv %s6298
          %v6300 = vmul.f32 %v6299, %v3163
          %v6301 = vmul.f32 %v6299, %v3164
          %v6302 = vmul.f32 %v6299, %v3165
          %v6306 = vrot.slane %v6300, 6
          %v6307 = vrot.slane %v6301, 6
          %v6308 = vsel %vm6141, %v6306, %v6307
          %v6309 = vrot.slane %v6302, 6
          %v6310 = vsel %vm6141, %v6307, %v6309
          %6311 = vrot.lane.b32.xlu0 %v6306, 126
          %v6312 = vpop.permute.xlu0 %6311
          %6313 = vrot.lane.b32.xlu0 %v6308, 126
          %v6314 = vpop.permute.xlu0 %6313
          %6315 = vrot.lane.b32.xlu0 %v6310, 126
          %v6316 = vpop.permute.xlu0 %6315
          %v6320 = vadd.f32 %v6242, %v6312
          %v6321 = vadd.f32 %v6243, %v6314
          %v6322 = vadd.f32 %v6244, %v6316
          %s6323 = sadd.s32 %s3166, 632
          %s6324 = sld [smem:[#allocation16 + %s6323]]
          %v6325 = vstv %s6324
          %v6326 = vmul.f32 %v6325, %v3163
          %v6327 = vmul.f32 %v6325, %v3164
          %v6328 = vmul.f32 %v6325, %v3165
          %v6332 = vrot.slane %v6326, 6
          %v6333 = vrot.slane %v6327, 6
          %v6334 = vsel %vm6141, %v6332, %v6333
          %v6335 = vrot.slane %v6328, 6
          %v6336 = vsel %vm6141, %v6333, %v6335
          %6337 = vrot.lane.b32.xlu0 %v6332, 126
          %v6338 = vpop.permute.xlu0 %6337
          %6339 = vrot.lane.b32.xlu0 %v6334, 126
          %v6340 = vpop.permute.xlu0 %6339
          %6341 = vrot.lane.b32.xlu0 %v6336, 126
          %v6342 = vpop.permute.xlu0 %6341
          %v6346 = vadd.f32 %v6268, %v6338
          %v6347 = vadd.f32 %v6269, %v6340
          %v6348 = vadd.f32 %v6270, %v6342
          %s6349 = sadd.s32 %s3166, 45
          %s6350 = sld [smem:[#allocation16 + %s6349]]
          %v6351 = vstv %s6350
          %v6352 = vmul.f32 %v6351, %v3163
          %v6353 = vmul.f32 %v6351, %v3164
          %v6354 = vmul.f32 %v6351, %v3165
          %v6358 = vrot.slane %v6352, 6
          %v6359 = vrot.slane %v6353, 6
          %v6360 = vsel %vm6141, %v6358, %v6359
          %v6361 = vrot.slane %v6354, 6
          %v6362 = vsel %vm6141, %v6359, %v6361
          %6363 = vrot.lane.b32.xlu0 %v6358, 125
          %v6364 = vpop.permute.xlu0 %6363
          %6365 = vrot.lane.b32.xlu0 %v6360, 125
          %v6366 = vpop.permute.xlu0 %6365
          %6367 = vrot.lane.b32.xlu0 %v6362, 125
          %v6368 = vpop.permute.xlu0 %6367
          %v6372 = vadd.f32 %v6294, %v6364
          %v6373 = vadd.f32 %v6295, %v6366
          %v6374 = vadd.f32 %v6296, %v6368
          %s6375 = sadd.s32 %s3166, 339
          %s6376 = sld [smem:[#allocation16 + %s6375]]
          %v6377 = vstv %s6376
          %v6378 = vmul.f32 %v6377, %v3163
          %v6379 = vmul.f32 %v6377, %v3164
          %v6380 = vmul.f32 %v6377, %v3165
          %v6384 = vrot.slane %v6378, 6
          %v6385 = vrot.slane %v6379, 6
          %v6386 = vsel %vm6141, %v6384, %v6385
          %v6387 = vrot.slane %v6380, 6
          %v6388 = vsel %vm6141, %v6385, %v6387
          %6389 = vrot.lane.b32.xlu0 %v6384, 125
          %v6390 = vpop.permute.xlu0 %6389
          %6391 = vrot.lane.b32.xlu0 %v6386, 125
          %v6392 = vpop.permute.xlu0 %6391
          %6393 = vrot.lane.b32.xlu0 %v6388, 125
          %v6394 = vpop.permute.xlu0 %6393
          %v6398 = vadd.f32 %v6320, %v6390
          %v6399 = vadd.f32 %v6321, %v6392
          %v6400 = vadd.f32 %v6322, %v6394
          %s6401 = sadd.s32 %s3166, 633
          %s6402 = sld [smem:[#allocation16 + %s6401]]
          %v6403 = vstv %s6402
          %v6404 = vmul.f32 %v6403, %v3163
          %v6405 = vmul.f32 %v6403, %v3164
          %v6406 = vmul.f32 %v6403, %v3165
          %v6410 = vrot.slane %v6404, 6
          %v6411 = vrot.slane %v6405, 6
          %v6412 = vsel %vm6141, %v6410, %v6411
          %v6413 = vrot.slane %v6406, 6
          %v6414 = vsel %vm6141, %v6411, %v6413
          %6415 = vrot.lane.b32.xlu0 %v6410, 125
          %v6416 = vpop.permute.xlu0 %6415
          %6417 = vrot.lane.b32.xlu0 %v6412, 125
          %v6418 = vpop.permute.xlu0 %6417
          %6419 = vrot.lane.b32.xlu0 %v6414, 125
          %v6420 = vpop.permute.xlu0 %6419
          %v6424 = vadd.f32 %v6346, %v6416
          %v6425 = vadd.f32 %v6347, %v6418
          %v6426 = vadd.f32 %v6348, %v6420
          %s6427 = sadd.s32 %s3166, 46
          %s6428 = sld [smem:[#allocation16 + %s6427]]
          %v6429 = vstv %s6428
          %v6430 = vmul.f32 %v6429, %v3163
          %v6431 = vmul.f32 %v6429, %v3164
          %v6432 = vmul.f32 %v6429, %v3165
          %v6436 = vrot.slane %v6430, 6
          %v6437 = vrot.slane %v6431, 6
          %v6438 = vsel %vm6141, %v6436, %v6437
          %v6439 = vrot.slane %v6432, 6
          %v6440 = vsel %vm6141, %v6437, %v6439
          %6441 = vrot.lane.b32.xlu0 %v6436, 124
          %v6442 = vpop.permute.xlu0 %6441
          %6443 = vrot.lane.b32.xlu0 %v6438, 124
          %v6444 = vpop.permute.xlu0 %6443
          %6445 = vrot.lane.b32.xlu0 %v6440, 124
          %v6446 = vpop.permute.xlu0 %6445
          %v6450 = vadd.f32 %v6372, %v6442
          %v6451 = vadd.f32 %v6373, %v6444
          %v6452 = vadd.f32 %v6374, %v6446
          %s6453 = sadd.s32 %s3166, 340
          %s6454 = sld [smem:[#allocation16 + %s6453]]
          %v6455 = vstv %s6454
          %v6456 = vmul.f32 %v6455, %v3163
          %v6457 = vmul.f32 %v6455, %v3164
          %v6458 = vmul.f32 %v6455, %v3165
          %v6462 = vrot.slane %v6456, 6
          %v6463 = vrot.slane %v6457, 6
          %v6464 = vsel %vm6141, %v6462, %v6463
          %v6465 = vrot.slane %v6458, 6
          %v6466 = vsel %vm6141, %v6463, %v6465
          %6467 = vrot.lane.b32.xlu0 %v6462, 124
          %v6468 = vpop.permute.xlu0 %6467
          %6469 = vrot.lane.b32.xlu0 %v6464, 124
          %v6470 = vpop.permute.xlu0 %6469
          %6471 = vrot.lane.b32.xlu0 %v6466, 124
          %v6472 = vpop.permute.xlu0 %6471
          %v6476 = vadd.f32 %v6398, %v6468
          %v6477 = vadd.f32 %v6399, %v6470
          %v6478 = vadd.f32 %v6400, %v6472
          %s6479 = sadd.s32 %s3166, 634
          %s6480 = sld [smem:[#allocation16 + %s6479]]
          %v6481 = vstv %s6480
          %v6482 = vmul.f32 %v6481, %v3163
          %v6483 = vmul.f32 %v6481, %v3164
          %v6484 = vmul.f32 %v6481, %v3165
          %v6488 = vrot.slane %v6482, 6
          %v6489 = vrot.slane %v6483, 6
          %v6490 = vsel %vm6141, %v6488, %v6489
          %v6491 = vrot.slane %v6484, 6
          %v6492 = vsel %vm6141, %v6489, %v6491
          %6493 = vrot.lane.b32.xlu0 %v6488, 124
          %v6494 = vpop.permute.xlu0 %6493
          %6495 = vrot.lane.b32.xlu0 %v6490, 124
          %v6496 = vpop.permute.xlu0 %6495
          %6497 = vrot.lane.b32.xlu0 %v6492, 124
          %v6498 = vpop.permute.xlu0 %6497
          %v6502 = vadd.f32 %v6424, %v6494
          %v6503 = vadd.f32 %v6425, %v6496
          %v6504 = vadd.f32 %v6426, %v6498
          %s6505 = sadd.s32 %s3166, 47
          %s6506 = sld [smem:[#allocation16 + %s6505]]
          %v6507 = vstv %s6506
          %v6508 = vmul.f32 %v6507, %v3163
          %v6509 = vmul.f32 %v6507, %v3164
          %v6510 = vmul.f32 %v6507, %v3165
          %v6514 = vrot.slane %v6508, 6
          %v6515 = vrot.slane %v6509, 6
          %v6516 = vsel %vm6141, %v6514, %v6515
          %v6517 = vrot.slane %v6510, 6
          %v6518 = vsel %vm6141, %v6515, %v6517
          %6519 = vrot.lane.b32.xlu0 %v6514, 123
          %v6520 = vpop.permute.xlu0 %6519
          %6521 = vrot.lane.b32.xlu0 %v6516, 123
          %v6522 = vpop.permute.xlu0 %6521
          %6523 = vrot.lane.b32.xlu0 %v6518, 123
          %v6524 = vpop.permute.xlu0 %6523
          %v6528 = vadd.f32 %v6450, %v6520
          %v6529 = vadd.f32 %v6451, %v6522
          %v6530 = vadd.f32 %v6452, %v6524
          %s6531 = sadd.s32 %s3166, 341
          %s6532 = sld [smem:[#allocation16 + %s6531]]
          %v6533 = vstv %s6532
          %v6534 = vmul.f32 %v6533, %v3163
          %v6535 = vmul.f32 %v6533, %v3164
          %v6536 = vmul.f32 %v6533, %v3165
          %v6540 = vrot.slane %v6534, 6
          %v6541 = vrot.slane %v6535, 6
          %v6542 = vsel %vm6141, %v6540, %v6541
          %v6543 = vrot.slane %v6536, 6
          %v6544 = vsel %vm6141, %v6541, %v6543
          %6545 = vrot.lane.b32.xlu0 %v6540, 123
          %v6546 = vpop.permute.xlu0 %6545
          %6547 = vrot.lane.b32.xlu0 %v6542, 123
          %v6548 = vpop.permute.xlu0 %6547
          %6549 = vrot.lane.b32.xlu0 %v6544, 123
          %v6550 = vpop.permute.xlu0 %6549
          %v6554 = vadd.f32 %v6476, %v6546
          %v6555 = vadd.f32 %v6477, %v6548
          %v6556 = vadd.f32 %v6478, %v6550
          %s6557 = sadd.s32 %s3166, 635
          %s6558 = sld [smem:[#allocation16 + %s6557]]
          %v6559 = vstv %s6558
          %v6560 = vmul.f32 %v6559, %v3163
          %v6561 = vmul.f32 %v6559, %v3164
          %v6562 = vmul.f32 %v6559, %v3165
          %v6566 = vrot.slane %v6560, 6
          %v6567 = vrot.slane %v6561, 6
          %v6568 = vsel %vm6141, %v6566, %v6567
          %v6569 = vrot.slane %v6562, 6
          %v6570 = vsel %vm6141, %v6567, %v6569
          %6571 = vrot.lane.b32.xlu0 %v6566, 123
          %v6572 = vpop.permute.xlu0 %6571
          %6573 = vrot.lane.b32.xlu0 %v6568, 123
          %v6574 = vpop.permute.xlu0 %6573
          %6575 = vrot.lane.b32.xlu0 %v6570, 123
          %v6576 = vpop.permute.xlu0 %6575
          %v6580 = vadd.f32 %v6502, %v6572
          %v6581 = vadd.f32 %v6503, %v6574
          %v6582 = vadd.f32 %v6504, %v6576
          %s6583 = sadd.s32 %s3166, 48
          %s6584 = sld [smem:[#allocation16 + %s6583]]
          %v6585 = vstv %s6584
          %v6586 = vmul.f32 %v6585, %v3163
          %v6587 = vmul.f32 %v6585, %v3164
          %v6588 = vmul.f32 %v6585, %v3165
          %v6592 = vrot.slane %v6586, 6
          %v6593 = vrot.slane %v6587, 6
          %v6594 = vsel %vm6141, %v6592, %v6593
          %v6595 = vrot.slane %v6588, 6
          %v6596 = vsel %vm6141, %v6593, %v6595
          %6597 = vrot.lane.b32.xlu0 %v6592, 122
          %v6598 = vpop.permute.xlu0 %6597
          %6599 = vrot.lane.b32.xlu0 %v6594, 122
          %v6600 = vpop.permute.xlu0 %6599
          %6601 = vrot.lane.b32.xlu0 %v6596, 122
          %v6602 = vpop.permute.xlu0 %6601
          %v6606 = vadd.f32 %v6528, %v6598
          %v6607 = vadd.f32 %v6529, %v6600
          %v6608 = vadd.f32 %v6530, %v6602
          %s6609 = sadd.s32 %s3166, 342
          %s6610 = sld [smem:[#allocation16 + %s6609]]
          %v6611 = vstv %s6610
          %v6612 = vmul.f32 %v6611, %v3163
          %v6613 = vmul.f32 %v6611, %v3164
          %v6614 = vmul.f32 %v6611, %v3165
          %v6618 = vrot.slane %v6612, 6
          %v6619 = vrot.slane %v6613, 6
          %v6620 = vsel %vm6141, %v6618, %v6619
          %v6621 = vrot.slane %v6614, 6
          %v6622 = vsel %vm6141, %v6619, %v6621
          %6623 = vrot.lane.b32.xlu0 %v6618, 122
          %v6624 = vpop.permute.xlu0 %6623
          %6625 = vrot.lane.b32.xlu0 %v6620, 122
          %v6626 = vpop.permute.xlu0 %6625
          %6627 = vrot.lane.b32.xlu0 %v6622, 122
          %v6628 = vpop.permute.xlu0 %6627
          %v6632 = vadd.f32 %v6554, %v6624
          %v6633 = vadd.f32 %v6555, %v6626
          %v6634 = vadd.f32 %v6556, %v6628
          %s6635 = sadd.s32 %s3166, 636
          %s6636 = sld [smem:[#allocation16 + %s6635]]
          %v6637 = vstv %s6636
          %v6638 = vmul.f32 %v6637, %v3163
          %v6639 = vmul.f32 %v6637, %v3164
          %v6640 = vmul.f32 %v6637, %v3165
          %v6644 = vrot.slane %v6638, 6
          %v6645 = vrot.slane %v6639, 6
          %v6646 = vsel %vm6141, %v6644, %v6645
          %v6647 = vrot.slane %v6640, 6
          %v6648 = vsel %vm6141, %v6645, %v6647
          %6649 = vrot.lane.b32.xlu0 %v6644, 122
          %v6650 = vpop.permute.xlu0 %6649
          %6651 = vrot.lane.b32.xlu0 %v6646, 122
          %v6652 = vpop.permute.xlu0 %6651
          %6653 = vrot.lane.b32.xlu0 %v6648, 122
          %v6654 = vpop.permute.xlu0 %6653
          %v6658 = vadd.f32 %v6580, %v6650
          %v6659 = vadd.f32 %v6581, %v6652
          %v6660 = vadd.f32 %v6582, %v6654
        $region127: #{tpu_custom_call.1} parent=63 // loop_footer
          %s3149 = sadd.s32 1, %s3145
        $region128: #{tpu_custom_call.1} parent=63 // loop_footer_branch
          %3144 = sbr.rel target = $region124
        $region129: #{tpu_custom_call.1} parent=63 // loop_exit
          _
        %v6661 = vmax.f32 %v3150, 0.0
        %v6662 = vmax.f32 %v3151, 0.0
        %v6663 = vmax.f32 %v3152, 0.0
        %v6664 = vmax.f32 %v3153, 0.0
        %v6665 = vmax.f32 %v3154, 0.0
        %v6666 = vmax.f32 %v3155, 0.0
        %v6667 = vmax.f32 %v3156, 0.0
        %v6668 = vmax.f32 %v3157, 0.0
        %v6669 = vmax.f32 %v3158, 0.0
        %6673 = vrot.lane.b32.xlu0 %v6661, 3
        %v6674 = vpop.permute.xlu0 %6673
        %6675 = vrot.lane.b32.xlu0 %v6662, 3
        %v6676 = vpop.permute.xlu0 %6675
        %6677 = vrot.lane.b32.xlu0 %v6663, 3
        %v6678 = vpop.permute.xlu0 %6677
        %s6682 = scalar_lea.vmem [#allocation2], 288
        %vm6683 = vcmask 154653
        %6684 = vst.msk [vmem:[%s6682 + $0x3] sm:$0xe0] %vm6683, %v6674
        %6685 = vst.msk [vmem:[%s6682 + $0xb] sm:$0xff] %vm679, %v6676
        %vm6686 = vcmask 151576
        %6687 = vst.msk [vmem:[%s6682 + $0x13] sm:$0x1f] %vm6686, %v6678
        %6691 = vrot.lane.b32.xlu0 %v6664, 3
        %v6692 = vpop.permute.xlu0 %6691
        %6693 = vrot.lane.b32.xlu0 %v6665, 3
        %v6694 = vpop.permute.xlu0 %6693
        %6695 = vrot.lane.b32.xlu0 %v6666, 3
        %v6696 = vpop.permute.xlu0 %6695
        %s6700 = scalar_lea.vmem [#allocation2], 320
        %6701 = vst.msk [vmem:[%s6700 + $0x3] sm:$0xe0] %vm6683, %v6692
        %6702 = vst.msk [vmem:[%s6700 + $0xb] sm:$0xff] %vm679, %v6694
        %6703 = vst.msk [vmem:[%s6700 + $0x13] sm:$0x1f] %vm6686, %v6696
        %6707 = vrot.lane.b32.xlu0 %v6667, 3
        %v6708 = vpop.permute.xlu0 %6707
        %6709 = vrot.lane.b32.xlu0 %v6668, 3
        %v6710 = vpop.permute.xlu0 %6709
        %6711 = vrot.lane.b32.xlu0 %v6669, 3
        %v6712 = vpop.permute.xlu0 %6711
        %s6716 = scalar_lea.vmem [#allocation2], 352
        %6717 = vst.msk [vmem:[%s6716 + $0x3] sm:$0xe0] %vm6683, %v6708
        %6718 = vst.msk [vmem:[%s6716 + $0xb] sm:$0xff] %vm679, %v6710
        %6719 = vst.msk [vmem:[%s6716 + $0x13] sm:$0x1f] %vm6686, %v6712
        %s6720 = sld [smem:[#allocation21]]
        %v6721 = vstv %s6720
        %s6722 = sld [smem:[#allocation21 + $0x1]]
        %v6723 = vstv %s6722
        %s6724 = sld [smem:[#allocation21 + $0x2]]
        %v6725 = vstv %s6724
        loop: start=0, step=1, limit=12
        $region130: #{tpu_custom_call.1} parent=63 // loop_pre_header
          _
        $region131: #{tpu_custom_call.1} parent=63 // loop_header
          %s6727 = sphi 0, %s6731
          %p6728 = scmp.ge.s32.totalorder %s6727, 12
          %v6732 = vphi %v6721, %v7243
          %v6733 = vphi %v6721, %v7244
          %v6734 = vphi %v6721, %v7245
          %v6735 = vphi %v6723, %v7269
          %v6736 = vphi %v6723, %v7270
          %v6737 = vphi %v6723, %v7271
          %v6738 = vphi %v6725, %v7295
          %v6739 = vphi %v6725, %v7296
          %v6740 = vphi %v6725, %v7297
        $region132: #{tpu_custom_call.1} parent=63 // loop_header_branch
          %6730 = sbr.rel (%p6728) target = $region136
        $region133: #{tpu_custom_call.1} parent=63 // loop_body
          %s6741 = smul.u32 %s6727, 32
          %s6742 = scalar_lea.vmem [#allocation2], %s6741
          %v6743 = vld [vmem:[%s6742] sm:$0xff]
          %v6744 = vld [vmem:[%s6742 + $0x8] sm:$0xff]
          %v6745 = vld [vmem:[%s6742 + $0x10] sm:$0xff]
          %v6746 = vld [vmem:[%s6742 + $0x18] sm:$0x7]
          %s6747 = smul.u32 %s6727, 9
          %s6748 = sld [smem:[#allocation20 + %s6747]]
          %v6749 = vstv %s6748
          %v6750 = vmul.f32 %v6749, %v6743
          %v6751 = vmul.f32 %v6749, %v6744
          %v6752 = vmul.f32 %v6749, %v6745
          %v6753 = vadd.f32 %v6732, %v6750
          %v6754 = vadd.f32 %v6733, %v6751
          %v6755 = vadd.f32 %v6734, %v6752
          %s6756 = sadd.s32 %s6747, 108
          %s6757 = sld [smem:[#allocation20 + %s6756]]
          %v6758 = vstv %s6757
          %v6759 = vmul.f32 %v6758, %v6743
          %v6760 = vmul.f32 %v6758, %v6744
          %v6761 = vmul.f32 %v6758, %v6745
          %v6762 = vadd.f32 %v6735, %v6759
          %v6763 = vadd.f32 %v6736, %v6760
          %v6764 = vadd.f32 %v6737, %v6761
          %s6765 = sadd.s32 %s6747, 216
          %s6766 = sld [smem:[#allocation20 + %s6765]]
          %v6767 = vstv %s6766
          %v6768 = vmul.f32 %v6767, %v6743
          %v6769 = vmul.f32 %v6767, %v6744
          %v6770 = vmul.f32 %v6767, %v6745
          %v6771 = vadd.f32 %v6738, %v6768
          %v6772 = vadd.f32 %v6739, %v6769
          %v6773 = vadd.f32 %v6740, %v6770
          %s6774 = sadd.s32 %s6747, 1
          %s6775 = sld [smem:[#allocation20 + %s6774]]
          %v6776 = vstv %s6775
          %v6777 = vmul.f32 %v6776, %v6743
          %v6778 = vmul.f32 %v6776, %v6744
          %v6779 = vmul.f32 %v6776, %v6745
          %6783 = vrot.lane.b32.xlu0 %v6777, 127
          %v6784 = vpop.permute.xlu0 %6783
          %6785 = vrot.lane.b32.xlu0 %v6778, 127
          %v6786 = vpop.permute.xlu0 %6785
          %6787 = vrot.lane.b32.xlu0 %v6779, 127
          %v6788 = vpop.permute.xlu0 %6787
          %v6792 = vadd.f32 %v6753, %v6784
          %v6793 = vadd.f32 %v6754, %v6786
          %v6794 = vadd.f32 %v6755, %v6788
          %s6795 = sadd.s32 %s6747, 109
          %s6796 = sld [smem:[#allocation20 + %s6795]]
          %v6797 = vstv %s6796
          %v6798 = vmul.f32 %v6797, %v6743
          %v6799 = vmul.f32 %v6797, %v6744
          %v6800 = vmul.f32 %v6797, %v6745
          %6804 = vrot.lane.b32.xlu0 %v6798, 127
          %v6805 = vpop.permute.xlu0 %6804
          %6806 = vrot.lane.b32.xlu0 %v6799, 127
          %v6807 = vpop.permute.xlu0 %6806
          %6808 = vrot.lane.b32.xlu0 %v6800, 127
          %v6809 = vpop.permute.xlu0 %6808
          %v6813 = vadd.f32 %v6762, %v6805
          %v6814 = vadd.f32 %v6763, %v6807
          %v6815 = vadd.f32 %v6764, %v6809
          %s6816 = sadd.s32 %s6747, 217
          %s6817 = sld [smem:[#allocation20 + %s6816]]
          %v6818 = vstv %s6817
          %v6819 = vmul.f32 %v6818, %v6743
          %v6820 = vmul.f32 %v6818, %v6744
          %v6821 = vmul.f32 %v6818, %v6745
          %6825 = vrot.lane.b32.xlu0 %v6819, 127
          %v6826 = vpop.permute.xlu0 %6825
          %6827 = vrot.lane.b32.xlu0 %v6820, 127
          %v6828 = vpop.permute.xlu0 %6827
          %6829 = vrot.lane.b32.xlu0 %v6821, 127
          %v6830 = vpop.permute.xlu0 %6829
          %v6834 = vadd.f32 %v6771, %v6826
          %v6835 = vadd.f32 %v6772, %v6828
          %v6836 = vadd.f32 %v6773, %v6830
          %s6837 = sadd.s32 %s6747, 2
          %s6838 = sld [smem:[#allocation20 + %s6837]]
          %v6839 = vstv %s6838
          %v6840 = vmul.f32 %v6839, %v6743
          %v6841 = vmul.f32 %v6839, %v6744
          %v6842 = vmul.f32 %v6839, %v6745
          %6846 = vrot.lane.b32.xlu0 %v6840, 126
          %v6847 = vpop.permute.xlu0 %6846
          %6848 = vrot.lane.b32.xlu0 %v6841, 126
          %v6849 = vpop.permute.xlu0 %6848
          %6850 = vrot.lane.b32.xlu0 %v6842, 126
          %v6851 = vpop.permute.xlu0 %6850
          %v6855 = vadd.f32 %v6792, %v6847
          %v6856 = vadd.f32 %v6793, %v6849
          %v6857 = vadd.f32 %v6794, %v6851
          %s6858 = sadd.s32 %s6747, 110
          %s6859 = sld [smem:[#allocation20 + %s6858]]
          %v6860 = vstv %s6859
          %v6861 = vmul.f32 %v6860, %v6743
          %v6862 = vmul.f32 %v6860, %v6744
          %v6863 = vmul.f32 %v6860, %v6745
          %6867 = vrot.lane.b32.xlu0 %v6861, 126
          %v6868 = vpop.permute.xlu0 %6867
          %6869 = vrot.lane.b32.xlu0 %v6862, 126
          %v6870 = vpop.permute.xlu0 %6869
          %6871 = vrot.lane.b32.xlu0 %v6863, 126
          %v6872 = vpop.permute.xlu0 %6871
          %v6876 = vadd.f32 %v6813, %v6868
          %v6877 = vadd.f32 %v6814, %v6870
          %v6878 = vadd.f32 %v6815, %v6872
          %s6879 = sadd.s32 %s6747, 218
          %s6880 = sld [smem:[#allocation20 + %s6879]]
          %v6881 = vstv %s6880
          %v6882 = vmul.f32 %v6881, %v6743
          %v6883 = vmul.f32 %v6881, %v6744
          %v6884 = vmul.f32 %v6881, %v6745
          %6888 = vrot.lane.b32.xlu0 %v6882, 126
          %v6889 = vpop.permute.xlu0 %6888
          %6890 = vrot.lane.b32.xlu0 %v6883, 126
          %v6891 = vpop.permute.xlu0 %6890
          %6892 = vrot.lane.b32.xlu0 %v6884, 126
          %v6893 = vpop.permute.xlu0 %6892
          %v6897 = vadd.f32 %v6834, %v6889
          %v6898 = vadd.f32 %v6835, %v6891
          %v6899 = vadd.f32 %v6836, %v6893
          %s6900 = sadd.s32 %s6747, 3
          %s6901 = sld [smem:[#allocation20 + %s6900]]
          %v6902 = vstv %s6901
          %v6903 = vmul.f32 %v6902, %v6744
          %v6904 = vmul.f32 %v6902, %v6745
          %vm6907 = vcmask 1046528
          %v6908 = vrot.slane %v6903, 1
          %v6909 = vrot.slane %v6904, 1
          %v6910 = vsel %vm6907, %v6908, %v6909
          %v6914 = vadd.f32 %v6855, %v6908
          %v6915 = vadd.f32 %v6856, %v6910
          %v6916 = vadd.f32 %v6857, %v6909
          %s6917 = sadd.s32 %s6747, 111
          %s6918 = sld [smem:[#allocation20 + %s6917]]
          %v6919 = vstv %s6918
          %v6920 = vmul.f32 %v6919, %v6744
          %v6921 = vmul.f32 %v6919, %v6745
          %v6924 = vrot.slane %v6920, 1
          %v6925 = vrot.slane %v6921, 1
          %v6926 = vsel %vm6907, %v6924, %v6925
          %v6930 = vadd.f32 %v6876, %v6924
          %v6931 = vadd.f32 %v6877, %v6926
          %v6932 = vadd.f32 %v6878, %v6925
          %s6933 = sadd.s32 %s6747, 219
          %s6934 = sld [smem:[#allocation20 + %s6933]]
          %v6935 = vstv %s6934
          %v6936 = vmul.f32 %v6935, %v6744
          %v6937 = vmul.f32 %v6935, %v6745
          %v6940 = vrot.slane %v6936, 1
          %v6941 = vrot.slane %v6937, 1
          %v6942 = vsel %vm6907, %v6940, %v6941
          %v6946 = vadd.f32 %v6897, %v6940
          %v6947 = vadd.f32 %v6898, %v6942
          %v6948 = vadd.f32 %v6899, %v6941
          %s6949 = sadd.s32 %s6747, 4
          %s6950 = sld [smem:[#allocation20 + %s6949]]
          %v6951 = vstv %s6950
          %v6952 = vmul.f32 %v6951, %v6744
          %v6953 = vmul.f32 %v6951, %v6745
          %v6956 = vrot.slane %v6952, 1
          %v6957 = vrot.slane %v6953, 1
          %v6958 = vsel %vm6907, %v6956, %v6957
          %6959 = vrot.lane.b32.xlu0 %v6956, 127
          %v6960 = vpop.permute.xlu0 %6959
          %6961 = vrot.lane.b32.xlu0 %v6958, 127
          %v6962 = vpop.permute.xlu0 %6961
          %6963 = vrot.lane.b32.xlu0 %v6957, 127
          %v6964 = vpop.permute.xlu0 %6963
          %v6968 = vadd.f32 %v6914, %v6960
          %v6969 = vadd.f32 %v6915, %v6962
          %v6970 = vadd.f32 %v6916, %v6964
          %s6971 = sadd.s32 %s6747, 112
          %s6972 = sld [smem:[#allocation20 + %s6971]]
          %v6973 = vstv %s6972
          %v6974 = vmul.f32 %v6973, %v6744
          %v6975 = vmul.f32 %v6973, %v6745
          %v6978 = vrot.slane %v6974, 1
          %v6979 = vrot.slane %v6975, 1
          %v6980 = vsel %vm6907, %v6978, %v6979
          %6981 = vrot.lane.b32.xlu0 %v6978, 127
          %v6982 = vpop.permute.xlu0 %6981
          %6983 = vrot.lane.b32.xlu0 %v6980, 127
          %v6984 = vpop.permute.xlu0 %6983
          %6985 = vrot.lane.b32.xlu0 %v6979, 127
          %v6986 = vpop.permute.xlu0 %6985
          %v6990 = vadd.f32 %v6930, %v6982
          %v6991 = vadd.f32 %v6931, %v6984
          %v6992 = vadd.f32 %v6932, %v6986
          %s6993 = sadd.s32 %s6747, 220
          %s6994 = sld [smem:[#allocation20 + %s6993]]
          %v6995 = vstv %s6994
          %v6996 = vmul.f32 %v6995, %v6744
          %v6997 = vmul.f32 %v6995, %v6745
          %v7000 = vrot.slane %v6996, 1
          %v7001 = vrot.slane %v6997, 1
          %v7002 = vsel %vm6907, %v7000, %v7001
          %7003 = vrot.lane.b32.xlu0 %v7000, 127
          %v7004 = vpop.permute.xlu0 %7003
          %7005 = vrot.lane.b32.xlu0 %v7002, 127
          %v7006 = vpop.permute.xlu0 %7005
          %7007 = vrot.lane.b32.xlu0 %v7001, 127
          %v7008 = vpop.permute.xlu0 %7007
          %v7012 = vadd.f32 %v6946, %v7004
          %v7013 = vadd.f32 %v6947, %v7006
          %v7014 = vadd.f32 %v6948, %v7008
          %s7015 = sadd.s32 %s6747, 5
          %s7016 = sld [smem:[#allocation20 + %s7015]]
          %v7017 = vstv %s7016
          %v7018 = vmul.f32 %v7017, %v6744
          %v7019 = vmul.f32 %v7017, %v6745
          %v7022 = vrot.slane %v7018, 1
          %v7023 = vrot.slane %v7019, 1
          %v7024 = vsel %vm6907, %v7022, %v7023
          %7025 = vrot.lane.b32.xlu0 %v7022, 126
          %v7026 = vpop.permute.xlu0 %7025
          %7027 = vrot.lane.b32.xlu0 %v7024, 126
          %v7028 = vpop.permute.xlu0 %7027
          %7029 = vrot.lane.b32.xlu0 %v7023, 126
          %v7030 = vpop.permute.xlu0 %7029
          %v7034 = vadd.f32 %v6968, %v7026
          %v7035 = vadd.f32 %v6969, %v7028
          %v7036 = vadd.f32 %v6970, %v7030
          %s7037 = sadd.s32 %s6747, 113
          %s7038 = sld [smem:[#allocation20 + %s7037]]
          %v7039 = vstv %s7038
          %v7040 = vmul.f32 %v7039, %v6744
          %v7041 = vmul.f32 %v7039, %v6745
          %v7044 = vrot.slane %v7040, 1
          %v7045 = vrot.slane %v7041, 1
          %v7046 = vsel %vm6907, %v7044, %v7045
          %7047 = vrot.lane.b32.xlu0 %v7044, 126
          %v7048 = vpop.permute.xlu0 %7047
          %7049 = vrot.lane.b32.xlu0 %v7046, 126
          %v7050 = vpop.permute.xlu0 %7049
          %7051 = vrot.lane.b32.xlu0 %v7045, 126
          %v7052 = vpop.permute.xlu0 %7051
          %v7056 = vadd.f32 %v6990, %v7048
          %v7057 = vadd.f32 %v6991, %v7050
          %v7058 = vadd.f32 %v6992, %v7052
          %s7059 = sadd.s32 %s6747, 221
          %s7060 = sld [smem:[#allocation20 + %s7059]]
          %v7061 = vstv %s7060
          %v7062 = vmul.f32 %v7061, %v6744
          %v7063 = vmul.f32 %v7061, %v6745
          %v7066 = vrot.slane %v7062, 1
          %v7067 = vrot.slane %v7063, 1
          %v7068 = vsel %vm6907, %v7066, %v7067
          %7069 = vrot.lane.b32.xlu0 %v7066, 126
          %v7070 = vpop.permute.xlu0 %7069
          %7071 = vrot.lane.b32.xlu0 %v7068, 126
          %v7072 = vpop.permute.xlu0 %7071
          %7073 = vrot.lane.b32.xlu0 %v7067, 126
          %v7074 = vpop.permute.xlu0 %7073
          %v7078 = vadd.f32 %v7012, %v7070
          %v7079 = vadd.f32 %v7013, %v7072
          %v7080 = vadd.f32 %v7014, %v7074
          %s7081 = sadd.s32 %s6747, 6
          %s7082 = sld [smem:[#allocation20 + %s7081]]
          %v7083 = vstv %s7082
          %v7084 = vmul.f32 %v7083, %v6744
          %v7085 = vmul.f32 %v7083, %v6745
          %v7086 = vmul.f32 %v7083, %v6746
          %vm7090 = vcmask 1045504
          %v7091 = vrot.slane %v7084, 2
          %v7092 = vrot.slane %v7085, 2
          %v7093 = vsel %vm7090, %v7091, %v7092
          %v7094 = vrot.slane %v7086, 2
          %v7095 = vsel %vm7090, %v7092, %v7094
          %v7099 = vadd.f32 %v7034, %v7091
          %v7100 = vadd.f32 %v7035, %v7093
          %v7101 = vadd.f32 %v7036, %v7095
          %s7102 = sadd.s32 %s6747, 114
          %s7103 = sld [smem:[#allocation20 + %s7102]]
          %v7104 = vstv %s7103
          %v7105 = vmul.f32 %v7104, %v6744
          %v7106 = vmul.f32 %v7104, %v6745
          %v7107 = vmul.f32 %v7104, %v6746
          %v7111 = vrot.slane %v7105, 2
          %v7112 = vrot.slane %v7106, 2
          %v7113 = vsel %vm7090, %v7111, %v7112
          %v7114 = vrot.slane %v7107, 2
          %v7115 = vsel %vm7090, %v7112, %v7114
          %v7119 = vadd.f32 %v7056, %v7111
          %v7120 = vadd.f32 %v7057, %v7113
          %v7121 = vadd.f32 %v7058, %v7115
          %s7122 = sadd.s32 %s6747, 222
          %s7123 = sld [smem:[#allocation20 + %s7122]]
          %v7124 = vstv %s7123
          %v7125 = vmul.f32 %v7124, %v6744
          %v7126 = vmul.f32 %v7124, %v6745
          %v7127 = vmul.f32 %v7124, %v6746
          %v7131 = vrot.slane %v7125, 2
          %v7132 = vrot.slane %v7126, 2
          %v7133 = vsel %vm7090, %v7131, %v7132
          %v7134 = vrot.slane %v7127, 2
          %v7135 = vsel %vm7090, %v7132, %v7134
          %v7139 = vadd.f32 %v7078, %v7131
          %v7140 = vadd.f32 %v7079, %v7133
          %v7141 = vadd.f32 %v7080, %v7135
          %s7142 = sadd.s32 %s6747, 7
          %s7143 = sld [smem:[#allocation20 + %s7142]]
          %v7144 = vstv %s7143
          %v7145 = vmul.f32 %v7144, %v6744
          %v7146 = vmul.f32 %v7144, %v6745
          %v7147 = vmul.f32 %v7144, %v6746
          %v7151 = vrot.slane %v7145, 2
          %v7152 = vrot.slane %v7146, 2
          %v7153 = vsel %vm7090, %v7151, %v7152
          %v7154 = vrot.slane %v7147, 2
          %v7155 = vsel %vm7090, %v7152, %v7154
          %7156 = vrot.lane.b32.xlu0 %v7151, 127
          %v7157 = vpop.permute.xlu0 %7156
          %7158 = vrot.lane.b32.xlu0 %v7153, 127
          %v7159 = vpop.permute.xlu0 %7158
          %7160 = vrot.lane.b32.xlu0 %v7155, 127
          %v7161 = vpop.permute.xlu0 %7160
          %v7165 = vadd.f32 %v7099, %v7157
          %v7166 = vadd.f32 %v7100, %v7159
          %v7167 = vadd.f32 %v7101, %v7161
          %s7168 = sadd.s32 %s6747, 115
          %s7169 = sld [smem:[#allocation20 + %s7168]]
          %v7170 = vstv %s7169
          %v7171 = vmul.f32 %v7170, %v6744
          %v7172 = vmul.f32 %v7170, %v6745
          %v7173 = vmul.f32 %v7170, %v6746
          %v7177 = vrot.slane %v7171, 2
          %v7178 = vrot.slane %v7172, 2
          %v7179 = vsel %vm7090, %v7177, %v7178
          %v7180 = vrot.slane %v7173, 2
          %v7181 = vsel %vm7090, %v7178, %v7180
          %7182 = vrot.lane.b32.xlu0 %v7177, 127
          %v7183 = vpop.permute.xlu0 %7182
          %7184 = vrot.lane.b32.xlu0 %v7179, 127
          %v7185 = vpop.permute.xlu0 %7184
          %7186 = vrot.lane.b32.xlu0 %v7181, 127
          %v7187 = vpop.permute.xlu0 %7186
          %v7191 = vadd.f32 %v7119, %v7183
          %v7192 = vadd.f32 %v7120, %v7185
          %v7193 = vadd.f32 %v7121, %v7187
          %s7194 = sadd.s32 %s6747, 223
          %s7195 = sld [smem:[#allocation20 + %s7194]]
          %v7196 = vstv %s7195
          %v7197 = vmul.f32 %v7196, %v6744
          %v7198 = vmul.f32 %v7196, %v6745
          %v7199 = vmul.f32 %v7196, %v6746
          %v7203 = vrot.slane %v7197, 2
          %v7204 = vrot.slane %v7198, 2
          %v7205 = vsel %vm7090, %v7203, %v7204
          %v7206 = vrot.slane %v7199, 2
          %v7207 = vsel %vm7090, %v7204, %v7206
          %7208 = vrot.lane.b32.xlu0 %v7203, 127
          %v7209 = vpop.permute.xlu0 %7208
          %7210 = vrot.lane.b32.xlu0 %v7205, 127
          %v7211 = vpop.permute.xlu0 %7210
          %7212 = vrot.lane.b32.xlu0 %v7207, 127
          %v7213 = vpop.permute.xlu0 %7212
          %v7217 = vadd.f32 %v7139, %v7209
          %v7218 = vadd.f32 %v7140, %v7211
          %v7219 = vadd.f32 %v7141, %v7213
          %s7220 = sadd.s32 %s6747, 8
          %s7221 = sld [smem:[#allocation20 + %s7220]]
          %v7222 = vstv %s7221
          %v7223 = vmul.f32 %v7222, %v6744
          %v7224 = vmul.f32 %v7222, %v6745
          %v7225 = vmul.f32 %v7222, %v6746
          %v7229 = vrot.slane %v7223, 2
          %v7230 = vrot.slane %v7224, 2
          %v7231 = vsel %vm7090, %v7229, %v7230
          %v7232 = vrot.slane %v7225, 2
          %v7233 = vsel %vm7090, %v7230, %v7232
          %7234 = vrot.lane.b32.xlu0 %v7229, 126
          %v7235 = vpop.permute.xlu0 %7234
          %7236 = vrot.lane.b32.xlu0 %v7231, 126
          %v7237 = vpop.permute.xlu0 %7236
          %7238 = vrot.lane.b32.xlu0 %v7233, 126
          %v7239 = vpop.permute.xlu0 %7238
          %v7243 = vadd.f32 %v7165, %v7235
          %v7244 = vadd.f32 %v7166, %v7237
          %v7245 = vadd.f32 %v7167, %v7239
          %s7246 = sadd.s32 %s6747, 116
          %s7247 = sld [smem:[#allocation20 + %s7246]]
          %v7248 = vstv %s7247
          %v7249 = vmul.f32 %v7248, %v6744
          %v7250 = vmul.f32 %v7248, %v6745
          %v7251 = vmul.f32 %v7248, %v6746
          %v7255 = vrot.slane %v7249, 2
          %v7256 = vrot.slane %v7250, 2
          %v7257 = vsel %vm7090, %v7255, %v7256
          %v7258 = vrot.slane %v7251, 2
          %v7259 = vsel %vm7090, %v7256, %v7258
          %7260 = vrot.lane.b32.xlu0 %v7255, 126
          %v7261 = vpop.permute.xlu0 %7260
          %7262 = vrot.lane.b32.xlu0 %v7257, 126
          %v7263 = vpop.permute.xlu0 %7262
          %7264 = vrot.lane.b32.xlu0 %v7259, 126
          %v7265 = vpop.permute.xlu0 %7264
          %v7269 = vadd.f32 %v7191, %v7261
          %v7270 = vadd.f32 %v7192, %v7263
          %v7271 = vadd.f32 %v7193, %v7265
          %s7272 = sadd.s32 %s6747, 224
          %s7273 = sld [smem:[#allocation20 + %s7272]]
          %v7274 = vstv %s7273
          %v7275 = vmul.f32 %v7274, %v6744
          %v7276 = vmul.f32 %v7274, %v6745
          %v7277 = vmul.f32 %v7274, %v6746
          %v7281 = vrot.slane %v7275, 2
          %v7282 = vrot.slane %v7276, 2
          %v7283 = vsel %vm7090, %v7281, %v7282
          %v7284 = vrot.slane %v7277, 2
          %v7285 = vsel %vm7090, %v7282, %v7284
          %7286 = vrot.lane.b32.xlu0 %v7281, 126
          %v7287 = vpop.permute.xlu0 %7286
          %7288 = vrot.lane.b32.xlu0 %v7283, 126
          %v7289 = vpop.permute.xlu0 %7288
          %7290 = vrot.lane.b32.xlu0 %v7285, 126
          %v7291 = vpop.permute.xlu0 %7290
          %v7295 = vadd.f32 %v7217, %v7287
          %v7296 = vadd.f32 %v7218, %v7289
          %v7297 = vadd.f32 %v7219, %v7291
        $region134: #{tpu_custom_call.1} parent=63 // loop_footer
          %s6731 = sadd.s32 1, %s6727
        $region135: #{tpu_custom_call.1} parent=63 // loop_footer_branch
          %6726 = sbr.rel target = $region131
        $region136: #{tpu_custom_call.1} parent=63 // loop_exit
          _
        %v7298 = vmax.f32 %v6732, 0.0
        %v7299 = vmax.f32 %v6733, 0.0
        %v7300 = vmax.f32 %v6734, 0.0
        %v7301 = vmax.f32 %v6735, 0.0
        %v7302 = vmax.f32 %v6736, 0.0
        %v7303 = vmax.f32 %v6737, 0.0
        %v7304 = vmax.f32 %v6738, 0.0
        %v7305 = vmax.f32 %v6739, 0.0
        %v7306 = vmax.f32 %v6740, 0.0
        %v7307 = vsub.f32 %v597, 1.0
        %v7308 = vsub.f32 %v598, 1.0
        %vm7311 = vcmask 1046528
        %v7312 = vrot.slane %v7307, 1
        %v7313 = vrot.slane %v7308, 1
        %v7314 = vsel %vm7311, %v7312, %v7313
        %7315 = vrot.lane.b32.xlu0 %v7312, 2
        %v7316 = vpop.permute.xlu0 %7315
        %7317 = vrot.lane.b32.xlu0 %v7314, 2
        %v7318 = vpop.permute.xlu0 %7317
        %7319 = vrot.lane.b32.xlu0 %v7313, 2
        %v7320 = vpop.permute.xlu0 %7319
        %v7324 = vmul.f32 %v7298, %v7316
        %v7325 = vmul.f32 %v7299, %v7318
        %v7326 = vmul.f32 %v7300, %v7320
        %v7327 = vadd.f32 %v7324, 1.0
        %v7328 = vadd.f32 %v7325, 1.0
        %v7329 = vadd.f32 %v7326, 1.0
        %v7330 = vmax.f32 %v7327, 0.0
        %v7331 = vmax.f32 %v7328, 0.0
        %v7332 = vmax.f32 %v7329, 0.0
        %7336 = vrot.lane.b32.xlu0 %v7330, 126
        %v7337 = vpop.permute.xlu0 %7336
        %7338 = vrot.lane.b32.xlu0 %v7331, 126
        %v7339 = vpop.permute.xlu0 %7338
        %7340 = vrot.lane.b32.xlu0 %v7332, 126
        %v7341 = vpop.permute.xlu0 %7340
        %vm7345 = vcmask 130055
        %7346 = vst.msk [vmem:[%s520 - $0x7] sm:$0x80] %vm7345, %v7337
        %vm7347 = vcmask 130048
        %7348 = vst.msk [vmem:[%s520 + $0x1] sm:$0xff] %vm7347, %v7339
        %vm7349 = vcmask 129024
        %7350 = vst.msk [vmem:[%s520 + $0x9] sm:$0x7f] %vm7349, %v7341
        %v7351 = vsub.f32 %v600, 1.0
        %v7352 = vsub.f32 %v601, 1.0
        %v7355 = vrot.slane %v7351, 1
        %v7356 = vrot.slane %v7352, 1
        %v7357 = vsel %vm7311, %v7355, %v7356
        %7358 = vrot.lane.b32.xlu0 %v7355, 2
        %v7359 = vpop.permute.xlu0 %7358
        %7360 = vrot.lane.b32.xlu0 %v7357, 2
        %v7361 = vpop.permute.xlu0 %7360
        %7362 = vrot.lane.b32.xlu0 %v7356, 2
        %v7363 = vpop.permute.xlu0 %7362
        %v7367 = vmul.f32 %v7301, %v7359
        %v7368 = vmul.f32 %v7302, %v7361
        %v7369 = vmul.f32 %v7303, %v7363
        %v7370 = vadd.f32 %v7367, 1.0
        %v7371 = vadd.f32 %v7368, 1.0
        %v7372 = vadd.f32 %v7369, 1.0
        %v7373 = vmax.f32 %v7370, 0.0
        %v7374 = vmax.f32 %v7371, 0.0
        %v7375 = vmax.f32 %v7372, 0.0
        %7379 = vrot.lane.b32.xlu0 %v7373, 126
        %v7380 = vpop.permute.xlu0 %7379
        %7381 = vrot.lane.b32.xlu0 %v7374, 126
        %v7382 = vpop.permute.xlu0 %7381
        %7383 = vrot.lane.b32.xlu0 %v7375, 126
        %v7384 = vpop.permute.xlu0 %7383
        %s7388 = scalar_lea.vmem %s520, 16 [#allocation23]
        %7389 = vst.msk [vmem:[%s7388 - $0x7] sm:$0x80] %vm7345, %v7380
        %7390 = vst.msk [vmem:[%s7388 + $0x1] sm:$0xff] %vm7347, %v7382
        %7391 = vst.msk [vmem:[%s7388 + $0x9] sm:$0x7f] %vm7349, %v7384
        %v7392 = vsub.f32 %v603, 1.0
        %v7393 = vsub.f32 %v604, 1.0
        %v7396 = vrot.slane %v7392, 1
        %v7397 = vrot.slane %v7393, 1
        %v7398 = vsel %vm7311, %v7396, %v7397
        %7399 = vrot.lane.b32.xlu0 %v7396, 2
        %v7400 = vpop.permute.xlu0 %7399
        %7401 = vrot.lane.b32.xlu0 %v7398, 2
        %v7402 = vpop.permute.xlu0 %7401
        %7403 = vrot.lane.b32.xlu0 %v7397, 2
        %v7404 = vpop.permute.xlu0 %7403
        %v7408 = vmul.f32 %v7304, %v7400
        %v7409 = vmul.f32 %v7305, %v7402
        %v7410 = vmul.f32 %v7306, %v7404
        %v7411 = vadd.f32 %v7408, 1.0
        %v7412 = vadd.f32 %v7409, 1.0
        %v7413 = vadd.f32 %v7410, 1.0
        %v7414 = vmax.f32 %v7411, 0.0
        %v7415 = vmax.f32 %v7412, 0.0
        %v7416 = vmax.f32 %v7413, 0.0
        %7420 = vrot.lane.b32.xlu0 %v7414, 126
        %v7421 = vpop.permute.xlu0 %7420
        %7422 = vrot.lane.b32.xlu0 %v7415, 126
        %v7423 = vpop.permute.xlu0 %7422
        %7424 = vrot.lane.b32.xlu0 %v7416, 126
        %v7425 = vpop.permute.xlu0 %7424
        %s7429 = scalar_lea.vmem %s520, 32 [#allocation23]
        %7430 = vst.msk [vmem:[%s7429 - $0x7] sm:$0x80] %vm7345, %v7421
        %7431 = vst.msk [vmem:[%s7429 + $0x1] sm:$0xff] %vm7347, %v7423
        %7432 = vst.msk [vmem:[%s7429 + $0x9] sm:$0x7f] %vm7349, %v7425
        %s7433 = sand.u32 %s279, 1
        %s7434 = scalar_lea.sflag [#allocation5], %s7433
        %s7435 = sand.u32 %s279, 1
        %s7436 = smul.addr %s7435, 48
        %s7437 = scalar_lea.vmem [#allocation23], %s7436
        // Predicated region
        $region137: #{tpu_custom_call.1} parent=63 // pred_check
          %p7438 = pneg %p289
        $region138: #{tpu_custom_call.1} parent=63 // pred_check_branch
          %7440 = sbr.rel (%p7438) target = $region140
        $region139: #{tpu_custom_call.1} parent=63 // pred_region
          %s7442 = ssub.s32 768, 768
          %7443 = vsyncadd %s7434, %s7442
          %s7444 = smul.addr %s35, 6
          %s7445 = smul.addr %s7444, 128
          %s7446 = scalar_lea.hbm %s11, %s7445
          %s7447 = sshll.u32 %s7437, 4
          %s7448 = int_to_ptr.vmem [resolvable:$true] %s7447
          %7453 = dma.vmem_to_hbm [thread:$0]  %s7448, 768, %s7446, %s7434, 128, 128, 8
        $region140: #{tpu_custom_call.1} parent=63 // pred_fallthru
          _
      $region64: #{tpu_custom_call.1} parent=5 // pred_fallthru
        _
      %p7454 = scmp.le.s32.totalorder 2, %s30
      // Predicated region
      $region141: #{tpu_custom_call.1} parent=5 // pred_check
        %p7455 = pneg %p7454
      $region142: #{tpu_custom_call.1} parent=5 // pred_check_branch
        %7457 = sbr.rel (%p7455) target = $region144
      $region143: #{tpu_custom_call.1} parent=5 // pred_region
        %s7458 = ssub.s32 %s30, 2
        // Predicated region
        $region145: #{tpu_custom_call.1} parent=143 // pred_check
          %p7459 = pneg %p295
        $region146: #{tpu_custom_call.1} parent=143 // pred_check_branch
          %7461 = sbr.rel (%p7459) target = $region148
        $region147: #{tpu_custom_call.1} parent=143 // pred_region
          %s7462 = sand.u32 %s280, 1
          %s7463 = scalar_lea.sflag [#allocation5], %s7462
          %s7464 = sand.u32 %s280, 1
          %s7465 = smul.addr %s7464, 48
          %s7466 = scalar_lea.vmem [#allocation23], %s7465
          %7467 = dma.done %s7463, 768
        $region148: #{tpu_custom_call.1} parent=143 // pred_fallthru
          _
      $region144: #{tpu_custom_call.1} parent=5 // pred_fallthru
        _
    $region6: #{tpu_custom_call.1} parent=1 // loop_footer
      %s34 = sadd.s32 1, %s30
    $region7: #{tpu_custom_call.1} parent=1 // loop_footer_branch
      %29 = sbr.rel target = $region3
    $region8: #{tpu_custom_call.1} parent=1 // loop_exit
      _
    %7468 = vsyncpa [#allocation4], 1
    %s7469 = scalar_lea.sflag [#allocation4], 1
    %7470 = vsyncpa %s7469, 1
    %7471 = vsyncpa [#allocation5], 1
    %s7472 = scalar_lea.sflag [#allocation5], 1
    %7473 = vsyncpa %s7472, 1
    %7474 = vsyncpa [#allocation6], 1
    %s7475 = scalar_lea.sflag [#allocation6], 1
    %7476 = vsyncpa %s7475, 1
    %7477 = vsyncpa [#allocation10], 1
    %7478 = vsyncpa [#allocation13], 1
    %7479 = vsyncpa [#allocation19], 1
    %7480 = vsyncpa [#allocation7], 1
    %s7481 = scalar_lea.sflag [#allocation7], 1
    %7482 = vsyncpa %s7481, 1
    %7483 = vsyncpa [#allocation17], 1
    %7484 = vsyncpa [#allocation22], 1

</llo_original>
